<compile_context>
chip_gen: v6e
topology: v6e:2x2x1
jax: 0.10.0
libtpu: 0.0.40
codegen_flags: <defaults>
</compile_context>

<pallas_src>
import functools
import math

import jax
import jax.numpy as jnp
from jax.experimental import pallas as pl
from jax.experimental.pallas import tpu as pltpu


# ----------------------------------------------------------------------------- #
# Kernel: one grid step == one row-block of SB samples (M = SB * n_regions rows) #
# ----------------------------------------------------------------------------- #
def _layernorm(x, g, b, eps=1e-5):
    m = jnp.mean(x, axis=-1, keepdims=True)
    v = jnp.mean(jnp.square(x - m), axis=-1, keepdims=True)
    return (x - m) * jax.lax.rsqrt(v + eps) * g + b


def _encoder_kernel(img_ref, pos_ref, qseg_ref, kseg_ref, wrow_ref,
                    cat_w, cat_b, m2_w, m2_b, pos_w, pos_b,
                    ln1_g, ln1_b, in_w, in_b, out_w, out_b,
                    ln2_g, ln2_b, fc_w, fc_b, fc2_w, fc2_b,
                    o_ref, attn_scr, *, nheads, n_regions, samples):
    f32 = jnp.float32
    bf16 = jnp.bfloat16
    E = out_w.shape[0]
    hd = E // nheads

    # ---- feat = self.linear(img) ; hid = ReLU(BN(Linear_2048x512(img)))  (fused weights)
    x = img_ref[...]                                              # (M, 2048) bf16
    cat = jnp.dot(x, cat_w[...], preferred_element_type=f32) + cat_b[...]
    feat = cat[:, :E]                                             # (M, E)
    hid = jnp.maximum(cat[:, E:], 0.0)                            # (M, 512)
    feat = feat + (jnp.dot(hid.astype(bf16), m2_w[...],
                           preferred_element_type=f32) + m2_b[...])

    # ---- positional projection (dropout_pos is identity in eval mode)
    pos = jnp.dot(pos_ref[...], pos_w[...], preferred_element_type=f32) + pos_b[...]

    # ---- res = lnorm(feat + pos)
    res = _layernorm(feat + pos, ln1_g[...], ln1_b[...])

    # ---- multi-head self-attention: one fused lane-dense QKV matmul
    qkv = jnp.dot(res.astype(bf16), in_w[...], preferred_element_type=f32) + in_b[...]
    scale = 1.0 / math.sqrt(hd)
    q = (qkv[:, :E] * scale).astype(bf16)
    k = qkv[:, E:2 * E].astype(bf16)
    v = qkv[:, 2 * E:].astype(bf16)

    # block-diagonal (same sample) + key-padding mask, shared across all heads
    bias = jnp.where(qseg_ref[0] == kseg_ref[0], 0.0, -1e9).astype(f32)   # (M, M)

    # per-head scores/softmax/PV; head outputs land in their lane slice of a VMEM
    # scratch so a single (M,E)@(E,E) out-projection matmul follows.
    for h in range(nheads):
        lo, hi = h * hd, (h + 1) * hd
        s = jnp.einsum('qd,kd->qk', q[:, lo:hi], k[:, lo:hi],
                       preferred_element_type=f32) + bias
        s = s - jnp.max(s, axis=-1, keepdims=True)
        p = jnp.exp(s)
        p = p / jnp.sum(p, axis=-1, keepdims=True)
        attn_scr[:, lo:hi] = jnp.dot(p.astype(bf16), v[:, lo:hi],
                                     preferred_element_type=f32)
    attn = jnp.dot(attn_scr[...].astype(bf16), out_w[...],
                   preferred_element_type=f32) + out_b[...]
    feat = feat + attn

    # ---- res = fc2(relu(fc(lnorm2(feat)))); feat = feat + res
    r = _layernorm(feat, ln2_g[...], ln2_b[...])
    r = jnp.maximum(jnp.dot(r.astype(bf16), fc_w[...],
                            preferred_element_type=f32) + fc_b[...], 0.0)
    r = jnp.dot(r.astype(bf16), fc2_w[...], preferred_element_type=f32) + fc2_b[...]
    feat = feat + r

    # TODO(synk): GPO(32,32) (bi-GRU scores + per-dim sorted weighted pooling) is an
    #             external class not defined in the reference module; using a
    #             length-masked mean over valid regions instead.
    masked = feat * wrow_ref[0]                                   # (M, E) * (M, 1): 1/len or 0
    for s_idx in range(samples):
        rows = masked[s_idx * n_regions:(s_idx + 1) * n_regions, :]
        o_ref[s_idx] = jnp.sum(rows, axis=0, keepdims=True).astype(o_ref.dtype)


# ----------------------------------------------------------------------------- #
# Wrapper                                                                        #
# ----------------------------------------------------------------------------- #
_PARAM_ORDER = ("cat_w", "cat_b", "mlp_w2", "mlp_b2", "pos_w", "pos_b",
                "ln1_g", "ln1_b", "in_w", "in_b", "out_w", "out_b",
                "ln2_g", "ln2_b", "fc_w", "fc_b", "fc2_w", "fc2_b")


@functools.partial(jax.jit, static_argnames=("nheads",))
def image_encoder_forward(params, img, pos_embeds, img_length, img_padding_mask,
                          nheads=16):
    bs, n, in_dim = img.shape
    pos_dim = pos_embeds.shape[-1]
    E = params["ln1_g"].shape[-1]

    # Samples-per-block: pack rows so each grid step feeds up to ~256 MXU rows
    # (M = sb * n), preferring blocks whose row count is a multiple of 8.
    sb = bs
    for cand in range(bs, 0, -1):
        if bs % cand == 0 and cand * n <= 256 and (cand * n) % 8 == 0:
            sb = cand
            break
    nblk = bs // sb
    M = sb * n

    # bf16 input stream (f32 accumulation stays inside the kernel).
    imgf = img.astype(jnp.bfloat16).reshape(bs * n, in_dim)
    posf = pos_embeds.astype(jnp.bfloat16).reshape(bs * n, pos_dim)

    valid = (~img_padding_mask).astype(jnp.float32)               # (bs, n): 1 valid, 0 pad
    lens = jnp.maximum(img_length.astype(jnp.float32), 1.0).reshape(bs, 1)
    wrow = (valid / lens).reshape(nblk, M, 1)                     # per-row pooling weight
    seg = jnp.broadcast_to(jnp.arange(bs, dtype=jnp.int32)[:, None], (bs, n))
    qseg = seg.reshape(nblk, M, 1)                                # row -> sample id
    kseg = jnp.where(valid > 0.5, seg, -1).reshape(nblk, 1, M)    # col -> sample id or -1

    pvals = [params[k] for k in _PARAM_ORDER]

    def full_spec(arr):
        nd = arr.ndim
        return pl.BlockSpec(arr.shape, lambda b, _nd=nd: (0,) * _nd)

    in_specs = [
        pl.BlockSpec((M, in_dim), lambda b: (b, 0)),
        pl.BlockSpec((M, pos_dim), lambda b: (b, 0)),
        pl.BlockSpec((1, M, 1), lambda b: (b, 0, 0)),
        pl.BlockSpec((1, 1, M), lambda b: (b, 0, 0)),
        pl.BlockSpec((1, M, 1), lambda b: (b, 0, 0)),
    ] + [full_spec(v) for v in pvals]

    out = pl.pallas_call(
        functools.partial(_encoder_kernel, nheads=nheads, n_regions=n, samples=sb),
        out_shape=jax.ShapeDtypeStruct((bs, 1, E), jnp.float32),
        grid_spec=pltpu.PrefetchScalarGridSpec(
            num_scalar_prefetch=0,
            grid=(nblk,),
            in_specs=in_specs,
            out_specs=pl.BlockSpec((sb, 1, E), lambda b: (b, 0, 0)),
            scratch_shapes=[pltpu.VMEM((M, E), jnp.float32)],     # per-head attn lane slices
        ),
        compiler_params=pltpu.CompilerParams(
            dimension_semantics=("parallel",),                    # row-blocks are independent
            # ~4 MiB bf16 weights x2 (default double buffering) + input/activation blocks;
            # 48 MiB is safe on v7x (64 MiB physical) and leaves headroom on v5e/v6e.
            vmem_limit_bytes=48 * 1024 * 1024,
        ),
    )(imgf, posf, qseg, kseg, wrow, *pvals)
    return out.reshape(bs, E)


# ----------------------------------------------------------------------------- #
# Parameter construction (deterministic, synthetic) — bf16 weights, f32 biases   #
# ----------------------------------------------------------------------------- #
def init_params(key, in_dim=2048, embed_dim=256, pos_dim=16, mlp_hidden=512, nheads=16):
    keys = jax.random.split(key, 16)
    wdt = jnp.bfloat16

    def w(k, shape):
        return (0.02 * jax.random.normal(k, shape)).astype(jnp.float32)

    p = {}
    # self.linear = nn.Linear(2048, E)
    linear_w = w(keys[0], (in_dim, embed_dim))
    linear_b = w(keys[1], (embed_dim,))
    # self.mlp = Linear(2048,512) -> BatchNorm1d(512) -> ReLU -> Linear(512,E)
    mlp_w1 = w(keys[2], (in_dim, mlp_hidden))
    mlp_b1 = w(keys[3], (mlp_hidden,))
    bn_w = jnp.ones((mlp_hidden,), jnp.float32)
    bn_b = jnp.zeros((mlp_hidden,), jnp.float32)
    bn_rm = jnp.zeros((mlp_hidden,), jnp.float32)
    bn_rv = jnp.ones((mlp_hidden,), jnp.float32)
    bn_scale = bn_w / jnp.sqrt(bn_rv + 1e-5)
    bn_shift = bn_b - bn_rm * bn_scale
    mlp_w1_eff = mlp_w1 * bn_scale[None, :]               # BN folded (eval mode, exact)
    mlp_b1_eff = mlp_b1 * bn_scale + bn_shift
    # Fused [linear | mlp-layer-1] projection (shared LHS)
    p["cat_w"] = jnp.concatenate([linear_w, mlp_w1_eff], axis=1).astype(wdt)   # (2048, E+512)
    p["cat_b"] = jnp.concatenate([linear_b, mlp_b1_eff]).reshape(1, -1)        # (1, E+512)
    p["mlp_w2"] = w(keys[4], (mlp_hidden, embed_dim)).astype(wdt)
    p["mlp_b2"] = w(keys[5], (embed_dim,)).reshape(1, -1)
    # self.pos_linear
    p["pos_w"] = w(keys[6], (pos_dim, embed_dim)).astype(wdt)
    p["pos_b"] = w(keys[7], (embed_dim,)).reshape(1, -1)
    # LayerNorms (default init)
    p["ln1_g"] = jnp.ones((1, embed_dim), jnp.float32)
    p["ln1_b"] = jnp.zeros((1, embed_dim), jnp.float32)
    p["ln2_g"] = jnp.ones((1, embed_dim), jnp.float32)
    p["ln2_b"] = jnp.zeros((1, embed_dim), jnp.float32)
    # nn.MultiheadAttention(E, 16): in_proj applied as x @ W (store transposed, lane-dense),
    # out_proj stored as (E, E) applied as concat(heads) @ W.
    # (Real PyTorch checkpoints: transpose in_proj_weight (3E,E) / out_proj.weight (E,E).)
    p["in_w"] = w(keys[8], (embed_dim, 3 * embed_dim)).astype(wdt)   # (E, 3E)
    p["in_b"] = w(keys[9], (3 * embed_dim,)).reshape(1, -1)          # (1, 3E)
    p["out_w"] = w(keys[10], (embed_dim, embed_dim)).astype(wdt)     # (E, E)
    p["out_b"] = w(keys[11], (embed_dim,)).reshape(1, -1)
    # self.fc / self.fc2
    p["fc_w"] = w(keys[12], (embed_dim, embed_dim)).astype(wdt)
    p["fc_b"] = w(keys[13], (embed_dim,)).reshape(1, -1)
    p["fc2_w"] = w(keys[14], (embed_dim, embed_dim)).astype(wdt)
    p["fc2_b"] = w(keys[15], (embed_dim,)).reshape(1, -1)
    return p


# ----------------------------------------------------------------------------- #
if __name__ == "__main__":
    BS, N_REGIONS, IN_DIM, POS_DIM, EMBED_DIM, NHEADS = 2, 8, 2048, 16, 256, 16

    root = jax.random.PRNGKey(0)
    k_params, k_img, k_pos = jax.random.split(root, 3)

    params = init_params(k_params, in_dim=IN_DIM, embed_dim=EMBED_DIM,
                         pos_dim=POS_DIM, nheads=NHEADS)

    img = jax.random.normal(k_img, (BS, N_REGIONS, IN_DIM), jnp.float32)
    img_pos_embeds = jax.random.normal(k_pos, (BS, N_REGIONS, POS_DIM), jnp.float32)
    img_length = jnp.array([N_REGIONS, 5], dtype=jnp.int32)
    # PyTorch key_padding_mask convention: True = padded position
    img_padding_mask = jnp.arange(N_REGIONS)[None, :] >= img_length[:, None]

    out = image_encoder_forward(params, img, img_pos_embeds,
                                img_length, img_padding_mask, nheads=NHEADS)
    jax.block_until_ready(out)
    assert out.shape == (BS, EMBED_DIM)
    assert bool(jnp.all(jnp.isfinite(out)))
    print("KERNEL_OK")
</pallas_src>

<mosaic_0001>
module attributes {stable_mosaic.version = 11 : i64} {
  func.func @_encoder_kernel(%arg0: i32, %arg1: memref<16x2048xbf16, #tpu.memory_space<vmem>>, %arg2: memref<16x16xbf16, #tpu.memory_space<vmem>>, %arg3: memref<1x16x1xi32, #tpu.memory_space<vmem>>, %arg4: memref<1x1x16xi32, #tpu.memory_space<vmem>>, %arg5: memref<1x16x1xf32, #tpu.memory_space<vmem>>, %arg6: memref<2048x768xbf16, #tpu.memory_space<vmem>>, %arg7: memref<1x768xf32, #tpu.memory_space<vmem>>, %arg8: memref<512x256xbf16, #tpu.memory_space<vmem>>, %arg9: memref<1x256xf32, #tpu.memory_space<vmem>>, %arg10: memref<16x256xbf16, #tpu.memory_space<vmem>>, %arg11: memref<1x256xf32, #tpu.memory_space<vmem>>, %arg12: memref<1x256xf32, #tpu.memory_space<vmem>>, %arg13: memref<1x256xf32, #tpu.memory_space<vmem>>, %arg14: memref<256x768xbf16, #tpu.memory_space<vmem>>, %arg15: memref<1x768xf32, #tpu.memory_space<vmem>>, %arg16: memref<256x256xbf16, #tpu.memory_space<vmem>>, %arg17: memref<1x256xf32, #tpu.memory_space<vmem>>, %arg18: memref<1x256xf32, #tpu.memory_space<vmem>>, %arg19: memref<1x256xf32, #tpu.memory_space<vmem>>, %arg20: memref<256x256xbf16, #tpu.memory_space<vmem>>, %arg21: memref<1x256xf32, #tpu.memory_space<vmem>>, %arg22: memref<256x256xbf16, #tpu.memory_space<vmem>>, %arg23: memref<1x256xf32, #tpu.memory_space<vmem>>, %arg24: memref<2x1x256xf32, #tpu.memory_space<vmem>>, %arg25: memref<16x256xf32, #tpu.memory_space<vmem>>) attributes {dimension_semantics = [#tpu.dimension_semantics<parallel>], iteration_bounds = array<i64: 1>, scalar_prefetch = 0 : i64, scratch_operands = 1 : i64, tpu.core_type = #tpu.core_type<tc>, window_params = [{transform_indices = @transform_0, window_bounds = array<i64: 16, 2048>}, {transform_indices = @transform_1, window_bounds = array<i64: 16, 16>}, {transform_indices = @transform_2, window_bounds = array<i64: 1, 16, 1>}, {transform_indices = @transform_3, window_bounds = array<i64: 1, 1, 16>}, {transform_indices = @transform_4, window_bounds = array<i64: 1, 16, 1>}, {pipeline_mode = #tpu.pipeline_mode<synchronous>, transform_indices = @transform_5, window_bounds = array<i64: 2048, 768>}, {pipeline_mode = #tpu.pipeline_mode<synchronous>, transform_indices = @transform_6, window_bounds = array<i64: 1, 768>}, {pipeline_mode = #tpu.pipeline_mode<synchronous>, transform_indices = @transform_7, window_bounds = array<i64: 512, 256>}, {pipeline_mode = #tpu.pipeline_mode<synchronous>, transform_indices = @transform_8, window_bounds = array<i64: 1, 256>}, {pipeline_mode = #tpu.pipeline_mode<synchronous>, transform_indices = @transform_9, window_bounds = array<i64: 16, 256>}, {pipeline_mode = #tpu.pipeline_mode<synchronous>, transform_indices = @transform_10, window_bounds = array<i64: 1, 256>}, {pipeline_mode = #tpu.pipeline_mode<synchronous>, transform_indices = @transform_11, window_bounds = array<i64: 1, 256>}, {pipeline_mode = #tpu.pipeline_mode<synchronous>, transform_indices = @transform_12, window_bounds = array<i64: 1, 256>}, {pipeline_mode = #tpu.pipeline_mode<synchronous>, transform_indices = @transform_13, window_bounds = array<i64: 256, 768>}, {pipeline_mode = #tpu.pipeline_mode<synchronous>, transform_indices = @transform_14, window_bounds = array<i64: 1, 768>}, {pipeline_mode = #tpu.pipeline_mode<synchronous>, transform_indices = @transform_15, window_bounds = array<i64: 256, 256>}, {pipeline_mode = #tpu.pipeline_mode<synchronous>, transform_indices = @transform_16, window_bounds = array<i64: 1, 256>}, {pipeline_mode = #tpu.pipeline_mode<synchronous>, transform_indices = @transform_17, window_bounds = array<i64: 1, 256>}, {pipeline_mode = #tpu.pipeline_mode<synchronous>, transform_indices = @transform_18, window_bounds = array<i64: 1, 256>}, {pipeline_mode = #tpu.pipeline_mode<synchronous>, transform_indices = @transform_19, window_bounds = array<i64: 256, 256>}, {pipeline_mode = #tpu.pipeline_mode<synchronous>, transform_indices = @transform_20, window_bounds = array<i64: 1, 256>}, {pipeline_mode = #tpu.pipeline_mode<synchronous>, transform_indices = @transform_21, window_bounds = array<i64: 256, 256>}, {pipeline_mode = #tpu.pipeline_mode<synchronous>, transform_indices = @transform_22, window_bounds = array<i64: 1, 256>}, {transform_indices = @transform_23, window_bounds = array<i64: 2, 1, 256>}]} {
    %c0 = arith.constant 0 : index
    %c0_0 = arith.constant 0 : index
    %0 = vector.load %arg1[%c0, %c0_0] : memref<16x2048xbf16, #tpu.memory_space<vmem>>, vector<16x2048xbf16>
    %c0_1 = arith.constant 0 : index
    %c0_2 = arith.constant 0 : index
    %1 = vector.load %arg6[%c0_1, %c0_2] : memref<2048x768xbf16, #tpu.memory_space<vmem>>, vector<2048x768xbf16>
    %cst = arith.constant dense<0.000000e+00> : vector<16x768xf32>
    %2 = tpu.matmul %0, %1, %cst {dimension_numbers = #tpu.dot_dimension_numbers<[1], [0], [0], [1], [0, 0, 1, 1], [], []>} : vector<16x2048xbf16>, vector<2048x768xbf16>, vector<16x768xf32> -> vector<16x768xf32>
    %c0_3 = arith.constant 0 : index
    %c0_4 = arith.constant 0 : index
    %3 = vector.load %arg7[%c0_3, %c0_4] : memref<1x768xf32, #tpu.memory_space<vmem>>, vector<1x768xf32>
    %4 = vector.broadcast %3 : vector<1x768xf32> to vector<16x768xf32>
    %5 = arith.addf %2, %4 : vector<16x768xf32>
    %6 = vector.extract_strided_slice %5 {offsets = [0, 0], sizes = [16, 256], strides = [1, 1]} : vector<16x768xf32> to vector<16x256xf32>
    %7 = vector.extract_strided_slice %5 {offsets = [0, 256], sizes = [16, 512], strides = [1, 1]} : vector<16x768xf32> to vector<16x512xf32>
    %cst_5 = arith.constant 0.000000e+00 : f32
    %8 = vector.broadcast %cst_5 : f32 to vector<16x512xf32>
    %9 = arith.maximumf %7, %8 : vector<16x512xf32>
    %10 = arith.truncf %9 : vector<16x512xf32> to vector<16x512xbf16>
    %c0_6 = arith.constant 0 : index
    %c0_7 = arith.constant 0 : index
    %11 = vector.load %arg8[%c0_6, %c0_7] : memref<512x256xbf16, #tpu.memory_space<vmem>>, vector<512x256xbf16>
    %cst_8 = arith.constant dense<0.000000e+00> : vector<16x256xf32>
    %12 = tpu.matmul %10, %11, %cst_8 {dimension_numbers = #tpu.dot_dimension_numbers<[1], [0], [0], [1], [0, 0, 1, 1], [], []>} : vector<16x512xbf16>, vector<512x256xbf16>, vector<16x256xf32> -> vector<16x256xf32>
    %c0_9 = arith.constant 0 : index
    %c0_10 = arith.constant 0 : index
    %13 = vector.load %arg9[%c0_9, %c0_10] : memref<1x256xf32, #tpu.memory_space<vmem>>, vector<1x256xf32>
    %14 = vector.broadcast %13 : vector<1x256xf32> to vector<16x256xf32>
    %15 = arith.addf %12, %14 : vector<16x256xf32>
    %16 = arith.addf %6, %15 : vector<16x256xf32>
    %c0_11 = arith.constant 0 : index
    %c0_12 = arith.constant 0 : index
    %17 = vector.load %arg2[%c0_11, %c0_12] : memref<16x16xbf16, #tpu.memory_space<vmem>>, vector<16x16xbf16>
    %c0_13 = arith.constant 0 : index
    %c0_14 = arith.constant 0 : index
    %18 = vector.load %arg10[%c0_13, %c0_14] : memref<16x256xbf16, #tpu.memory_space<vmem>>, vector<16x256xbf16>
    %cst_15 = arith.constant dense<0.000000e+00> : vector<16x256xf32>
    %19 = tpu.matmul %17, %18, %cst_15 {dimension_numbers = #tpu.dot_dimension_numbers<[1], [0], [0], [1], [0, 0, 1, 1], [], []>} : vector<16x16xbf16>, vector<16x256xbf16>, vector<16x256xf32> -> vector<16x256xf32>
    %c0_16 = arith.constant 0 : index
    %c0_17 = arith.constant 0 : index
    %20 = vector.load %arg11[%c0_16, %c0_17] : memref<1x256xf32, #tpu.memory_space<vmem>>, vector<1x256xf32>
    %21 = vector.broadcast %20 : vector<1x256xf32> to vector<16x256xf32>
    %22 = arith.addf %19, %21 : vector<16x256xf32>
    %23 = arith.addf %16, %22 : vector<16x256xf32>
    %c0_18 = arith.constant 0 : index
    %c0_19 = arith.constant 0 : index
    %24 = vector.load %arg12[%c0_18, %c0_19] : memref<1x256xf32, #tpu.memory_space<vmem>>, vector<1x256xf32>
    %c0_20 = arith.constant 0 : index
    %c0_21 = arith.constant 0 : index
    %25 = vector.load %arg13[%c0_20, %c0_21] : memref<1x256xf32, #tpu.memory_space<vmem>>, vector<1x256xf32>
    %cst_22 = arith.constant dense<0.000000e+00> : vector<16xf32>
    %26 = vector.multi_reduction <add>, %23, %cst_22 [1] : vector<16x256xf32> to vector<16xf32>
    %27 = vector.shape_cast %26 : vector<16xf32> to vector<16x1xf32>
    %cst_23 = arith.constant 2.560000e+02 : f32
    %28 = vector.broadcast %cst_23 : f32 to vector<16x1xf32>
    %29 = arith.divf %27, %28 : vector<16x1xf32>
    %30 = vector.broadcast %29 : vector<16x1xf32> to vector<16x256xf32>
    %31 = arith.subf %23, %30 : vector<16x256xf32>
    %32 = arith.mulf %31, %31 : vector<16x256xf32>
    %cst_24 = arith.constant dense<0.000000e+00> : vector<16xf32>
    %33 = vector.multi_reduction <add>, %32, %cst_24 [1] : vector<16x256xf32> to vector<16xf32>
    %34 = vector.shape_cast %33 : vector<16xf32> to vector<16x1xf32>
    %cst_25 = arith.constant 2.560000e+02 : f32
    %35 = vector.broadcast %cst_25 : f32 to vector<16x1xf32>
    %36 = arith.divf %34, %35 : vector<16x1xf32>
    %37 = vector.broadcast %29 : vector<16x1xf32> to vector<16x256xf32>
    %38 = arith.subf %23, %37 : vector<16x256xf32>
    %cst_26 = arith.constant 9.99999974E-6 : f32
    %39 = vector.broadcast %cst_26 : f32 to vector<16x1xf32>
    %40 = arith.addf %36, %39 : vector<16x1xf32>
    %41 = math.rsqrt %40 : vector<16x1xf32>
    %42 = vector.broadcast %41 : vector<16x1xf32> to vector<16x256xf32>
    %43 = arith.mulf %38, %42 : vector<16x256xf32>
    %44 = vector.broadcast %24 : vector<1x256xf32> to vector<16x256xf32>
    %45 = arith.mulf %43, %44 : vector<16x256xf32>
    %46 = vector.broadcast %25 : vector<1x256xf32> to vector<16x256xf32>
    %47 = arith.addf %45, %46 : vector<16x256xf32>
    %48 = arith.truncf %47 : vector<16x256xf32> to vector<16x256xbf16>
    %c0_27 = arith.constant 0 : index
    %c0_28 = arith.constant 0 : index
    %49 = vector.load %arg14[%c0_27, %c0_28] : memref<256x768xbf16, #tpu.memory_space<vmem>>, vector<256x768xbf16>
    %cst_29 = arith.constant dense<0.000000e+00> : vector<16x768xf32>
    %50 = tpu.matmul %48, %49, %cst_29 {dimension_numbers = #tpu.dot_dimension_numbers<[1], [0], [0], [1], [0, 0, 1, 1], [], []>} : vector<16x256xbf16>, vector<256x768xbf16>, vector<16x768xf32> -> vector<16x768xf32>
    %c0_30 = arith.constant 0 : index
    %c0_31 = arith.constant 0 : index
    %51 = vector.load %arg15[%c0_30, %c0_31] : memref<1x768xf32, #tpu.memory_space<vmem>>, vector<1x768xf32>
    %52 = vector.broadcast %51 : vector<1x768xf32> to vector<16x768xf32>
    %53 = arith.addf %50, %52 : vector<16x768xf32>
    %54 = vector.extract_strided_slice %53 {offsets = [0, 0], sizes = [16, 256], strides = [1, 1]} : vector<16x768xf32> to vector<16x256xf32>
    %cst_32 = arith.constant 2.500000e-01 : f32
    %55 = vector.broadcast %cst_32 : f32 to vector<16x256xf32>
    %56 = arith.mulf %54, %55 : vector<16x256xf32>
    %57 = arith.truncf %56 : vector<16x256xf32> to vector<16x256xbf16>
    %58 = vector.extract_strided_slice %53 {offsets = [0, 256], sizes = [16, 256], strides = [1, 1]} : vector<16x768xf32> to vector<16x256xf32>
    %59 = arith.truncf %58 : vector<16x256xf32> to vector<16x256xbf16>
    %60 = vector.extract_strided_slice %53 {offsets = [0, 512], sizes = [16, 256], strides = [1, 1]} : vector<16x768xf32> to vector<16x256xf32>
    %61 = arith.truncf %60 : vector<16x256xf32> to vector<16x256xbf16>
    %c0_33 = arith.constant 0 : index
    %c0_34 = arith.constant 0 : index
    %c0_35 = arith.constant 0 : index
    %62 = vector.load %arg3[%c0_33, %c0_34, %c0_35] : memref<1x16x1xi32, #tpu.memory_space<vmem>>, vector<1x16x1xi32>
    %63 = vector.shape_cast %62 : vector<1x16x1xi32> to vector<16x1xi32>
    %c0_36 = arith.constant 0 : index
    %c0_37 = arith.constant 0 : index
    %c0_38 = arith.constant 0 : index
    %64 = vector.load %arg4[%c0_36, %c0_37, %c0_38] : memref<1x1x16xi32, #tpu.memory_space<vmem>>, vector<1x1x16xi32>
    %65 = vector.shape_cast %64 : vector<1x1x16xi32> to vector<1x16xi32>
    %66 = vector.broadcast %63 : vector<16x1xi32> to vector<16x16xi32>
    %67 = vector.broadcast %65 : vector<1x16xi32> to vector<16x16xi32>
    %68 = arith.cmpi eq, %66, %67 : vector<16x16xi32>
    %cst_39 = arith.constant 0.000000e+00 : f32
    %cst_40 = arith.constant -1.000000e+09 : f32
    %69 = vector.broadcast %cst_39 : f32 to vector<16x16xf32>
    %70 = vector.broadcast %cst_40 : f32 to vector<16x16xf32>
    %71 = arith.select %68, %69, %70 : vector<16x16xi1>, vector<16x16xf32>
    %72 = vector.extract_strided_slice %57 {offsets = [0, 0], sizes = [16, 16], strides = [1, 1]} : vector<16x256xbf16> to vector<16x16xbf16>
    %73 = vector.extract_strided_slice %59 {offsets = [0, 0], sizes = [16, 16], strides = [1, 1]} : vector<16x256xbf16> to vector<16x16xbf16>
    "tpu.trace_start"() <{level = 10 : i32, message = "qd,kd->qk"}> : () -> ()
    %cst_41 = arith.constant dense<0.000000e+00> : vector<16x16xf32>
    %74 = tpu.matmul %72, %73, %cst_41 {dimension_numbers = #tpu.dot_dimension_numbers<[1], [1], [0], [0], [0, 0, 1, 0], [], []>} : vector<16x16xbf16>, vector<16x16xbf16>, vector<16x16xf32> -> vector<16x16xf32>
    "tpu.trace_stop"() : () -> ()
    %75 = arith.addf %74, %71 : vector<16x16xf32>
    %cst_42 = arith.constant dense<0xFF800000> : vector<16xf32>
    %76 = vector.multi_reduction <maximumf>, %75, %cst_42 [1] : vector<16x16xf32> to vector<16xf32>
    %77 = vector.shape_cast %76 : vector<16xf32> to vector<16x1xf32>
    %78 = vector.broadcast %77 : vector<16x1xf32> to vector<16x16xf32>
    %79 = arith.subf %75, %78 : vector<16x16xf32>
    %80 = math.exp %79 : vector<16x16xf32>
    %cst_43 = arith.constant dense<0.000000e+00> : vector<16xf32>
    %81 = vector.multi_reduction <add>, %80, %cst_43 [1] : vector<16x16xf32> to vector<16xf32>
    %82 = vector.shape_cast %81 : vector<16xf32> to vector<16x1xf32>
    %83 = vector.broadcast %82 : vector<16x1xf32> to vector<16x16xf32>
    %84 = arith.divf %80, %83 : vector<16x16xf32>
    %85 = arith.truncf %84 : vector<16x16xf32> to vector<16x16xbf16>
    %86 = vector.extract_strided_slice %61 {offsets = [0, 0], sizes = [16, 16], strides = [1, 1]} : vector<16x256xbf16> to vector<16x16xbf16>
    %cst_44 = arith.constant dense<0.000000e+00> : vector<16x16xf32>
    %87 = tpu.matmul %85, %86, %cst_44 {dimension_numbers = #tpu.dot_dimension_numbers<[1], [0], [0], [1], [0, 0, 1, 1], [], []>} : vector<16x16xbf16>, vector<16x16xbf16>, vector<16x16xf32> -> vector<16x16xf32>
    %c0_45 = arith.constant 0 : index
    %c0_46 = arith.constant 0 : index
    %88 = vector.load %arg25[%c0_45, %c0_46] : memref<16x256xf32, #tpu.memory_space<vmem>>, vector<16x16xf32>
    tpu.vector_store %arg25[%c0_45, %c0_46], %87 {strides = array<i32>} : memref<16x256xf32, #tpu.memory_space<vmem>>, vector<16x16xf32>,
    %89 = vector.extract_strided_slice %57 {offsets = [0, 16], sizes = [16, 16], strides = [1, 1]} : vector<16x256xbf16> to vector<16x16xbf16>
    %90 = vector.extract_strided_slice %59 {offsets = [0, 16], sizes = [16, 16], strides = [1, 1]} : vector<16x256xbf16> to vector<16x16xbf16>
    "tpu.trace_start"() <{level = 10 : i32, message = "qd,kd->qk"}> : () -> ()
    %cst_47 = arith.constant dense<0.000000e+00> : vector<16x16xf32>
    %91 = tpu.matmul %89, %90, %cst_47 {dimension_numbers = #tpu.dot_dimension_numbers<[1], [1], [0], [0], [0, 0, 1, 0], [], []>} : vector<16x16xbf16>, vector<16x16xbf16>, vector<16x16xf32> -> vector<16x16xf32>
    "tpu.trace_stop"() : () -> ()
    %92 = arith.addf %91, %71 : vector<16x16xf32>
    %cst_48 = arith.constant dense<0xFF800000> : vector<16xf32>
    %93 = vector.multi_reduction <maximumf>, %92, %cst_48 [1] : vector<16x16xf32> to vector<16xf32>
    %94 = vector.shape_cast %93 : vector<16xf32> to vector<16x1xf32>
    %95 = vector.broadcast %94 : vector<16x1xf32> to vector<16x16xf32>
    %96 = arith.subf %92, %95 : vector<16x16xf32>
    %97 = math.exp %96 : vector<16x16xf32>
    %cst_49 = arith.constant dense<0.000000e+00> : vector<16xf32>
    %98 = vector.multi_reduction <add>, %97, %cst_49 [1] : vector<16x16xf32> to vector<16xf32>
    %99 = vector.shape_cast %98 : vector<16xf32> to vector<16x1xf32>
    %100 = vector.broadcast %99 : vector<16x1xf32> to vector<16x16xf32>
    %101 = arith.divf %97, %100 : vector<16x16xf32>
    %102 = arith.truncf %101 : vector<16x16xf32> to vector<16x16xbf16>
    %103 = vector.extract_strided_slice %61 {offsets = [0, 16], sizes = [16, 16], strides = [1, 1]} : vector<16x256xbf16> to vector<16x16xbf16>
    %cst_50 = arith.constant dense<0.000000e+00> : vector<16x16xf32>
    %104 = tpu.matmul %102, %103, %cst_50 {dimension_numbers = #tpu.dot_dimension_numbers<[1], [0], [0], [1], [0, 0, 1, 1], [], []>} : vector<16x16xbf16>, vector<16x16xbf16>, vector<16x16xf32> -> vector<16x16xf32>
    %c0_51 = arith.constant 0 : index
    %c16 = arith.constant 16 : index
    %105 = vector.load %arg25[%c0_51, %c16] : memref<16x256xf32, #tpu.memory_space<vmem>>, vector<16x16xf32>
    tpu.vector_store %arg25[%c0_51, %c16], %104 {strides = array<i32>} : memref<16x256xf32, #tpu.memory_space<vmem>>, vector<16x16xf32>,
    %106 = vector.extract_strided_slice %57 {offsets = [0, 32], sizes = [16, 16], strides = [1, 1]} : vector<16x256xbf16> to vector<16x16xbf16>
    %107 = vector.extract_strided_slice %59 {offsets = [0, 32], sizes = [16, 16], strides = [1, 1]} : vector<16x256xbf16> to vector<16x16xbf16>
    "tpu.trace_start"() <{level = 10 : i32, message = "qd,kd->qk"}> : () -> ()
    %cst_52 = arith.constant dense<0.000000e+00> : vector<16x16xf32>
    %108 = tpu.matmul %106, %107, %cst_52 {dimension_numbers = #tpu.dot_dimension_numbers<[1], [1], [0], [0], [0, 0, 1, 0], [], []>} : vector<16x16xbf16>, vector<16x16xbf16>, vector<16x16xf32> -> vector<16x16xf32>
    "tpu.trace_stop"() : () -> ()
    %109 = arith.addf %108, %71 : vector<16x16xf32>
    %cst_53 = arith.constant dense<0xFF800000> : vector<16xf32>
    %110 = vector.multi_reduction <maximumf>, %109, %cst_53 [1] : vector<16x16xf32> to vector<16xf32>
    %111 = vector.shape_cast %110 : vector<16xf32> to vector<16x1xf32>
    %112 = vector.broadcast %111 : vector<16x1xf32> to vector<16x16xf32>
    %113 = arith.subf %109, %112 : vector<16x16xf32>
    %114 = math.exp %113 : vector<16x16xf32>
    %cst_54 = arith.constant dense<0.000000e+00> : vector<16xf32>
    %115 = vector.multi_reduction <add>, %114, %cst_54 [1] : vector<16x16xf32> to vector<16xf32>
    %116 = vector.shape_cast %115 : vector<16xf32> to vector<16x1xf32>
    %117 = vector.broadcast %116 : vector<16x1xf32> to vector<16x16xf32>
    %118 = arith.divf %114, %117 : vector<16x16xf32>
    %119 = arith.truncf %118 : vector<16x16xf32> to vector<16x16xbf16>
    %120 = vector.extract_strided_slice %61 {offsets = [0, 32], sizes = [16, 16], strides = [1, 1]} : vector<16x256xbf16> to vector<16x16xbf16>
    %cst_55 = arith.constant dense<0.000000e+00> : vector<16x16xf32>
    %121 = tpu.matmul %119, %120, %cst_55 {dimension_numbers = #tpu.dot_dimension_numbers<[1], [0], [0], [1], [0, 0, 1, 1], [], []>} : vector<16x16xbf16>, vector<16x16xbf16>, vector<16x16xf32> -> vector<16x16xf32>
    %c0_56 = arith.constant 0 : index
    %c32 = arith.constant 32 : index
    %122 = vector.load %arg25[%c0_56, %c32] : memref<16x256xf32, #tpu.memory_space<vmem>>, vector<16x16xf32>
    tpu.vector_store %arg25[%c0_56, %c32], %121 {strides = array<i32>} : memref<16x256xf32, #tpu.memory_space<vmem>>, vector<16x16xf32>,
    %123 = vector.extract_strided_slice %57 {offsets = [0, 48], sizes = [16, 16], strides = [1, 1]} : vector<16x256xbf16> to vector<16x16xbf16>
    %124 = vector.extract_strided_slice %59 {offsets = [0, 48], sizes = [16, 16], strides = [1, 1]} : vector<16x256xbf16> to vector<16x16xbf16>
    "tpu.trace_start"() <{level = 10 : i32, message = "qd,kd->qk"}> : () -> ()
    %cst_57 = arith.constant dense<0.000000e+00> : vector<16x16xf32>
    %125 = tpu.matmul %123, %124, %cst_57 {dimension_numbers = #tpu.dot_dimension_numbers<[1], [1], [0], [0], [0, 0, 1, 0], [], []>} : vector<16x16xbf16>, vector<16x16xbf16>, vector<16x16xf32> -> vector<16x16xf32>
    "tpu.trace_stop"() : () -> ()
    %126 = arith.addf %125, %71 : vector<16x16xf32>
    %cst_58 = arith.constant dense<0xFF800000> : vector<16xf32>
    %127 = vector.multi_reduction <maximumf>, %126, %cst_58 [1] : vector<16x16xf32> to vector<16xf32>
    %128 = vector.shape_cast %127 : vector<16xf32> to vector<16x1xf32>
    %129 = vector.broadcast %128 : vector<16x1xf32> to vector<16x16xf32>
    %130 = arith.subf %126, %129 : vector<16x16xf32>
    %131 = math.exp %130 : vector<16x16xf32>
    %cst_59 = arith.constant dense<0.000000e+00> : vector<16xf32>
    %132 = vector.multi_reduction <add>, %131, %cst_59 [1] : vector<16x16xf32> to vector<16xf32>
    %133 = vector.shape_cast %132 : vector<16xf32> to vector<16x1xf32>
    %134 = vector.broadcast %133 : vector<16x1xf32> to vector<16x16xf32>
    %135 = arith.divf %131, %134 : vector<16x16xf32>
    %136 = arith.truncf %135 : vector<16x16xf32> to vector<16x16xbf16>
    %137 = vector.extract_strided_slice %61 {offsets = [0, 48], sizes = [16, 16], strides = [1, 1]} : vector<16x256xbf16> to vector<16x16xbf16>
    %cst_60 = arith.constant dense<0.000000e+00> : vector<16x16xf32>
    %138 = tpu.matmul %136, %137, %cst_60 {dimension_numbers = #tpu.dot_dimension_numbers<[1], [0], [0], [1], [0, 0, 1, 1], [], []>} : vector<16x16xbf16>, vector<16x16xbf16>, vector<16x16xf32> -> vector<16x16xf32>
    %c0_61 = arith.constant 0 : index
    %c48 = arith.constant 48 : index
    %139 = vector.load %arg25[%c0_61, %c48] : memref<16x256xf32, #tpu.memory_space<vmem>>, vector<16x16xf32>
    tpu.vector_store %arg25[%c0_61, %c48], %138 {strides = array<i32>} : memref<16x256xf32, #tpu.memory_space<vmem>>, vector<16x16xf32>,
    %140 = vector.extract_strided_slice %57 {offsets = [0, 64], sizes = [16, 16], strides = [1, 1]} : vector<16x256xbf16> to vector<16x16xbf16>
    %141 = vector.extract_strided_slice %59 {offsets = [0, 64], sizes = [16, 16], strides = [1, 1]} : vector<16x256xbf16> to vector<16x16xbf16>
    "tpu.trace_start"() <{level = 10 : i32, message = "qd,kd->qk"}> : () -> ()
    %cst_62 = arith.constant dense<0.000000e+00> : vector<16x16xf32>
    %142 = tpu.matmul %140, %141, %cst_62 {dimension_numbers = #tpu.dot_dimension_numbers<[1], [1], [0], [0], [0, 0, 1, 0], [], []>} : vector<16x16xbf16>, vector<16x16xbf16>, vector<16x16xf32> -> vector<16x16xf32>
    "tpu.trace_stop"() : () -> ()
    %143 = arith.addf %142, %71 : vector<16x16xf32>
    %cst_63 = arith.constant dense<0xFF800000> : vector<16xf32>
    %144 = vector.multi_reduction <maximumf>, %143, %cst_63 [1] : vector<16x16xf32> to vector<16xf32>
    %145 = vector.shape_cast %144 : vector<16xf32> to vector<16x1xf32>
    %146 = vector.broadcast %145 : vector<16x1xf32> to vector<16x16xf32>
    %147 = arith.subf %143, %146 : vector<16x16xf32>
    %148 = math.exp %147 : vector<16x16xf32>
    %cst_64 = arith.constant dense<0.000000e+00> : vector<16xf32>
    %149 = vector.multi_reduction <add>, %148, %cst_64 [1] : vector<16x16xf32> to vector<16xf32>
    %150 = vector.shape_cast %149 : vector<16xf32> to vector<16x1xf32>
    %151 = vector.broadcast %150 : vector<16x1xf32> to vector<16x16xf32>
    %152 = arith.divf %148, %151 : vector<16x16xf32>
    %153 = arith.truncf %152 : vector<16x16xf32> to vector<16x16xbf16>
    %154 = vector.extract_strided_slice %61 {offsets = [0, 64], sizes = [16, 16], strides = [1, 1]} : vector<16x256xbf16> to vector<16x16xbf16>
    %cst_65 = arith.constant dense<0.000000e+00> : vector<16x16xf32>
    %155 = tpu.matmul %153, %154, %cst_65 {dimension_numbers = #tpu.dot_dimension_numbers<[1], [0], [0], [1], [0, 0, 1, 1], [], []>} : vector<16x16xbf16>, vector<16x16xbf16>, vector<16x16xf32> -> vector<16x16xf32>
    %c0_66 = arith.constant 0 : index
    %c64 = arith.constant 64 : index
    %156 = vector.load %arg25[%c0_66, %c64] : memref<16x256xf32, #tpu.memory_space<vmem>>, vector<16x16xf32>
    tpu.vector_store %arg25[%c0_66, %c64], %155 {strides = array<i32>} : memref<16x256xf32, #tpu.memory_space<vmem>>, vector<16x16xf32>,
    %157 = vector.extract_strided_slice %57 {offsets = [0, 80], sizes = [16, 16], strides = [1, 1]} : vector<16x256xbf16> to vector<16x16xbf16>
    %158 = vector.extract_strided_slice %59 {offsets = [0, 80], sizes = [16, 16], strides = [1, 1]} : vector<16x256xbf16> to vector<16x16xbf16>
    "tpu.trace_start"() <{level = 10 : i32, message = "qd,kd->qk"}> : () -> ()
    %cst_67 = arith.constant dense<0.000000e+00> : vector<16x16xf32>
    %159 = tpu.matmul %157, %158, %cst_67 {dimension_numbers = #tpu.dot_dimension_numbers<[1], [1], [0], [0], [0, 0, 1, 0], [], []>} : vector<16x16xbf16>, vector<16x16xbf16>, vector<16x16xf32> -> vector<16x16xf32>
    "tpu.trace_stop"() : () -> ()
    %160 = arith.addf %159, %71 : vector<16x16xf32>
    %cst_68 = arith.constant dense<0xFF800000> : vector<16xf32>
    %161 = vector.multi_reduction <maximumf>, %160, %cst_68 [1] : vector<16x16xf32> to vector<16xf32>
    %162 = vector.shape_cast %161 : vector<16xf32> to vector<16x1xf32>
    %163 = vector.broadcast %162 : vector<16x1xf32> to vector<16x16xf32>
    %164 = arith.subf %160, %163 : vector<16x16xf32>
    %165 = math.exp %164 : vector<16x16xf32>
    %cst_69 = arith.constant dense<0.000000e+00> : vector<16xf32>
    %166 = vector.multi_reduction <add>, %165, %cst_69 [1] : vector<16x16xf32> to vector<16xf32>
    %167 = vector.shape_cast %166 : vector<16xf32> to vector<16x1xf32>
    %168 = vector.broadcast %167 : vector<16x1xf32> to vector<16x16xf32>
    %169 = arith.divf %165, %168 : vector<16x16xf32>
    %170 = arith.truncf %169 : vector<16x16xf32> to vector<16x16xbf16>
    %171 = vector.extract_strided_slice %61 {offsets = [0, 80], sizes = [16, 16], strides = [1, 1]} : vector<16x256xbf16> to vector<16x16xbf16>
    %cst_70 = arith.constant dense<0.000000e+00> : vector<16x16xf32>
    %172 = tpu.matmul %170, %171, %cst_70 {dimension_numbers = #tpu.dot_dimension_numbers<[1], [0], [0], [1], [0, 0, 1, 1], [], []>} : vector<16x16xbf16>, vector<16x16xbf16>, vector<16x16xf32> -> vector<16x16xf32>
    %c0_71 = arith.constant 0 : index
    %c80 = arith.constant 80 : index
    %173 = vector.load %arg25[%c0_71, %c80] : memref<16x256xf32, #tpu.memory_space<vmem>>, vector<16x16xf32>
    tpu.vector_store %arg25[%c0_71, %c80], %172 {strides = array<i32>} : memref<16x256xf32, #tpu.memory_space<vmem>>, vector<16x16xf32>,
    %174 = vector.extract_strided_slice %57 {offsets = [0, 96], sizes = [16, 16], strides = [1, 1]} : vector<16x256xbf16> to vector<16x16xbf16>
    %175 = vector.extract_strided_slice %59 {offsets = [0, 96], sizes = [16, 16], strides = [1, 1]} : vector<16x256xbf16> to vector<16x16xbf16>
    "tpu.trace_start"() <{level = 10 : i32, message = "qd,kd->qk"}> : () -> ()
    %cst_72 = arith.constant dense<0.000000e+00> : vector<16x16xf32>
    %176 = tpu.matmul %174, %175, %cst_72 {dimension_numbers = #tpu.dot_dimension_numbers<[1], [1], [0], [0], [0, 0, 1, 0], [], []>} : vector<16x16xbf16>, vector<16x16xbf16>, vector<16x16xf32> -> vector<16x16xf32>
    "tpu.trace_stop"() : () -> ()
    %177 = arith.addf %176, %71 : vector<16x16xf32>
    %cst_73 = arith.constant dense<0xFF800000> : vector<16xf32>
    %178 = vector.multi_reduction <maximumf>, %177, %cst_73 [1] : vector<16x16xf32> to vector<16xf32>
    %179 = vector.shape_cast %178 : vector<16xf32> to vector<16x1xf32>
    %180 = vector.broadcast %179 : vector<16x1xf32> to vector<16x16xf32>
    %181 = arith.subf %177, %180 : vector<16x16xf32>
    %182 = math.exp %181 : vector<16x16xf32>
    %cst_74 = arith.constant dense<0.000000e+00> : vector<16xf32>
    %183 = vector.multi_reduction <add>, %182, %cst_74 [1] : vector<16x16xf32> to vector<16xf32>
    %184 = vector.shape_cast %183 : vector<16xf32> to vector<16x1xf32>
    %185 = vector.broadcast %184 : vector<16x1xf32> to vector<16x16xf32>
    %186 = arith.divf %182, %185 : vector<16x16xf32>
    %187 = arith.truncf %186 : vector<16x16xf32> to vector<16x16xbf16>
    %188 = vector.extract_strided_slice %61 {offsets = [0, 96], sizes = [16, 16], strides = [1, 1]} : vector<16x256xbf16> to vector<16x16xbf16>
    %cst_75 = arith.constant dense<0.000000e+00> : vector<16x16xf32>
    %189 = tpu.matmul %187, %188, %cst_75 {dimension_numbers = #tpu.dot_dimension_numbers<[1], [0], [0], [1], [0, 0, 1, 1], [], []>} : vector<16x16xbf16>, vector<16x16xbf16>, vector<16x16xf32> -> vector<16x16xf32>
    %c0_76 = arith.constant 0 : index
    %c96 = arith.constant 96 : index
    %190 = vector.load %arg25[%c0_76, %c96] : memref<16x256xf32, #tpu.memory_space<vmem>>, vector<16x16xf32>
    tpu.vector_store %arg25[%c0_76, %c96], %189 {strides = array<i32>} : memref<16x256xf32, #tpu.memory_space<vmem>>, vector<16x16xf32>,
    %191 = vector.extract_strided_slice %57 {offsets = [0, 112], sizes = [16, 16], strides = [1, 1]} : vector<16x256xbf16> to vector<16x16xbf16>
    %192 = vector.extract_strided_slice %59 {offsets = [0, 112], sizes = [16, 16], strides = [1, 1]} : vector<16x256xbf16> to vector<16x16xbf16>
    "tpu.trace_start"() <{level = 10 : i32, message = "qd,kd->qk"}> : () -> ()
    %cst_77 = arith.constant dense<0.000000e+00> : vector<16x16xf32>
    %193 = tpu.matmul %191, %192, %cst_77 {dimension_numbers = #tpu.dot_dimension_numbers<[1], [1], [0], [0], [0, 0, 1, 0], [], []>} : vector<16x16xbf16>, vector<16x16xbf16>, vector<16x16xf32> -> vector<16x16xf32>
    "tpu.trace_stop"() : () -> ()
    %194 = arith.addf %193, %71 : vector<16x16xf32>
    %cst_78 = arith.constant dense<0xFF800000> : vector<16xf32>
    %195 = vector.multi_reduction <maximumf>, %194, %cst_78 [1] : vector<16x16xf32> to vector<16xf32>
    %196 = vector.shape_cast %195 : vector<16xf32> to vector<16x1xf32>
    %197 = vector.broadcast %196 : vector<16x1xf32> to vector<16x16xf32>
    %198 = arith.subf %194, %197 : vector<16x16xf32>
    %199 = math.exp %198 : vector<16x16xf32>
    %cst_79 = arith.constant dense<0.000000e+00> : vector<16xf32>
    %200 = vector.multi_reduction <add>, %199, %cst_79 [1] : vector<16x16xf32> to vector<16xf32>
    %201 = vector.shape_cast %200 : vector<16xf32> to vector<16x1xf32>
    %202 = vector.broadcast %201 : vector<16x1xf32> to vector<16x16xf32>
    %203 = arith.divf %199, %202 : vector<16x16xf32>
    %204 = arith.truncf %203 : vector<16x16xf32> to vector<16x16xbf16>
    %205 = vector.extract_strided_slice %61 {offsets = [0, 112], sizes = [16, 16], strides = [1, 1]} : vector<16x256xbf16> to vector<16x16xbf16>
    %cst_80 = arith.constant dense<0.000000e+00> : vector<16x16xf32>
    %206 = tpu.matmul %204, %205, %cst_80 {dimension_numbers = #tpu.dot_dimension_numbers<[1], [0], [0], [1], [0, 0, 1, 1], [], []>} : vector<16x16xbf16>, vector<16x16xbf16>, vector<16x16xf32> -> vector<16x16xf32>
    %c0_81 = arith.constant 0 : index
    %c112 = arith.constant 112 : index
    %207 = vector.load %arg25[%c0_81, %c112] : memref<16x256xf32, #tpu.memory_space<vmem>>, vector<16x16xf32>
    tpu.vector_store %arg25[%c0_81, %c112], %206 {strides = array<i32>} : memref<16x256xf32, #tpu.memory_space<vmem>>, vector<16x16xf32>,
    %208 = vector.extract_strided_slice %57 {offsets = [0, 128], sizes = [16, 16], strides = [1, 1]} : vector<16x256xbf16> to vector<16x16xbf16>
    %209 = vector.extract_strided_slice %59 {offsets = [0, 128], sizes = [16, 16], strides = [1, 1]} : vector<16x256xbf16> to vector<16x16xbf16>
    "tpu.trace_start"() <{level = 10 : i32, message = "qd,kd->qk"}> : () -> ()
    %cst_82 = arith.constant dense<0.000000e+00> : vector<16x16xf32>
    %210 = tpu.matmul %208, %209, %cst_82 {dimension_numbers = #tpu.dot_dimension_numbers<[1], [1], [0], [0], [0, 0, 1, 0], [], []>} : vector<16x16xbf16>, vector<16x16xbf16>, vector<16x16xf32> -> vector<16x16xf32>
    "tpu.trace_stop"() : () -> ()
    %211 = arith.addf %210, %71 : vector<16x16xf32>
    %cst_83 = arith.constant dense<0xFF800000> : vector<16xf32>
    %212 = vector.multi_reduction <maximumf>, %211, %cst_83 [1] : vector<16x16xf32> to vector<16xf32>
    %213 = vector.shape_cast %212 : vector<16xf32> to vector<16x1xf32>
    %214 = vector.broadcast %213 : vector<16x1xf32> to vector<16x16xf32>
    %215 = arith.subf %211, %214 : vector<16x16xf32>
    %216 = math.exp %215 : vector<16x16xf32>
    %cst_84 = arith.constant dense<0.000000e+00> : vector<16xf32>
    %217 = vector.multi_reduction <add>, %216, %cst_84 [1] : vector<16x16xf32> to vector<16xf32>
    %218 = vector.shape_cast %217 : vector<16xf32> to vector<16x1xf32>
    %219 = vector.broadcast %218 : vector<16x1xf32> to vector<16x16xf32>
    %220 = arith.divf %216, %219 : vector<16x16xf32>
    %221 = arith.truncf %220 : vector<16x16xf32> to vector<16x16xbf16>
    %222 = vector.extract_strided_slice %61 {offsets = [0, 128], sizes = [16, 16], strides = [1, 1]} : vector<16x256xbf16> to vector<16x16xbf16>
    %cst_85 = arith.constant dense<0.000000e+00> : vector<16x16xf32>
    %223 = tpu.matmul %221, %222, %cst_85 {dimension_numbers = #tpu.dot_dimension_numbers<[1], [0], [0], [1], [0, 0, 1, 1], [], []>} : vector<16x16xbf16>, vector<16x16xbf16>, vector<16x16xf32> -> vector<16x16xf32>
    %c0_86 = arith.constant 0 : index
    %c128 = arith.constant 128 : index
    %224 = vector.load %arg25[%c0_86, %c128] : memref<16x256xf32, #tpu.memory_space<vmem>>, vector<16x16xf32>
    tpu.vector_store %arg25[%c0_86, %c128], %223 {strides = array<i32>} : memref<16x256xf32, #tpu.memory_space<vmem>>, vector<16x16xf32>,
    %225 = vector.extract_strided_slice %57 {offsets = [0, 144], sizes = [16, 16], strides = [1, 1]} : vector<16x256xbf16> to vector<16x16xbf16>
    %226 = vector.extract_strided_slice %59 {offsets = [0, 144], sizes = [16, 16], strides = [1, 1]} : vector<16x256xbf16> to vector<16x16xbf16>
    "tpu.trace_start"() <{level = 10 : i32, message = "qd,kd->qk"}> : () -> ()
    %cst_87 = arith.constant dense<0.000000e+00> : vector<16x16xf32>
    %227 = tpu.matmul %225, %226, %cst_87 {dimension_numbers = #tpu.dot_dimension_numbers<[1], [1], [0], [0], [0, 0, 1, 0], [], []>} : vector<16x16xbf16>, vector<16x16xbf16>, vector<16x16xf32> -> vector<16x16xf32>
    "tpu.trace_stop"() : () -> ()
    %228 = arith.addf %227, %71 : vector<16x16xf32>
    %cst_88 = arith.constant dense<0xFF800000> : vector<16xf32>
    %229 = vector.multi_reduction <maximumf>, %228, %cst_88 [1] : vector<16x16xf32> to vector<16xf32>
    %230 = vector.shape_cast %229 : vector<16xf32> to vector<16x1xf32>
    %231 = vector.broadcast %230 : vector<16x1xf32> to vector<16x16xf32>
    %232 = arith.subf %228, %231 : vector<16x16xf32>
    %233 = math.exp %232 : vector<16x16xf32>
    %cst_89 = arith.constant dense<0.000000e+00> : vector<16xf32>
    %234 = vector.multi_reduction <add>, %233, %cst_89 [1] : vector<16x16xf32> to vector<16xf32>
    %235 = vector.shape_cast %234 : vector<16xf32> to vector<16x1xf32>
    %236 = vector.broadcast %235 : vector<16x1xf32> to vector<16x16xf32>
    %237 = arith.divf %233, %236 : vector<16x16xf32>
    %238 = arith.truncf %237 : vector<16x16xf32> to vector<16x16xbf16>
    %239 = vector.extract_strided_slice %61 {offsets = [0, 144], sizes = [16, 16], strides = [1, 1]} : vector<16x256xbf16> to vector<16x16xbf16>
    %cst_90 = arith.constant dense<0.000000e+00> : vector<16x16xf32>
    %240 = tpu.matmul %238, %239, %cst_90 {dimension_numbers = #tpu.dot_dimension_numbers<[1], [0], [0], [1], [0, 0, 1, 1], [], []>} : vector<16x16xbf16>, vector<16x16xbf16>, vector<16x16xf32> -> vector<16x16xf32>
    %c0_91 = arith.constant 0 : index
    %c144 = arith.constant 144 : index
    %241 = vector.load %arg25[%c0_91, %c144] : memref<16x256xf32, #tpu.memory_space<vmem>>, vector<16x16xf32>
    tpu.vector_store %arg25[%c0_91, %c144], %240 {strides = array<i32>} : memref<16x256xf32, #tpu.memory_space<vmem>>, vector<16x16xf32>,
    %242 = vector.extract_strided_slice %57 {offsets = [0, 160], sizes = [16, 16], strides = [1, 1]} : vector<16x256xbf16> to vector<16x16xbf16>
    %243 = vector.extract_strided_slice %59 {offsets = [0, 160], sizes = [16, 16], strides = [1, 1]} : vector<16x256xbf16> to vector<16x16xbf16>
    "tpu.trace_start"() <{level = 10 : i32, message = "qd,kd->qk"}> : () -> ()
    %cst_92 = arith.constant dense<0.000000e+00> : vector<16x16xf32>
    %244 = tpu.matmul %242, %243, %cst_92 {dimension_numbers = #tpu.dot_dimension_numbers<[1], [1], [0], [0], [0, 0, 1, 0], [], []>} : vector<16x16xbf16>, vector<16x16xbf16>, vector<16x16xf32> -> vector<16x16xf32>
    "tpu.trace_stop"() : () -> ()
    %245 = arith.addf %244, %71 : vector<16x16xf32>
    %cst_93 = arith.constant dense<0xFF800000> : vector<16xf32>
    %246 = vector.multi_reduction <maximumf>, %245, %cst_93 [1] : vector<16x16xf32> to vector<16xf32>
    %247 = vector.shape_cast %246 : vector<16xf32> to vector<16x1xf32>
    %248 = vector.broadcast %247 : vector<16x1xf32> to vector<16x16xf32>
    %249 = arith.subf %245, %248 : vector<16x16xf32>
    %250 = math.exp %249 : vector<16x16xf32>
    %cst_94 = arith.constant dense<0.000000e+00> : vector<16xf32>
    %251 = vector.multi_reduction <add>, %250, %cst_94 [1] : vector<16x16xf32> to vector<16xf32>
    %252 = vector.shape_cast %251 : vector<16xf32> to vector<16x1xf32>
    %253 = vector.broadcast %252 : vector<16x1xf32> to vector<16x16xf32>
    %254 = arith.divf %250, %253 : vector<16x16xf32>
    %255 = arith.truncf %254 : vector<16x16xf32> to vector<16x16xbf16>
    %256 = vector.extract_strided_slice %61 {offsets = [0, 160], sizes = [16, 16], strides = [1, 1]} : vector<16x256xbf16> to vector<16x16xbf16>
    %cst_95 = arith.constant dense<0.000000e+00> : vector<16x16xf32>
    %257 = tpu.matmul %255, %256, %cst_95 {dimension_numbers = #tpu.dot_dimension_numbers<[1], [0], [0], [1], [0, 0, 1, 1], [], []>} : vector<16x16xbf16>, vector<16x16xbf16>, vector<16x16xf32> -> vector<16x16xf32>
    %c0_96 = arith.constant 0 : index
    %c160 = arith.constant 160 : index
    %258 = vector.load %arg25[%c0_96, %c160] : memref<16x256xf32, #tpu.memory_space<vmem>>, vector<16x16xf32>
    tpu.vector_store %arg25[%c0_96, %c160], %257 {strides = array<i32>} : memref<16x256xf32, #tpu.memory_space<vmem>>, vector<16x16xf32>,
    %259 = vector.extract_strided_slice %57 {offsets = [0, 176], sizes = [16, 16], strides = [1, 1]} : vector<16x256xbf16> to vector<16x16xbf16>
    %260 = vector.extract_strided_slice %59 {offsets = [0, 176], sizes = [16, 16], strides = [1, 1]} : vector<16x256xbf16> to vector<16x16xbf16>
    "tpu.trace_start"() <{level = 10 : i32, message = "qd,kd->qk"}> : () -> ()
    %cst_97 = arith.constant dense<0.000000e+00> : vector<16x16xf32>
    %261 = tpu.matmul %259, %260, %cst_97 {dimension_numbers = #tpu.dot_dimension_numbers<[1], [1], [0], [0], [0, 0, 1, 0], [], []>} : vector<16x16xbf16>, vector<16x16xbf16>, vector<16x16xf32> -> vector<16x16xf32>
    "tpu.trace_stop"() : () -> ()
    %262 = arith.addf %261, %71 : vector<16x16xf32>
    %cst_98 = arith.constant dense<0xFF800000> : vector<16xf32>
    %263 = vector.multi_reduction <maximumf>, %262, %cst_98 [1] : vector<16x16xf32> to vector<16xf32>
    %264 = vector.shape_cast %263 : vector<16xf32> to vector<16x1xf32>
    %265 = vector.broadcast %264 : vector<16x1xf32> to vector<16x16xf32>
    %266 = arith.subf %262, %265 : vector<16x16xf32>
    %267 = math.exp %266 : vector<16x16xf32>
    %cst_99 = arith.constant dense<0.000000e+00> : vector<16xf32>
    %268 = vector.multi_reduction <add>, %267, %cst_99 [1] : vector<16x16xf32> to vector<16xf32>
    %269 = vector.shape_cast %268 : vector<16xf32> to vector<16x1xf32>
    %270 = vector.broadcast %269 : vector<16x1xf32> to vector<16x16xf32>
    %271 = arith.divf %267, %270 : vector<16x16xf32>
    %272 = arith.truncf %271 : vector<16x16xf32> to vector<16x16xbf16>
    %273 = vector.extract_strided_slice %61 {offsets = [0, 176], sizes = [16, 16], strides = [1, 1]} : vector<16x256xbf16> to vector<16x16xbf16>
    %cst_100 = arith.constant dense<0.000000e+00> : vector<16x16xf32>
    %274 = tpu.matmul %272, %273, %cst_100 {dimension_numbers = #tpu.dot_dimension_numbers<[1], [0], [0], [1], [0, 0, 1, 1], [], []>} : vector<16x16xbf16>, vector<16x16xbf16>, vector<16x16xf32> -> vector<16x16xf32>
    %c0_101 = arith.constant 0 : index
    %c176 = arith.constant 176 : index
    %275 = vector.load %arg25[%c0_101, %c176] : memref<16x256xf32, #tpu.memory_space<vmem>>, vector<16x16xf32>
    tpu.vector_store %arg25[%c0_101, %c176], %274 {strides = array<i32>} : memref<16x256xf32, #tpu.memory_space<vmem>>, vector<16x16xf32>,
    %276 = vector.extract_strided_slice %57 {offsets = [0, 192], sizes = [16, 16], strides = [1, 1]} : vector<16x256xbf16> to vector<16x16xbf16>
    %277 = vector.extract_strided_slice %59 {offsets = [0, 192], sizes = [16, 16], strides = [1, 1]} : vector<16x256xbf16> to vector<16x16xbf16>
    "tpu.trace_start"() <{level = 10 : i32, message = "qd,kd->qk"}> : () -> ()
    %cst_102 = arith.constant dense<0.000000e+00> : vector<16x16xf32>
    %278 = tpu.matmul %276, %277, %cst_102 {dimension_numbers = #tpu.dot_dimension_numbers<[1], [1], [0], [0], [0, 0, 1, 0], [], []>} : vector<16x16xbf16>, vector<16x16xbf16>, vector<16x16xf32> -> vector<16x16xf32>
    "tpu.trace_stop"() : () -> ()
    %279 = arith.addf %278, %71 : vector<16x16xf32>
    %cst_103 = arith.constant dense<0xFF800000> : vector<16xf32>
    %280 = vector.multi_reduction <maximumf>, %279, %cst_103 [1] : vector<16x16xf32> to vector<16xf32>
    %281 = vector.shape_cast %280 : vector<16xf32> to vector<16x1xf32>
    %282 = vector.broadcast %281 : vector<16x1xf32> to vector<16x16xf32>
    %283 = arith.subf %279, %282 : vector<16x16xf32>
    %284 = math.exp %283 : vector<16x16xf32>
    %cst_104 = arith.constant dense<0.000000e+00> : vector<16xf32>
    %285 = vector.multi_reduction <add>, %284, %cst_104 [1] : vector<16x16xf32> to vector<16xf32>
    %286 = vector.shape_cast %285 : vector<16xf32> to vector<16x1xf32>
    %287 = vector.broadcast %286 : vector<16x1xf32> to vector<16x16xf32>
    %288 = arith.divf %284, %287 : vector<16x16xf32>
    %289 = arith.truncf %288 : vector<16x16xf32> to vector<16x16xbf16>
    %290 = vector.extract_strided_slice %61 {offsets = [0, 192], sizes = [16, 16], strides = [1, 1]} : vector<16x256xbf16> to vector<16x16xbf16>
    %cst_105 = arith.constant dense<0.000000e+00> : vector<16x16xf32>
    %291 = tpu.matmul %289, %290, %cst_105 {dimension_numbers = #tpu.dot_dimension_numbers<[1], [0], [0], [1], [0, 0, 1, 1], [], []>} : vector<16x16xbf16>, vector<16x16xbf16>, vector<16x16xf32> -> vector<16x16xf32>
    %c0_106 = arith.constant 0 : index
    %c192 = arith.constant 192 : index
    %292 = vector.load %arg25[%c0_106, %c192] : memref<16x256xf32, #tpu.memory_space<vmem>>, vector<16x16xf32>
    tpu.vector_store %arg25[%c0_106, %c192], %291 {strides = array<i32>} : memref<16x256xf32, #tpu.memory_space<vmem>>, vector<16x16xf32>,
    %293 = vector.extract_strided_slice %57 {offsets = [0, 208], sizes = [16, 16], strides = [1, 1]} : vector<16x256xbf16> to vector<16x16xbf16>
    %294 = vector.extract_strided_slice %59 {offsets = [0, 208], sizes = [16, 16], strides = [1, 1]} : vector<16x256xbf16> to vector<16x16xbf16>
    "tpu.trace_start"() <{level = 10 : i32, message = "qd,kd->qk"}> : () -> ()
    %cst_107 = arith.constant dense<0.000000e+00> : vector<16x16xf32>
    %295 = tpu.matmul %293, %294, %cst_107 {dimension_numbers = #tpu.dot_dimension_numbers<[1], [1], [0], [0], [0, 0, 1, 0], [], []>} : vector<16x16xbf16>, vector<16x16xbf16>, vector<16x16xf32> -> vector<16x16xf32>
    "tpu.trace_stop"() : () -> ()
    %296 = arith.addf %295, %71 : vector<16x16xf32>
    %cst_108 = arith.constant dense<0xFF800000> : vector<16xf32>
    %297 = vector.multi_reduction <maximumf>, %296, %cst_108 [1] : vector<16x16xf32> to vector<16xf32>
    %298 = vector.shape_cast %297 : vector<16xf32> to vector<16x1xf32>
    %299 = vector.broadcast %298 : vector<16x1xf32> to vector<16x16xf32>
    %300 = arith.subf %296, %299 : vector<16x16xf32>
    %301 = math.exp %300 : vector<16x16xf32>
    %cst_109 = arith.constant dense<0.000000e+00> : vector<16xf32>
    %302 = vector.multi_reduction <add>, %301, %cst_109 [1] : vector<16x16xf32> to vector<16xf32>
    %303 = vector.shape_cast %302 : vector<16xf32> to vector<16x1xf32>
    %304 = vector.broadcast %303 : vector<16x1xf32> to vector<16x16xf32>
    %305 = arith.divf %301, %304 : vector<16x16xf32>
    %306 = arith.truncf %305 : vector<16x16xf32> to vector<16x16xbf16>
    %307 = vector.extract_strided_slice %61 {offsets = [0, 208], sizes = [16, 16], strides = [1, 1]} : vector<16x256xbf16> to vector<16x16xbf16>
    %cst_110 = arith.constant dense<0.000000e+00> : vector<16x16xf32>
    %308 = tpu.matmul %306, %307, %cst_110 {dimension_numbers = #tpu.dot_dimension_numbers<[1], [0], [0], [1], [0, 0, 1, 1], [], []>} : vector<16x16xbf16>, vector<16x16xbf16>, vector<16x16xf32> -> vector<16x16xf32>
    %c0_111 = arith.constant 0 : index
    %c208 = arith.constant 208 : index
    %309 = vector.load %arg25[%c0_111, %c208] : memref<16x256xf32, #tpu.memory_space<vmem>>, vector<16x16xf32>
    tpu.vector_store %arg25[%c0_111, %c208], %308 {strides = array<i32>} : memref<16x256xf32, #tpu.memory_space<vmem>>, vector<16x16xf32>,
    %310 = vector.extract_strided_slice %57 {offsets = [0, 224], sizes = [16, 16], strides = [1, 1]} : vector<16x256xbf16> to vector<16x16xbf16>
    %311 = vector.extract_strided_slice %59 {offsets = [0, 224], sizes = [16, 16], strides = [1, 1]} : vector<16x256xbf16> to vector<16x16xbf16>
    "tpu.trace_start"() <{level = 10 : i32, message = "qd,kd->qk"}> : () -> ()
    %cst_112 = arith.constant dense<0.000000e+00> : vector<16x16xf32>
    %312 = tpu.matmul %310, %311, %cst_112 {dimension_numbers = #tpu.dot_dimension_numbers<[1], [1], [0], [0], [0, 0, 1, 0], [], []>} : vector<16x16xbf16>, vector<16x16xbf16>, vector<16x16xf32> -> vector<16x16xf32>
    "tpu.trace_stop"() : () -> ()
    %313 = arith.addf %312, %71 : vector<16x16xf32>
    %cst_113 = arith.constant dense<0xFF800000> : vector<16xf32>
    %314 = vector.multi_reduction <maximumf>, %313, %cst_113 [1] : vector<16x16xf32> to vector<16xf32>
    %315 = vector.shape_cast %314 : vector<16xf32> to vector<16x1xf32>
    %316 = vector.broadcast %315 : vector<16x1xf32> to vector<16x16xf32>
    %317 = arith.subf %313, %316 : vector<16x16xf32>
    %318 = math.exp %317 : vector<16x16xf32>
    %cst_114 = arith.constant dense<0.000000e+00> : vector<16xf32>
    %319 = vector.multi_reduction <add>, %318, %cst_114 [1] : vector<16x16xf32> to vector<16xf32>
    %320 = vector.shape_cast %319 : vector<16xf32> to vector<16x1xf32>
    %321 = vector.broadcast %320 : vector<16x1xf32> to vector<16x16xf32>
    %322 = arith.divf %318, %321 : vector<16x16xf32>
    %323 = arith.truncf %322 : vector<16x16xf32> to vector<16x16xbf16>
    %324 = vector.extract_strided_slice %61 {offsets = [0, 224], sizes = [16, 16], strides = [1, 1]} : vector<16x256xbf16> to vector<16x16xbf16>
    %cst_115 = arith.constant dense<0.000000e+00> : vector<16x16xf32>
    %325 = tpu.matmul %323, %324, %cst_115 {dimension_numbers = #tpu.dot_dimension_numbers<[1], [0], [0], [1], [0, 0, 1, 1], [], []>} : vector<16x16xbf16>, vector<16x16xbf16>, vector<16x16xf32> -> vector<16x16xf32>
    %c0_116 = arith.constant 0 : index
    %c224 = arith.constant 224 : index
    %326 = vector.load %arg25[%c0_116, %c224] : memref<16x256xf32, #tpu.memory_space<vmem>>, vector<16x16xf32>
    tpu.vector_store %arg25[%c0_116, %c224], %325 {strides = array<i32>} : memref<16x256xf32, #tpu.memory_space<vmem>>, vector<16x16xf32>,
    %327 = vector.extract_strided_slice %57 {offsets = [0, 240], sizes = [16, 16], strides = [1, 1]} : vector<16x256xbf16> to vector<16x16xbf16>
    %328 = vector.extract_strided_slice %59 {offsets = [0, 240], sizes = [16, 16], strides = [1, 1]} : vector<16x256xbf16> to vector<16x16xbf16>
    "tpu.trace_start"() <{level = 10 : i32, message = "qd,kd->qk"}> : () -> ()
    %cst_117 = arith.constant dense<0.000000e+00> : vector<16x16xf32>
    %329 = tpu.matmul %327, %328, %cst_117 {dimension_numbers = #tpu.dot_dimension_numbers<[1], [1], [0], [0], [0, 0, 1, 0], [], []>} : vector<16x16xbf16>, vector<16x16xbf16>, vector<16x16xf32> -> vector<16x16xf32>
    "tpu.trace_stop"() : () -> ()
    %330 = arith.addf %329, %71 : vector<16x16xf32>
    %cst_118 = arith.constant dense<0xFF800000> : vector<16xf32>
    %331 = vector.multi_reduction <maximumf>, %330, %cst_118 [1] : vector<16x16xf32> to vector<16xf32>
    %332 = vector.shape_cast %331 : vector<16xf32> to vector<16x1xf32>
    %333 = vector.broadcast %332 : vector<16x1xf32> to vector<16x16xf32>
    %334 = arith.subf %330, %333 : vector<16x16xf32>
    %335 = math.exp %334 : vector<16x16xf32>
    %cst_119 = arith.constant dense<0.000000e+00> : vector<16xf32>
    %336 = vector.multi_reduction <add>, %335, %cst_119 [1] : vector<16x16xf32> to vector<16xf32>
    %337 = vector.shape_cast %336 : vector<16xf32> to vector<16x1xf32>
    %338 = vector.broadcast %337 : vector<16x1xf32> to vector<16x16xf32>
    %339 = arith.divf %335, %338 : vector<16x16xf32>
    %340 = arith.truncf %339 : vector<16x16xf32> to vector<16x16xbf16>
    %341 = vector.extract_strided_slice %61 {offsets = [0, 240], sizes = [16, 16], strides = [1, 1]} : vector<16x256xbf16> to vector<16x16xbf16>
    %cst_120 = arith.constant dense<0.000000e+00> : vector<16x16xf32>
    %342 = tpu.matmul %340, %341, %cst_120 {dimension_numbers = #tpu.dot_dimension_numbers<[1], [0], [0], [1], [0, 0, 1, 1], [], []>} : vector<16x16xbf16>, vector<16x16xbf16>, vector<16x16xf32> -> vector<16x16xf32>
    %c0_121 = arith.constant 0 : index
    %c240 = arith.constant 240 : index
    %343 = vector.load %arg25[%c0_121, %c240] : memref<16x256xf32, #tpu.memory_space<vmem>>, vector<16x16xf32>
    tpu.vector_store %arg25[%c0_121, %c240], %342 {strides = array<i32>} : memref<16x256xf32, #tpu.memory_space<vmem>>, vector<16x16xf32>,
    %c0_122 = arith.constant 0 : index
    %c0_123 = arith.constant 0 : index
    %344 = vector.load %arg25[%c0_122, %c0_123] : memref<16x256xf32, #tpu.memory_space<vmem>>, vector<16x256xf32>
    %345 = arith.truncf %344 : vector<16x256xf32> to vector<16x256xbf16>
    %c0_124 = arith.constant 0 : index
    %c0_125 = arith.constant 0 : index
    %346 = vector.load %arg16[%c0_124, %c0_125] : memref<256x256xbf16, #tpu.memory_space<vmem>>, vector<256x256xbf16>
    %cst_126 = arith.constant dense<0.000000e+00> : vector<16x256xf32>
    %347 = tpu.matmul %345, %346, %cst_126 {dimension_numbers = #tpu.dot_dimension_numbers<[1], [0], [0], [1], [0, 0, 1, 1], [], []>} : vector<16x256xbf16>, vector<256x256xbf16>, vector<16x256xf32> -> vector<16x256xf32>
    %c0_127 = arith.constant 0 : index
    %c0_128 = arith.constant 0 : index
    %348 = vector.load %arg17[%c0_127, %c0_128] : memref<1x256xf32, #tpu.memory_space<vmem>>, vector<1x256xf32>
    %349 = vector.broadcast %348 : vector<1x256xf32> to vector<16x256xf32>
    %350 = arith.addf %347, %349 : vector<16x256xf32>
    %351 = arith.addf %16, %350 : vector<16x256xf32>
    %c0_129 = arith.constant 0 : index
    %c0_130 = arith.constant 0 : index
    %352 = vector.load %arg18[%c0_129, %c0_130] : memref<1x256xf32, #tpu.memory_space<vmem>>, vector<1x256xf32>
    %c0_131 = arith.constant 0 : index
    %c0_132 = arith.constant 0 : index
    %353 = vector.load %arg19[%c0_131, %c0_132] : memref<1x256xf32, #tpu.memory_space<vmem>>, vector<1x256xf32>
    %cst_133 = arith.constant dense<0.000000e+00> : vector<16xf32>
    %354 = vector.multi_reduction <add>, %351, %cst_133 [1] : vector<16x256xf32> to vector<16xf32>
    %355 = vector.shape_cast %354 : vector<16xf32> to vector<16x1xf32>
    %cst_134 = arith.constant 2.560000e+02 : f32
    %356 = vector.broadcast %cst_134 : f32 to vector<16x1xf32>
    %357 = arith.divf %355, %356 : vector<16x1xf32>
    %358 = vector.broadcast %357 : vector<16x1xf32> to vector<16x256xf32>
    %359 = arith.subf %351, %358 : vector<16x256xf32>
    %360 = arith.mulf %359, %359 : vector<16x256xf32>
    %cst_135 = arith.constant dense<0.000000e+00> : vector<16xf32>
    %361 = vector.multi_reduction <add>, %360, %cst_135 [1] : vector<16x256xf32> to vector<16xf32>
    %362 = vector.shape_cast %361 : vector<16xf32> to vector<16x1xf32>
    %cst_136 = arith.constant 2.560000e+02 : f32
    %363 = vector.broadcast %cst_136 : f32 to vector<16x1xf32>
    %364 = arith.divf %362, %363 : vector<16x1xf32>
    %365 = vector.broadcast %357 : vector<16x1xf32> to vector<16x256xf32>
    %366 = arith.subf %351, %365 : vector<16x256xf32>
    %cst_137 = arith.constant 9.99999974E-6 : f32
    %367 = vector.broadcast %cst_137 : f32 to vector<16x1xf32>
    %368 = arith.addf %364, %367 : vector<16x1xf32>
    %369 = math.rsqrt %368 : vector<16x1xf32>
    %370 = vector.broadcast %369 : vector<16x1xf32> to vector<16x256xf32>
    %371 = arith.mulf %366, %370 : vector<16x256xf32>
    %372 = vector.broadcast %352 : vector<1x256xf32> to vector<16x256xf32>
    %373 = arith.mulf %371, %372 : vector<16x256xf32>
    %374 = vector.broadcast %353 : vector<1x256xf32> to vector<16x256xf32>
    %375 = arith.addf %373, %374 : vector<16x256xf32>
    %376 = arith.truncf %375 : vector<16x256xf32> to vector<16x256xbf16>
    %c0_138 = arith.constant 0 : index
    %c0_139 = arith.constant 0 : index
    %377 = vector.load %arg20[%c0_138, %c0_139] : memref<256x256xbf16, #tpu.memory_space<vmem>>, vector<256x256xbf16>
    %cst_140 = arith.constant dense<0.000000e+00> : vector<16x256xf32>
    %378 = tpu.matmul %376, %377, %cst_140 {dimension_numbers = #tpu.dot_dimension_numbers<[1], [0], [0], [1], [0, 0, 1, 1], [], []>} : vector<16x256xbf16>, vector<256x256xbf16>, vector<16x256xf32> -> vector<16x256xf32>
    %c0_141 = arith.constant 0 : index
    %c0_142 = arith.constant 0 : index
    %379 = vector.load %arg21[%c0_141, %c0_142] : memref<1x256xf32, #tpu.memory_space<vmem>>, vector<1x256xf32>
    %380 = vector.broadcast %379 : vector<1x256xf32> to vector<16x256xf32>
    %381 = arith.addf %378, %380 : vector<16x256xf32>
    %cst_143 = arith.constant 0.000000e+00 : f32
    %382 = vector.broadcast %cst_143 : f32 to vector<16x256xf32>
    %383 = arith.maximumf %381, %382 : vector<16x256xf32>
    %384 = arith.truncf %383 : vector<16x256xf32> to vector<16x256xbf16>
    %c0_144 = arith.constant 0 : index
    %c0_145 = arith.constant 0 : index
    %385 = vector.load %arg22[%c0_144, %c0_145] : memref<256x256xbf16, #tpu.memory_space<vmem>>, vector<256x256xbf16>
    %cst_146 = arith.constant dense<0.000000e+00> : vector<16x256xf32>
    %386 = tpu.matmul %384, %385, %cst_146 {dimension_numbers = #tpu.dot_dimension_numbers<[1], [0], [0], [1], [0, 0, 1, 1], [], []>} : vector<16x256xbf16>, vector<256x256xbf16>, vector<16x256xf32> -> vector<16x256xf32>
    %c0_147 = arith.constant 0 : index
    %c0_148 = arith.constant 0 : index
    %387 = vector.load %arg23[%c0_147, %c0_148] : memref<1x256xf32, #tpu.memory_space<vmem>>, vector<1x256xf32>
    %388 = vector.broadcast %387 : vector<1x256xf32> to vector<16x256xf32>
    %389 = arith.addf %386, %388 : vector<16x256xf32>
    %390 = arith.addf %351, %389 : vector<16x256xf32>
    %c0_149 = arith.constant 0 : index
    %c0_150 = arith.constant 0 : index
    %c0_151 = arith.constant 0 : index
    %391 = vector.load %arg5[%c0_149, %c0_150, %c0_151] : memref<1x16x1xf32, #tpu.memory_space<vmem>>, vector<1x16x1xf32>
    %392 = vector.shape_cast %391 : vector<1x16x1xf32> to vector<16x1xf32>
    %393 = vector.broadcast %392 : vector<16x1xf32> to vector<16x256xf32>
    %394 = arith.mulf %390, %393 : vector<16x256xf32>
    %395 = vector.extract_strided_slice %394 {offsets = [0, 0], sizes = [8, 256], strides = [1, 1]} : vector<16x256xf32> to vector<8x256xf32>
    %cst_152 = arith.constant dense<0.000000e+00> : vector<256xf32>
    %396 = vector.multi_reduction <add>, %395, %cst_152 [0] : vector<8x256xf32> to vector<256xf32>
    %397 = vector.shape_cast %396 : vector<256xf32> to vector<1x256xf32>
    %c0_153 = arith.constant 0 : index
    %c0_154 = arith.constant 0 : index
    %c0_155 = arith.constant 0 : index
    %398 = vector.load %arg24[%c0_153, %c0_154, %c0_155] : memref<2x1x256xf32, #tpu.memory_space<vmem>>, vector<1x1x256xf32>
    %399 = vector.shape_cast %398 : vector<1x1x256xf32> to vector<1x256xf32>
    %400 = vector.shape_cast %397 : vector<1x256xf32> to vector<1x1x256xf32>
    tpu.vector_store %arg24[%c0_153, %c0_154, %c0_155], %400 {strides = array<i32>} : memref<2x1x256xf32, #tpu.memory_space<vmem>>, vector<1x1x256xf32>,
    %401 = vector.extract_strided_slice %394 {offsets = [8, 0], sizes = [8, 256], strides = [1, 1]} : vector<16x256xf32> to vector<8x256xf32>
    %cst_156 = arith.constant dense<0.000000e+00> : vector<256xf32>
    %402 = vector.multi_reduction <add>, %401, %cst_156 [0] : vector<8x256xf32> to vector<256xf32>
    %403 = vector.shape_cast %402 : vector<256xf32> to vector<1x256xf32>
    %c1 = arith.constant 1 : index
    %c0_157 = arith.constant 0 : index
    %c0_158 = arith.constant 0 : index
    %404 = vector.load %arg24[%c1, %c0_157, %c0_158] : memref<2x1x256xf32, #tpu.memory_space<vmem>>, vector<1x1x256xf32>
    %405 = vector.shape_cast %404 : vector<1x1x256xf32> to vector<1x256xf32>
    %406 = vector.shape_cast %403 : vector<1x256xf32> to vector<1x1x256xf32>
    tpu.vector_store %arg24[%c1, %c0_157, %c0_158], %406 {strides = array<i32>} : memref<2x1x256xf32, #tpu.memory_space<vmem>>, vector<1x1x256xf32>,
    return
  }
  func.func @transform_0(%arg0: i32) -> (i32, i32) {
    %c0_i32 = arith.constant 0 : i32
    %c0_i32_0 = arith.constant 0 : i32
    return %arg0, %c0_i32 : i32, i32
  }
  func.func @transform_1(%arg0: i32) -> (i32, i32) {
    %c0_i32 = arith.constant 0 : i32
    %c0_i32_0 = arith.constant 0 : i32
    return %arg0, %c0_i32 : i32, i32
  }
  func.func @transform_2(%arg0: i32) -> (i32, i32, i32) {
    %c0_i32 = arith.constant 0 : i32
    %c0_i32_0 = arith.constant 0 : i32
    %c0_i32_1 = arith.constant 0 : i32
    return %arg0, %c0_i32, %c0_i32_0 : i32, i32, i32
  }
  func.func @transform_3(%arg0: i32) -> (i32, i32, i32) {
    %c0_i32 = arith.constant 0 : i32
    %c0_i32_0 = arith.constant 0 : i32
    %c0_i32_1 = arith.constant 0 : i32
    return %arg0, %c0_i32, %c0_i32_0 : i32, i32, i32
  }
  func.func @transform_4(%arg0: i32) -> (i32, i32, i32) {
    %c0_i32 = arith.constant 0 : i32
    %c0_i32_0 = arith.constant 0 : i32
    %c0_i32_1 = arith.constant 0 : i32
    return %arg0, %c0_i32, %c0_i32_0 : i32, i32, i32
  }
  func.func @transform_5(%arg0: i32) -> (i32, i32) {
    %c0_i32 = arith.constant 0 : i32
    %c0_i32_0 = arith.constant 0 : i32
    %c0_i32_1 = arith.constant 0 : i32
    return %c0_i32, %c0_i32_0 : i32, i32
  }
  func.func @transform_6(%arg0: i32) -> (i32, i32) {
    %c0_i32 = arith.constant 0 : i32
    %c0_i32_0 = arith.constant 0 : i32
    %c0_i32_1 = arith.constant 0 : i32
    return %c0_i32, %c0_i32_0 : i32, i32
  }
  func.func @transform_7(%arg0: i32) -> (i32, i32) {
    %c0_i32 = arith.constant 0 : i32
    %c0_i32_0 = arith.constant 0 : i32
    %c0_i32_1 = arith.constant 0 : i32
    return %c0_i32, %c0_i32_0 : i32, i32
  }
  func.func @transform_8(%arg0: i32) -> (i32, i32) {
    %c0_i32 = arith.constant 0 : i32
    %c0_i32_0 = arith.constant 0 : i32
    %c0_i32_1 = arith.constant 0 : i32
    return %c0_i32, %c0_i32_0 : i32, i32
  }
  func.func @transform_9(%arg0: i32) -> (i32, i32) {
    %c0_i32 = arith.constant 0 : i32
    %c0_i32_0 = arith.constant 0 : i32
    %c0_i32_1 = arith.constant 0 : i32
    return %c0_i32, %c0_i32_0 : i32, i32
  }
  func.func @transform_10(%arg0: i32) -> (i32, i32) {
    %c0_i32 = arith.constant 0 : i32
    %c0_i32_0 = arith.constant 0 : i32
    %c0_i32_1 = arith.constant 0 : i32
    return %c0_i32, %c0_i32_0 : i32, i32
  }
  func.func @transform_11(%arg0: i32) -> (i32, i32) {
    %c0_i32 = arith.constant 0 : i32
    %c0_i32_0 = arith.constant 0 : i32
    %c0_i32_1 = arith.constant 0 : i32
    return %c0_i32, %c0_i32_0 : i32, i32
  }
  func.func @transform_12(%arg0: i32) -> (i32, i32) {
    %c0_i32 = arith.constant 0 : i32
    %c0_i32_0 = arith.constant 0 : i32
    %c0_i32_1 = arith.constant 0 : i32
    return %c0_i32, %c0_i32_0 : i32, i32
  }
  func.func @transform_13(%arg0: i32) -> (i32, i32) {
    %c0_i32 = arith.constant 0 : i32
    %c0_i32_0 = arith.constant 0 : i32
    %c0_i32_1 = arith.constant 0 : i32
    return %c0_i32, %c0_i32_0 : i32, i32
  }
  func.func @transform_14(%arg0: i32) -> (i32, i32) {
    %c0_i32 = arith.constant 0 : i32
    %c0_i32_0 = arith.constant 0 : i32
    %c0_i32_1 = arith.constant 0 : i32
    return %c0_i32, %c0_i32_0 : i32, i32
  }
  func.func @transform_15(%arg0: i32) -> (i32, i32) {
    %c0_i32 = arith.constant 0 : i32
    %c0_i32_0 = arith.constant 0 : i32
    %c0_i32_1 = arith.constant 0 : i32
    return %c0_i32, %c0_i32_0 : i32, i32
  }
  func.func @transform_16(%arg0: i32) -> (i32, i32) {
    %c0_i32 = arith.constant 0 : i32
    %c0_i32_0 = arith.constant 0 : i32
    %c0_i32_1 = arith.constant 0 : i32
    return %c0_i32, %c0_i32_0 : i32, i32
  }
  func.func @transform_17(%arg0: i32) -> (i32, i32) {
    %c0_i32 = arith.constant 0 : i32
    %c0_i32_0 = arith.constant 0 : i32
    %c0_i32_1 = arith.constant 0 : i32
    return %c0_i32, %c0_i32_0 : i32, i32
  }
  func.func @transform_18(%arg0: i32) -> (i32, i32) {
    %c0_i32 = arith.constant 0 : i32
    %c0_i32_0 = arith.constant 0 : i32
    %c0_i32_1 = arith.constant 0 : i32
    return %c0_i32, %c0_i32_0 : i32, i32
  }
  func.func @transform_19(%arg0: i32) -> (i32, i32) {
    %c0_i32 = arith.constant 0 : i32
    %c0_i32_0 = arith.constant 0 : i32
    %c0_i32_1 = arith.constant 0 : i32
    return %c0_i32, %c0_i32_0 : i32, i32
  }
  func.func @transform_20(%arg0: i32) -> (i32, i32) {
    %c0_i32 = arith.constant 0 : i32
    %c0_i32_0 = arith.constant 0 : i32
    %c0_i32_1 = arith.constant 0 : i32
    return %c0_i32, %c0_i32_0 : i32, i32
  }
  func.func @transform_21(%arg0: i32) -> (i32, i32) {
    %c0_i32 = arith.constant 0 : i32
    %c0_i32_0 = arith.constant 0 : i32
    %c0_i32_1 = arith.constant 0 : i32
    return %c0_i32, %c0_i32_0 : i32, i32
  }
  func.func @transform_22(%arg0: i32) -> (i32, i32) {
    %c0_i32 = arith.constant 0 : i32
    %c0_i32_0 = arith.constant 0 : i32
    %c0_i32_1 = arith.constant 0 : i32
    return %c0_i32, %c0_i32_0 : i32, i32
  }
  func.func @transform_23(%arg0: i32) -> (i32, i32, i32) {
    %c0_i32 = arith.constant 0 : i32
    %c0_i32_0 = arith.constant 0 : i32
    %c0_i32_1 = arith.constant 0 : i32
    return %arg0, %c0_i32, %c0_i32_0 : i32, i32, i32
  }
}

</mosaic_0001>

<llo_original>
// kernel: image_encoder_forward.1
$region0: #{image_encoder_forward.1}
  #allocation0 [shape = 'u32[]', space=smem, size = 0x4, offset = 0x4, fixed_abs, tag = 'smem constant byte address 0x4 - core index']
  #allocation1 [shape = 'u32[144,128]{1,0:T(1,128)}', space=vmem, size = 0x12000, scoped, tag = 'internal scratch']
  #allocation2 [shape = 'f32[16,256]{1,0:T(8,128)}', space=vmem, size = 0x4000, scoped, tag = 'scratch operand']
  %s0 = inlined_call_operand.vmem [shape: bf16[16,2048], index: 0, kind: input, shape index: {}]
  %s1 = inlined_call_operand.vmem [shape: bf16[16,16], index: 1, kind: input, shape index: {}]
  %s2 = inlined_call_operand.vmem [shape: s32[1,16,1], index: 2, kind: input, shape index: {}]
  %s3 = inlined_call_operand.vmem [shape: s32[1,1,16], index: 3, kind: input, shape index: {}]
  %s4 = inlined_call_operand.vmem [shape: f32[1,16,1], index: 4, kind: input, shape index: {}]
  %s5 = inlined_call_operand.hbm [shape: bf16[2048,768], index: 5, kind: input, shape index: {}]
  %s6 = inlined_call_operand.hbm [shape: f32[1,768], index: 6, kind: input, shape index: {}]
  %s7 = inlined_call_operand.hbm [shape: bf16[512,256], index: 7, kind: input, shape index: {}]
  %s8 = inlined_call_operand.hbm [shape: f32[1,256], index: 8, kind: input, shape index: {}]
  %s9 = inlined_call_operand.hbm [shape: bf16[16,256], index: 9, kind: input, shape index: {}]
  %s10 = inlined_call_operand.hbm [shape: f32[1,256], index: 10, kind: input, shape index: {}]
  %s11 = inlined_call_operand.hbm [shape: f32[1,256], index: 11, kind: input, shape index: {}]
  %s12 = inlined_call_operand.hbm [shape: f32[1,256], index: 12, kind: input, shape index: {}]
  %s13 = inlined_call_operand.hbm [shape: bf16[256,768], index: 13, kind: input, shape index: {}]
  %s14 = inlined_call_operand.hbm [shape: f32[1,768], index: 14, kind: input, shape index: {}]
  %s15 = inlined_call_operand.hbm [shape: bf16[256,256], index: 15, kind: input, shape index: {}]
  %s16 = inlined_call_operand.hbm [shape: f32[1,256], index: 16, kind: input, shape index: {}]
  %s17 = inlined_call_operand.hbm [shape: f32[1,256], index: 17, kind: input, shape index: {}]
  %s18 = inlined_call_operand.hbm [shape: f32[1,256], index: 18, kind: input, shape index: {}]
  %s19 = inlined_call_operand.hbm [shape: bf16[256,256], index: 19, kind: input, shape index: {}]
  %s20 = inlined_call_operand.hbm [shape: f32[1,256], index: 20, kind: input, shape index: {}]
  %s21 = inlined_call_operand.hbm [shape: bf16[256,256], index: 21, kind: input, shape index: {}]
  %s22 = inlined_call_operand.hbm [shape: f32[1,256], index: 22, kind: input, shape index: {}]
  %s23 = inlined_call_operand.vmem [shape: f32[2,1,256], index: 23, kind: output, shape index: {}]
  %s24 = sld [smem:[#allocation0]]
  $region174: #{image_encoder_forward.1} parent=0
    _
  %s26 = ssub.s32 1, %s24
  %s27 = scalar_select 0, %s26, %s24
  $region1: #{image_encoder_forward.1} parent=0
    #allocation3 [shape = 'u8[3145728]{0}', space=vmem, size = 0x300000, scoped, tag = 'input window, operand 5, single buffered']
    #allocation4 [shape = 's32[1]{0}', space=sflag, size = 0x4, scoped, tag = 'scoped memory for image_encoder_forward.1']
    #allocation5 [shape = 'u8[3072]{0}', space=vmem, size = 0xc00, scoped, tag = 'input window, operand 6, single buffered']
    #allocation6 [shape = 's32[1]{0}', space=sflag, size = 0x4, scoped, tag = 'scoped memory for image_encoder_forward.1']
    #allocation7 [shape = 'u8[262144]{0}', space=vmem, size = 0x40000, scoped, tag = 'input window, operand 7, single buffered']
    #allocation8 [shape = 'u8[1024]{0}', space=vmem, size = 0x400, scoped, tag = 'input window, operand 8, single buffered']
    #allocation9 [shape = 's32[1]{0}', space=sflag, size = 0x4, scoped, tag = 'scoped memory for image_encoder_forward.1']
    #allocation10 [shape = 'u8[8192]{0}', space=vmem, size = 0x2000, scoped, tag = 'input window, operand 9, single buffered']
    #allocation11 [shape = 'u8[1024]{0}', space=vmem, size = 0x400, scoped, tag = 'input window, operand 10, single buffered']
    #allocation12 [shape = 's32[1]{0}', space=sflag, size = 0x4, scoped, tag = 'scoped memory for image_encoder_forward.1']
    #allocation13 [shape = 'u8[1024]{0}', space=vmem, size = 0x400, scoped, tag = 'input window, operand 11, single buffered']
    #allocation14 [shape = 'u8[1024]{0}', space=vmem, size = 0x400, scoped, tag = 'input window, operand 12, single buffered']
    #allocation15 [shape = 's32[1]{0}', space=sflag, size = 0x4, scoped, tag = 'scoped memory for image_encoder_forward.1']
    #allocation16 [shape = 'u8[393216]{0}', space=vmem, size = 0x60000, scoped, tag = 'input window, operand 13, single buffered']
    #allocation17 [shape = 'u8[3072]{0}', space=vmem, size = 0xc00, scoped, tag = 'input window, operand 14, single buffered']
    #allocation18 [shape = 's32[1]{0}', space=sflag, size = 0x4, scoped, tag = 'scoped memory for image_encoder_forward.1']
    #allocation19 [shape = 'u8[131072]{0}', space=vmem, size = 0x20000, scoped, tag = 'input window, operand 15, single buffered']
    #allocation20 [shape = 'u8[1024]{0}', space=vmem, size = 0x400, scoped, tag = 'input window, operand 16, single buffered']
    #allocation21 [shape = 's32[1]{0}', space=sflag, size = 0x4, scoped, tag = 'scoped memory for image_encoder_forward.1']
    #allocation22 [shape = 'u8[1024]{0}', space=vmem, size = 0x400, scoped, tag = 'input window, operand 17, single buffered']
    #allocation23 [shape = 'u8[1024]{0}', space=vmem, size = 0x400, scoped, tag = 'input window, operand 18, single buffered']
    #allocation24 [shape = 's32[1]{0}', space=sflag, size = 0x4, scoped, tag = 'scoped memory for image_encoder_forward.1']
    #allocation25 [shape = 'u8[131072]{0}', space=vmem, size = 0x20000, scoped, tag = 'input window, operand 19, single buffered']
    #allocation26 [shape = 'u8[1024]{0}', space=vmem, size = 0x400, scoped, tag = 'input window, operand 20, single buffered']
    #allocation27 [shape = 's32[1]{0}', space=sflag, size = 0x4, scoped, tag = 'scoped memory for image_encoder_forward.1']
    #allocation28 [shape = 'u8[131072]{0}', space=vmem, size = 0x20000, scoped, tag = 'input window, operand 21, single buffered']
    #allocation29 [shape = 'u8[1024]{0}', space=vmem, size = 0x400, scoped, tag = 'input window, operand 22, single buffered']
    #allocation30 [shape = 's32[1]{0}', space=sflag, size = 0x4, scoped, tag = 'scoped memory for image_encoder_forward.1']
    %28 = vsyncpa [#allocation4], 0
    %29 = vsyncpa [#allocation6], 0
    %30 = vsyncpa [#allocation9], 0
    %31 = vsyncpa [#allocation12], 0
    %32 = vsyncpa [#allocation15], 0
    %33 = vsyncpa [#allocation18], 0
    %34 = vsyncpa [#allocation21], 0
    %35 = vsyncpa [#allocation24], 0
    %36 = vsyncpa [#allocation27], 0
    %37 = vsyncpa [#allocation30], 0
    // Predicated region
    $region2: #{image_encoder_forward.1} parent=1 // pred_check
      _
    $region3: #{image_encoder_forward.1} parent=1 // pred_check_branch
      %39 = sbr.rel (0) target = $region5
    $region4: #{image_encoder_forward.1} parent=1 // pred_region
      _
    $region5: #{image_encoder_forward.1} parent=1 // pred_fallthru
      _
    // Predicated region
    $region6: #{image_encoder_forward.1} parent=1 // pred_check
      _
    $region7: #{image_encoder_forward.1} parent=1 // pred_check_branch
      %41 = sbr.rel (0) target = $region9
    $region8: #{image_encoder_forward.1} parent=1 // pred_region
      _
    $region9: #{image_encoder_forward.1} parent=1 // pred_fallthru
      _
    // Predicated region
    $region10: #{image_encoder_forward.1} parent=1 // pred_check
      _
    $region11: #{image_encoder_forward.1} parent=1 // pred_check_branch
      %43 = sbr.rel (0) target = $region13
    $region12: #{image_encoder_forward.1} parent=1 // pred_region
      _
    $region13: #{image_encoder_forward.1} parent=1 // pred_fallthru
      _
    // Predicated region
    $region14: #{image_encoder_forward.1} parent=1 // pred_check
      _
    $region15: #{image_encoder_forward.1} parent=1 // pred_check_branch
      %45 = sbr.rel (0) target = $region17
    $region16: #{image_encoder_forward.1} parent=1 // pred_region
      _
    $region17: #{image_encoder_forward.1} parent=1 // pred_fallthru
      _
    // Predicated region
    $region18: #{image_encoder_forward.1} parent=1 // pred_check
      _
    $region19: #{image_encoder_forward.1} parent=1 // pred_check_branch
      %47 = sbr.rel (0) target = $region21
    $region20: #{image_encoder_forward.1} parent=1 // pred_region
      _
    $region21: #{image_encoder_forward.1} parent=1 // pred_fallthru
      _
    // Predicated region
    $region22: #{image_encoder_forward.1} parent=1 // pred_check
      _
    $region23: #{image_encoder_forward.1} parent=1 // pred_check_branch
      %49 = sbr.rel (0) target = $region25
    $region24: #{image_encoder_forward.1} parent=1 // pred_region
      %s51 = ssub.s32 98304, 98304
      %52 = vsyncadd [#allocation4], %s51
      %s53 = sshll.u32 [#allocation3], 4
      %s54 = int_to_ptr.vmem [resolvable:$true] %s53
      %59 = dma.hbm_to_vmem [thread:$0]  %s5, 98304, %s54, [#allocation4], 384, 384, 24
    $region25: #{image_encoder_forward.1} parent=1 // pred_fallthru
      _
    // Predicated region
    $region26: #{image_encoder_forward.1} parent=1 // pred_check
      _
    $region27: #{image_encoder_forward.1} parent=1 // pred_check_branch
      %61 = sbr.rel (0) target = $region29
    $region28: #{image_encoder_forward.1} parent=1 // pred_region
      %s63 = ssub.s32 96, 96
      %64 = vsyncadd [#allocation6], %s63
      %s66 = sshll.u32 [#allocation5], 4
      %s67 = int_to_ptr.vmem [resolvable:$true] %s66
      %69 = dma.hbm_to_vmem [thread:$0]  %s6, 96, %s67, [#allocation6]
    $region29: #{image_encoder_forward.1} parent=1 // pred_fallthru
      _
    // Predicated region
    $region30: #{image_encoder_forward.1} parent=1 // pred_check
      _
    $region31: #{image_encoder_forward.1} parent=1 // pred_check_branch
      %71 = sbr.rel (0) target = $region33
    $region32: #{image_encoder_forward.1} parent=1 // pred_region
      %s73 = ssub.s32 8192, 8192
      %74 = vsyncadd [#allocation6], %s73
      %s75 = sshll.u32 [#allocation7], 4
      %s76 = int_to_ptr.vmem [resolvable:$true] %s75
      %81 = dma.hbm_to_vmem [thread:$0]  %s7, 8192, %s76, [#allocation6], 128, 128, 8
    $region33: #{image_encoder_forward.1} parent=1 // pred_fallthru
      _
    // Predicated region
    $region34: #{image_encoder_forward.1} parent=1 // pred_check
      _
    $region35: #{image_encoder_forward.1} parent=1 // pred_check_branch
      %83 = sbr.rel (0) target = $region37
    $region36: #{image_encoder_forward.1} parent=1 // pred_region
      %s85 = ssub.s32 32, 32
      %86 = vsyncadd [#allocation9], %s85
      %s88 = sshll.u32 [#allocation8], 4
      %s89 = int_to_ptr.vmem [resolvable:$true] %s88
      %91 = dma.hbm_to_vmem [thread:$0]  %s8, 32, %s89, [#allocation9]
    $region37: #{image_encoder_forward.1} parent=1 // pred_fallthru
      _
    // Predicated region
    $region38: #{image_encoder_forward.1} parent=1 // pred_check
      _
    $region39: #{image_encoder_forward.1} parent=1 // pred_check_branch
      %93 = sbr.rel (0) target = $region41
    $region40: #{image_encoder_forward.1} parent=1 // pred_region
      %s95 = ssub.s32 256, 256
      %96 = vsyncadd [#allocation9], %s95
      %s97 = sshll.u32 [#allocation10], 4
      %s98 = int_to_ptr.vmem [resolvable:$true] %s97
      %103 = dma.hbm_to_vmem [thread:$0]  %s9, 256, %s98, [#allocation9], 128, 128, 8
    $region41: #{image_encoder_forward.1} parent=1 // pred_fallthru
      _
    // Predicated region
    $region42: #{image_encoder_forward.1} parent=1 // pred_check
      _
    $region43: #{image_encoder_forward.1} parent=1 // pred_check_branch
      %105 = sbr.rel (0) target = $region45
    $region44: #{image_encoder_forward.1} parent=1 // pred_region
      %s107 = ssub.s32 32, 32
      %108 = vsyncadd [#allocation12], %s107
      %s110 = sshll.u32 [#allocation11], 4
      %s111 = int_to_ptr.vmem [resolvable:$true] %s110
      %113 = dma.hbm_to_vmem [thread:$0]  %s10, 32, %s111, [#allocation12]
    $region45: #{image_encoder_forward.1} parent=1 // pred_fallthru
      _
    // Predicated region
    $region46: #{image_encoder_forward.1} parent=1 // pred_check
      _
    $region47: #{image_encoder_forward.1} parent=1 // pred_check_branch
      %115 = sbr.rel (0) target = $region49
    $region48: #{image_encoder_forward.1} parent=1 // pred_region
      %s117 = ssub.s32 32, 32
      %118 = vsyncadd [#allocation12], %s117
      %s120 = sshll.u32 [#allocation13], 4
      %s121 = int_to_ptr.vmem [resolvable:$true] %s120
      %123 = dma.hbm_to_vmem [thread:$0]  %s11, 32, %s121, [#allocation12]
    $region49: #{image_encoder_forward.1} parent=1 // pred_fallthru
      _
    // Predicated region
    $region50: #{image_encoder_forward.1} parent=1 // pred_check
      _
    $region51: #{image_encoder_forward.1} parent=1 // pred_check_branch
      %125 = sbr.rel (0) target = $region53
    $region52: #{image_encoder_forward.1} parent=1 // pred_region
      %s127 = ssub.s32 32, 32
      %128 = vsyncadd [#allocation15], %s127
      %s130 = sshll.u32 [#allocation14], 4
      %s131 = int_to_ptr.vmem [resolvable:$true] %s130
      %133 = dma.hbm_to_vmem [thread:$0]  %s12, 32, %s131, [#allocation15]
    $region53: #{image_encoder_forward.1} parent=1 // pred_fallthru
      _
    // Predicated region
    $region54: #{image_encoder_forward.1} parent=1 // pred_check
      _
    $region55: #{image_encoder_forward.1} parent=1 // pred_check_branch
      %135 = sbr.rel (0) target = $region57
    $region56: #{image_encoder_forward.1} parent=1 // pred_region
      %s137 = ssub.s32 12288, 12288
      %138 = vsyncadd [#allocation15], %s137
      %s139 = sshll.u32 [#allocation16], 4
      %s140 = int_to_ptr.vmem [resolvable:$true] %s139
      %145 = dma.hbm_to_vmem [thread:$0]  %s13, 12288, %s140, [#allocation15], 384, 384, 24
    $region57: #{image_encoder_forward.1} parent=1 // pred_fallthru
      _
    // Predicated region
    $region58: #{image_encoder_forward.1} parent=1 // pred_check
      _
    $region59: #{image_encoder_forward.1} parent=1 // pred_check_branch
      %147 = sbr.rel (0) target = $region61
    $region60: #{image_encoder_forward.1} parent=1 // pred_region
      %s149 = ssub.s32 96, 96
      %150 = vsyncadd [#allocation18], %s149
      %s152 = sshll.u32 [#allocation17], 4
      %s153 = int_to_ptr.vmem [resolvable:$true] %s152
      %155 = dma.hbm_to_vmem [thread:$0]  %s14, 96, %s153, [#allocation18]
    $region61: #{image_encoder_forward.1} parent=1 // pred_fallthru
      _
    // Predicated region
    $region62: #{image_encoder_forward.1} parent=1 // pred_check
      _
    $region63: #{image_encoder_forward.1} parent=1 // pred_check_branch
      %157 = sbr.rel (0) target = $region65
    $region64: #{image_encoder_forward.1} parent=1 // pred_region
      %s159 = ssub.s32 4096, 4096
      %160 = vsyncadd [#allocation18], %s159
      %s161 = sshll.u32 [#allocation19], 4
      %s162 = int_to_ptr.vmem [resolvable:$true] %s161
      %167 = dma.hbm_to_vmem [thread:$0]  %s15, 4096, %s162, [#allocation18], 128, 128, 8
    $region65: #{image_encoder_forward.1} parent=1 // pred_fallthru
      _
    // Predicated region
    $region66: #{image_encoder_forward.1} parent=1 // pred_check
      _
    $region67: #{image_encoder_forward.1} parent=1 // pred_check_branch
      %169 = sbr.rel (0) target = $region69
    $region68: #{image_encoder_forward.1} parent=1 // pred_region
      %s171 = ssub.s32 32, 32
      %172 = vsyncadd [#allocation21], %s171
      %s174 = sshll.u32 [#allocation20], 4
      %s175 = int_to_ptr.vmem [resolvable:$true] %s174
      %177 = dma.hbm_to_vmem [thread:$0]  %s16, 32, %s175, [#allocation21]
    $region69: #{image_encoder_forward.1} parent=1 // pred_fallthru
      _
    // Predicated region
    $region70: #{image_encoder_forward.1} parent=1 // pred_check
      _
    $region71: #{image_encoder_forward.1} parent=1 // pred_check_branch
      %179 = sbr.rel (0) target = $region73
    $region72: #{image_encoder_forward.1} parent=1 // pred_region
      %s181 = ssub.s32 32, 32
      %182 = vsyncadd [#allocation21], %s181
      %s184 = sshll.u32 [#allocation22], 4
      %s185 = int_to_ptr.vmem [resolvable:$true] %s184
      %187 = dma.hbm_to_vmem [thread:$0]  %s17, 32, %s185, [#allocation21]
    $region73: #{image_encoder_forward.1} parent=1 // pred_fallthru
      _
    // Predicated region
    $region74: #{image_encoder_forward.1} parent=1 // pred_check
      _
    $region75: #{image_encoder_forward.1} parent=1 // pred_check_branch
      %189 = sbr.rel (0) target = $region77
    $region76: #{image_encoder_forward.1} parent=1 // pred_region
      %s191 = ssub.s32 32, 32
      %192 = vsyncadd [#allocation24], %s191
      %s194 = sshll.u32 [#allocation23], 4
      %s195 = int_to_ptr.vmem [resolvable:$true] %s194
      %197 = dma.hbm_to_vmem [thread:$0]  %s18, 32, %s195, [#allocation24]
    $region77: #{image_encoder_forward.1} parent=1 // pred_fallthru
      _
    // Predicated region
    $region78: #{image_encoder_forward.1} parent=1 // pred_check
      _
    $region79: #{image_encoder_forward.1} parent=1 // pred_check_branch
      %199 = sbr.rel (0) target = $region81
    $region80: #{image_encoder_forward.1} parent=1 // pred_region
      %s201 = ssub.s32 4096, 4096
      %202 = vsyncadd [#allocation24], %s201
      %s203 = sshll.u32 [#allocation25], 4
      %s204 = int_to_ptr.vmem [resolvable:$true] %s203
      %209 = dma.hbm_to_vmem [thread:$0]  %s19, 4096, %s204, [#allocation24], 128, 128, 8
    $region81: #{image_encoder_forward.1} parent=1 // pred_fallthru
      _
    // Predicated region
    $region82: #{image_encoder_forward.1} parent=1 // pred_check
      _
    $region83: #{image_encoder_forward.1} parent=1 // pred_check_branch
      %211 = sbr.rel (0) target = $region85
    $region84: #{image_encoder_forward.1} parent=1 // pred_region
      %s213 = ssub.s32 32, 32
      %214 = vsyncadd [#allocation27], %s213
      %s216 = sshll.u32 [#allocation26], 4
      %s217 = int_to_ptr.vmem [resolvable:$true] %s216
      %219 = dma.hbm_to_vmem [thread:$0]  %s20, 32, %s217, [#allocation27]
    $region85: #{image_encoder_forward.1} parent=1 // pred_fallthru
      _
    // Predicated region
    $region86: #{image_encoder_forward.1} parent=1 // pred_check
      _
    $region87: #{image_encoder_forward.1} parent=1 // pred_check_branch
      %221 = sbr.rel (0) target = $region89
    $region88: #{image_encoder_forward.1} parent=1 // pred_region
      %s223 = ssub.s32 4096, 4096
      %224 = vsyncadd [#allocation27], %s223
      %s225 = sshll.u32 [#allocation28], 4
      %s226 = int_to_ptr.vmem [resolvable:$true] %s225
      %231 = dma.hbm_to_vmem [thread:$0]  %s21, 4096, %s226, [#allocation27], 128, 128, 8
    $region89: #{image_encoder_forward.1} parent=1 // pred_fallthru
      _
    // Predicated region
    $region90: #{image_encoder_forward.1} parent=1 // pred_check
      _
    $region91: #{image_encoder_forward.1} parent=1 // pred_check_branch
      %233 = sbr.rel (0) target = $region93
    $region92: #{image_encoder_forward.1} parent=1 // pred_region
      %s235 = ssub.s32 32, 32
      %236 = vsyncadd [#allocation30], %s235
      %s238 = sshll.u32 [#allocation29], 4
      %s239 = int_to_ptr.vmem [resolvable:$true] %s238
      %241 = dma.hbm_to_vmem [thread:$0]  %s22, 32, %s239, [#allocation30]
    $region93: #{image_encoder_forward.1} parent=1 // pred_fallthru
      _
    // Predicated region
    $region94: #{image_encoder_forward.1} parent=1 // pred_check
      _
    $region95: #{image_encoder_forward.1} parent=1 // pred_check_branch
      %243 = sbr.rel (0) target = $region97
    $region96: #{image_encoder_forward.1} parent=1 // pred_region
      %244 = dma.done [#allocation4], 98304
    $region97: #{image_encoder_forward.1} parent=1 // pred_fallthru
      _
    // Predicated region
    $region98: #{image_encoder_forward.1} parent=1 // pred_check
      _
    $region99: #{image_encoder_forward.1} parent=1 // pred_check_branch
      %246 = sbr.rel (0) target = $region101
    $region100: #{image_encoder_forward.1} parent=1 // pred_region
      %247 = dma.done [#allocation6], 96
    $region101: #{image_encoder_forward.1} parent=1 // pred_fallthru
      _
    // Predicated region
    $region102: #{image_encoder_forward.1} parent=1 // pred_check
      _
    $region103: #{image_encoder_forward.1} parent=1 // pred_check_branch
      %249 = sbr.rel (0) target = $region105
    $region104: #{image_encoder_forward.1} parent=1 // pred_region
      %250 = dma.done [#allocation6], 8192
    $region105: #{image_encoder_forward.1} parent=1 // pred_fallthru
      _
    // Predicated region
    $region106: #{image_encoder_forward.1} parent=1 // pred_check
      _
    $region107: #{image_encoder_forward.1} parent=1 // pred_check_branch
      %252 = sbr.rel (0) target = $region109
    $region108: #{image_encoder_forward.1} parent=1 // pred_region
      %253 = dma.done [#allocation9], 32
    $region109: #{image_encoder_forward.1} parent=1 // pred_fallthru
      _
    // Predicated region
    $region110: #{image_encoder_forward.1} parent=1 // pred_check
      _
    $region111: #{image_encoder_forward.1} parent=1 // pred_check_branch
      %255 = sbr.rel (0) target = $region113
    $region112: #{image_encoder_forward.1} parent=1 // pred_region
      %256 = dma.done [#allocation9], 256
    $region113: #{image_encoder_forward.1} parent=1 // pred_fallthru
      _
    // Predicated region
    $region114: #{image_encoder_forward.1} parent=1 // pred_check
      _
    $region115: #{image_encoder_forward.1} parent=1 // pred_check_branch
      %258 = sbr.rel (0) target = $region117
    $region116: #{image_encoder_forward.1} parent=1 // pred_region
      %259 = dma.done [#allocation12], 32
    $region117: #{image_encoder_forward.1} parent=1 // pred_fallthru
      _
    // Predicated region
    $region118: #{image_encoder_forward.1} parent=1 // pred_check
      _
    $region119: #{image_encoder_forward.1} parent=1 // pred_check_branch
      %261 = sbr.rel (0) target = $region121
    $region120: #{image_encoder_forward.1} parent=1 // pred_region
      %262 = dma.done [#allocation12], 32
    $region121: #{image_encoder_forward.1} parent=1 // pred_fallthru
      _
    // Predicated region
    $region122: #{image_encoder_forward.1} parent=1 // pred_check
      _
    $region123: #{image_encoder_forward.1} parent=1 // pred_check_branch
      %264 = sbr.rel (0) target = $region125
    $region124: #{image_encoder_forward.1} parent=1 // pred_region
      %265 = dma.done [#allocation15], 32
    $region125: #{image_encoder_forward.1} parent=1 // pred_fallthru
      _
    // Predicated region
    $region126: #{image_encoder_forward.1} parent=1 // pred_check
      _
    $region127: #{image_encoder_forward.1} parent=1 // pred_check_branch
      %267 = sbr.rel (0) target = $region129
    $region128: #{image_encoder_forward.1} parent=1 // pred_region
      %268 = dma.done [#allocation15], 12288
    $region129: #{image_encoder_forward.1} parent=1 // pred_fallthru
      _
    // Predicated region
    $region130: #{image_encoder_forward.1} parent=1 // pred_check
      _
    $region131: #{image_encoder_forward.1} parent=1 // pred_check_branch
      %270 = sbr.rel (0) target = $region133
    $region132: #{image_encoder_forward.1} parent=1 // pred_region
      %271 = dma.done [#allocation18], 96
    $region133: #{image_encoder_forward.1} parent=1 // pred_fallthru
      _
    // Predicated region
    $region134: #{image_encoder_forward.1} parent=1 // pred_check
      _
    $region135: #{image_encoder_forward.1} parent=1 // pred_check_branch
      %273 = sbr.rel (0) target = $region137
    $region136: #{image_encoder_forward.1} parent=1 // pred_region
      %274 = dma.done [#allocation18], 4096
    $region137: #{image_encoder_forward.1} parent=1 // pred_fallthru
      _
    // Predicated region
    $region138: #{image_encoder_forward.1} parent=1 // pred_check
      _
    $region139: #{image_encoder_forward.1} parent=1 // pred_check_branch
      %276 = sbr.rel (0) target = $region141
    $region140: #{image_encoder_forward.1} parent=1 // pred_region
      %277 = dma.done [#allocation21], 32
    $region141: #{image_encoder_forward.1} parent=1 // pred_fallthru
      _
    // Predicated region
    $region142: #{image_encoder_forward.1} parent=1 // pred_check
      _
    $region143: #{image_encoder_forward.1} parent=1 // pred_check_branch
      %279 = sbr.rel (0) target = $region145
    $region144: #{image_encoder_forward.1} parent=1 // pred_region
      %280 = dma.done [#allocation21], 32
    $region145: #{image_encoder_forward.1} parent=1 // pred_fallthru
      _
    // Predicated region
    $region146: #{image_encoder_forward.1} parent=1 // pred_check
      _
    $region147: #{image_encoder_forward.1} parent=1 // pred_check_branch
      %282 = sbr.rel (0) target = $region149
    $region148: #{image_encoder_forward.1} parent=1 // pred_region
      %283 = dma.done [#allocation24], 32
    $region149: #{image_encoder_forward.1} parent=1 // pred_fallthru
      _
    // Predicated region
    $region150: #{image_encoder_forward.1} parent=1 // pred_check
      _
    $region151: #{image_encoder_forward.1} parent=1 // pred_check_branch
      %285 = sbr.rel (0) target = $region153
    $region152: #{image_encoder_forward.1} parent=1 // pred_region
      %286 = dma.done [#allocation24], 4096
    $region153: #{image_encoder_forward.1} parent=1 // pred_fallthru
      _
    // Predicated region
    $region154: #{image_encoder_forward.1} parent=1 // pred_check
      _
    $region155: #{image_encoder_forward.1} parent=1 // pred_check_branch
      %288 = sbr.rel (0) target = $region157
    $region156: #{image_encoder_forward.1} parent=1 // pred_region
      %289 = dma.done [#allocation27], 32
    $region157: #{image_encoder_forward.1} parent=1 // pred_fallthru
      _
    // Predicated region
    $region158: #{image_encoder_forward.1} parent=1 // pred_check
      _
    $region159: #{image_encoder_forward.1} parent=1 // pred_check_branch
      %291 = sbr.rel (0) target = $region161
    $region160: #{image_encoder_forward.1} parent=1 // pred_region
      %292 = dma.done [#allocation27], 4096
    $region161: #{image_encoder_forward.1} parent=1 // pred_fallthru
      _
    // Predicated region
    $region162: #{image_encoder_forward.1} parent=1 // pred_check
      _
    $region163: #{image_encoder_forward.1} parent=1 // pred_check_branch
      %294 = sbr.rel (0) target = $region165
    $region164: #{image_encoder_forward.1} parent=1 // pred_region
      %295 = dma.done [#allocation30], 32
    $region165: #{image_encoder_forward.1} parent=1 // pred_fallthru
      _
    %v297 = vld [vmem:[%s0] sm:$0xff]
    %v298 = vld [vmem:[%s0 + $0x8] sm:$0xff]
    %v299 = vld [vmem:[%s0 + $0x10] sm:$0xff]
    %v300 = vld [vmem:[%s0 + $0x18] sm:$0xff]
    %v301 = vld [vmem:[%s0 + $0x20] sm:$0xff]
    %v302 = vld [vmem:[%s0 + $0x28] sm:$0xff]
    %v303 = vld [vmem:[%s0 + $0x30] sm:$0xff]
    %v304 = vld [vmem:[%s0 + $0x38] sm:$0xff]
    %v305 = vld [vmem:[%s0 + $0x40] sm:$0xff]
    %v306 = vld [vmem:[%s0 + $0x48] sm:$0xff]
    %v307 = vld [vmem:[%s0 + $0x50] sm:$0xff]
    %v308 = vld [vmem:[%s0 + $0x58] sm:$0xff]
    %v309 = vld [vmem:[%s0 + $0x60] sm:$0xff]
    %v310 = vld [vmem:[%s0 + $0x68] sm:$0xff]
    %v311 = vld [vmem:[%s0 + $0x70] sm:$0xff]
    %v312 = vld [vmem:[%s0 + $0x78] sm:$0xff]
    %v313 = vld [vmem:[#allocation3] sm:$0xff]
    %v314 = vld [vmem:[#allocation3 + $0x8] sm:$0xff]
    %v315 = vld [vmem:[#allocation3 + $0x10] sm:$0xff]
    %v316 = vld [vmem:[#allocation3 + $0x18] sm:$0xff]
    %v317 = vld [vmem:[#allocation3 + $0x20] sm:$0xff]
    %v318 = vld [vmem:[#allocation3 + $0x28] sm:$0xff]
    %v319 = vld [vmem:[#allocation3 + $0x30] sm:$0xff]
    %v320 = vld [vmem:[#allocation3 + $0x38] sm:$0xff]
    %v321 = vld [vmem:[#allocation3 + $0x40] sm:$0xff]
    %v322 = vld [vmem:[#allocation3 + $0x48] sm:$0xff]
    %v323 = vld [vmem:[#allocation3 + $0x50] sm:$0xff]
    %v324 = vld [vmem:[#allocation3 + $0x58] sm:$0xff]
    %v325 = vld [vmem:[#allocation3 + $0x60] sm:$0xff]
    %v326 = vld [vmem:[#allocation3 + $0x68] sm:$0xff]
    %v327 = vld [vmem:[#allocation3 + $0x70] sm:$0xff]
    %v328 = vld [vmem:[#allocation3 + $0x78] sm:$0xff]
    %v329 = vld [vmem:[#allocation3 + $0x80] sm:$0xff]
    %v330 = vld [vmem:[#allocation3 + $0x88] sm:$0xff]
    %v331 = vld [vmem:[#allocation3 + $0x90] sm:$0xff]
    %v332 = vld [vmem:[#allocation3 + $0x98] sm:$0xff]
    %v333 = vld [vmem:[#allocation3 + $0xa0] sm:$0xff]
    %v334 = vld [vmem:[#allocation3 + $0xa8] sm:$0xff]
    %v335 = vld [vmem:[#allocation3 + $0xb0] sm:$0xff]
    %v336 = vld [vmem:[#allocation3 + $0xb8] sm:$0xff]
    %v337 = vld [vmem:[#allocation3 + $0xc0] sm:$0xff]
    %v338 = vld [vmem:[#allocation3 + $0xc8] sm:$0xff]
    %v339 = vld [vmem:[#allocation3 + $0xd0] sm:$0xff]
    %v340 = vld [vmem:[#allocation3 + $0xd8] sm:$0xff]
    %v341 = vld [vmem:[#allocation3 + $0xe0] sm:$0xff]
    %v342 = vld [vmem:[#allocation3 + $0xe8] sm:$0xff]
    %v343 = vld [vmem:[#allocation3 + $0xf0] sm:$0xff]
    %v344 = vld [vmem:[#allocation3 + $0xf8] sm:$0xff]
    %v345 = vld [vmem:[#allocation3 + $0x100] sm:$0xff]
    %v346 = vld [vmem:[#allocation3 + $0x108] sm:$0xff]
    %v347 = vld [vmem:[#allocation3 + $0x110] sm:$0xff]
    %v348 = vld [vmem:[#allocation3 + $0x118] sm:$0xff]
    %v349 = vld [vmem:[#allocation3 + $0x120] sm:$0xff]
    %v350 = vld [vmem:[#allocation3 + $0x128] sm:$0xff]
    %v351 = vld [vmem:[#allocation3 + $0x130] sm:$0xff]
    %v352 = vld [vmem:[#allocation3 + $0x138] sm:$0xff]
    %v353 = vld [vmem:[#allocation3 + $0x140] sm:$0xff]
    %v354 = vld [vmem:[#allocation3 + $0x148] sm:$0xff]
    %v355 = vld [vmem:[#allocation3 + $0x150] sm:$0xff]
    %v356 = vld [vmem:[#allocation3 + $0x158] sm:$0xff]
    %v357 = vld [vmem:[#allocation3 + $0x160] sm:$0xff]
    %v358 = vld [vmem:[#allocation3 + $0x168] sm:$0xff]
    %v359 = vld [vmem:[#allocation3 + $0x170] sm:$0xff]
    %v360 = vld [vmem:[#allocation3 + $0x178] sm:$0xff]
    %v361 = vld [vmem:[#allocation3 + $0x180] sm:$0xff]
    %v362 = vld [vmem:[#allocation3 + $0x188] sm:$0xff]
    %v363 = vld [vmem:[#allocation3 + $0x190] sm:$0xff]
    %v364 = vld [vmem:[#allocation3 + $0x198] sm:$0xff]
    %v365 = vld [vmem:[#allocation3 + $0x1a0] sm:$0xff]
    %v366 = vld [vmem:[#allocation3 + $0x1a8] sm:$0xff]
    %v367 = vld [vmem:[#allocation3 + $0x1b0] sm:$0xff]
    %v368 = vld [vmem:[#allocation3 + $0x1b8] sm:$0xff]
    %v369 = vld [vmem:[#allocation3 + $0x1c0] sm:$0xff]
    %v370 = vld [vmem:[#allocation3 + $0x1c8] sm:$0xff]
    %v371 = vld [vmem:[#allocation3 + $0x1d0] sm:$0xff]
    %v372 = vld [vmem:[#allocation3 + $0x1d8] sm:$0xff]
    %v373 = vld [vmem:[#allocation3 + $0x1e0] sm:$0xff]
    %v374 = vld [vmem:[#allocation3 + $0x1e8] sm:$0xff]
    %v375 = vld [vmem:[#allocation3 + $0x1f0] sm:$0xff]
    %v376 = vld [vmem:[#allocation3 + $0x1f8] sm:$0xff]
    %v377 = vld [vmem:[#allocation3 + $0x200] sm:$0xff]
    %v378 = vld [vmem:[#allocation3 + $0x208] sm:$0xff]
    %v379 = vld [vmem:[#allocation3 + $0x210] sm:$0xff]
    %v380 = vld [vmem:[#allocation3 + $0x218] sm:$0xff]
    %v381 = vld [vmem:[#allocation3 + $0x220] sm:$0xff]
    %v382 = vld [vmem:[#allocation3 + $0x228] sm:$0xff]
    %v383 = vld [vmem:[#allocation3 + $0x230] sm:$0xff]
    %v384 = vld [vmem:[#allocation3 + $0x238] sm:$0xff]
    %v385 = vld [vmem:[#allocation3 + $0x240] sm:$0xff]
    %v386 = vld [vmem:[#allocation3 + $0x248] sm:$0xff]
    %v387 = vld [vmem:[#allocation3 + $0x250] sm:$0xff]
    %v388 = vld [vmem:[#allocation3 + $0x258] sm:$0xff]
    %v389 = vld [vmem:[#allocation3 + $0x260] sm:$0xff]
    %v390 = vld [vmem:[#allocation3 + $0x268] sm:$0xff]
    %v391 = vld [vmem:[#allocation3 + $0x270] sm:$0xff]
    %v392 = vld [vmem:[#allocation3 + $0x278] sm:$0xff]
    %v393 = vld [vmem:[#allocation3 + $0x280] sm:$0xff]
    %v394 = vld [vmem:[#allocation3 + $0x288] sm:$0xff]
    %v395 = vld [vmem:[#allocation3 + $0x290] sm:$0xff]
    %v396 = vld [vmem:[#allocation3 + $0x298] sm:$0xff]
    %v397 = vld [vmem:[#allocation3 + $0x2a0] sm:$0xff]
    %v398 = vld [vmem:[#allocation3 + $0x2a8] sm:$0xff]
    %v399 = vld [vmem:[#allocation3 + $0x2b0] sm:$0xff]
    %v400 = vld [vmem:[#allocation3 + $0x2b8] sm:$0xff]
    %v401 = vld [vmem:[#allocation3 + $0x2c0] sm:$0xff]
    %v402 = vld [vmem:[#allocation3 + $0x2c8] sm:$0xff]
    %v403 = vld [vmem:[#allocation3 + $0x2d0] sm:$0xff]
    %v404 = vld [vmem:[#allocation3 + $0x2d8] sm:$0xff]
    %v405 = vld [vmem:[#allocation3 + $0x2e0] sm:$0xff]
    %v406 = vld [vmem:[#allocation3 + $0x2e8] sm:$0xff]
    %v407 = vld [vmem:[#allocation3 + $0x2f0] sm:$0xff]
    %v408 = vld [vmem:[#allocation3 + $0x2f8] sm:$0xff]
    %v409 = vld [vmem:[#allocation3 + $0x300] sm:$0xff]
    %v410 = vld [vmem:[#allocation3 + $0x308] sm:$0xff]
    %v411 = vld [vmem:[#allocation3 + $0x310] sm:$0xff]
    %v412 = vld [vmem:[#allocation3 + $0x318] sm:$0xff]
    %v413 = vld [vmem:[#allocation3 + $0x320] sm:$0xff]
    %v414 = vld [vmem:[#allocation3 + $0x328] sm:$0xff]
    %v415 = vld [vmem:[#allocation3 + $0x330] sm:$0xff]
    %v416 = vld [vmem:[#allocation3 + $0x338] sm:$0xff]
    %v417 = vld [vmem:[#allocation3 + $0x340] sm:$0xff]
    %v418 = vld [vmem:[#allocation3 + $0x348] sm:$0xff]
    %v419 = vld [vmem:[#allocation3 + $0x350] sm:$0xff]
    %v420 = vld [vmem:[#allocation3 + $0x358] sm:$0xff]
    %v421 = vld [vmem:[#allocation3 + $0x360] sm:$0xff]
    %v422 = vld [vmem:[#allocation3 + $0x368] sm:$0xff]
    %v423 = vld [vmem:[#allocation3 + $0x370] sm:$0xff]
    %v424 = vld [vmem:[#allocation3 + $0x378] sm:$0xff]
    %v425 = vld [vmem:[#allocation3 + $0x380] sm:$0xff]
    %v426 = vld [vmem:[#allocation3 + $0x388] sm:$0xff]
    %v427 = vld [vmem:[#allocation3 + $0x390] sm:$0xff]
    %v428 = vld [vmem:[#allocation3 + $0x398] sm:$0xff]
    %v429 = vld [vmem:[#allocation3 + $0x3a0] sm:$0xff]
    %v430 = vld [vmem:[#allocation3 + $0x3a8] sm:$0xff]
    %v431 = vld [vmem:[#allocation3 + $0x3b0] sm:$0xff]
    %v432 = vld [vmem:[#allocation3 + $0x3b8] sm:$0xff]
    %v433 = vld [vmem:[#allocation3 + $0x3c0] sm:$0xff]
    %v434 = vld [vmem:[#allocation3 + $0x3c8] sm:$0xff]
    %v435 = vld [vmem:[#allocation3 + $0x3d0] sm:$0xff]
    %v436 = vld [vmem:[#allocation3 + $0x3d8] sm:$0xff]
    %v437 = vld [vmem:[#allocation3 + $0x3e0] sm:$0xff]
    %v438 = vld [vmem:[#allocation3 + $0x3e8] sm:$0xff]
    %v439 = vld [vmem:[#allocation3 + $0x3f0] sm:$0xff]
    %v440 = vld [vmem:[#allocation3 + $0x3f8] sm:$0xff]
    %v441 = vld [vmem:[#allocation3 + $0x400] sm:$0xff]
    %v442 = vld [vmem:[#allocation3 + $0x408] sm:$0xff]
    %v443 = vld [vmem:[#allocation3 + $0x410] sm:$0xff]
    %v444 = vld [vmem:[#allocation3 + $0x418] sm:$0xff]
    %v445 = vld [vmem:[#allocation3 + $0x420] sm:$0xff]
    %v446 = vld [vmem:[#allocation3 + $0x428] sm:$0xff]
    %v447 = vld [vmem:[#allocation3 + $0x430] sm:$0xff]
    %v448 = vld [vmem:[#allocation3 + $0x438] sm:$0xff]
    %v449 = vld [vmem:[#allocation3 + $0x440] sm:$0xff]
    %v450 = vld [vmem:[#allocation3 + $0x448] sm:$0xff]
    %v451 = vld [vmem:[#allocation3 + $0x450] sm:$0xff]
    %v452 = vld [vmem:[#allocation3 + $0x458] sm:$0xff]
    %v453 = vld [vmem:[#allocation3 + $0x460] sm:$0xff]
    %v454 = vld [vmem:[#allocation3 + $0x468] sm:$0xff]
    %v455 = vld [vmem:[#allocation3 + $0x470] sm:$0xff]
    %v456 = vld [vmem:[#allocation3 + $0x478] sm:$0xff]
    %v457 = vld [vmem:[#allocation3 + $0x480] sm:$0xff]
    %v458 = vld [vmem:[#allocation3 + $0x488] sm:$0xff]
    %v459 = vld [vmem:[#allocation3 + $0x490] sm:$0xff]
    %v460 = vld [vmem:[#allocation3 + $0x498] sm:$0xff]
    %v461 = vld [vmem:[#allocation3 + $0x4a0] sm:$0xff]
    %v462 = vld [vmem:[#allocation3 + $0x4a8] sm:$0xff]
    %v463 = vld [vmem:[#allocation3 + $0x4b0] sm:$0xff]
    %v464 = vld [vmem:[#allocation3 + $0x4b8] sm:$0xff]
    %v465 = vld [vmem:[#allocation3 + $0x4c0] sm:$0xff]
    %v466 = vld [vmem:[#allocation3 + $0x4c8] sm:$0xff]
    %v467 = vld [vmem:[#allocation3 + $0x4d0] sm:$0xff]
    %v468 = vld [vmem:[#allocation3 + $0x4d8] sm:$0xff]
    %v469 = vld [vmem:[#allocation3 + $0x4e0] sm:$0xff]
    %v470 = vld [vmem:[#allocation3 + $0x4e8] sm:$0xff]
    %v471 = vld [vmem:[#allocation3 + $0x4f0] sm:$0xff]
    %v472 = vld [vmem:[#allocation3 + $0x4f8] sm:$0xff]
    %v473 = vld [vmem:[#allocation3 + $0x500] sm:$0xff]
    %v474 = vld [vmem:[#allocation3 + $0x508] sm:$0xff]
    %v475 = vld [vmem:[#allocation3 + $0x510] sm:$0xff]
    %v476 = vld [vmem:[#allocation3 + $0x518] sm:$0xff]
    %v477 = vld [vmem:[#allocation3 + $0x520] sm:$0xff]
    %v478 = vld [vmem:[#allocation3 + $0x528] sm:$0xff]
    %v479 = vld [vmem:[#allocation3 + $0x530] sm:$0xff]
    %v480 = vld [vmem:[#allocation3 + $0x538] sm:$0xff]
    %v481 = vld [vmem:[#allocation3 + $0x540] sm:$0xff]
    %v482 = vld [vmem:[#allocation3 + $0x548] sm:$0xff]
    %v483 = vld [vmem:[#allocation3 + $0x550] sm:$0xff]
    %v484 = vld [vmem:[#allocation3 + $0x558] sm:$0xff]
    %v485 = vld [vmem:[#allocation3 + $0x560] sm:$0xff]
    %v486 = vld [vmem:[#allocation3 + $0x568] sm:$0xff]
    %v487 = vld [vmem:[#allocation3 + $0x570] sm:$0xff]
    %v488 = vld [vmem:[#allocation3 + $0x578] sm:$0xff]
    %v489 = vld [vmem:[#allocation3 + $0x580] sm:$0xff]
    %v490 = vld [vmem:[#allocation3 + $0x588] sm:$0xff]
    %v491 = vld [vmem:[#allocation3 + $0x590] sm:$0xff]
    %v492 = vld [vmem:[#allocation3 + $0x598] sm:$0xff]
    %v493 = vld [vmem:[#allocation3 + $0x5a0] sm:$0xff]
    %v494 = vld [vmem:[#allocation3 + $0x5a8] sm:$0xff]
    %v495 = vld [vmem:[#allocation3 + $0x5b0] sm:$0xff]
    %v496 = vld [vmem:[#allocation3 + $0x5b8] sm:$0xff]
    %v497 = vld [vmem:[#allocation3 + $0x5c0] sm:$0xff]
    %v498 = vld [vmem:[#allocation3 + $0x5c8] sm:$0xff]
    %v499 = vld [vmem:[#allocation3 + $0x5d0] sm:$0xff]
    %v500 = vld [vmem:[#allocation3 + $0x5d8] sm:$0xff]
    %v501 = vld [vmem:[#allocation3 + $0x5e0] sm:$0xff]
    %v502 = vld [vmem:[#allocation3 + $0x5e8] sm:$0xff]
    %v503 = vld [vmem:[#allocation3 + $0x5f0] sm:$0xff]
    %v504 = vld [vmem:[#allocation3 + $0x5f8] sm:$0xff]
    %v505 = vld [vmem:[#allocation3 + $0x600] sm:$0xff]
    %v506 = vld [vmem:[#allocation3 + $0x608] sm:$0xff]
    %v507 = vld [vmem:[#allocation3 + $0x610] sm:$0xff]
    %v508 = vld [vmem:[#allocation3 + $0x618] sm:$0xff]
    %v509 = vld [vmem:[#allocation3 + $0x620] sm:$0xff]
    %v510 = vld [vmem:[#allocation3 + $0x628] sm:$0xff]
    %v511 = vld [vmem:[#allocation3 + $0x630] sm:$0xff]
    %v512 = vld [vmem:[#allocation3 + $0x638] sm:$0xff]
    %v513 = vld [vmem:[#allocation3 + $0x640] sm:$0xff]
    %v514 = vld [vmem:[#allocation3 + $0x648] sm:$0xff]
    %v515 = vld [vmem:[#allocation3 + $0x650] sm:$0xff]
    %v516 = vld [vmem:[#allocation3 + $0x658] sm:$0xff]
    %v517 = vld [vmem:[#allocation3 + $0x660] sm:$0xff]
    %v518 = vld [vmem:[#allocation3 + $0x668] sm:$0xff]
    %v519 = vld [vmem:[#allocation3 + $0x670] sm:$0xff]
    %v520 = vld [vmem:[#allocation3 + $0x678] sm:$0xff]
    %v521 = vld [vmem:[#allocation3 + $0x680] sm:$0xff]
    %v522 = vld [vmem:[#allocation3 + $0x688] sm:$0xff]
    %v523 = vld [vmem:[#allocation3 + $0x690] sm:$0xff]
    %v524 = vld [vmem:[#allocation3 + $0x698] sm:$0xff]
    %v525 = vld [vmem:[#allocation3 + $0x6a0] sm:$0xff]
    %v526 = vld [vmem:[#allocation3 + $0x6a8] sm:$0xff]
    %v527 = vld [vmem:[#allocation3 + $0x6b0] sm:$0xff]
    %v528 = vld [vmem:[#allocation3 + $0x6b8] sm:$0xff]
    %v529 = vld [vmem:[#allocation3 + $0x6c0] sm:$0xff]
    %v530 = vld [vmem:[#allocation3 + $0x6c8] sm:$0xff]
    %v531 = vld [vmem:[#allocation3 + $0x6d0] sm:$0xff]
    %v532 = vld [vmem:[#allocation3 + $0x6d8] sm:$0xff]
    %v533 = vld [vmem:[#allocation3 + $0x6e0] sm:$0xff]
    %v534 = vld [vmem:[#allocation3 + $0x6e8] sm:$0xff]
    %v535 = vld [vmem:[#allocation3 + $0x6f0] sm:$0xff]
    %v536 = vld [vmem:[#allocation3 + $0x6f8] sm:$0xff]
    %v537 = vld [vmem:[#allocation3 + $0x700] sm:$0xff]
    %v538 = vld [vmem:[#allocation3 + $0x708] sm:$0xff]
    %v539 = vld [vmem:[#allocation3 + $0x710] sm:$0xff]
    %v540 = vld [vmem:[#allocation3 + $0x718] sm:$0xff]
    %v541 = vld [vmem:[#allocation3 + $0x720] sm:$0xff]
    %v542 = vld [vmem:[#allocation3 + $0x728] sm:$0xff]
    %v543 = vld [vmem:[#allocation3 + $0x730] sm:$0xff]
    %v544 = vld [vmem:[#allocation3 + $0x738] sm:$0xff]
    %v545 = vld [vmem:[#allocation3 + $0x740] sm:$0xff]
    %v546 = vld [vmem:[#allocation3 + $0x748] sm:$0xff]
    %v547 = vld [vmem:[#allocation3 + $0x750] sm:$0xff]
    %v548 = vld [vmem:[#allocation3 + $0x758] sm:$0xff]
    %v549 = vld [vmem:[#allocation3 + $0x760] sm:$0xff]
    %v550 = vld [vmem:[#allocation3 + $0x768] sm:$0xff]
    %v551 = vld [vmem:[#allocation3 + $0x770] sm:$0xff]
    %v552 = vld [vmem:[#allocation3 + $0x778] sm:$0xff]
    %v553 = vld [vmem:[#allocation3 + $0x780] sm:$0xff]
    %v554 = vld [vmem:[#allocation3 + $0x788] sm:$0xff]
    %v555 = vld [vmem:[#allocation3 + $0x790] sm:$0xff]
    %v556 = vld [vmem:[#allocation3 + $0x798] sm:$0xff]
    %v557 = vld [vmem:[#allocation3 + $0x7a0] sm:$0xff]
    %v558 = vld [vmem:[#allocation3 + $0x7a8] sm:$0xff]
    %v559 = vld [vmem:[#allocation3 + $0x7b0] sm:$0xff]
    %v560 = vld [vmem:[#allocation3 + $0x7b8] sm:$0xff]
    %v561 = vld [vmem:[#allocation3 + $0x7c0] sm:$0xff]
    %v562 = vld [vmem:[#allocation3 + $0x7c8] sm:$0xff]
    %v563 = vld [vmem:[#allocation3 + $0x7d0] sm:$0xff]
    %v564 = vld [vmem:[#allocation3 + $0x7d8] sm:$0xff]
    %v565 = vld [vmem:[#allocation3 + $0x7e0] sm:$0xff]
    %v566 = vld [vmem:[#allocation3 + $0x7e8] sm:$0xff]
    %v567 = vld [vmem:[#allocation3 + $0x7f0] sm:$0xff]
    %v568 = vld [vmem:[#allocation3 + $0x7f8] sm:$0xff]
    %v569 = vld [vmem:[#allocation3 + $0x800] sm:$0xff]
    %v570 = vld [vmem:[#allocation3 + $0x808] sm:$0xff]
    %v571 = vld [vmem:[#allocation3 + $0x810] sm:$0xff]
    %v572 = vld [vmem:[#allocation3 + $0x818] sm:$0xff]
    %v573 = vld [vmem:[#allocation3 + $0x820] sm:$0xff]
    %v574 = vld [vmem:[#allocation3 + $0x828] sm:$0xff]
    %v575 = vld [vmem:[#allocation3 + $0x830] sm:$0xff]
    %v576 = vld [vmem:[#allocation3 + $0x838] sm:$0xff]
    %v577 = vld [vmem:[#allocation3 + $0x840] sm:$0xff]
    %v578 = vld [vmem:[#allocation3 + $0x848] sm:$0xff]
    %v579 = vld [vmem:[#allocation3 + $0x850] sm:$0xff]
    %v580 = vld [vmem:[#allocation3 + $0x858] sm:$0xff]
    %v581 = vld [vmem:[#allocation3 + $0x860] sm:$0xff]
    %v582 = vld [vmem:[#allocation3 + $0x868] sm:$0xff]
    %v583 = vld [vmem:[#allocation3 + $0x870] sm:$0xff]
    %v584 = vld [vmem:[#allocation3 + $0x878] sm:$0xff]
    %v585 = vld [vmem:[#allocation3 + $0x880] sm:$0xff]
    %v586 = vld [vmem:[#allocation3 + $0x888] sm:$0xff]
    %v587 = vld [vmem:[#allocation3 + $0x890] sm:$0xff]
    %v588 = vld [vmem:[#allocation3 + $0x898] sm:$0xff]
    %v589 = vld [vmem:[#allocation3 + $0x8a0] sm:$0xff]
    %v590 = vld [vmem:[#allocation3 + $0x8a8] sm:$0xff]
    %v591 = vld [vmem:[#allocation3 + $0x8b0] sm:$0xff]
    %v592 = vld [vmem:[#allocation3 + $0x8b8] sm:$0xff]
    %v593 = vld [vmem:[#allocation3 + $0x8c0] sm:$0xff]
    %v594 = vld [vmem:[#allocation3 + $0x8c8] sm:$0xff]
    %v595 = vld [vmem:[#allocation3 + $0x8d0] sm:$0xff]
    %v596 = vld [vmem:[#allocation3 + $0x8d8] sm:$0xff]
    %v597 = vld [vmem:[#allocation3 + $0x8e0] sm:$0xff]
    %v598 = vld [vmem:[#allocation3 + $0x8e8] sm:$0xff]
    %v599 = vld [vmem:[#allocation3 + $0x8f0] sm:$0xff]
    %v600 = vld [vmem:[#allocation3 + $0x8f8] sm:$0xff]
    %v601 = vld [vmem:[#allocation3 + $0x900] sm:$0xff]
    %v602 = vld [vmem:[#allocation3 + $0x908] sm:$0xff]
    %v603 = vld [vmem:[#allocation3 + $0x910] sm:$0xff]
    %v604 = vld [vmem:[#allocation3 + $0x918] sm:$0xff]
    %v605 = vld [vmem:[#allocation3 + $0x920] sm:$0xff]
    %v606 = vld [vmem:[#allocation3 + $0x928] sm:$0xff]
    %v607 = vld [vmem:[#allocation3 + $0x930] sm:$0xff]
    %v608 = vld [vmem:[#allocation3 + $0x938] sm:$0xff]
    %v609 = vld [vmem:[#allocation3 + $0x940] sm:$0xff]
    %v610 = vld [vmem:[#allocation3 + $0x948] sm:$0xff]
    %v611 = vld [vmem:[#allocation3 + $0x950] sm:$0xff]
    %v612 = vld [vmem:[#allocation3 + $0x958] sm:$0xff]
    %v613 = vld [vmem:[#allocation3 + $0x960] sm:$0xff]
    %v614 = vld [vmem:[#allocation3 + $0x968] sm:$0xff]
    %v615 = vld [vmem:[#allocation3 + $0x970] sm:$0xff]
    %v616 = vld [vmem:[#allocation3 + $0x978] sm:$0xff]
    %v617 = vld [vmem:[#allocation3 + $0x980] sm:$0xff]
    %v618 = vld [vmem:[#allocation3 + $0x988] sm:$0xff]
    %v619 = vld [vmem:[#allocation3 + $0x990] sm:$0xff]
    %v620 = vld [vmem:[#allocation3 + $0x998] sm:$0xff]
    %v621 = vld [vmem:[#allocation3 + $0x9a0] sm:$0xff]
    %v622 = vld [vmem:[#allocation3 + $0x9a8] sm:$0xff]
    %v623 = vld [vmem:[#allocation3 + $0x9b0] sm:$0xff]
    %v624 = vld [vmem:[#allocation3 + $0x9b8] sm:$0xff]
    %v625 = vld [vmem:[#allocation3 + $0x9c0] sm:$0xff]
    %v626 = vld [vmem:[#allocation3 + $0x9c8] sm:$0xff]
    %v627 = vld [vmem:[#allocation3 + $0x9d0] sm:$0xff]
    %v628 = vld [vmem:[#allocation3 + $0x9d8] sm:$0xff]
    %v629 = vld [vmem:[#allocation3 + $0x9e0] sm:$0xff]
    %v630 = vld [vmem:[#allocation3 + $0x9e8] sm:$0xff]
    %v631 = vld [vmem:[#allocation3 + $0x9f0] sm:$0xff]
    %v632 = vld [vmem:[#allocation3 + $0x9f8] sm:$0xff]
    %v633 = vld [vmem:[#allocation3 + $0xa00] sm:$0xff]
    %v634 = vld [vmem:[#allocation3 + $0xa08] sm:$0xff]
    %v635 = vld [vmem:[#allocation3 + $0xa10] sm:$0xff]
    %v636 = vld [vmem:[#allocation3 + $0xa18] sm:$0xff]
    %v637 = vld [vmem:[#allocation3 + $0xa20] sm:$0xff]
    %v638 = vld [vmem:[#allocation3 + $0xa28] sm:$0xff]
    %v639 = vld [vmem:[#allocation3 + $0xa30] sm:$0xff]
    %v640 = vld [vmem:[#allocation3 + $0xa38] sm:$0xff]
    %v641 = vld [vmem:[#allocation3 + $0xa40] sm:$0xff]
    %v642 = vld [vmem:[#allocation3 + $0xa48] sm:$0xff]
    %v643 = vld [vmem:[#allocation3 + $0xa50] sm:$0xff]
    %v644 = vld [vmem:[#allocation3 + $0xa58] sm:$0xff]
    %v645 = vld [vmem:[#allocation3 + $0xa60] sm:$0xff]
    %v646 = vld [vmem:[#allocation3 + $0xa68] sm:$0xff]
    %v647 = vld [vmem:[#allocation3 + $0xa70] sm:$0xff]
    %v648 = vld [vmem:[#allocation3 + $0xa78] sm:$0xff]
    %v649 = vld [vmem:[#allocation3 + $0xa80] sm:$0xff]
    %v650 = vld [vmem:[#allocation3 + $0xa88] sm:$0xff]
    %v651 = vld [vmem:[#allocation3 + $0xa90] sm:$0xff]
    %v652 = vld [vmem:[#allocation3 + $0xa98] sm:$0xff]
    %v653 = vld [vmem:[#allocation3 + $0xaa0] sm:$0xff]
    %v654 = vld [vmem:[#allocation3 + $0xaa8] sm:$0xff]
    %v655 = vld [vmem:[#allocation3 + $0xab0] sm:$0xff]
    %v656 = vld [vmem:[#allocation3 + $0xab8] sm:$0xff]
    %v657 = vld [vmem:[#allocation3 + $0xac0] sm:$0xff]
    %v658 = vld [vmem:[#allocation3 + $0xac8] sm:$0xff]
    %v659 = vld [vmem:[#allocation3 + $0xad0] sm:$0xff]
    %v660 = vld [vmem:[#allocation3 + $0xad8] sm:$0xff]
    %v661 = vld [vmem:[#allocation3 + $0xae0] sm:$0xff]
    %v662 = vld [vmem:[#allocation3 + $0xae8] sm:$0xff]
    %v663 = vld [vmem:[#allocation3 + $0xaf0] sm:$0xff]
    %v664 = vld [vmem:[#allocation3 + $0xaf8] sm:$0xff]
    %v665 = vld [vmem:[#allocation3 + $0xb00] sm:$0xff]
    %v666 = vld [vmem:[#allocation3 + $0xb08] sm:$0xff]
    %v667 = vld [vmem:[#allocation3 + $0xb10] sm:$0xff]
    %v668 = vld [vmem:[#allocation3 + $0xb18] sm:$0xff]
    %v669 = vld [vmem:[#allocation3 + $0xb20] sm:$0xff]
    %v670 = vld [vmem:[#allocation3 + $0xb28] sm:$0xff]
    %v671 = vld [vmem:[#allocation3 + $0xb30] sm:$0xff]
    %v672 = vld [vmem:[#allocation3 + $0xb38] sm:$0xff]
    %v673 = vld [vmem:[#allocation3 + $0xb40] sm:$0xff]
    %v674 = vld [vmem:[#allocation3 + $0xb48] sm:$0xff]
    %v675 = vld [vmem:[#allocation3 + $0xb50] sm:$0xff]
    %v676 = vld [vmem:[#allocation3 + $0xb58] sm:$0xff]
    %v677 = vld [vmem:[#allocation3 + $0xb60] sm:$0xff]
    %v678 = vld [vmem:[#allocation3 + $0xb68] sm:$0xff]
    %v679 = vld [vmem:[#allocation3 + $0xb70] sm:$0xff]
    %v680 = vld [vmem:[#allocation3 + $0xb78] sm:$0xff]
    %v681 = vld [vmem:[#allocation3 + $0xb80] sm:$0xff]
    %v682 = vld [vmem:[#allocation3 + $0xb88] sm:$0xff]
    %v683 = vld [vmem:[#allocation3 + $0xb90] sm:$0xff]
    %v684 = vld [vmem:[#allocation3 + $0xb98] sm:$0xff]
    %v685 = vld [vmem:[#allocation3 + $0xba0] sm:$0xff]
    %v686 = vld [vmem:[#allocation3 + $0xba8] sm:$0xff]
    %v687 = vld [vmem:[#allocation3 + $0xbb0] sm:$0xff]
    %v688 = vld [vmem:[#allocation3 + $0xbb8] sm:$0xff]
    %v689 = vld [vmem:[#allocation3 + $0xbc0] sm:$0xff]
    %v690 = vld [vmem:[#allocation3 + $0xbc8] sm:$0xff]
    %v691 = vld [vmem:[#allocation3 + $0xbd0] sm:$0xff]
    %v692 = vld [vmem:[#allocation3 + $0xbd8] sm:$0xff]
    %v693 = vld [vmem:[#allocation3 + $0xbe0] sm:$0xff]
    %v694 = vld [vmem:[#allocation3 + $0xbe8] sm:$0xff]
    %v695 = vld [vmem:[#allocation3 + $0xbf0] sm:$0xff]
    %v696 = vld [vmem:[#allocation3 + $0xbf8] sm:$0xff]
    %v697 = vld [vmem:[#allocation3 + $0xc00] sm:$0xff]
    %v698 = vld [vmem:[#allocation3 + $0xc08] sm:$0xff]
    %v699 = vld [vmem:[#allocation3 + $0xc10] sm:$0xff]
    %v700 = vld [vmem:[#allocation3 + $0xc18] sm:$0xff]
    %v701 = vld [vmem:[#allocation3 + $0xc20] sm:$0xff]
    %v702 = vld [vmem:[#allocation3 + $0xc28] sm:$0xff]
    %v703 = vld [vmem:[#allocation3 + $0xc30] sm:$0xff]
    %v704 = vld [vmem:[#allocation3 + $0xc38] sm:$0xff]
    %v705 = vld [vmem:[#allocation3 + $0xc40] sm:$0xff]
    %v706 = vld [vmem:[#allocation3 + $0xc48] sm:$0xff]
    %v707 = vld [vmem:[#allocation3 + $0xc50] sm:$0xff]
    %v708 = vld [vmem:[#allocation3 + $0xc58] sm:$0xff]
    %v709 = vld [vmem:[#allocation3 + $0xc60] sm:$0xff]
    %v710 = vld [vmem:[#allocation3 + $0xc68] sm:$0xff]
    %v711 = vld [vmem:[#allocation3 + $0xc70] sm:$0xff]
    %v712 = vld [vmem:[#allocation3 + $0xc78] sm:$0xff]
    %v713 = vld [vmem:[#allocation3 + $0xc80] sm:$0xff]
    %v714 = vld [vmem:[#allocation3 + $0xc88] sm:$0xff]
    %v715 = vld [vmem:[#allocation3 + $0xc90] sm:$0xff]
    %v716 = vld [vmem:[#allocation3 + $0xc98] sm:$0xff]
    %v717 = vld [vmem:[#allocation3 + $0xca0] sm:$0xff]
    %v718 = vld [vmem:[#allocation3 + $0xca8] sm:$0xff]
    %v719 = vld [vmem:[#allocation3 + $0xcb0] sm:$0xff]
    %v720 = vld [vmem:[#allocation3 + $0xcb8] sm:$0xff]
    %v721 = vld [vmem:[#allocation3 + $0xcc0] sm:$0xff]
    %v722 = vld [vmem:[#allocation3 + $0xcc8] sm:$0xff]
    %v723 = vld [vmem:[#allocation3 + $0xcd0] sm:$0xff]
    %v724 = vld [vmem:[#allocation3 + $0xcd8] sm:$0xff]
    %v725 = vld [vmem:[#allocation3 + $0xce0] sm:$0xff]
    %v726 = vld [vmem:[#allocation3 + $0xce8] sm:$0xff]
    %v727 = vld [vmem:[#allocation3 + $0xcf0] sm:$0xff]
    %v728 = vld [vmem:[#allocation3 + $0xcf8] sm:$0xff]
    %v729 = vld [vmem:[#allocation3 + $0xd00] sm:$0xff]
    %v730 = vld [vmem:[#allocation3 + $0xd08] sm:$0xff]
    %v731 = vld [vmem:[#allocation3 + $0xd10] sm:$0xff]
    %v732 = vld [vmem:[#allocation3 + $0xd18] sm:$0xff]
    %v733 = vld [vmem:[#allocation3 + $0xd20] sm:$0xff]
    %v734 = vld [vmem:[#allocation3 + $0xd28] sm:$0xff]
    %v735 = vld [vmem:[#allocation3 + $0xd30] sm:$0xff]
    %v736 = vld [vmem:[#allocation3 + $0xd38] sm:$0xff]
    %v737 = vld [vmem:[#allocation3 + $0xd40] sm:$0xff]
    %v738 = vld [vmem:[#allocation3 + $0xd48] sm:$0xff]
    %v739 = vld [vmem:[#allocation3 + $0xd50] sm:$0xff]
    %v740 = vld [vmem:[#allocation3 + $0xd58] sm:$0xff]
    %v741 = vld [vmem:[#allocation3 + $0xd60] sm:$0xff]
    %v742 = vld [vmem:[#allocation3 + $0xd68] sm:$0xff]
    %v743 = vld [vmem:[#allocation3 + $0xd70] sm:$0xff]
    %v744 = vld [vmem:[#allocation3 + $0xd78] sm:$0xff]
    %v745 = vld [vmem:[#allocation3 + $0xd80] sm:$0xff]
    %v746 = vld [vmem:[#allocation3 + $0xd88] sm:$0xff]
    %v747 = vld [vmem:[#allocation3 + $0xd90] sm:$0xff]
    %v748 = vld [vmem:[#allocation3 + $0xd98] sm:$0xff]
    %v749 = vld [vmem:[#allocation3 + $0xda0] sm:$0xff]
    %v750 = vld [vmem:[#allocation3 + $0xda8] sm:$0xff]
    %v751 = vld [vmem:[#allocation3 + $0xdb0] sm:$0xff]
    %v752 = vld [vmem:[#allocation3 + $0xdb8] sm:$0xff]
    %v753 = vld [vmem:[#allocation3 + $0xdc0] sm:$0xff]
    %v754 = vld [vmem:[#allocation3 + $0xdc8] sm:$0xff]
    %v755 = vld [vmem:[#allocation3 + $0xdd0] sm:$0xff]
    %v756 = vld [vmem:[#allocation3 + $0xdd8] sm:$0xff]
    %v757 = vld [vmem:[#allocation3 + $0xde0] sm:$0xff]
    %v758 = vld [vmem:[#allocation3 + $0xde8] sm:$0xff]
    %v759 = vld [vmem:[#allocation3 + $0xdf0] sm:$0xff]
    %v760 = vld [vmem:[#allocation3 + $0xdf8] sm:$0xff]
    %v761 = vld [vmem:[#allocation3 + $0xe00] sm:$0xff]
    %v762 = vld [vmem:[#allocation3 + $0xe08] sm:$0xff]
    %v763 = vld [vmem:[#allocation3 + $0xe10] sm:$0xff]
    %v764 = vld [vmem:[#allocation3 + $0xe18] sm:$0xff]
    %v765 = vld [vmem:[#allocation3 + $0xe20] sm:$0xff]
    %v766 = vld [vmem:[#allocation3 + $0xe28] sm:$0xff]
    %v767 = vld [vmem:[#allocation3 + $0xe30] sm:$0xff]
    %v768 = vld [vmem:[#allocation3 + $0xe38] sm:$0xff]
    %v769 = vld [vmem:[#allocation3 + $0xe40] sm:$0xff]
    %v770 = vld [vmem:[#allocation3 + $0xe48] sm:$0xff]
    %v771 = vld [vmem:[#allocation3 + $0xe50] sm:$0xff]
    %v772 = vld [vmem:[#allocation3 + $0xe58] sm:$0xff]
    %v773 = vld [vmem:[#allocation3 + $0xe60] sm:$0xff]
    %v774 = vld [vmem:[#allocation3 + $0xe68] sm:$0xff]
    %v775 = vld [vmem:[#allocation3 + $0xe70] sm:$0xff]
    %v776 = vld [vmem:[#allocation3 + $0xe78] sm:$0xff]
    %v777 = vld [vmem:[#allocation3 + $0xe80] sm:$0xff]
    %v778 = vld [vmem:[#allocation3 + $0xe88] sm:$0xff]
    %v779 = vld [vmem:[#allocation3 + $0xe90] sm:$0xff]
    %v780 = vld [vmem:[#allocation3 + $0xe98] sm:$0xff]
    %v781 = vld [vmem:[#allocation3 + $0xea0] sm:$0xff]
    %v782 = vld [vmem:[#allocation3 + $0xea8] sm:$0xff]
    %v783 = vld [vmem:[#allocation3 + $0xeb0] sm:$0xff]
    %v784 = vld [vmem:[#allocation3 + $0xeb8] sm:$0xff]
    %v785 = vld [vmem:[#allocation3 + $0xec0] sm:$0xff]
    %v786 = vld [vmem:[#allocation3 + $0xec8] sm:$0xff]
    %v787 = vld [vmem:[#allocation3 + $0xed0] sm:$0xff]
    %v788 = vld [vmem:[#allocation3 + $0xed8] sm:$0xff]
    %v789 = vld [vmem:[#allocation3 + $0xee0] sm:$0xff]
    %v790 = vld [vmem:[#allocation3 + $0xee8] sm:$0xff]
    %v791 = vld [vmem:[#allocation3 + $0xef0] sm:$0xff]
    %v792 = vld [vmem:[#allocation3 + $0xef8] sm:$0xff]
    %v793 = vld [vmem:[#allocation3 + $0xf00] sm:$0xff]
    %v794 = vld [vmem:[#allocation3 + $0xf08] sm:$0xff]
    %v795 = vld [vmem:[#allocation3 + $0xf10] sm:$0xff]
    %v796 = vld [vmem:[#allocation3 + $0xf18] sm:$0xff]
    %v797 = vld [vmem:[#allocation3 + $0xf20] sm:$0xff]
    %v798 = vld [vmem:[#allocation3 + $0xf28] sm:$0xff]
    %v799 = vld [vmem:[#allocation3 + $0xf30] sm:$0xff]
    %v800 = vld [vmem:[#allocation3 + $0xf38] sm:$0xff]
    %v801 = vld [vmem:[#allocation3 + $0xf40] sm:$0xff]
    %v802 = vld [vmem:[#allocation3 + $0xf48] sm:$0xff]
    %v803 = vld [vmem:[#allocation3 + $0xf50] sm:$0xff]
    %v804 = vld [vmem:[#allocation3 + $0xf58] sm:$0xff]
    %v805 = vld [vmem:[#allocation3 + $0xf60] sm:$0xff]
    %v806 = vld [vmem:[#allocation3 + $0xf68] sm:$0xff]
    %v807 = vld [vmem:[#allocation3 + $0xf70] sm:$0xff]
    %v808 = vld [vmem:[#allocation3 + $0xf78] sm:$0xff]
    %v809 = vld [vmem:[#allocation3 + $0xf80] sm:$0xff]
    %v810 = vld [vmem:[#allocation3 + $0xf88] sm:$0xff]
    %v811 = vld [vmem:[#allocation3 + $0xf90] sm:$0xff]
    %v812 = vld [vmem:[#allocation3 + $0xf98] sm:$0xff]
    %v813 = vld [vmem:[#allocation3 + $0xfa0] sm:$0xff]
    %v814 = vld [vmem:[#allocation3 + $0xfa8] sm:$0xff]
    %v815 = vld [vmem:[#allocation3 + $0xfb0] sm:$0xff]
    %v816 = vld [vmem:[#allocation3 + $0xfb8] sm:$0xff]
    %v817 = vld [vmem:[#allocation3 + $0xfc0] sm:$0xff]
    %v818 = vld [vmem:[#allocation3 + $0xfc8] sm:$0xff]
    %v819 = vld [vmem:[#allocation3 + $0xfd0] sm:$0xff]
    %v820 = vld [vmem:[#allocation3 + $0xfd8] sm:$0xff]
    %v821 = vld [vmem:[#allocation3 + $0xfe0] sm:$0xff]
    %v822 = vld [vmem:[#allocation3 + $0xfe8] sm:$0xff]
    %v823 = vld [vmem:[#allocation3 + $0xff0] sm:$0xff]
    %v824 = vld [vmem:[#allocation3 + $0xff8] sm:$0xff]
    %v825 = vld [vmem:[#allocation3 + $0x1000] sm:$0xff]
    %v826 = vld [vmem:[#allocation3 + $0x1008] sm:$0xff]
    %v827 = vld [vmem:[#allocation3 + $0x1010] sm:$0xff]
    %v828 = vld [vmem:[#allocation3 + $0x1018] sm:$0xff]
    %v829 = vld [vmem:[#allocation3 + $0x1020] sm:$0xff]
    %v830 = vld [vmem:[#allocation3 + $0x1028] sm:$0xff]
    %v831 = vld [vmem:[#allocation3 + $0x1030] sm:$0xff]
    %v832 = vld [vmem:[#allocation3 + $0x1038] sm:$0xff]
    %v833 = vld [vmem:[#allocation3 + $0x1040] sm:$0xff]
    %v834 = vld [vmem:[#allocation3 + $0x1048] sm:$0xff]
    %v835 = vld [vmem:[#allocation3 + $0x1050] sm:$0xff]
    %v836 = vld [vmem:[#allocation3 + $0x1058] sm:$0xff]
    %v837 = vld [vmem:[#allocation3 + $0x1060] sm:$0xff]
    %v838 = vld [vmem:[#allocation3 + $0x1068] sm:$0xff]
    %v839 = vld [vmem:[#allocation3 + $0x1070] sm:$0xff]
    %v840 = vld [vmem:[#allocation3 + $0x1078] sm:$0xff]
    %v841 = vld [vmem:[#allocation3 + $0x1080] sm:$0xff]
    %v842 = vld [vmem:[#allocation3 + $0x1088] sm:$0xff]
    %v843 = vld [vmem:[#allocation3 + $0x1090] sm:$0xff]
    %v844 = vld [vmem:[#allocation3 + $0x1098] sm:$0xff]
    %v845 = vld [vmem:[#allocation3 + $0x10a0] sm:$0xff]
    %v846 = vld [vmem:[#allocation3 + $0x10a8] sm:$0xff]
    %v847 = vld [vmem:[#allocation3 + $0x10b0] sm:$0xff]
    %v848 = vld [vmem:[#allocation3 + $0x10b8] sm:$0xff]
    %v849 = vld [vmem:[#allocation3 + $0x10c0] sm:$0xff]
    %v850 = vld [vmem:[#allocation3 + $0x10c8] sm:$0xff]
    %v851 = vld [vmem:[#allocation3 + $0x10d0] sm:$0xff]
    %v852 = vld [vmem:[#allocation3 + $0x10d8] sm:$0xff]
    %v853 = vld [vmem:[#allocation3 + $0x10e0] sm:$0xff]
    %v854 = vld [vmem:[#allocation3 + $0x10e8] sm:$0xff]
    %v855 = vld [vmem:[#allocation3 + $0x10f0] sm:$0xff]
    %v856 = vld [vmem:[#allocation3 + $0x10f8] sm:$0xff]
    %v857 = vld [vmem:[#allocation3 + $0x1100] sm:$0xff]
    %v858 = vld [vmem:[#allocation3 + $0x1108] sm:$0xff]
    %v859 = vld [vmem:[#allocation3 + $0x1110] sm:$0xff]
    %v860 = vld [vmem:[#allocation3 + $0x1118] sm:$0xff]
    %v861 = vld [vmem:[#allocation3 + $0x1120] sm:$0xff]
    %v862 = vld [vmem:[#allocation3 + $0x1128] sm:$0xff]
    %v863 = vld [vmem:[#allocation3 + $0x1130] sm:$0xff]
    %v864 = vld [vmem:[#allocation3 + $0x1138] sm:$0xff]
    %v865 = vld [vmem:[#allocation3 + $0x1140] sm:$0xff]
    %v866 = vld [vmem:[#allocation3 + $0x1148] sm:$0xff]
    %v867 = vld [vmem:[#allocation3 + $0x1150] sm:$0xff]
    %v868 = vld [vmem:[#allocation3 + $0x1158] sm:$0xff]
    %v869 = vld [vmem:[#allocation3 + $0x1160] sm:$0xff]
    %v870 = vld [vmem:[#allocation3 + $0x1168] sm:$0xff]
    %v871 = vld [vmem:[#allocation3 + $0x1170] sm:$0xff]
    %v872 = vld [vmem:[#allocation3 + $0x1178] sm:$0xff]
    %v873 = vld [vmem:[#allocation3 + $0x1180] sm:$0xff]
    %v874 = vld [vmem:[#allocation3 + $0x1188] sm:$0xff]
    %v875 = vld [vmem:[#allocation3 + $0x1190] sm:$0xff]
    %v876 = vld [vmem:[#allocation3 + $0x1198] sm:$0xff]
    %v877 = vld [vmem:[#allocation3 + $0x11a0] sm:$0xff]
    %v878 = vld [vmem:[#allocation3 + $0x11a8] sm:$0xff]
    %v879 = vld [vmem:[#allocation3 + $0x11b0] sm:$0xff]
    %v880 = vld [vmem:[#allocation3 + $0x11b8] sm:$0xff]
    %v881 = vld [vmem:[#allocation3 + $0x11c0] sm:$0xff]
    %v882 = vld [vmem:[#allocation3 + $0x11c8] sm:$0xff]
    %v883 = vld [vmem:[#allocation3 + $0x11d0] sm:$0xff]
    %v884 = vld [vmem:[#allocation3 + $0x11d8] sm:$0xff]
    %v885 = vld [vmem:[#allocation3 + $0x11e0] sm:$0xff]
    %v886 = vld [vmem:[#allocation3 + $0x11e8] sm:$0xff]
    %v887 = vld [vmem:[#allocation3 + $0x11f0] sm:$0xff]
    %v888 = vld [vmem:[#allocation3 + $0x11f8] sm:$0xff]
    %v889 = vld [vmem:[#allocation3 + $0x1200] sm:$0xff]
    %v890 = vld [vmem:[#allocation3 + $0x1208] sm:$0xff]
    %v891 = vld [vmem:[#allocation3 + $0x1210] sm:$0xff]
    %v892 = vld [vmem:[#allocation3 + $0x1218] sm:$0xff]
    %v893 = vld [vmem:[#allocation3 + $0x1220] sm:$0xff]
    %v894 = vld [vmem:[#allocation3 + $0x1228] sm:$0xff]
    %v895 = vld [vmem:[#allocation3 + $0x1230] sm:$0xff]
    %v896 = vld [vmem:[#allocation3 + $0x1238] sm:$0xff]
    %v897 = vld [vmem:[#allocation3 + $0x1240] sm:$0xff]
    %v898 = vld [vmem:[#allocation3 + $0x1248] sm:$0xff]
    %v899 = vld [vmem:[#allocation3 + $0x1250] sm:$0xff]
    %v900 = vld [vmem:[#allocation3 + $0x1258] sm:$0xff]
    %v901 = vld [vmem:[#allocation3 + $0x1260] sm:$0xff]
    %v902 = vld [vmem:[#allocation3 + $0x1268] sm:$0xff]
    %v903 = vld [vmem:[#allocation3 + $0x1270] sm:$0xff]
    %v904 = vld [vmem:[#allocation3 + $0x1278] sm:$0xff]
    %v905 = vld [vmem:[#allocation3 + $0x1280] sm:$0xff]
    %v906 = vld [vmem:[#allocation3 + $0x1288] sm:$0xff]
    %v907 = vld [vmem:[#allocation3 + $0x1290] sm:$0xff]
    %v908 = vld [vmem:[#allocation3 + $0x1298] sm:$0xff]
    %v909 = vld [vmem:[#allocation3 + $0x12a0] sm:$0xff]
    %v910 = vld [vmem:[#allocation3 + $0x12a8] sm:$0xff]
    %v911 = vld [vmem:[#allocation3 + $0x12b0] sm:$0xff]
    %v912 = vld [vmem:[#allocation3 + $0x12b8] sm:$0xff]
    %v913 = vld [vmem:[#allocation3 + $0x12c0] sm:$0xff]
    %v914 = vld [vmem:[#allocation3 + $0x12c8] sm:$0xff]
    %v915 = vld [vmem:[#allocation3 + $0x12d0] sm:$0xff]
    %v916 = vld [vmem:[#allocation3 + $0x12d8] sm:$0xff]
    %v917 = vld [vmem:[#allocation3 + $0x12e0] sm:$0xff]
    %v918 = vld [vmem:[#allocation3 + $0x12e8] sm:$0xff]
    %v919 = vld [vmem:[#allocation3 + $0x12f0] sm:$0xff]
    %v920 = vld [vmem:[#allocation3 + $0x12f8] sm:$0xff]
    %v921 = vld [vmem:[#allocation3 + $0x1300] sm:$0xff]
    %v922 = vld [vmem:[#allocation3 + $0x1308] sm:$0xff]
    %v923 = vld [vmem:[#allocation3 + $0x1310] sm:$0xff]
    %v924 = vld [vmem:[#allocation3 + $0x1318] sm:$0xff]
    %v925 = vld [vmem:[#allocation3 + $0x1320] sm:$0xff]
    %v926 = vld [vmem:[#allocation3 + $0x1328] sm:$0xff]
    %v927 = vld [vmem:[#allocation3 + $0x1330] sm:$0xff]
    %v928 = vld [vmem:[#allocation3 + $0x1338] sm:$0xff]
    %v929 = vld [vmem:[#allocation3 + $0x1340] sm:$0xff]
    %v930 = vld [vmem:[#allocation3 + $0x1348] sm:$0xff]
    %v931 = vld [vmem:[#allocation3 + $0x1350] sm:$0xff]
    %v932 = vld [vmem:[#allocation3 + $0x1358] sm:$0xff]
    %v933 = vld [vmem:[#allocation3 + $0x1360] sm:$0xff]
    %v934 = vld [vmem:[#allocation3 + $0x1368] sm:$0xff]
    %v935 = vld [vmem:[#allocation3 + $0x1370] sm:$0xff]
    %v936 = vld [vmem:[#allocation3 + $0x1378] sm:$0xff]
    %v937 = vld [vmem:[#allocation3 + $0x1380] sm:$0xff]
    %v938 = vld [vmem:[#allocation3 + $0x1388] sm:$0xff]
    %v939 = vld [vmem:[#allocation3 + $0x1390] sm:$0xff]
    %v940 = vld [vmem:[#allocation3 + $0x1398] sm:$0xff]
    %v941 = vld [vmem:[#allocation3 + $0x13a0] sm:$0xff]
    %v942 = vld [vmem:[#allocation3 + $0x13a8] sm:$0xff]
    %v943 = vld [vmem:[#allocation3 + $0x13b0] sm:$0xff]
    %v944 = vld [vmem:[#allocation3 + $0x13b8] sm:$0xff]
    %v945 = vld [vmem:[#allocation3 + $0x13c0] sm:$0xff]
    %v946 = vld [vmem:[#allocation3 + $0x13c8] sm:$0xff]
    %v947 = vld [vmem:[#allocation3 + $0x13d0] sm:$0xff]
    %v948 = vld [vmem:[#allocation3 + $0x13d8] sm:$0xff]
    %v949 = vld [vmem:[#allocation3 + $0x13e0] sm:$0xff]
    %v950 = vld [vmem:[#allocation3 + $0x13e8] sm:$0xff]
    %v951 = vld [vmem:[#allocation3 + $0x13f0] sm:$0xff]
    %v952 = vld [vmem:[#allocation3 + $0x13f8] sm:$0xff]
    %v953 = vld [vmem:[#allocation3 + $0x1400] sm:$0xff]
    %v954 = vld [vmem:[#allocation3 + $0x1408] sm:$0xff]
    %v955 = vld [vmem:[#allocation3 + $0x1410] sm:$0xff]
    %v956 = vld [vmem:[#allocation3 + $0x1418] sm:$0xff]
    %v957 = vld [vmem:[#allocation3 + $0x1420] sm:$0xff]
    %v958 = vld [vmem:[#allocation3 + $0x1428] sm:$0xff]
    %v959 = vld [vmem:[#allocation3 + $0x1430] sm:$0xff]
    %v960 = vld [vmem:[#allocation3 + $0x1438] sm:$0xff]
    %v961 = vld [vmem:[#allocation3 + $0x1440] sm:$0xff]
    %v962 = vld [vmem:[#allocation3 + $0x1448] sm:$0xff]
    %v963 = vld [vmem:[#allocation3 + $0x1450] sm:$0xff]
    %v964 = vld [vmem:[#allocation3 + $0x1458] sm:$0xff]
    %v965 = vld [vmem:[#allocation3 + $0x1460] sm:$0xff]
    %v966 = vld [vmem:[#allocation3 + $0x1468] sm:$0xff]
    %v967 = vld [vmem:[#allocation3 + $0x1470] sm:$0xff]
    %v968 = vld [vmem:[#allocation3 + $0x1478] sm:$0xff]
    %v969 = vld [vmem:[#allocation3 + $0x1480] sm:$0xff]
    %v970 = vld [vmem:[#allocation3 + $0x1488] sm:$0xff]
    %v971 = vld [vmem:[#allocation3 + $0x1490] sm:$0xff]
    %v972 = vld [vmem:[#allocation3 + $0x1498] sm:$0xff]
    %v973 = vld [vmem:[#allocation3 + $0x14a0] sm:$0xff]
    %v974 = vld [vmem:[#allocation3 + $0x14a8] sm:$0xff]
    %v975 = vld [vmem:[#allocation3 + $0x14b0] sm:$0xff]
    %v976 = vld [vmem:[#allocation3 + $0x14b8] sm:$0xff]
    %v977 = vld [vmem:[#allocation3 + $0x14c0] sm:$0xff]
    %v978 = vld [vmem:[#allocation3 + $0x14c8] sm:$0xff]
    %v979 = vld [vmem:[#allocation3 + $0x14d0] sm:$0xff]
    %v980 = vld [vmem:[#allocation3 + $0x14d8] sm:$0xff]
    %v981 = vld [vmem:[#allocation3 + $0x14e0] sm:$0xff]
    %v982 = vld [vmem:[#allocation3 + $0x14e8] sm:$0xff]
    %v983 = vld [vmem:[#allocation3 + $0x14f0] sm:$0xff]
    %v984 = vld [vmem:[#allocation3 + $0x14f8] sm:$0xff]
    %v985 = vld [vmem:[#allocation3 + $0x1500] sm:$0xff]
    %v986 = vld [vmem:[#allocation3 + $0x1508] sm:$0xff]
    %v987 = vld [vmem:[#allocation3 + $0x1510] sm:$0xff]
    %v988 = vld [vmem:[#allocation3 + $0x1518] sm:$0xff]
    %v989 = vld [vmem:[#allocation3 + $0x1520] sm:$0xff]
    %v990 = vld [vmem:[#allocation3 + $0x1528] sm:$0xff]
    %v991 = vld [vmem:[#allocation3 + $0x1530] sm:$0xff]
    %v992 = vld [vmem:[#allocation3 + $0x1538] sm:$0xff]
    %v993 = vld [vmem:[#allocation3 + $0x1540] sm:$0xff]
    %v994 = vld [vmem:[#allocation3 + $0x1548] sm:$0xff]
    %v995 = vld [vmem:[#allocation3 + $0x1550] sm:$0xff]
    %v996 = vld [vmem:[#allocation3 + $0x1558] sm:$0xff]
    %v997 = vld [vmem:[#allocation3 + $0x1560] sm:$0xff]
    %v998 = vld [vmem:[#allocation3 + $0x1568] sm:$0xff]
    %v999 = vld [vmem:[#allocation3 + $0x1570] sm:$0xff]
    %v1000 = vld [vmem:[#allocation3 + $0x1578] sm:$0xff]
    %v1001 = vld [vmem:[#allocation3 + $0x1580] sm:$0xff]
    %v1002 = vld [vmem:[#allocation3 + $0x1588] sm:$0xff]
    %v1003 = vld [vmem:[#allocation3 + $0x1590] sm:$0xff]
    %v1004 = vld [vmem:[#allocation3 + $0x1598] sm:$0xff]
    %v1005 = vld [vmem:[#allocation3 + $0x15a0] sm:$0xff]
    %v1006 = vld [vmem:[#allocation3 + $0x15a8] sm:$0xff]
    %v1007 = vld [vmem:[#allocation3 + $0x15b0] sm:$0xff]
    %v1008 = vld [vmem:[#allocation3 + $0x15b8] sm:$0xff]
    %v1009 = vld [vmem:[#allocation3 + $0x15c0] sm:$0xff]
    %v1010 = vld [vmem:[#allocation3 + $0x15c8] sm:$0xff]
    %v1011 = vld [vmem:[#allocation3 + $0x15d0] sm:$0xff]
    %v1012 = vld [vmem:[#allocation3 + $0x15d8] sm:$0xff]
    %v1013 = vld [vmem:[#allocation3 + $0x15e0] sm:$0xff]
    %v1014 = vld [vmem:[#allocation3 + $0x15e8] sm:$0xff]
    %v1015 = vld [vmem:[#allocation3 + $0x15f0] sm:$0xff]
    %v1016 = vld [vmem:[#allocation3 + $0x15f8] sm:$0xff]
    %v1017 = vld [vmem:[#allocation3 + $0x1600] sm:$0xff]
    %v1018 = vld [vmem:[#allocation3 + $0x1608] sm:$0xff]
    %v1019 = vld [vmem:[#allocation3 + $0x1610] sm:$0xff]
    %v1020 = vld [vmem:[#allocation3 + $0x1618] sm:$0xff]
    %v1021 = vld [vmem:[#allocation3 + $0x1620] sm:$0xff]
    %v1022 = vld [vmem:[#allocation3 + $0x1628] sm:$0xff]
    %v1023 = vld [vmem:[#allocation3 + $0x1630] sm:$0xff]
    %v1024 = vld [vmem:[#allocation3 + $0x1638] sm:$0xff]
    %v1025 = vld [vmem:[#allocation3 + $0x1640] sm:$0xff]
    %v1026 = vld [vmem:[#allocation3 + $0x1648] sm:$0xff]
    %v1027 = vld [vmem:[#allocation3 + $0x1650] sm:$0xff]
    %v1028 = vld [vmem:[#allocation3 + $0x1658] sm:$0xff]
    %v1029 = vld [vmem:[#allocation3 + $0x1660] sm:$0xff]
    %v1030 = vld [vmem:[#allocation3 + $0x1668] sm:$0xff]
    %v1031 = vld [vmem:[#allocation3 + $0x1670] sm:$0xff]
    %v1032 = vld [vmem:[#allocation3 + $0x1678] sm:$0xff]
    %v1033 = vld [vmem:[#allocation3 + $0x1680] sm:$0xff]
    %v1034 = vld [vmem:[#allocation3 + $0x1688] sm:$0xff]
    %v1035 = vld [vmem:[#allocation3 + $0x1690] sm:$0xff]
    %v1036 = vld [vmem:[#allocation3 + $0x1698] sm:$0xff]
    %v1037 = vld [vmem:[#allocation3 + $0x16a0] sm:$0xff]
    %v1038 = vld [vmem:[#allocation3 + $0x16a8] sm:$0xff]
    %v1039 = vld [vmem:[#allocation3 + $0x16b0] sm:$0xff]
    %v1040 = vld [vmem:[#allocation3 + $0x16b8] sm:$0xff]
    %v1041 = vld [vmem:[#allocation3 + $0x16c0] sm:$0xff]
    %v1042 = vld [vmem:[#allocation3 + $0x16c8] sm:$0xff]
    %v1043 = vld [vmem:[#allocation3 + $0x16d0] sm:$0xff]
    %v1044 = vld [vmem:[#allocation3 + $0x16d8] sm:$0xff]
    %v1045 = vld [vmem:[#allocation3 + $0x16e0] sm:$0xff]
    %v1046 = vld [vmem:[#allocation3 + $0x16e8] sm:$0xff]
    %v1047 = vld [vmem:[#allocation3 + $0x16f0] sm:$0xff]
    %v1048 = vld [vmem:[#allocation3 + $0x16f8] sm:$0xff]
    %v1049 = vld [vmem:[#allocation3 + $0x1700] sm:$0xff]
    %v1050 = vld [vmem:[#allocation3 + $0x1708] sm:$0xff]
    %v1051 = vld [vmem:[#allocation3 + $0x1710] sm:$0xff]
    %v1052 = vld [vmem:[#allocation3 + $0x1718] sm:$0xff]
    %v1053 = vld [vmem:[#allocation3 + $0x1720] sm:$0xff]
    %v1054 = vld [vmem:[#allocation3 + $0x1728] sm:$0xff]
    %v1055 = vld [vmem:[#allocation3 + $0x1730] sm:$0xff]
    %v1056 = vld [vmem:[#allocation3 + $0x1738] sm:$0xff]
    %v1057 = vld [vmem:[#allocation3 + $0x1740] sm:$0xff]
    %v1058 = vld [vmem:[#allocation3 + $0x1748] sm:$0xff]
    %v1059 = vld [vmem:[#allocation3 + $0x1750] sm:$0xff]
    %v1060 = vld [vmem:[#allocation3 + $0x1758] sm:$0xff]
    %v1061 = vld [vmem:[#allocation3 + $0x1760] sm:$0xff]
    %v1062 = vld [vmem:[#allocation3 + $0x1768] sm:$0xff]
    %v1063 = vld [vmem:[#allocation3 + $0x1770] sm:$0xff]
    %v1064 = vld [vmem:[#allocation3 + $0x1778] sm:$0xff]
    %v1065 = vld [vmem:[#allocation3 + $0x1780] sm:$0xff]
    %v1066 = vld [vmem:[#allocation3 + $0x1788] sm:$0xff]
    %v1067 = vld [vmem:[#allocation3 + $0x1790] sm:$0xff]
    %v1068 = vld [vmem:[#allocation3 + $0x1798] sm:$0xff]
    %v1069 = vld [vmem:[#allocation3 + $0x17a0] sm:$0xff]
    %v1070 = vld [vmem:[#allocation3 + $0x17a8] sm:$0xff]
    %v1071 = vld [vmem:[#allocation3 + $0x17b0] sm:$0xff]
    %v1072 = vld [vmem:[#allocation3 + $0x17b8] sm:$0xff]
    %v1073 = vld [vmem:[#allocation3 + $0x17c0] sm:$0xff]
    %v1074 = vld [vmem:[#allocation3 + $0x17c8] sm:$0xff]
    %v1075 = vld [vmem:[#allocation3 + $0x17d0] sm:$0xff]
    %v1076 = vld [vmem:[#allocation3 + $0x17d8] sm:$0xff]
    %v1077 = vld [vmem:[#allocation3 + $0x17e0] sm:$0xff]
    %v1078 = vld [vmem:[#allocation3 + $0x17e8] sm:$0xff]
    %v1079 = vld [vmem:[#allocation3 + $0x17f0] sm:$0xff]
    %v1080 = vld [vmem:[#allocation3 + $0x17f8] sm:$0xff]
    %v1081 = vld [vmem:[#allocation5] sm:$0x3f]
    %v1083 = vlaneseq
    %v1084 = vshrl.u32 %v1083, 7
    %v1085 = vsub.s32 0, %v1084
    %v1086 = vrot.slane %v1081, %v1085
    %v1087 = vlaneseq
    %v1088 = vshrl.u32 %v1087, 7
    %v1089 = vsub.s32 1, %v1088
    %v1090 = vrot.slane %v1081, %v1089
    %v1091 = vlaneseq
    %v1092 = vshrl.u32 %v1091, 7
    %v1093 = vsub.s32 2, %v1092
    %v1094 = vrot.slane %v1081, %v1093
    %v1095 = vlaneseq
    %v1096 = vshrl.u32 %v1095, 7
    %v1097 = vsub.s32 3, %v1096
    %v1098 = vrot.slane %v1081, %v1097
    %v1099 = vlaneseq
    %v1100 = vshrl.u32 %v1099, 7
    %v1101 = vsub.s32 4, %v1100
    %v1102 = vrot.slane %v1081, %v1101
    %v1103 = vlaneseq
    %v1104 = vshrl.u32 %v1103, 7
    %v1105 = vsub.s32 5, %v1104
    %v1106 = vrot.slane %v1081, %v1105
    %v1129 = vunpack.c.l.b16 %v297
    %v1130 = vunpack.c.h.b16 %v297
    %v1131 = vunpack.c.l.b16 %v298
    %v1132 = vunpack.c.h.b16 %v298
    %v1133 = vunpack.c.l.b16 %v299
    %v1134 = vunpack.c.h.b16 %v299
    %v1135 = vunpack.c.l.b16 %v300
    %v1136 = vunpack.c.h.b16 %v300
    %v1137 = vunpack.c.l.b16 %v301
    %v1138 = vunpack.c.h.b16 %v301
    %v1139 = vunpack.c.l.b16 %v302
    %v1140 = vunpack.c.h.b16 %v302
    %v1141 = vunpack.c.l.b16 %v303
    %v1142 = vunpack.c.h.b16 %v303
    %v1143 = vunpack.c.l.b16 %v304
    %v1144 = vunpack.c.h.b16 %v304
    %v1145 = vunpack.c.l.b16 %v305
    %v1146 = vunpack.c.h.b16 %v305
    %v1147 = vunpack.c.l.b16 %v306
    %v1148 = vunpack.c.h.b16 %v306
    %v1149 = vunpack.c.l.b16 %v307
    %v1150 = vunpack.c.h.b16 %v307
    %v1151 = vunpack.c.l.b16 %v308
    %v1152 = vunpack.c.h.b16 %v308
    %v1153 = vunpack.c.l.b16 %v309
    %v1154 = vunpack.c.h.b16 %v309
    %v1155 = vunpack.c.l.b16 %v310
    %v1156 = vunpack.c.h.b16 %v310
    %v1157 = vunpack.c.l.b16 %v311
    %v1158 = vunpack.c.h.b16 %v311
    %v1159 = vunpack.c.l.b16 %v312
    %v1160 = vunpack.c.h.b16 %v312
    %v1161 = vpack.c.b16 %v1145, %v1129
    %v1162 = vpack.c.b16 %v1146, %v1130
    %v1163 = vpack.c.b16 %v1147, %v1131
    %v1164 = vpack.c.b16 %v1148, %v1132
    %v1165 = vpack.c.b16 %v1149, %v1133
    %v1166 = vpack.c.b16 %v1150, %v1134
    %v1167 = vpack.c.b16 %v1151, %v1135
    %v1168 = vpack.c.b16 %v1152, %v1136
    %v1169 = vpack.c.b16 %v1153, %v1137
    %v1170 = vpack.c.b16 %v1154, %v1138
    %v1171 = vpack.c.b16 %v1155, %v1139
    %v1172 = vpack.c.b16 %v1156, %v1140
    %v1173 = vpack.c.b16 %v1157, %v1141
    %v1174 = vpack.c.b16 %v1158, %v1142
    %v1175 = vpack.c.b16 %v1159, %v1143
    %v1176 = vpack.c.b16 %v1160, %v1144
    %v1961 = vunpack.c.l.b16 %v313
    %v1962 = vunpack.c.h.b16 %v313
    %v1963 = vunpack.c.l.b16 %v314
    %v1964 = vunpack.c.h.b16 %v314
    %v1965 = vunpack.c.l.b16 %v315
    %v1966 = vunpack.c.h.b16 %v315
    %v1967 = vunpack.c.l.b16 %v316
    %v1968 = vunpack.c.h.b16 %v316
    %v1969 = vunpack.c.l.b16 %v317
    %v1970 = vunpack.c.h.b16 %v317
    %v1971 = vunpack.c.l.b16 %v318
    %v1972 = vunpack.c.h.b16 %v318
    %v1973 = vunpack.c.l.b16 %v319
    %v1974 = vunpack.c.h.b16 %v319
    %v1975 = vunpack.c.l.b16 %v320
    %v1976 = vunpack.c.h.b16 %v320
    %v1977 = vunpack.c.l.b16 %v321
    %v1978 = vunpack.c.h.b16 %v321
    %v1979 = vunpack.c.l.b16 %v322
    %v1980 = vunpack.c.h.b16 %v322
    %v1981 = vunpack.c.l.b16 %v323
    %v1982 = vunpack.c.h.b16 %v323
    %v1983 = vunpack.c.l.b16 %v324
    %v1984 = vunpack.c.h.b16 %v324
    %v1985 = vunpack.c.l.b16 %v325
    %v1986 = vunpack.c.h.b16 %v325
    %v1987 = vunpack.c.l.b16 %v326
    %v1988 = vunpack.c.h.b16 %v326
    %v1989 = vunpack.c.l.b16 %v327
    %v1990 = vunpack.c.h.b16 %v327
    %v1991 = vunpack.c.l.b16 %v328
    %v1992 = vunpack.c.h.b16 %v328
    %v1993 = vunpack.c.l.b16 %v329
    %v1994 = vunpack.c.h.b16 %v329
    %v1995 = vunpack.c.l.b16 %v330
    %v1996 = vunpack.c.h.b16 %v330
    %v1997 = vunpack.c.l.b16 %v331
    %v1998 = vunpack.c.h.b16 %v331
    %v1999 = vunpack.c.l.b16 %v332
    %v2000 = vunpack.c.h.b16 %v332
    %v2001 = vunpack.c.l.b16 %v333
    %v2002 = vunpack.c.h.b16 %v333
    %v2003 = vunpack.c.l.b16 %v334
    %v2004 = vunpack.c.h.b16 %v334
    %v2005 = vunpack.c.l.b16 %v335
    %v2006 = vunpack.c.h.b16 %v335
    %v2007 = vunpack.c.l.b16 %v336
    %v2008 = vunpack.c.h.b16 %v336
    %v2009 = vunpack.c.l.b16 %v337
    %v2010 = vunpack.c.h.b16 %v337
    %v2011 = vunpack.c.l.b16 %v338
    %v2012 = vunpack.c.h.b16 %v338
    %v2013 = vunpack.c.l.b16 %v339
    %v2014 = vunpack.c.h.b16 %v339
    %v2015 = vunpack.c.l.b16 %v340
    %v2016 = vunpack.c.h.b16 %v340
    %v2017 = vunpack.c.l.b16 %v341
    %v2018 = vunpack.c.h.b16 %v341
    %v2019 = vunpack.c.l.b16 %v342
    %v2020 = vunpack.c.h.b16 %v342
    %v2021 = vunpack.c.l.b16 %v343
    %v2022 = vunpack.c.h.b16 %v343
    %v2023 = vunpack.c.l.b16 %v344
    %v2024 = vunpack.c.h.b16 %v344
    %v2025 = vunpack.c.l.b16 %v345
    %v2026 = vunpack.c.h.b16 %v345
    %v2027 = vunpack.c.l.b16 %v346
    %v2028 = vunpack.c.h.b16 %v346
    %v2029 = vunpack.c.l.b16 %v347
    %v2030 = vunpack.c.h.b16 %v347
    %v2031 = vunpack.c.l.b16 %v348
    %v2032 = vunpack.c.h.b16 %v348
    %v2033 = vunpack.c.l.b16 %v349
    %v2034 = vunpack.c.h.b16 %v349
    %v2035 = vunpack.c.l.b16 %v350
    %v2036 = vunpack.c.h.b16 %v350
    %v2037 = vunpack.c.l.b16 %v351
    %v2038 = vunpack.c.h.b16 %v351
    %v2039 = vunpack.c.l.b16 %v352
    %v2040 = vunpack.c.h.b16 %v352
    %v2041 = vunpack.c.l.b16 %v353
    %v2042 = vunpack.c.h.b16 %v353
    %v2043 = vunpack.c.l.b16 %v354
    %v2044 = vunpack.c.h.b16 %v354
    %v2045 = vunpack.c.l.b16 %v355
    %v2046 = vunpack.c.h.b16 %v355
    %v2047 = vunpack.c.l.b16 %v356
    %v2048 = vunpack.c.h.b16 %v356
    %v2049 = vunpack.c.l.b16 %v357
    %v2050 = vunpack.c.h.b16 %v357
    %v2051 = vunpack.c.l.b16 %v358
    %v2052 = vunpack.c.h.b16 %v358
    %v2053 = vunpack.c.l.b16 %v359
    %v2054 = vunpack.c.h.b16 %v359
    %v2055 = vunpack.c.l.b16 %v360
    %v2056 = vunpack.c.h.b16 %v360
    %v2057 = vunpack.c.l.b16 %v361
    %v2058 = vunpack.c.h.b16 %v361
    %v2059 = vunpack.c.l.b16 %v362
    %v2060 = vunpack.c.h.b16 %v362
    %v2061 = vunpack.c.l.b16 %v363
    %v2062 = vunpack.c.h.b16 %v363
    %v2063 = vunpack.c.l.b16 %v364
    %v2064 = vunpack.c.h.b16 %v364
    %v2065 = vunpack.c.l.b16 %v365
    %v2066 = vunpack.c.h.b16 %v365
    %v2067 = vunpack.c.l.b16 %v366
    %v2068 = vunpack.c.h.b16 %v366
    %v2069 = vunpack.c.l.b16 %v367
    %v2070 = vunpack.c.h.b16 %v367
    %v2071 = vunpack.c.l.b16 %v368
    %v2072 = vunpack.c.h.b16 %v368
    %v2073 = vunpack.c.l.b16 %v369
    %v2074 = vunpack.c.h.b16 %v369
    %v2075 = vunpack.c.l.b16 %v370
    %v2076 = vunpack.c.h.b16 %v370
    %v2077 = vunpack.c.l.b16 %v371
    %v2078 = vunpack.c.h.b16 %v371
    %v2079 = vunpack.c.l.b16 %v372
    %v2080 = vunpack.c.h.b16 %v372
    %v2081 = vunpack.c.l.b16 %v373
    %v2082 = vunpack.c.h.b16 %v373
    %v2083 = vunpack.c.l.b16 %v374
    %v2084 = vunpack.c.h.b16 %v374
    %v2085 = vunpack.c.l.b16 %v375
    %v2086 = vunpack.c.h.b16 %v375
    %v2087 = vunpack.c.l.b16 %v376
    %v2088 = vunpack.c.h.b16 %v376
    %v2089 = vunpack.c.l.b16 %v377
    %v2090 = vunpack.c.h.b16 %v377
    %v2091 = vunpack.c.l.b16 %v378
    %v2092 = vunpack.c.h.b16 %v378
    %v2093 = vunpack.c.l.b16 %v379
    %v2094 = vunpack.c.h.b16 %v379
    %v2095 = vunpack.c.l.b16 %v380
    %v2096 = vunpack.c.h.b16 %v380
    %v2097 = vunpack.c.l.b16 %v381
    %v2098 = vunpack.c.h.b16 %v381
    %v2099 = vunpack.c.l.b16 %v382
    %v2100 = vunpack.c.h.b16 %v382
    %v2101 = vunpack.c.l.b16 %v383
    %v2102 = vunpack.c.h.b16 %v383
    %v2103 = vunpack.c.l.b16 %v384
    %v2104 = vunpack.c.h.b16 %v384
    %v2105 = vunpack.c.l.b16 %v385
    %v2106 = vunpack.c.h.b16 %v385
    %v2107 = vunpack.c.l.b16 %v386
    %v2108 = vunpack.c.h.b16 %v386
    %v2109 = vunpack.c.l.b16 %v387
    %v2110 = vunpack.c.h.b16 %v387
    %v2111 = vunpack.c.l.b16 %v388
    %v2112 = vunpack.c.h.b16 %v388
    %v2113 = vunpack.c.l.b16 %v389
    %v2114 = vunpack.c.h.b16 %v389
    %v2115 = vunpack.c.l.b16 %v390
    %v2116 = vunpack.c.h.b16 %v390
    %v2117 = vunpack.c.l.b16 %v391
    %v2118 = vunpack.c.h.b16 %v391
    %v2119 = vunpack.c.l.b16 %v392
    %v2120 = vunpack.c.h.b16 %v392
    %v2121 = vunpack.c.l.b16 %v393
    %v2122 = vunpack.c.h.b16 %v393
    %v2123 = vunpack.c.l.b16 %v394
    %v2124 = vunpack.c.h.b16 %v394
    %v2125 = vunpack.c.l.b16 %v395
    %v2126 = vunpack.c.h.b16 %v395
    %v2127 = vunpack.c.l.b16 %v396
    %v2128 = vunpack.c.h.b16 %v396
    %v2129 = vunpack.c.l.b16 %v397
    %v2130 = vunpack.c.h.b16 %v397
    %v2131 = vunpack.c.l.b16 %v398
    %v2132 = vunpack.c.h.b16 %v398
    %v2133 = vunpack.c.l.b16 %v399
    %v2134 = vunpack.c.h.b16 %v399
    %v2135 = vunpack.c.l.b16 %v400
    %v2136 = vunpack.c.h.b16 %v400
    %v2137 = vunpack.c.l.b16 %v401
    %v2138 = vunpack.c.h.b16 %v401
    %v2139 = vunpack.c.l.b16 %v402
    %v2140 = vunpack.c.h.b16 %v402
    %v2141 = vunpack.c.l.b16 %v403
    %v2142 = vunpack.c.h.b16 %v403
    %v2143 = vunpack.c.l.b16 %v404
    %v2144 = vunpack.c.h.b16 %v404
    %v2145 = vunpack.c.l.b16 %v405
    %v2146 = vunpack.c.h.b16 %v405
    %v2147 = vunpack.c.l.b16 %v406
    %v2148 = vunpack.c.h.b16 %v406
    %v2149 = vunpack.c.l.b16 %v407
    %v2150 = vunpack.c.h.b16 %v407
    %v2151 = vunpack.c.l.b16 %v408
    %v2152 = vunpack.c.h.b16 %v408
    %v2153 = vunpack.c.l.b16 %v409
    %v2154 = vunpack.c.h.b16 %v409
    %v2155 = vunpack.c.l.b16 %v410
    %v2156 = vunpack.c.h.b16 %v410
    %v2157 = vunpack.c.l.b16 %v411
    %v2158 = vunpack.c.h.b16 %v411
    %v2159 = vunpack.c.l.b16 %v412
    %v2160 = vunpack.c.h.b16 %v412
    %v2161 = vunpack.c.l.b16 %v413
    %v2162 = vunpack.c.h.b16 %v413
    %v2163 = vunpack.c.l.b16 %v414
    %v2164 = vunpack.c.h.b16 %v414
    %v2165 = vunpack.c.l.b16 %v415
    %v2166 = vunpack.c.h.b16 %v415
    %v2167 = vunpack.c.l.b16 %v416
    %v2168 = vunpack.c.h.b16 %v416
    %v2169 = vunpack.c.l.b16 %v417
    %v2170 = vunpack.c.h.b16 %v417
    %v2171 = vunpack.c.l.b16 %v418
    %v2172 = vunpack.c.h.b16 %v418
    %v2173 = vunpack.c.l.b16 %v419
    %v2174 = vunpack.c.h.b16 %v419
    %v2175 = vunpack.c.l.b16 %v420
    %v2176 = vunpack.c.h.b16 %v420
    %v2177 = vunpack.c.l.b16 %v421
    %v2178 = vunpack.c.h.b16 %v421
    %v2179 = vunpack.c.l.b16 %v422
    %v2180 = vunpack.c.h.b16 %v422
    %v2181 = vunpack.c.l.b16 %v423
    %v2182 = vunpack.c.h.b16 %v423
    %v2183 = vunpack.c.l.b16 %v424
    %v2184 = vunpack.c.h.b16 %v424
    %v2185 = vunpack.c.l.b16 %v425
    %v2186 = vunpack.c.h.b16 %v425
    %v2187 = vunpack.c.l.b16 %v426
    %v2188 = vunpack.c.h.b16 %v426
    %v2189 = vunpack.c.l.b16 %v427
    %v2190 = vunpack.c.h.b16 %v427
    %v2191 = vunpack.c.l.b16 %v428
    %v2192 = vunpack.c.h.b16 %v428
    %v2193 = vunpack.c.l.b16 %v429
    %v2194 = vunpack.c.h.b16 %v429
    %v2195 = vunpack.c.l.b16 %v430
    %v2196 = vunpack.c.h.b16 %v430
    %v2197 = vunpack.c.l.b16 %v431
    %v2198 = vunpack.c.h.b16 %v431
    %v2199 = vunpack.c.l.b16 %v432
    %v2200 = vunpack.c.h.b16 %v432
    %v2201 = vunpack.c.l.b16 %v433
    %v2202 = vunpack.c.h.b16 %v433
    %v2203 = vunpack.c.l.b16 %v434
    %v2204 = vunpack.c.h.b16 %v434
    %v2205 = vunpack.c.l.b16 %v435
    %v2206 = vunpack.c.h.b16 %v435
    %v2207 = vunpack.c.l.b16 %v436
    %v2208 = vunpack.c.h.b16 %v436
    %v2209 = vunpack.c.l.b16 %v437
    %v2210 = vunpack.c.h.b16 %v437
    %v2211 = vunpack.c.l.b16 %v438
    %v2212 = vunpack.c.h.b16 %v438
    %v2213 = vunpack.c.l.b16 %v439
    %v2214 = vunpack.c.h.b16 %v439
    %v2215 = vunpack.c.l.b16 %v440
    %v2216 = vunpack.c.h.b16 %v440
    %v2217 = vunpack.c.l.b16 %v441
    %v2218 = vunpack.c.h.b16 %v441
    %v2219 = vunpack.c.l.b16 %v442
    %v2220 = vunpack.c.h.b16 %v442
    %v2221 = vunpack.c.l.b16 %v443
    %v2222 = vunpack.c.h.b16 %v443
    %v2223 = vunpack.c.l.b16 %v444
    %v2224 = vunpack.c.h.b16 %v444
    %v2225 = vunpack.c.l.b16 %v445
    %v2226 = vunpack.c.h.b16 %v445
    %v2227 = vunpack.c.l.b16 %v446
    %v2228 = vunpack.c.h.b16 %v446
    %v2229 = vunpack.c.l.b16 %v447
    %v2230 = vunpack.c.h.b16 %v447
    %v2231 = vunpack.c.l.b16 %v448
    %v2232 = vunpack.c.h.b16 %v448
    %v2233 = vunpack.c.l.b16 %v449
    %v2234 = vunpack.c.h.b16 %v449
    %v2235 = vunpack.c.l.b16 %v450
    %v2236 = vunpack.c.h.b16 %v450
    %v2237 = vunpack.c.l.b16 %v451
    %v2238 = vunpack.c.h.b16 %v451
    %v2239 = vunpack.c.l.b16 %v452
    %v2240 = vunpack.c.h.b16 %v452
    %v2241 = vunpack.c.l.b16 %v453
    %v2242 = vunpack.c.h.b16 %v453
    %v2243 = vunpack.c.l.b16 %v454
    %v2244 = vunpack.c.h.b16 %v454
    %v2245 = vunpack.c.l.b16 %v455
    %v2246 = vunpack.c.h.b16 %v455
    %v2247 = vunpack.c.l.b16 %v456
    %v2248 = vunpack.c.h.b16 %v456
    %v2249 = vunpack.c.l.b16 %v457
    %v2250 = vunpack.c.h.b16 %v457
    %v2251 = vunpack.c.l.b16 %v458
    %v2252 = vunpack.c.h.b16 %v458
    %v2253 = vunpack.c.l.b16 %v459
    %v2254 = vunpack.c.h.b16 %v459
    %v2255 = vunpack.c.l.b16 %v460
    %v2256 = vunpack.c.h.b16 %v460
    %v2257 = vunpack.c.l.b16 %v461
    %v2258 = vunpack.c.h.b16 %v461
    %v2259 = vunpack.c.l.b16 %v462
    %v2260 = vunpack.c.h.b16 %v462
    %v2261 = vunpack.c.l.b16 %v463
    %v2262 = vunpack.c.h.b16 %v463
    %v2263 = vunpack.c.l.b16 %v464
    %v2264 = vunpack.c.h.b16 %v464
    %v2265 = vunpack.c.l.b16 %v465
    %v2266 = vunpack.c.h.b16 %v465
    %v2267 = vunpack.c.l.b16 %v466
    %v2268 = vunpack.c.h.b16 %v466
    %v2269 = vunpack.c.l.b16 %v467
    %v2270 = vunpack.c.h.b16 %v467
    %v2271 = vunpack.c.l.b16 %v468
    %v2272 = vunpack.c.h.b16 %v468
    %v2273 = vunpack.c.l.b16 %v469
    %v2274 = vunpack.c.h.b16 %v469
    %v2275 = vunpack.c.l.b16 %v470
    %v2276 = vunpack.c.h.b16 %v470
    %v2277 = vunpack.c.l.b16 %v471
    %v2278 = vunpack.c.h.b16 %v471
    %v2279 = vunpack.c.l.b16 %v472
    %v2280 = vunpack.c.h.b16 %v472
    %v2281 = vunpack.c.l.b16 %v473
    %v2282 = vunpack.c.h.b16 %v473
    %v2283 = vunpack.c.l.b16 %v474
    %v2284 = vunpack.c.h.b16 %v474
    %v2285 = vunpack.c.l.b16 %v475
    %v2286 = vunpack.c.h.b16 %v475
    %v2287 = vunpack.c.l.b16 %v476
    %v2288 = vunpack.c.h.b16 %v476
    %v2289 = vunpack.c.l.b16 %v477
    %v2290 = vunpack.c.h.b16 %v477
    %v2291 = vunpack.c.l.b16 %v478
    %v2292 = vunpack.c.h.b16 %v478
    %v2293 = vunpack.c.l.b16 %v479
    %v2294 = vunpack.c.h.b16 %v479
    %v2295 = vunpack.c.l.b16 %v480
    %v2296 = vunpack.c.h.b16 %v480
    %v2297 = vunpack.c.l.b16 %v481
    %v2298 = vunpack.c.h.b16 %v481
    %v2299 = vunpack.c.l.b16 %v482
    %v2300 = vunpack.c.h.b16 %v482
    %v2301 = vunpack.c.l.b16 %v483
    %v2302 = vunpack.c.h.b16 %v483
    %v2303 = vunpack.c.l.b16 %v484
    %v2304 = vunpack.c.h.b16 %v484
    %v2305 = vunpack.c.l.b16 %v485
    %v2306 = vunpack.c.h.b16 %v485
    %v2307 = vunpack.c.l.b16 %v486
    %v2308 = vunpack.c.h.b16 %v486
    %v2309 = vunpack.c.l.b16 %v487
    %v2310 = vunpack.c.h.b16 %v487
    %v2311 = vunpack.c.l.b16 %v488
    %v2312 = vunpack.c.h.b16 %v488
    %v2313 = vunpack.c.l.b16 %v489
    %v2314 = vunpack.c.h.b16 %v489
    %v2315 = vunpack.c.l.b16 %v490
    %v2316 = vunpack.c.h.b16 %v490
    %v2317 = vunpack.c.l.b16 %v491
    %v2318 = vunpack.c.h.b16 %v491
    %v2319 = vunpack.c.l.b16 %v492
    %v2320 = vunpack.c.h.b16 %v492
    %v2321 = vunpack.c.l.b16 %v493
    %v2322 = vunpack.c.h.b16 %v493
    %v2323 = vunpack.c.l.b16 %v494
    %v2324 = vunpack.c.h.b16 %v494
    %v2325 = vunpack.c.l.b16 %v495
    %v2326 = vunpack.c.h.b16 %v495
    %v2327 = vunpack.c.l.b16 %v496
    %v2328 = vunpack.c.h.b16 %v496
    %v2329 = vunpack.c.l.b16 %v497
    %v2330 = vunpack.c.h.b16 %v497
    %v2331 = vunpack.c.l.b16 %v498
    %v2332 = vunpack.c.h.b16 %v498
    %v2333 = vunpack.c.l.b16 %v499
    %v2334 = vunpack.c.h.b16 %v499
    %v2335 = vunpack.c.l.b16 %v500
    %v2336 = vunpack.c.h.b16 %v500
    %v2337 = vunpack.c.l.b16 %v501
    %v2338 = vunpack.c.h.b16 %v501
    %v2339 = vunpack.c.l.b16 %v502
    %v2340 = vunpack.c.h.b16 %v502
    %v2341 = vunpack.c.l.b16 %v503
    %v2342 = vunpack.c.h.b16 %v503
    %v2343 = vunpack.c.l.b16 %v504
    %v2344 = vunpack.c.h.b16 %v504
    %v2345 = vunpack.c.l.b16 %v505
    %v2346 = vunpack.c.h.b16 %v505
    %v2347 = vunpack.c.l.b16 %v506
    %v2348 = vunpack.c.h.b16 %v506
    %v2349 = vunpack.c.l.b16 %v507
    %v2350 = vunpack.c.h.b16 %v507
    %v2351 = vunpack.c.l.b16 %v508
    %v2352 = vunpack.c.h.b16 %v508
    %v2353 = vunpack.c.l.b16 %v509
    %v2354 = vunpack.c.h.b16 %v509
    %v2355 = vunpack.c.l.b16 %v510
    %v2356 = vunpack.c.h.b16 %v510
    %v2357 = vunpack.c.l.b16 %v511
    %v2358 = vunpack.c.h.b16 %v511
    %v2359 = vunpack.c.l.b16 %v512
    %v2360 = vunpack.c.h.b16 %v512
    %v2361 = vunpack.c.l.b16 %v513
    %v2362 = vunpack.c.h.b16 %v513
    %v2363 = vunpack.c.l.b16 %v514
    %v2364 = vunpack.c.h.b16 %v514
    %v2365 = vunpack.c.l.b16 %v515
    %v2366 = vunpack.c.h.b16 %v515
    %v2367 = vunpack.c.l.b16 %v516
    %v2368 = vunpack.c.h.b16 %v516
    %v2369 = vunpack.c.l.b16 %v517
    %v2370 = vunpack.c.h.b16 %v517
    %v2371 = vunpack.c.l.b16 %v518
    %v2372 = vunpack.c.h.b16 %v518
    %v2373 = vunpack.c.l.b16 %v519
    %v2374 = vunpack.c.h.b16 %v519
    %v2375 = vunpack.c.l.b16 %v520
    %v2376 = vunpack.c.h.b16 %v520
    %v2377 = vunpack.c.l.b16 %v521
    %v2378 = vunpack.c.h.b16 %v521
    %v2379 = vunpack.c.l.b16 %v522
    %v2380 = vunpack.c.h.b16 %v522
    %v2381 = vunpack.c.l.b16 %v523
    %v2382 = vunpack.c.h.b16 %v523
    %v2383 = vunpack.c.l.b16 %v524
    %v2384 = vunpack.c.h.b16 %v524
    %v2385 = vunpack.c.l.b16 %v525
    %v2386 = vunpack.c.h.b16 %v525
    %v2387 = vunpack.c.l.b16 %v526
    %v2388 = vunpack.c.h.b16 %v526
    %v2389 = vunpack.c.l.b16 %v527
    %v2390 = vunpack.c.h.b16 %v527
    %v2391 = vunpack.c.l.b16 %v528
    %v2392 = vunpack.c.h.b16 %v528
    %v2393 = vunpack.c.l.b16 %v529
    %v2394 = vunpack.c.h.b16 %v529
    %v2395 = vunpack.c.l.b16 %v530
    %v2396 = vunpack.c.h.b16 %v530
    %v2397 = vunpack.c.l.b16 %v531
    %v2398 = vunpack.c.h.b16 %v531
    %v2399 = vunpack.c.l.b16 %v532
    %v2400 = vunpack.c.h.b16 %v532
    %v2401 = vunpack.c.l.b16 %v533
    %v2402 = vunpack.c.h.b16 %v533
    %v2403 = vunpack.c.l.b16 %v534
    %v2404 = vunpack.c.h.b16 %v534
    %v2405 = vunpack.c.l.b16 %v535
    %v2406 = vunpack.c.h.b16 %v535
    %v2407 = vunpack.c.l.b16 %v536
    %v2408 = vunpack.c.h.b16 %v536
    %v2409 = vunpack.c.l.b16 %v537
    %v2410 = vunpack.c.h.b16 %v537
    %v2411 = vunpack.c.l.b16 %v538
    %v2412 = vunpack.c.h.b16 %v538
    %v2413 = vunpack.c.l.b16 %v539
    %v2414 = vunpack.c.h.b16 %v539
    %v2415 = vunpack.c.l.b16 %v540
    %v2416 = vunpack.c.h.b16 %v540
    %v2417 = vunpack.c.l.b16 %v541
    %v2418 = vunpack.c.h.b16 %v541
    %v2419 = vunpack.c.l.b16 %v542
    %v2420 = vunpack.c.h.b16 %v542
    %v2421 = vunpack.c.l.b16 %v543
    %v2422 = vunpack.c.h.b16 %v543
    %v2423 = vunpack.c.l.b16 %v544
    %v2424 = vunpack.c.h.b16 %v544
    %v2425 = vunpack.c.l.b16 %v545
    %v2426 = vunpack.c.h.b16 %v545
    %v2427 = vunpack.c.l.b16 %v546
    %v2428 = vunpack.c.h.b16 %v546
    %v2429 = vunpack.c.l.b16 %v547
    %v2430 = vunpack.c.h.b16 %v547
    %v2431 = vunpack.c.l.b16 %v548
    %v2432 = vunpack.c.h.b16 %v548
    %v2433 = vunpack.c.l.b16 %v549
    %v2434 = vunpack.c.h.b16 %v549
    %v2435 = vunpack.c.l.b16 %v550
    %v2436 = vunpack.c.h.b16 %v550
    %v2437 = vunpack.c.l.b16 %v551
    %v2438 = vunpack.c.h.b16 %v551
    %v2439 = vunpack.c.l.b16 %v552
    %v2440 = vunpack.c.h.b16 %v552
    %v2441 = vunpack.c.l.b16 %v553
    %v2442 = vunpack.c.h.b16 %v553
    %v2443 = vunpack.c.l.b16 %v554
    %v2444 = vunpack.c.h.b16 %v554
    %v2445 = vunpack.c.l.b16 %v555
    %v2446 = vunpack.c.h.b16 %v555
    %v2447 = vunpack.c.l.b16 %v556
    %v2448 = vunpack.c.h.b16 %v556
    %v2449 = vunpack.c.l.b16 %v557
    %v2450 = vunpack.c.h.b16 %v557
    %v2451 = vunpack.c.l.b16 %v558
    %v2452 = vunpack.c.h.b16 %v558
    %v2453 = vunpack.c.l.b16 %v559
    %v2454 = vunpack.c.h.b16 %v559
    %v2455 = vunpack.c.l.b16 %v560
    %v2456 = vunpack.c.h.b16 %v560
    %v2457 = vunpack.c.l.b16 %v561
    %v2458 = vunpack.c.h.b16 %v561
    %v2459 = vunpack.c.l.b16 %v562
    %v2460 = vunpack.c.h.b16 %v562
    %v2461 = vunpack.c.l.b16 %v563
    %v2462 = vunpack.c.h.b16 %v563
    %v2463 = vunpack.c.l.b16 %v564
    %v2464 = vunpack.c.h.b16 %v564
    %v2465 = vunpack.c.l.b16 %v565
    %v2466 = vunpack.c.h.b16 %v565
    %v2467 = vunpack.c.l.b16 %v566
    %v2468 = vunpack.c.h.b16 %v566
    %v2469 = vunpack.c.l.b16 %v567
    %v2470 = vunpack.c.h.b16 %v567
    %v2471 = vunpack.c.l.b16 %v568
    %v2472 = vunpack.c.h.b16 %v568
    %v2473 = vunpack.c.l.b16 %v569
    %v2474 = vunpack.c.h.b16 %v569
    %v2475 = vunpack.c.l.b16 %v570
    %v2476 = vunpack.c.h.b16 %v570
    %v2477 = vunpack.c.l.b16 %v571
    %v2478 = vunpack.c.h.b16 %v571
    %v2479 = vunpack.c.l.b16 %v572
    %v2480 = vunpack.c.h.b16 %v572
    %v2481 = vunpack.c.l.b16 %v573
    %v2482 = vunpack.c.h.b16 %v573
    %v2483 = vunpack.c.l.b16 %v574
    %v2484 = vunpack.c.h.b16 %v574
    %v2485 = vunpack.c.l.b16 %v575
    %v2486 = vunpack.c.h.b16 %v575
    %v2487 = vunpack.c.l.b16 %v576
    %v2488 = vunpack.c.h.b16 %v576
    %v2489 = vunpack.c.l.b16 %v577
    %v2490 = vunpack.c.h.b16 %v577
    %v2491 = vunpack.c.l.b16 %v578
    %v2492 = vunpack.c.h.b16 %v578
    %v2493 = vunpack.c.l.b16 %v579
    %v2494 = vunpack.c.h.b16 %v579
    %v2495 = vunpack.c.l.b16 %v580
    %v2496 = vunpack.c.h.b16 %v580
    %v2497 = vunpack.c.l.b16 %v581
    %v2498 = vunpack.c.h.b16 %v581
    %v2499 = vunpack.c.l.b16 %v582
    %v2500 = vunpack.c.h.b16 %v582
    %v2501 = vunpack.c.l.b16 %v583
    %v2502 = vunpack.c.h.b16 %v583
    %v2503 = vunpack.c.l.b16 %v584
    %v2504 = vunpack.c.h.b16 %v584
    %v2505 = vunpack.c.l.b16 %v585
    %v2506 = vunpack.c.h.b16 %v585
    %v2507 = vunpack.c.l.b16 %v586
    %v2508 = vunpack.c.h.b16 %v586
    %v2509 = vunpack.c.l.b16 %v587
    %v2510 = vunpack.c.h.b16 %v587
    %v2511 = vunpack.c.l.b16 %v588
    %v2512 = vunpack.c.h.b16 %v588
    %v2513 = vunpack.c.l.b16 %v589
    %v2514 = vunpack.c.h.b16 %v589
    %v2515 = vunpack.c.l.b16 %v590
    %v2516 = vunpack.c.h.b16 %v590
    %v2517 = vunpack.c.l.b16 %v591
    %v2518 = vunpack.c.h.b16 %v591
    %v2519 = vunpack.c.l.b16 %v592
    %v2520 = vunpack.c.h.b16 %v592
    %v2521 = vunpack.c.l.b16 %v593
    %v2522 = vunpack.c.h.b16 %v593
    %v2523 = vunpack.c.l.b16 %v594
    %v2524 = vunpack.c.h.b16 %v594
    %v2525 = vunpack.c.l.b16 %v595
    %v2526 = vunpack.c.h.b16 %v595
    %v2527 = vunpack.c.l.b16 %v596
    %v2528 = vunpack.c.h.b16 %v596
    %v2529 = vunpack.c.l.b16 %v597
    %v2530 = vunpack.c.h.b16 %v597
    %v2531 = vunpack.c.l.b16 %v598
    %v2532 = vunpack.c.h.b16 %v598
    %v2533 = vunpack.c.l.b16 %v599
    %v2534 = vunpack.c.h.b16 %v599
    %v2535 = vunpack.c.l.b16 %v600
    %v2536 = vunpack.c.h.b16 %v600
    %v2537 = vunpack.c.l.b16 %v601
    %v2538 = vunpack.c.h.b16 %v601
    %v2539 = vunpack.c.l.b16 %v602
    %v2540 = vunpack.c.h.b16 %v602
    %v2541 = vunpack.c.l.b16 %v603
    %v2542 = vunpack.c.h.b16 %v603
    %v2543 = vunpack.c.l.b16 %v604
    %v2544 = vunpack.c.h.b16 %v604
    %v2545 = vunpack.c.l.b16 %v605
    %v2546 = vunpack.c.h.b16 %v605
    %v2547 = vunpack.c.l.b16 %v606
    %v2548 = vunpack.c.h.b16 %v606
    %v2549 = vunpack.c.l.b16 %v607
    %v2550 = vunpack.c.h.b16 %v607
    %v2551 = vunpack.c.l.b16 %v608
    %v2552 = vunpack.c.h.b16 %v608
    %v2553 = vunpack.c.l.b16 %v609
    %v2554 = vunpack.c.h.b16 %v609
    %v2555 = vunpack.c.l.b16 %v610
    %v2556 = vunpack.c.h.b16 %v610
    %v2557 = vunpack.c.l.b16 %v611
    %v2558 = vunpack.c.h.b16 %v611
    %v2559 = vunpack.c.l.b16 %v612
    %v2560 = vunpack.c.h.b16 %v612
    %v2561 = vunpack.c.l.b16 %v613
    %v2562 = vunpack.c.h.b16 %v613
    %v2563 = vunpack.c.l.b16 %v614
    %v2564 = vunpack.c.h.b16 %v614
    %v2565 = vunpack.c.l.b16 %v615
    %v2566 = vunpack.c.h.b16 %v615
    %v2567 = vunpack.c.l.b16 %v616
    %v2568 = vunpack.c.h.b16 %v616
    %v2569 = vunpack.c.l.b16 %v617
    %v2570 = vunpack.c.h.b16 %v617
    %v2571 = vunpack.c.l.b16 %v618
    %v2572 = vunpack.c.h.b16 %v618
    %v2573 = vunpack.c.l.b16 %v619
    %v2574 = vunpack.c.h.b16 %v619
    %v2575 = vunpack.c.l.b16 %v620
    %v2576 = vunpack.c.h.b16 %v620
    %v2577 = vunpack.c.l.b16 %v621
    %v2578 = vunpack.c.h.b16 %v621
    %v2579 = vunpack.c.l.b16 %v622
    %v2580 = vunpack.c.h.b16 %v622
    %v2581 = vunpack.c.l.b16 %v623
    %v2582 = vunpack.c.h.b16 %v623
    %v2583 = vunpack.c.l.b16 %v624
    %v2584 = vunpack.c.h.b16 %v624
    %v2585 = vunpack.c.l.b16 %v625
    %v2586 = vunpack.c.h.b16 %v625
    %v2587 = vunpack.c.l.b16 %v626
    %v2588 = vunpack.c.h.b16 %v626
    %v2589 = vunpack.c.l.b16 %v627
    %v2590 = vunpack.c.h.b16 %v627
    %v2591 = vunpack.c.l.b16 %v628
    %v2592 = vunpack.c.h.b16 %v628
    %v2593 = vunpack.c.l.b16 %v629
    %v2594 = vunpack.c.h.b16 %v629
    %v2595 = vunpack.c.l.b16 %v630
    %v2596 = vunpack.c.h.b16 %v630
    %v2597 = vunpack.c.l.b16 %v631
    %v2598 = vunpack.c.h.b16 %v631
    %v2599 = vunpack.c.l.b16 %v632
    %v2600 = vunpack.c.h.b16 %v632
    %v2601 = vunpack.c.l.b16 %v633
    %v2602 = vunpack.c.h.b16 %v633
    %v2603 = vunpack.c.l.b16 %v634
    %v2604 = vunpack.c.h.b16 %v634
    %v2605 = vunpack.c.l.b16 %v635
    %v2606 = vunpack.c.h.b16 %v635
    %v2607 = vunpack.c.l.b16 %v636
    %v2608 = vunpack.c.h.b16 %v636
    %v2609 = vunpack.c.l.b16 %v637
    %v2610 = vunpack.c.h.b16 %v637
    %v2611 = vunpack.c.l.b16 %v638
    %v2612 = vunpack.c.h.b16 %v638
    %v2613 = vunpack.c.l.b16 %v639
    %v2614 = vunpack.c.h.b16 %v639
    %v2615 = vunpack.c.l.b16 %v640
    %v2616 = vunpack.c.h.b16 %v640
    %v2617 = vunpack.c.l.b16 %v641
    %v2618 = vunpack.c.h.b16 %v641
    %v2619 = vunpack.c.l.b16 %v642
    %v2620 = vunpack.c.h.b16 %v642
    %v2621 = vunpack.c.l.b16 %v643
    %v2622 = vunpack.c.h.b16 %v643
    %v2623 = vunpack.c.l.b16 %v644
    %v2624 = vunpack.c.h.b16 %v644
    %v2625 = vunpack.c.l.b16 %v645
    %v2626 = vunpack.c.h.b16 %v645
    %v2627 = vunpack.c.l.b16 %v646
    %v2628 = vunpack.c.h.b16 %v646
    %v2629 = vunpack.c.l.b16 %v647
    %v2630 = vunpack.c.h.b16 %v647
    %v2631 = vunpack.c.l.b16 %v648
    %v2632 = vunpack.c.h.b16 %v648
    %v2633 = vunpack.c.l.b16 %v649
    %v2634 = vunpack.c.h.b16 %v649
    %v2635 = vunpack.c.l.b16 %v650
    %v2636 = vunpack.c.h.b16 %v650
    %v2637 = vunpack.c.l.b16 %v651
    %v2638 = vunpack.c.h.b16 %v651
    %v2639 = vunpack.c.l.b16 %v652
    %v2640 = vunpack.c.h.b16 %v652
    %v2641 = vunpack.c.l.b16 %v653
    %v2642 = vunpack.c.h.b16 %v653
    %v2643 = vunpack.c.l.b16 %v654
    %v2644 = vunpack.c.h.b16 %v654
    %v2645 = vunpack.c.l.b16 %v655
    %v2646 = vunpack.c.h.b16 %v655
    %v2647 = vunpack.c.l.b16 %v656
    %v2648 = vunpack.c.h.b16 %v656
    %v2649 = vunpack.c.l.b16 %v657
    %v2650 = vunpack.c.h.b16 %v657
    %v2651 = vunpack.c.l.b16 %v658
    %v2652 = vunpack.c.h.b16 %v658
    %v2653 = vunpack.c.l.b16 %v659
    %v2654 = vunpack.c.h.b16 %v659
    %v2655 = vunpack.c.l.b16 %v660
    %v2656 = vunpack.c.h.b16 %v660
    %v2657 = vunpack.c.l.b16 %v661
    %v2658 = vunpack.c.h.b16 %v661
    %v2659 = vunpack.c.l.b16 %v662
    %v2660 = vunpack.c.h.b16 %v662
    %v2661 = vunpack.c.l.b16 %v663
    %v2662 = vunpack.c.h.b16 %v663
    %v2663 = vunpack.c.l.b16 %v664
    %v2664 = vunpack.c.h.b16 %v664
    %v2665 = vunpack.c.l.b16 %v665
    %v2666 = vunpack.c.h.b16 %v665
    %v2667 = vunpack.c.l.b16 %v666
    %v2668 = vunpack.c.h.b16 %v666
    %v2669 = vunpack.c.l.b16 %v667
    %v2670 = vunpack.c.h.b16 %v667
    %v2671 = vunpack.c.l.b16 %v668
    %v2672 = vunpack.c.h.b16 %v668
    %v2673 = vunpack.c.l.b16 %v669
    %v2674 = vunpack.c.h.b16 %v669
    %v2675 = vunpack.c.l.b16 %v670
    %v2676 = vunpack.c.h.b16 %v670
    %v2677 = vunpack.c.l.b16 %v671
    %v2678 = vunpack.c.h.b16 %v671
    %v2679 = vunpack.c.l.b16 %v672
    %v2680 = vunpack.c.h.b16 %v672
    %v2681 = vunpack.c.l.b16 %v673
    %v2682 = vunpack.c.h.b16 %v673
    %v2683 = vunpack.c.l.b16 %v674
    %v2684 = vunpack.c.h.b16 %v674
    %v2685 = vunpack.c.l.b16 %v675
    %v2686 = vunpack.c.h.b16 %v675
    %v2687 = vunpack.c.l.b16 %v676
    %v2688 = vunpack.c.h.b16 %v676
    %v2689 = vunpack.c.l.b16 %v677
    %v2690 = vunpack.c.h.b16 %v677
    %v2691 = vunpack.c.l.b16 %v678
    %v2692 = vunpack.c.h.b16 %v678
    %v2693 = vunpack.c.l.b16 %v679
    %v2694 = vunpack.c.h.b16 %v679
    %v2695 = vunpack.c.l.b16 %v680
    %v2696 = vunpack.c.h.b16 %v680
    %v2697 = vunpack.c.l.b16 %v681
    %v2698 = vunpack.c.h.b16 %v681
    %v2699 = vunpack.c.l.b16 %v682
    %v2700 = vunpack.c.h.b16 %v682
    %v2701 = vunpack.c.l.b16 %v683
    %v2702 = vunpack.c.h.b16 %v683
    %v2703 = vunpack.c.l.b16 %v684
    %v2704 = vunpack.c.h.b16 %v684
    %v2705 = vunpack.c.l.b16 %v685
    %v2706 = vunpack.c.h.b16 %v685
    %v2707 = vunpack.c.l.b16 %v686
    %v2708 = vunpack.c.h.b16 %v686
    %v2709 = vunpack.c.l.b16 %v687
    %v2710 = vunpack.c.h.b16 %v687
    %v2711 = vunpack.c.l.b16 %v688
    %v2712 = vunpack.c.h.b16 %v688
    %v2713 = vunpack.c.l.b16 %v689
    %v2714 = vunpack.c.h.b16 %v689
    %v2715 = vunpack.c.l.b16 %v690
    %v2716 = vunpack.c.h.b16 %v690
    %v2717 = vunpack.c.l.b16 %v691
    %v2718 = vunpack.c.h.b16 %v691
    %v2719 = vunpack.c.l.b16 %v692
    %v2720 = vunpack.c.h.b16 %v692
    %v2721 = vunpack.c.l.b16 %v693
    %v2722 = vunpack.c.h.b16 %v693
    %v2723 = vunpack.c.l.b16 %v694
    %v2724 = vunpack.c.h.b16 %v694
    %v2725 = vunpack.c.l.b16 %v695
    %v2726 = vunpack.c.h.b16 %v695
    %v2727 = vunpack.c.l.b16 %v696
    %v2728 = vunpack.c.h.b16 %v696
    %v2729 = vunpack.c.l.b16 %v697
    %v2730 = vunpack.c.h.b16 %v697
    %v2731 = vunpack.c.l.b16 %v698
    %v2732 = vunpack.c.h.b16 %v698
    %v2733 = vunpack.c.l.b16 %v699
    %v2734 = vunpack.c.h.b16 %v699
    %v2735 = vunpack.c.l.b16 %v700
    %v2736 = vunpack.c.h.b16 %v700
    %v2737 = vunpack.c.l.b16 %v701
    %v2738 = vunpack.c.h.b16 %v701
    %v2739 = vunpack.c.l.b16 %v702
    %v2740 = vunpack.c.h.b16 %v702
    %v2741 = vunpack.c.l.b16 %v703
    %v2742 = vunpack.c.h.b16 %v703
    %v2743 = vunpack.c.l.b16 %v704
    %v2744 = vunpack.c.h.b16 %v704
    %v2745 = vunpack.c.l.b16 %v705
    %v2746 = vunpack.c.h.b16 %v705
    %v2747 = vunpack.c.l.b16 %v706
    %v2748 = vunpack.c.h.b16 %v706
    %v2749 = vunpack.c.l.b16 %v707
    %v2750 = vunpack.c.h.b16 %v707
    %v2751 = vunpack.c.l.b16 %v708
    %v2752 = vunpack.c.h.b16 %v708
    %v2753 = vunpack.c.l.b16 %v709
    %v2754 = vunpack.c.h.b16 %v709
    %v2755 = vunpack.c.l.b16 %v710
    %v2756 = vunpack.c.h.b16 %v710
    %v2757 = vunpack.c.l.b16 %v711
    %v2758 = vunpack.c.h.b16 %v711
    %v2759 = vunpack.c.l.b16 %v712
    %v2760 = vunpack.c.h.b16 %v712
    %v2761 = vunpack.c.l.b16 %v713
    %v2762 = vunpack.c.h.b16 %v713
    %v2763 = vunpack.c.l.b16 %v714
    %v2764 = vunpack.c.h.b16 %v714
    %v2765 = vunpack.c.l.b16 %v715
    %v2766 = vunpack.c.h.b16 %v715
    %v2767 = vunpack.c.l.b16 %v716
    %v2768 = vunpack.c.h.b16 %v716
    %v2769 = vunpack.c.l.b16 %v717
    %v2770 = vunpack.c.h.b16 %v717
    %v2771 = vunpack.c.l.b16 %v718
    %v2772 = vunpack.c.h.b16 %v718
    %v2773 = vunpack.c.l.b16 %v719
    %v2774 = vunpack.c.h.b16 %v719
    %v2775 = vunpack.c.l.b16 %v720
    %v2776 = vunpack.c.h.b16 %v720
    %v2777 = vunpack.c.l.b16 %v721
    %v2778 = vunpack.c.h.b16 %v721
    %v2779 = vunpack.c.l.b16 %v722
    %v2780 = vunpack.c.h.b16 %v722
    %v2781 = vunpack.c.l.b16 %v723
    %v2782 = vunpack.c.h.b16 %v723
    %v2783 = vunpack.c.l.b16 %v724
    %v2784 = vunpack.c.h.b16 %v724
    %v2785 = vunpack.c.l.b16 %v725
    %v2786 = vunpack.c.h.b16 %v725
    %v2787 = vunpack.c.l.b16 %v726
    %v2788 = vunpack.c.h.b16 %v726
    %v2789 = vunpack.c.l.b16 %v727
    %v2790 = vunpack.c.h.b16 %v727
    %v2791 = vunpack.c.l.b16 %v728
    %v2792 = vunpack.c.h.b16 %v728
    %v2793 = vunpack.c.l.b16 %v729
    %v2794 = vunpack.c.h.b16 %v729
    %v2795 = vunpack.c.l.b16 %v730
    %v2796 = vunpack.c.h.b16 %v730
    %v2797 = vunpack.c.l.b16 %v731
    %v2798 = vunpack.c.h.b16 %v731
    %v2799 = vunpack.c.l.b16 %v732
    %v2800 = vunpack.c.h.b16 %v732
    %v2801 = vunpack.c.l.b16 %v733
    %v2802 = vunpack.c.h.b16 %v733
    %v2803 = vunpack.c.l.b16 %v734
    %v2804 = vunpack.c.h.b16 %v734
    %v2805 = vunpack.c.l.b16 %v735
    %v2806 = vunpack.c.h.b16 %v735
    %v2807 = vunpack.c.l.b16 %v736
    %v2808 = vunpack.c.h.b16 %v736
    %v2809 = vunpack.c.l.b16 %v737
    %v2810 = vunpack.c.h.b16 %v737
    %v2811 = vunpack.c.l.b16 %v738
    %v2812 = vunpack.c.h.b16 %v738
    %v2813 = vunpack.c.l.b16 %v739
    %v2814 = vunpack.c.h.b16 %v739
    %v2815 = vunpack.c.l.b16 %v740
    %v2816 = vunpack.c.h.b16 %v740
    %v2817 = vunpack.c.l.b16 %v741
    %v2818 = vunpack.c.h.b16 %v741
    %v2819 = vunpack.c.l.b16 %v742
    %v2820 = vunpack.c.h.b16 %v742
    %v2821 = vunpack.c.l.b16 %v743
    %v2822 = vunpack.c.h.b16 %v743
    %v2823 = vunpack.c.l.b16 %v744
    %v2824 = vunpack.c.h.b16 %v744
    %v2825 = vunpack.c.l.b16 %v745
    %v2826 = vunpack.c.h.b16 %v745
    %v2827 = vunpack.c.l.b16 %v746
    %v2828 = vunpack.c.h.b16 %v746
    %v2829 = vunpack.c.l.b16 %v747
    %v2830 = vunpack.c.h.b16 %v747
    %v2831 = vunpack.c.l.b16 %v748
    %v2832 = vunpack.c.h.b16 %v748
    %v2833 = vunpack.c.l.b16 %v749
    %v2834 = vunpack.c.h.b16 %v749
    %v2835 = vunpack.c.l.b16 %v750
    %v2836 = vunpack.c.h.b16 %v750
    %v2837 = vunpack.c.l.b16 %v751
    %v2838 = vunpack.c.h.b16 %v751
    %v2839 = vunpack.c.l.b16 %v752
    %v2840 = vunpack.c.h.b16 %v752
    %v2841 = vunpack.c.l.b16 %v753
    %v2842 = vunpack.c.h.b16 %v753
    %v2843 = vunpack.c.l.b16 %v754
    %v2844 = vunpack.c.h.b16 %v754
    %v2845 = vunpack.c.l.b16 %v755
    %v2846 = vunpack.c.h.b16 %v755
    %v2847 = vunpack.c.l.b16 %v756
    %v2848 = vunpack.c.h.b16 %v756
    %v2849 = vunpack.c.l.b16 %v757
    %v2850 = vunpack.c.h.b16 %v757
    %v2851 = vunpack.c.l.b16 %v758
    %v2852 = vunpack.c.h.b16 %v758
    %v2853 = vunpack.c.l.b16 %v759
    %v2854 = vunpack.c.h.b16 %v759
    %v2855 = vunpack.c.l.b16 %v760
    %v2856 = vunpack.c.h.b16 %v760
    %v2857 = vunpack.c.l.b16 %v761
    %v2858 = vunpack.c.h.b16 %v761
    %v2859 = vunpack.c.l.b16 %v762
    %v2860 = vunpack.c.h.b16 %v762
    %v2861 = vunpack.c.l.b16 %v763
    %v2862 = vunpack.c.h.b16 %v763
    %v2863 = vunpack.c.l.b16 %v764
    %v2864 = vunpack.c.h.b16 %v764
    %v2865 = vunpack.c.l.b16 %v765
    %v2866 = vunpack.c.h.b16 %v765
    %v2867 = vunpack.c.l.b16 %v766
    %v2868 = vunpack.c.h.b16 %v766
    %v2869 = vunpack.c.l.b16 %v767
    %v2870 = vunpack.c.h.b16 %v767
    %v2871 = vunpack.c.l.b16 %v768
    %v2872 = vunpack.c.h.b16 %v768
    %v2873 = vunpack.c.l.b16 %v769
    %v2874 = vunpack.c.h.b16 %v769
    %v2875 = vunpack.c.l.b16 %v770
    %v2876 = vunpack.c.h.b16 %v770
    %v2877 = vunpack.c.l.b16 %v771
    %v2878 = vunpack.c.h.b16 %v771
    %v2879 = vunpack.c.l.b16 %v772
    %v2880 = vunpack.c.h.b16 %v772
    %v2881 = vunpack.c.l.b16 %v773
    %v2882 = vunpack.c.h.b16 %v773
    %v2883 = vunpack.c.l.b16 %v774
    %v2884 = vunpack.c.h.b16 %v774
    %v2885 = vunpack.c.l.b16 %v775
    %v2886 = vunpack.c.h.b16 %v775
    %v2887 = vunpack.c.l.b16 %v776
    %v2888 = vunpack.c.h.b16 %v776
    %v2889 = vunpack.c.l.b16 %v777
    %v2890 = vunpack.c.h.b16 %v777
    %v2891 = vunpack.c.l.b16 %v778
    %v2892 = vunpack.c.h.b16 %v778
    %v2893 = vunpack.c.l.b16 %v779
    %v2894 = vunpack.c.h.b16 %v779
    %v2895 = vunpack.c.l.b16 %v780
    %v2896 = vunpack.c.h.b16 %v780
    %v2897 = vunpack.c.l.b16 %v781
    %v2898 = vunpack.c.h.b16 %v781
    %v2899 = vunpack.c.l.b16 %v782
    %v2900 = vunpack.c.h.b16 %v782
    %v2901 = vunpack.c.l.b16 %v783
    %v2902 = vunpack.c.h.b16 %v783
    %v2903 = vunpack.c.l.b16 %v784
    %v2904 = vunpack.c.h.b16 %v784
    %v2905 = vunpack.c.l.b16 %v785
    %v2906 = vunpack.c.h.b16 %v785
    %v2907 = vunpack.c.l.b16 %v786
    %v2908 = vunpack.c.h.b16 %v786
    %v2909 = vunpack.c.l.b16 %v787
    %v2910 = vunpack.c.h.b16 %v787
    %v2911 = vunpack.c.l.b16 %v788
    %v2912 = vunpack.c.h.b16 %v788
    %v2913 = vunpack.c.l.b16 %v789
    %v2914 = vunpack.c.h.b16 %v789
    %v2915 = vunpack.c.l.b16 %v790
    %v2916 = vunpack.c.h.b16 %v790
    %v2917 = vunpack.c.l.b16 %v791
    %v2918 = vunpack.c.h.b16 %v791
    %v2919 = vunpack.c.l.b16 %v792
    %v2920 = vunpack.c.h.b16 %v792
    %v2921 = vunpack.c.l.b16 %v793
    %v2922 = vunpack.c.h.b16 %v793
    %v2923 = vunpack.c.l.b16 %v794
    %v2924 = vunpack.c.h.b16 %v794
    %v2925 = vunpack.c.l.b16 %v795
    %v2926 = vunpack.c.h.b16 %v795
    %v2927 = vunpack.c.l.b16 %v796
    %v2928 = vunpack.c.h.b16 %v796
    %v2929 = vunpack.c.l.b16 %v797
    %v2930 = vunpack.c.h.b16 %v797
    %v2931 = vunpack.c.l.b16 %v798
    %v2932 = vunpack.c.h.b16 %v798
    %v2933 = vunpack.c.l.b16 %v799
    %v2934 = vunpack.c.h.b16 %v799
    %v2935 = vunpack.c.l.b16 %v800
    %v2936 = vunpack.c.h.b16 %v800
    %v2937 = vunpack.c.l.b16 %v801
    %v2938 = vunpack.c.h.b16 %v801
    %v2939 = vunpack.c.l.b16 %v802
    %v2940 = vunpack.c.h.b16 %v802
    %v2941 = vunpack.c.l.b16 %v803
    %v2942 = vunpack.c.h.b16 %v803
    %v2943 = vunpack.c.l.b16 %v804
    %v2944 = vunpack.c.h.b16 %v804
    %v2945 = vunpack.c.l.b16 %v805
    %v2946 = vunpack.c.h.b16 %v805
    %v2947 = vunpack.c.l.b16 %v806
    %v2948 = vunpack.c.h.b16 %v806
    %v2949 = vunpack.c.l.b16 %v807
    %v2950 = vunpack.c.h.b16 %v807
    %v2951 = vunpack.c.l.b16 %v808
    %v2952 = vunpack.c.h.b16 %v808
    %v2953 = vunpack.c.l.b16 %v809
    %v2954 = vunpack.c.h.b16 %v809
    %v2955 = vunpack.c.l.b16 %v810
    %v2956 = vunpack.c.h.b16 %v810
    %v2957 = vunpack.c.l.b16 %v811
    %v2958 = vunpack.c.h.b16 %v811
    %v2959 = vunpack.c.l.b16 %v812
    %v2960 = vunpack.c.h.b16 %v812
    %v2961 = vunpack.c.l.b16 %v813
    %v2962 = vunpack.c.h.b16 %v813
    %v2963 = vunpack.c.l.b16 %v814
    %v2964 = vunpack.c.h.b16 %v814
    %v2965 = vunpack.c.l.b16 %v815
    %v2966 = vunpack.c.h.b16 %v815
    %v2967 = vunpack.c.l.b16 %v816
    %v2968 = vunpack.c.h.b16 %v816
    %v2969 = vunpack.c.l.b16 %v817
    %v2970 = vunpack.c.h.b16 %v817
    %v2971 = vunpack.c.l.b16 %v818
    %v2972 = vunpack.c.h.b16 %v818
    %v2973 = vunpack.c.l.b16 %v819
    %v2974 = vunpack.c.h.b16 %v819
    %v2975 = vunpack.c.l.b16 %v820
    %v2976 = vunpack.c.h.b16 %v820
    %v2977 = vunpack.c.l.b16 %v821
    %v2978 = vunpack.c.h.b16 %v821
    %v2979 = vunpack.c.l.b16 %v822
    %v2980 = vunpack.c.h.b16 %v822
    %v2981 = vunpack.c.l.b16 %v823
    %v2982 = vunpack.c.h.b16 %v823
    %v2983 = vunpack.c.l.b16 %v824
    %v2984 = vunpack.c.h.b16 %v824
    %v2985 = vunpack.c.l.b16 %v825
    %v2986 = vunpack.c.h.b16 %v825
    %v2987 = vunpack.c.l.b16 %v826
    %v2988 = vunpack.c.h.b16 %v826
    %v2989 = vunpack.c.l.b16 %v827
    %v2990 = vunpack.c.h.b16 %v827
    %v2991 = vunpack.c.l.b16 %v828
    %v2992 = vunpack.c.h.b16 %v828
    %v2993 = vunpack.c.l.b16 %v829
    %v2994 = vunpack.c.h.b16 %v829
    %v2995 = vunpack.c.l.b16 %v830
    %v2996 = vunpack.c.h.b16 %v830
    %v2997 = vunpack.c.l.b16 %v831
    %v2998 = vunpack.c.h.b16 %v831
    %v2999 = vunpack.c.l.b16 %v832
    %v3000 = vunpack.c.h.b16 %v832
    %v3001 = vunpack.c.l.b16 %v833
    %v3002 = vunpack.c.h.b16 %v833
    %v3003 = vunpack.c.l.b16 %v834
    %v3004 = vunpack.c.h.b16 %v834
    %v3005 = vunpack.c.l.b16 %v835
    %v3006 = vunpack.c.h.b16 %v835
    %v3007 = vunpack.c.l.b16 %v836
    %v3008 = vunpack.c.h.b16 %v836
    %v3009 = vunpack.c.l.b16 %v837
    %v3010 = vunpack.c.h.b16 %v837
    %v3011 = vunpack.c.l.b16 %v838
    %v3012 = vunpack.c.h.b16 %v838
    %v3013 = vunpack.c.l.b16 %v839
    %v3014 = vunpack.c.h.b16 %v839
    %v3015 = vunpack.c.l.b16 %v840
    %v3016 = vunpack.c.h.b16 %v840
    %v3017 = vunpack.c.l.b16 %v841
    %v3018 = vunpack.c.h.b16 %v841
    %v3019 = vunpack.c.l.b16 %v842
    %v3020 = vunpack.c.h.b16 %v842
    %v3021 = vunpack.c.l.b16 %v843
    %v3022 = vunpack.c.h.b16 %v843
    %v3023 = vunpack.c.l.b16 %v844
    %v3024 = vunpack.c.h.b16 %v844
    %v3025 = vunpack.c.l.b16 %v845
    %v3026 = vunpack.c.h.b16 %v845
    %v3027 = vunpack.c.l.b16 %v846
    %v3028 = vunpack.c.h.b16 %v846
    %v3029 = vunpack.c.l.b16 %v847
    %v3030 = vunpack.c.h.b16 %v847
    %v3031 = vunpack.c.l.b16 %v848
    %v3032 = vunpack.c.h.b16 %v848
    %v3033 = vunpack.c.l.b16 %v849
    %v3034 = vunpack.c.h.b16 %v849
    %v3035 = vunpack.c.l.b16 %v850
    %v3036 = vunpack.c.h.b16 %v850
    %v3037 = vunpack.c.l.b16 %v851
    %v3038 = vunpack.c.h.b16 %v851
    %v3039 = vunpack.c.l.b16 %v852
    %v3040 = vunpack.c.h.b16 %v852
    %v3041 = vunpack.c.l.b16 %v853
    %v3042 = vunpack.c.h.b16 %v853
    %v3043 = vunpack.c.l.b16 %v854
    %v3044 = vunpack.c.h.b16 %v854
    %v3045 = vunpack.c.l.b16 %v855
    %v3046 = vunpack.c.h.b16 %v855
    %v3047 = vunpack.c.l.b16 %v856
    %v3048 = vunpack.c.h.b16 %v856
    %v3049 = vunpack.c.l.b16 %v857
    %v3050 = vunpack.c.h.b16 %v857
    %v3051 = vunpack.c.l.b16 %v858
    %v3052 = vunpack.c.h.b16 %v858
    %v3053 = vunpack.c.l.b16 %v859
    %v3054 = vunpack.c.h.b16 %v859
    %v3055 = vunpack.c.l.b16 %v860
    %v3056 = vunpack.c.h.b16 %v860
    %v3057 = vunpack.c.l.b16 %v861
    %v3058 = vunpack.c.h.b16 %v861
    %v3059 = vunpack.c.l.b16 %v862
    %v3060 = vunpack.c.h.b16 %v862
    %v3061 = vunpack.c.l.b16 %v863
    %v3062 = vunpack.c.h.b16 %v863
    %v3063 = vunpack.c.l.b16 %v864
    %v3064 = vunpack.c.h.b16 %v864
    %v3065 = vunpack.c.l.b16 %v865
    %v3066 = vunpack.c.h.b16 %v865
    %v3067 = vunpack.c.l.b16 %v866
    %v3068 = vunpack.c.h.b16 %v866
    %v3069 = vunpack.c.l.b16 %v867
    %v3070 = vunpack.c.h.b16 %v867
    %v3071 = vunpack.c.l.b16 %v868
    %v3072 = vunpack.c.h.b16 %v868
    %v3073 = vunpack.c.l.b16 %v869
    %v3074 = vunpack.c.h.b16 %v869
    %v3075 = vunpack.c.l.b16 %v870
    %v3076 = vunpack.c.h.b16 %v870
    %v3077 = vunpack.c.l.b16 %v871
    %v3078 = vunpack.c.h.b16 %v871
    %v3079 = vunpack.c.l.b16 %v872
    %v3080 = vunpack.c.h.b16 %v872
    %v3081 = vunpack.c.l.b16 %v873
    %v3082 = vunpack.c.h.b16 %v873
    %v3083 = vunpack.c.l.b16 %v874
    %v3084 = vunpack.c.h.b16 %v874
    %v3085 = vunpack.c.l.b16 %v875
    %v3086 = vunpack.c.h.b16 %v875
    %v3087 = vunpack.c.l.b16 %v876
    %v3088 = vunpack.c.h.b16 %v876
    %v3089 = vunpack.c.l.b16 %v877
    %v3090 = vunpack.c.h.b16 %v877
    %v3091 = vunpack.c.l.b16 %v878
    %v3092 = vunpack.c.h.b16 %v878
    %v3093 = vunpack.c.l.b16 %v879
    %v3094 = vunpack.c.h.b16 %v879
    %v3095 = vunpack.c.l.b16 %v880
    %v3096 = vunpack.c.h.b16 %v880
    %v3097 = vunpack.c.l.b16 %v881
    %v3098 = vunpack.c.h.b16 %v881
    %v3099 = vunpack.c.l.b16 %v882
    %v3100 = vunpack.c.h.b16 %v882
    %v3101 = vunpack.c.l.b16 %v883
    %v3102 = vunpack.c.h.b16 %v883
    %v3103 = vunpack.c.l.b16 %v884
    %v3104 = vunpack.c.h.b16 %v884
    %v3105 = vunpack.c.l.b16 %v885
    %v3106 = vunpack.c.h.b16 %v885
    %v3107 = vunpack.c.l.b16 %v886
    %v3108 = vunpack.c.h.b16 %v886
    %v3109 = vunpack.c.l.b16 %v887
    %v3110 = vunpack.c.h.b16 %v887
    %v3111 = vunpack.c.l.b16 %v888
    %v3112 = vunpack.c.h.b16 %v888
    %v3113 = vunpack.c.l.b16 %v889
    %v3114 = vunpack.c.h.b16 %v889
    %v3115 = vunpack.c.l.b16 %v890
    %v3116 = vunpack.c.h.b16 %v890
    %v3117 = vunpack.c.l.b16 %v891
    %v3118 = vunpack.c.h.b16 %v891
    %v3119 = vunpack.c.l.b16 %v892
    %v3120 = vunpack.c.h.b16 %v892
    %v3121 = vunpack.c.l.b16 %v893
    %v3122 = vunpack.c.h.b16 %v893
    %v3123 = vunpack.c.l.b16 %v894
    %v3124 = vunpack.c.h.b16 %v894
    %v3125 = vunpack.c.l.b16 %v895
    %v3126 = vunpack.c.h.b16 %v895
    %v3127 = vunpack.c.l.b16 %v896
    %v3128 = vunpack.c.h.b16 %v896
    %v3129 = vunpack.c.l.b16 %v897
    %v3130 = vunpack.c.h.b16 %v897
    %v3131 = vunpack.c.l.b16 %v898
    %v3132 = vunpack.c.h.b16 %v898
    %v3133 = vunpack.c.l.b16 %v899
    %v3134 = vunpack.c.h.b16 %v899
    %v3135 = vunpack.c.l.b16 %v900
    %v3136 = vunpack.c.h.b16 %v900
    %v3137 = vunpack.c.l.b16 %v901
    %v3138 = vunpack.c.h.b16 %v901
    %v3139 = vunpack.c.l.b16 %v902
    %v3140 = vunpack.c.h.b16 %v902
    %v3141 = vunpack.c.l.b16 %v903
    %v3142 = vunpack.c.h.b16 %v903
    %v3143 = vunpack.c.l.b16 %v904
    %v3144 = vunpack.c.h.b16 %v904
    %v3145 = vunpack.c.l.b16 %v905
    %v3146 = vunpack.c.h.b16 %v905
    %v3147 = vunpack.c.l.b16 %v906
    %v3148 = vunpack.c.h.b16 %v906
    %v3149 = vunpack.c.l.b16 %v907
    %v3150 = vunpack.c.h.b16 %v907
    %v3151 = vunpack.c.l.b16 %v908
    %v3152 = vunpack.c.h.b16 %v908
    %v3153 = vunpack.c.l.b16 %v909
    %v3154 = vunpack.c.h.b16 %v909
    %v3155 = vunpack.c.l.b16 %v910
    %v3156 = vunpack.c.h.b16 %v910
    %v3157 = vunpack.c.l.b16 %v911
    %v3158 = vunpack.c.h.b16 %v911
    %v3159 = vunpack.c.l.b16 %v912
    %v3160 = vunpack.c.h.b16 %v912
    %v3161 = vunpack.c.l.b16 %v913
    %v3162 = vunpack.c.h.b16 %v913
    %v3163 = vunpack.c.l.b16 %v914
    %v3164 = vunpack.c.h.b16 %v914
    %v3165 = vunpack.c.l.b16 %v915
    %v3166 = vunpack.c.h.b16 %v915
    %v3167 = vunpack.c.l.b16 %v916
    %v3168 = vunpack.c.h.b16 %v916
    %v3169 = vunpack.c.l.b16 %v917
    %v3170 = vunpack.c.h.b16 %v917
    %v3171 = vunpack.c.l.b16 %v918
    %v3172 = vunpack.c.h.b16 %v918
    %v3173 = vunpack.c.l.b16 %v919
    %v3174 = vunpack.c.h.b16 %v919
    %v3175 = vunpack.c.l.b16 %v920
    %v3176 = vunpack.c.h.b16 %v920
    %v3177 = vunpack.c.l.b16 %v921
    %v3178 = vunpack.c.h.b16 %v921
    %v3179 = vunpack.c.l.b16 %v922
    %v3180 = vunpack.c.h.b16 %v922
    %v3181 = vunpack.c.l.b16 %v923
    %v3182 = vunpack.c.h.b16 %v923
    %v3183 = vunpack.c.l.b16 %v924
    %v3184 = vunpack.c.h.b16 %v924
    %v3185 = vunpack.c.l.b16 %v925
    %v3186 = vunpack.c.h.b16 %v925
    %v3187 = vunpack.c.l.b16 %v926
    %v3188 = vunpack.c.h.b16 %v926
    %v3189 = vunpack.c.l.b16 %v927
    %v3190 = vunpack.c.h.b16 %v927
    %v3191 = vunpack.c.l.b16 %v928
    %v3192 = vunpack.c.h.b16 %v928
    %v3193 = vunpack.c.l.b16 %v929
    %v3194 = vunpack.c.h.b16 %v929
    %v3195 = vunpack.c.l.b16 %v930
    %v3196 = vunpack.c.h.b16 %v930
    %v3197 = vunpack.c.l.b16 %v931
    %v3198 = vunpack.c.h.b16 %v931
    %v3199 = vunpack.c.l.b16 %v932
    %v3200 = vunpack.c.h.b16 %v932
    %v3201 = vunpack.c.l.b16 %v933
    %v3202 = vunpack.c.h.b16 %v933
    %v3203 = vunpack.c.l.b16 %v934
    %v3204 = vunpack.c.h.b16 %v934
    %v3205 = vunpack.c.l.b16 %v935
    %v3206 = vunpack.c.h.b16 %v935
    %v3207 = vunpack.c.l.b16 %v936
    %v3208 = vunpack.c.h.b16 %v936
    %v3209 = vunpack.c.l.b16 %v937
    %v3210 = vunpack.c.h.b16 %v937
    %v3211 = vunpack.c.l.b16 %v938
    %v3212 = vunpack.c.h.b16 %v938
    %v3213 = vunpack.c.l.b16 %v939
    %v3214 = vunpack.c.h.b16 %v939
    %v3215 = vunpack.c.l.b16 %v940
    %v3216 = vunpack.c.h.b16 %v940
    %v3217 = vunpack.c.l.b16 %v941
    %v3218 = vunpack.c.h.b16 %v941
    %v3219 = vunpack.c.l.b16 %v942
    %v3220 = vunpack.c.h.b16 %v942
    %v3221 = vunpack.c.l.b16 %v943
    %v3222 = vunpack.c.h.b16 %v943
    %v3223 = vunpack.c.l.b16 %v944
    %v3224 = vunpack.c.h.b16 %v944
    %v3225 = vunpack.c.l.b16 %v945
    %v3226 = vunpack.c.h.b16 %v945
    %v3227 = vunpack.c.l.b16 %v946
    %v3228 = vunpack.c.h.b16 %v946
    %v3229 = vunpack.c.l.b16 %v947
    %v3230 = vunpack.c.h.b16 %v947
    %v3231 = vunpack.c.l.b16 %v948
    %v3232 = vunpack.c.h.b16 %v948
    %v3233 = vunpack.c.l.b16 %v949
    %v3234 = vunpack.c.h.b16 %v949
    %v3235 = vunpack.c.l.b16 %v950
    %v3236 = vunpack.c.h.b16 %v950
    %v3237 = vunpack.c.l.b16 %v951
    %v3238 = vunpack.c.h.b16 %v951
    %v3239 = vunpack.c.l.b16 %v952
    %v3240 = vunpack.c.h.b16 %v952
    %v3241 = vunpack.c.l.b16 %v953
    %v3242 = vunpack.c.h.b16 %v953
    %v3243 = vunpack.c.l.b16 %v954
    %v3244 = vunpack.c.h.b16 %v954
    %v3245 = vunpack.c.l.b16 %v955
    %v3246 = vunpack.c.h.b16 %v955
    %v3247 = vunpack.c.l.b16 %v956
    %v3248 = vunpack.c.h.b16 %v956
    %v3249 = vunpack.c.l.b16 %v957
    %v3250 = vunpack.c.h.b16 %v957
    %v3251 = vunpack.c.l.b16 %v958
    %v3252 = vunpack.c.h.b16 %v958
    %v3253 = vunpack.c.l.b16 %v959
    %v3254 = vunpack.c.h.b16 %v959
    %v3255 = vunpack.c.l.b16 %v960
    %v3256 = vunpack.c.h.b16 %v960
    %v3257 = vunpack.c.l.b16 %v961
    %v3258 = vunpack.c.h.b16 %v961
    %v3259 = vunpack.c.l.b16 %v962
    %v3260 = vunpack.c.h.b16 %v962
    %v3261 = vunpack.c.l.b16 %v963
    %v3262 = vunpack.c.h.b16 %v963
    %v3263 = vunpack.c.l.b16 %v964
    %v3264 = vunpack.c.h.b16 %v964
    %v3265 = vunpack.c.l.b16 %v965
    %v3266 = vunpack.c.h.b16 %v965
    %v3267 = vunpack.c.l.b16 %v966
    %v3268 = vunpack.c.h.b16 %v966
    %v3269 = vunpack.c.l.b16 %v967
    %v3270 = vunpack.c.h.b16 %v967
    %v3271 = vunpack.c.l.b16 %v968
    %v3272 = vunpack.c.h.b16 %v968
    %v3273 = vunpack.c.l.b16 %v969
    %v3274 = vunpack.c.h.b16 %v969
    %v3275 = vunpack.c.l.b16 %v970
    %v3276 = vunpack.c.h.b16 %v970
    %v3277 = vunpack.c.l.b16 %v971
    %v3278 = vunpack.c.h.b16 %v971
    %v3279 = vunpack.c.l.b16 %v972
    %v3280 = vunpack.c.h.b16 %v972
    %v3281 = vunpack.c.l.b16 %v973
    %v3282 = vunpack.c.h.b16 %v973
    %v3283 = vunpack.c.l.b16 %v974
    %v3284 = vunpack.c.h.b16 %v974
    %v3285 = vunpack.c.l.b16 %v975
    %v3286 = vunpack.c.h.b16 %v975
    %v3287 = vunpack.c.l.b16 %v976
    %v3288 = vunpack.c.h.b16 %v976
    %v3289 = vunpack.c.l.b16 %v977
    %v3290 = vunpack.c.h.b16 %v977
    %v3291 = vunpack.c.l.b16 %v978
    %v3292 = vunpack.c.h.b16 %v978
    %v3293 = vunpack.c.l.b16 %v979
    %v3294 = vunpack.c.h.b16 %v979
    %v3295 = vunpack.c.l.b16 %v980
    %v3296 = vunpack.c.h.b16 %v980
    %v3297 = vunpack.c.l.b16 %v981
    %v3298 = vunpack.c.h.b16 %v981
    %v3299 = vunpack.c.l.b16 %v982
    %v3300 = vunpack.c.h.b16 %v982
    %v3301 = vunpack.c.l.b16 %v983
    %v3302 = vunpack.c.h.b16 %v983
    %v3303 = vunpack.c.l.b16 %v984
    %v3304 = vunpack.c.h.b16 %v984
    %v3305 = vunpack.c.l.b16 %v985
    %v3306 = vunpack.c.h.b16 %v985
    %v3307 = vunpack.c.l.b16 %v986
    %v3308 = vunpack.c.h.b16 %v986
    %v3309 = vunpack.c.l.b16 %v987
    %v3310 = vunpack.c.h.b16 %v987
    %v3311 = vunpack.c.l.b16 %v988
    %v3312 = vunpack.c.h.b16 %v988
    %v3313 = vunpack.c.l.b16 %v989
    %v3314 = vunpack.c.h.b16 %v989
    %v3315 = vunpack.c.l.b16 %v990
    %v3316 = vunpack.c.h.b16 %v990
    %v3317 = vunpack.c.l.b16 %v991
    %v3318 = vunpack.c.h.b16 %v991
    %v3319 = vunpack.c.l.b16 %v992
    %v3320 = vunpack.c.h.b16 %v992
    %v3321 = vunpack.c.l.b16 %v993
    %v3322 = vunpack.c.h.b16 %v993
    %v3323 = vunpack.c.l.b16 %v994
    %v3324 = vunpack.c.h.b16 %v994
    %v3325 = vunpack.c.l.b16 %v995
    %v3326 = vunpack.c.h.b16 %v995
    %v3327 = vunpack.c.l.b16 %v996
    %v3328 = vunpack.c.h.b16 %v996
    %v3329 = vunpack.c.l.b16 %v997
    %v3330 = vunpack.c.h.b16 %v997
    %v3331 = vunpack.c.l.b16 %v998
    %v3332 = vunpack.c.h.b16 %v998
    %v3333 = vunpack.c.l.b16 %v999
    %v3334 = vunpack.c.h.b16 %v999
    %v3335 = vunpack.c.l.b16 %v1000
    %v3336 = vunpack.c.h.b16 %v1000
    %v3337 = vunpack.c.l.b16 %v1001
    %v3338 = vunpack.c.h.b16 %v1001
    %v3339 = vunpack.c.l.b16 %v1002
    %v3340 = vunpack.c.h.b16 %v1002
    %v3341 = vunpack.c.l.b16 %v1003
    %v3342 = vunpack.c.h.b16 %v1003
    %v3343 = vunpack.c.l.b16 %v1004
    %v3344 = vunpack.c.h.b16 %v1004
    %v3345 = vunpack.c.l.b16 %v1005
    %v3346 = vunpack.c.h.b16 %v1005
    %v3347 = vunpack.c.l.b16 %v1006
    %v3348 = vunpack.c.h.b16 %v1006
    %v3349 = vunpack.c.l.b16 %v1007
    %v3350 = vunpack.c.h.b16 %v1007
    %v3351 = vunpack.c.l.b16 %v1008
    %v3352 = vunpack.c.h.b16 %v1008
    %v3353 = vunpack.c.l.b16 %v1009
    %v3354 = vunpack.c.h.b16 %v1009
    %v3355 = vunpack.c.l.b16 %v1010
    %v3356 = vunpack.c.h.b16 %v1010
    %v3357 = vunpack.c.l.b16 %v1011
    %v3358 = vunpack.c.h.b16 %v1011
    %v3359 = vunpack.c.l.b16 %v1012
    %v3360 = vunpack.c.h.b16 %v1012
    %v3361 = vunpack.c.l.b16 %v1013
    %v3362 = vunpack.c.h.b16 %v1013
    %v3363 = vunpack.c.l.b16 %v1014
    %v3364 = vunpack.c.h.b16 %v1014
    %v3365 = vunpack.c.l.b16 %v1015
    %v3366 = vunpack.c.h.b16 %v1015
    %v3367 = vunpack.c.l.b16 %v1016
    %v3368 = vunpack.c.h.b16 %v1016
    %v3369 = vunpack.c.l.b16 %v1017
    %v3370 = vunpack.c.h.b16 %v1017
    %v3371 = vunpack.c.l.b16 %v1018
    %v3372 = vunpack.c.h.b16 %v1018
    %v3373 = vunpack.c.l.b16 %v1019
    %v3374 = vunpack.c.h.b16 %v1019
    %v3375 = vunpack.c.l.b16 %v1020
    %v3376 = vunpack.c.h.b16 %v1020
    %v3377 = vunpack.c.l.b16 %v1021
    %v3378 = vunpack.c.h.b16 %v1021
    %v3379 = vunpack.c.l.b16 %v1022
    %v3380 = vunpack.c.h.b16 %v1022
    %v3381 = vunpack.c.l.b16 %v1023
    %v3382 = vunpack.c.h.b16 %v1023
    %v3383 = vunpack.c.l.b16 %v1024
    %v3384 = vunpack.c.h.b16 %v1024
    %v3385 = vunpack.c.l.b16 %v1025
    %v3386 = vunpack.c.h.b16 %v1025
    %v3387 = vunpack.c.l.b16 %v1026
    %v3388 = vunpack.c.h.b16 %v1026
    %v3389 = vunpack.c.l.b16 %v1027
    %v3390 = vunpack.c.h.b16 %v1027
    %v3391 = vunpack.c.l.b16 %v1028
    %v3392 = vunpack.c.h.b16 %v1028
    %v3393 = vunpack.c.l.b16 %v1029
    %v3394 = vunpack.c.h.b16 %v1029
    %v3395 = vunpack.c.l.b16 %v1030
    %v3396 = vunpack.c.h.b16 %v1030
    %v3397 = vunpack.c.l.b16 %v1031
    %v3398 = vunpack.c.h.b16 %v1031
    %v3399 = vunpack.c.l.b16 %v1032
    %v3400 = vunpack.c.h.b16 %v1032
    %v3401 = vunpack.c.l.b16 %v1033
    %v3402 = vunpack.c.h.b16 %v1033
    %v3403 = vunpack.c.l.b16 %v1034
    %v3404 = vunpack.c.h.b16 %v1034
    %v3405 = vunpack.c.l.b16 %v1035
    %v3406 = vunpack.c.h.b16 %v1035
    %v3407 = vunpack.c.l.b16 %v1036
    %v3408 = vunpack.c.h.b16 %v1036
    %v3409 = vunpack.c.l.b16 %v1037
    %v3410 = vunpack.c.h.b16 %v1037
    %v3411 = vunpack.c.l.b16 %v1038
    %v3412 = vunpack.c.h.b16 %v1038
    %v3413 = vunpack.c.l.b16 %v1039
    %v3414 = vunpack.c.h.b16 %v1039
    %v3415 = vunpack.c.l.b16 %v1040
    %v3416 = vunpack.c.h.b16 %v1040
    %v3417 = vunpack.c.l.b16 %v1041
    %v3418 = vunpack.c.h.b16 %v1041
    %v3419 = vunpack.c.l.b16 %v1042
    %v3420 = vunpack.c.h.b16 %v1042
    %v3421 = vunpack.c.l.b16 %v1043
    %v3422 = vunpack.c.h.b16 %v1043
    %v3423 = vunpack.c.l.b16 %v1044
    %v3424 = vunpack.c.h.b16 %v1044
    %v3425 = vunpack.c.l.b16 %v1045
    %v3426 = vunpack.c.h.b16 %v1045
    %v3427 = vunpack.c.l.b16 %v1046
    %v3428 = vunpack.c.h.b16 %v1046
    %v3429 = vunpack.c.l.b16 %v1047
    %v3430 = vunpack.c.h.b16 %v1047
    %v3431 = vunpack.c.l.b16 %v1048
    %v3432 = vunpack.c.h.b16 %v1048
    %v3433 = vunpack.c.l.b16 %v1049
    %v3434 = vunpack.c.h.b16 %v1049
    %v3435 = vunpack.c.l.b16 %v1050
    %v3436 = vunpack.c.h.b16 %v1050
    %v3437 = vunpack.c.l.b16 %v1051
    %v3438 = vunpack.c.h.b16 %v1051
    %v3439 = vunpack.c.l.b16 %v1052
    %v3440 = vunpack.c.h.b16 %v1052
    %v3441 = vunpack.c.l.b16 %v1053
    %v3442 = vunpack.c.h.b16 %v1053
    %v3443 = vunpack.c.l.b16 %v1054
    %v3444 = vunpack.c.h.b16 %v1054
    %v3445 = vunpack.c.l.b16 %v1055
    %v3446 = vunpack.c.h.b16 %v1055
    %v3447 = vunpack.c.l.b16 %v1056
    %v3448 = vunpack.c.h.b16 %v1056
    %v3449 = vunpack.c.l.b16 %v1057
    %v3450 = vunpack.c.h.b16 %v1057
    %v3451 = vunpack.c.l.b16 %v1058
    %v3452 = vunpack.c.h.b16 %v1058
    %v3453 = vunpack.c.l.b16 %v1059
    %v3454 = vunpack.c.h.b16 %v1059
    %v3455 = vunpack.c.l.b16 %v1060
    %v3456 = vunpack.c.h.b16 %v1060
    %v3457 = vunpack.c.l.b16 %v1061
    %v3458 = vunpack.c.h.b16 %v1061
    %v3459 = vunpack.c.l.b16 %v1062
    %v3460 = vunpack.c.h.b16 %v1062
    %v3461 = vunpack.c.l.b16 %v1063
    %v3462 = vunpack.c.h.b16 %v1063
    %v3463 = vunpack.c.l.b16 %v1064
    %v3464 = vunpack.c.h.b16 %v1064
    %v3465 = vunpack.c.l.b16 %v1065
    %v3466 = vunpack.c.h.b16 %v1065
    %v3467 = vunpack.c.l.b16 %v1066
    %v3468 = vunpack.c.h.b16 %v1066
    %v3469 = vunpack.c.l.b16 %v1067
    %v3470 = vunpack.c.h.b16 %v1067
    %v3471 = vunpack.c.l.b16 %v1068
    %v3472 = vunpack.c.h.b16 %v1068
    %v3473 = vunpack.c.l.b16 %v1069
    %v3474 = vunpack.c.h.b16 %v1069
    %v3475 = vunpack.c.l.b16 %v1070
    %v3476 = vunpack.c.h.b16 %v1070
    %v3477 = vunpack.c.l.b16 %v1071
    %v3478 = vunpack.c.h.b16 %v1071
    %v3479 = vunpack.c.l.b16 %v1072
    %v3480 = vunpack.c.h.b16 %v1072
    %v3481 = vunpack.c.l.b16 %v1073
    %v3482 = vunpack.c.h.b16 %v1073
    %v3483 = vunpack.c.l.b16 %v1074
    %v3484 = vunpack.c.h.b16 %v1074
    %v3485 = vunpack.c.l.b16 %v1075
    %v3486 = vunpack.c.h.b16 %v1075
    %v3487 = vunpack.c.l.b16 %v1076
    %v3488 = vunpack.c.h.b16 %v1076
    %v3489 = vunpack.c.l.b16 %v1077
    %v3490 = vunpack.c.h.b16 %v1077
    %v3491 = vunpack.c.l.b16 %v1078
    %v3492 = vunpack.c.h.b16 %v1078
    %v3493 = vunpack.c.l.b16 %v1079
    %v3494 = vunpack.c.h.b16 %v1079
    %v3495 = vunpack.c.l.b16 %v1080
    %v3496 = vunpack.c.h.b16 %v1080
    %v3497 = vpack.c.b16 %v1967, %v1961
    %v3498 = vpack.c.b16 %v1968, %v1962
    %v3499 = vpack.c.b16 %v1969, %v1963
    %v3500 = vpack.c.b16 %v1970, %v1964
    %v3501 = vpack.c.b16 %v1971, %v1965
    %v3502 = vpack.c.b16 %v1972, %v1966
    %v3503 = vpack.c.b16 %v1979, %v1973
    %v3504 = vpack.c.b16 %v1980, %v1974
    %v3505 = vpack.c.b16 %v1981, %v1975
    %v3506 = vpack.c.b16 %v1982, %v1976
    %v3507 = vpack.c.b16 %v1983, %v1977
    %v3508 = vpack.c.b16 %v1984, %v1978
    %v3509 = vpack.c.b16 %v1991, %v1985
    %v3510 = vpack.c.b16 %v1992, %v1986
    %v3511 = vpack.c.b16 %v1993, %v1987
    %v3512 = vpack.c.b16 %v1994, %v1988
    %v3513 = vpack.c.b16 %v1995, %v1989
    %v3514 = vpack.c.b16 %v1996, %v1990
    %v3515 = vpack.c.b16 %v2003, %v1997
    %v3516 = vpack.c.b16 %v2004, %v1998
    %v3517 = vpack.c.b16 %v2005, %v1999
    %v3518 = vpack.c.b16 %v2006, %v2000
    %v3519 = vpack.c.b16 %v2007, %v2001
    %v3520 = vpack.c.b16 %v2008, %v2002
    %v3521 = vpack.c.b16 %v2015, %v2009
    %v3522 = vpack.c.b16 %v2016, %v2010
    %v3523 = vpack.c.b16 %v2017, %v2011
    %v3524 = vpack.c.b16 %v2018, %v2012
    %v3525 = vpack.c.b16 %v2019, %v2013
    %v3526 = vpack.c.b16 %v2020, %v2014
    %v3527 = vpack.c.b16 %v2027, %v2021
    %v3528 = vpack.c.b16 %v2028, %v2022
    %v3529 = vpack.c.b16 %v2029, %v2023
    %v3530 = vpack.c.b16 %v2030, %v2024
    %v3531 = vpack.c.b16 %v2031, %v2025
    %v3532 = vpack.c.b16 %v2032, %v2026
    %v3533 = vpack.c.b16 %v2039, %v2033
    %v3534 = vpack.c.b16 %v2040, %v2034
    %v3535 = vpack.c.b16 %v2041, %v2035
    %v3536 = vpack.c.b16 %v2042, %v2036
    %v3537 = vpack.c.b16 %v2043, %v2037
    %v3538 = vpack.c.b16 %v2044, %v2038
    %v3539 = vpack.c.b16 %v2051, %v2045
    %v3540 = vpack.c.b16 %v2052, %v2046
    %v3541 = vpack.c.b16 %v2053, %v2047
    %v3542 = vpack.c.b16 %v2054, %v2048
    %v3543 = vpack.c.b16 %v2055, %v2049
    %v3544 = vpack.c.b16 %v2056, %v2050
    %v3545 = vpack.c.b16 %v2063, %v2057
    %v3546 = vpack.c.b16 %v2064, %v2058
    %v3547 = vpack.c.b16 %v2065, %v2059
    %v3548 = vpack.c.b16 %v2066, %v2060
    %v3549 = vpack.c.b16 %v2067, %v2061
    %v3550 = vpack.c.b16 %v2068, %v2062
    %v3551 = vpack.c.b16 %v2075, %v2069
    %v3552 = vpack.c.b16 %v2076, %v2070
    %v3553 = vpack.c.b16 %v2077, %v2071
    %v3554 = vpack.c.b16 %v2078, %v2072
    %v3555 = vpack.c.b16 %v2079, %v2073
    %v3556 = vpack.c.b16 %v2080, %v2074
    %v3557 = vpack.c.b16 %v2087, %v2081
    %v3558 = vpack.c.b16 %v2088, %v2082
    %v3559 = vpack.c.b16 %v2089, %v2083
    %v3560 = vpack.c.b16 %v2090, %v2084
    %v3561 = vpack.c.b16 %v2091, %v2085
    %v3562 = vpack.c.b16 %v2092, %v2086
    %v3563 = vpack.c.b16 %v2099, %v2093
    %v3564 = vpack.c.b16 %v2100, %v2094
    %v3565 = vpack.c.b16 %v2101, %v2095
    %v3566 = vpack.c.b16 %v2102, %v2096
    %v3567 = vpack.c.b16 %v2103, %v2097
    %v3568 = vpack.c.b16 %v2104, %v2098
    %v3569 = vpack.c.b16 %v2111, %v2105
    %v3570 = vpack.c.b16 %v2112, %v2106
    %v3571 = vpack.c.b16 %v2113, %v2107
    %v3572 = vpack.c.b16 %v2114, %v2108
    %v3573 = vpack.c.b16 %v2115, %v2109
    %v3574 = vpack.c.b16 %v2116, %v2110
    %v3575 = vpack.c.b16 %v2123, %v2117
    %v3576 = vpack.c.b16 %v2124, %v2118
    %v3577 = vpack.c.b16 %v2125, %v2119
    %v3578 = vpack.c.b16 %v2126, %v2120
    %v3579 = vpack.c.b16 %v2127, %v2121
    %v3580 = vpack.c.b16 %v2128, %v2122
    %v3581 = vpack.c.b16 %v2135, %v2129
    %v3582 = vpack.c.b16 %v2136, %v2130
    %v3583 = vpack.c.b16 %v2137, %v2131
    %v3584 = vpack.c.b16 %v2138, %v2132
    %v3585 = vpack.c.b16 %v2139, %v2133
    %v3586 = vpack.c.b16 %v2140, %v2134
    %v3587 = vpack.c.b16 %v2147, %v2141
    %v3588 = vpack.c.b16 %v2148, %v2142
    %v3589 = vpack.c.b16 %v2149, %v2143
    %v3590 = vpack.c.b16 %v2150, %v2144
    %v3591 = vpack.c.b16 %v2151, %v2145
    %v3592 = vpack.c.b16 %v2152, %v2146
    %v3593 = vpack.c.b16 %v2159, %v2153
    %v3594 = vpack.c.b16 %v2160, %v2154
    %v3595 = vpack.c.b16 %v2161, %v2155
    %v3596 = vpack.c.b16 %v2162, %v2156
    %v3597 = vpack.c.b16 %v2163, %v2157
    %v3598 = vpack.c.b16 %v2164, %v2158
    %v3599 = vpack.c.b16 %v2171, %v2165
    %v3600 = vpack.c.b16 %v2172, %v2166
    %v3601 = vpack.c.b16 %v2173, %v2167
    %v3602 = vpack.c.b16 %v2174, %v2168
    %v3603 = vpack.c.b16 %v2175, %v2169
    %v3604 = vpack.c.b16 %v2176, %v2170
    %v3605 = vpack.c.b16 %v2183, %v2177
    %v3606 = vpack.c.b16 %v2184, %v2178
    %v3607 = vpack.c.b16 %v2185, %v2179
    %v3608 = vpack.c.b16 %v2186, %v2180
    %v3609 = vpack.c.b16 %v2187, %v2181
    %v3610 = vpack.c.b16 %v2188, %v2182
    %v3611 = vpack.c.b16 %v2195, %v2189
    %v3612 = vpack.c.b16 %v2196, %v2190
    %v3613 = vpack.c.b16 %v2197, %v2191
    %v3614 = vpack.c.b16 %v2198, %v2192
    %v3615 = vpack.c.b16 %v2199, %v2193
    %v3616 = vpack.c.b16 %v2200, %v2194
    %v3617 = vpack.c.b16 %v2207, %v2201
    %v3618 = vpack.c.b16 %v2208, %v2202
    %v3619 = vpack.c.b16 %v2209, %v2203
    %v3620 = vpack.c.b16 %v2210, %v2204
    %v3621 = vpack.c.b16 %v2211, %v2205
    %v3622 = vpack.c.b16 %v2212, %v2206
    %v3623 = vpack.c.b16 %v2219, %v2213
    %v3624 = vpack.c.b16 %v2220, %v2214
    %v3625 = vpack.c.b16 %v2221, %v2215
    %v3626 = vpack.c.b16 %v2222, %v2216
    %v3627 = vpack.c.b16 %v2223, %v2217
    %v3628 = vpack.c.b16 %v2224, %v2218
    %v3629 = vpack.c.b16 %v2231, %v2225
    %v3630 = vpack.c.b16 %v2232, %v2226
    %v3631 = vpack.c.b16 %v2233, %v2227
    %v3632 = vpack.c.b16 %v2234, %v2228
    %v3633 = vpack.c.b16 %v2235, %v2229
    %v3634 = vpack.c.b16 %v2236, %v2230
    %v3635 = vpack.c.b16 %v2243, %v2237
    %v3636 = vpack.c.b16 %v2244, %v2238
    %v3637 = vpack.c.b16 %v2245, %v2239
    %v3638 = vpack.c.b16 %v2246, %v2240
    %v3639 = vpack.c.b16 %v2247, %v2241
    %v3640 = vpack.c.b16 %v2248, %v2242
    %v3641 = vpack.c.b16 %v2255, %v2249
    %v3642 = vpack.c.b16 %v2256, %v2250
    %v3643 = vpack.c.b16 %v2257, %v2251
    %v3644 = vpack.c.b16 %v2258, %v2252
    %v3645 = vpack.c.b16 %v2259, %v2253
    %v3646 = vpack.c.b16 %v2260, %v2254
    %v3647 = vpack.c.b16 %v2267, %v2261
    %v3648 = vpack.c.b16 %v2268, %v2262
    %v3649 = vpack.c.b16 %v2269, %v2263
    %v3650 = vpack.c.b16 %v2270, %v2264
    %v3651 = vpack.c.b16 %v2271, %v2265
    %v3652 = vpack.c.b16 %v2272, %v2266
    %v3653 = vpack.c.b16 %v2279, %v2273
    %v3654 = vpack.c.b16 %v2280, %v2274
    %v3655 = vpack.c.b16 %v2281, %v2275
    %v3656 = vpack.c.b16 %v2282, %v2276
    %v3657 = vpack.c.b16 %v2283, %v2277
    %v3658 = vpack.c.b16 %v2284, %v2278
    %v3659 = vpack.c.b16 %v2291, %v2285
    %v3660 = vpack.c.b16 %v2292, %v2286
    %v3661 = vpack.c.b16 %v2293, %v2287
    %v3662 = vpack.c.b16 %v2294, %v2288
    %v3663 = vpack.c.b16 %v2295, %v2289
    %v3664 = vpack.c.b16 %v2296, %v2290
    %v3665 = vpack.c.b16 %v2303, %v2297
    %v3666 = vpack.c.b16 %v2304, %v2298
    %v3667 = vpack.c.b16 %v2305, %v2299
    %v3668 = vpack.c.b16 %v2306, %v2300
    %v3669 = vpack.c.b16 %v2307, %v2301
    %v3670 = vpack.c.b16 %v2308, %v2302
    %v3671 = vpack.c.b16 %v2315, %v2309
    %v3672 = vpack.c.b16 %v2316, %v2310
    %v3673 = vpack.c.b16 %v2317, %v2311
    %v3674 = vpack.c.b16 %v2318, %v2312
    %v3675 = vpack.c.b16 %v2319, %v2313
    %v3676 = vpack.c.b16 %v2320, %v2314
    %v3677 = vpack.c.b16 %v2327, %v2321
    %v3678 = vpack.c.b16 %v2328, %v2322
    %v3679 = vpack.c.b16 %v2329, %v2323
    %v3680 = vpack.c.b16 %v2330, %v2324
    %v3681 = vpack.c.b16 %v2331, %v2325
    %v3682 = vpack.c.b16 %v2332, %v2326
    %v3683 = vpack.c.b16 %v2339, %v2333
    %v3684 = vpack.c.b16 %v2340, %v2334
    %v3685 = vpack.c.b16 %v2341, %v2335
    %v3686 = vpack.c.b16 %v2342, %v2336
    %v3687 = vpack.c.b16 %v2343, %v2337
    %v3688 = vpack.c.b16 %v2344, %v2338
    %v3689 = vpack.c.b16 %v2351, %v2345
    %v3690 = vpack.c.b16 %v2352, %v2346
    %v3691 = vpack.c.b16 %v2353, %v2347
    %v3692 = vpack.c.b16 %v2354, %v2348
    %v3693 = vpack.c.b16 %v2355, %v2349
    %v3694 = vpack.c.b16 %v2356, %v2350
    %v3695 = vpack.c.b16 %v2363, %v2357
    %v3696 = vpack.c.b16 %v2364, %v2358
    %v3697 = vpack.c.b16 %v2365, %v2359
    %v3698 = vpack.c.b16 %v2366, %v2360
    %v3699 = vpack.c.b16 %v2367, %v2361
    %v3700 = vpack.c.b16 %v2368, %v2362
    %v3701 = vpack.c.b16 %v2375, %v2369
    %v3702 = vpack.c.b16 %v2376, %v2370
    %v3703 = vpack.c.b16 %v2377, %v2371
    %v3704 = vpack.c.b16 %v2378, %v2372
    %v3705 = vpack.c.b16 %v2379, %v2373
    %v3706 = vpack.c.b16 %v2380, %v2374
    %v3707 = vpack.c.b16 %v2387, %v2381
    %v3708 = vpack.c.b16 %v2388, %v2382
    %v3709 = vpack.c.b16 %v2389, %v2383
    %v3710 = vpack.c.b16 %v2390, %v2384
    %v3711 = vpack.c.b16 %v2391, %v2385
    %v3712 = vpack.c.b16 %v2392, %v2386
    %v3713 = vpack.c.b16 %v2399, %v2393
    %v3714 = vpack.c.b16 %v2400, %v2394
    %v3715 = vpack.c.b16 %v2401, %v2395
    %v3716 = vpack.c.b16 %v2402, %v2396
    %v3717 = vpack.c.b16 %v2403, %v2397
    %v3718 = vpack.c.b16 %v2404, %v2398
    %v3719 = vpack.c.b16 %v2411, %v2405
    %v3720 = vpack.c.b16 %v2412, %v2406
    %v3721 = vpack.c.b16 %v2413, %v2407
    %v3722 = vpack.c.b16 %v2414, %v2408
    %v3723 = vpack.c.b16 %v2415, %v2409
    %v3724 = vpack.c.b16 %v2416, %v2410
    %v3725 = vpack.c.b16 %v2423, %v2417
    %v3726 = vpack.c.b16 %v2424, %v2418
    %v3727 = vpack.c.b16 %v2425, %v2419
    %v3728 = vpack.c.b16 %v2426, %v2420
    %v3729 = vpack.c.b16 %v2427, %v2421
    %v3730 = vpack.c.b16 %v2428, %v2422
    %v3731 = vpack.c.b16 %v2435, %v2429
    %v3732 = vpack.c.b16 %v2436, %v2430
    %v3733 = vpack.c.b16 %v2437, %v2431
    %v3734 = vpack.c.b16 %v2438, %v2432
    %v3735 = vpack.c.b16 %v2439, %v2433
    %v3736 = vpack.c.b16 %v2440, %v2434
    %v3737 = vpack.c.b16 %v2447, %v2441
    %v3738 = vpack.c.b16 %v2448, %v2442
    %v3739 = vpack.c.b16 %v2449, %v2443
    %v3740 = vpack.c.b16 %v2450, %v2444
    %v3741 = vpack.c.b16 %v2451, %v2445
    %v3742 = vpack.c.b16 %v2452, %v2446
    %v3743 = vpack.c.b16 %v2459, %v2453
    %v3744 = vpack.c.b16 %v2460, %v2454
    %v3745 = vpack.c.b16 %v2461, %v2455
    %v3746 = vpack.c.b16 %v2462, %v2456
    %v3747 = vpack.c.b16 %v2463, %v2457
    %v3748 = vpack.c.b16 %v2464, %v2458
    %v3749 = vpack.c.b16 %v2471, %v2465
    %v3750 = vpack.c.b16 %v2472, %v2466
    %v3751 = vpack.c.b16 %v2473, %v2467
    %v3752 = vpack.c.b16 %v2474, %v2468
    %v3753 = vpack.c.b16 %v2475, %v2469
    %v3754 = vpack.c.b16 %v2476, %v2470
    %v3755 = vpack.c.b16 %v2483, %v2477
    %v3756 = vpack.c.b16 %v2484, %v2478
    %v3757 = vpack.c.b16 %v2485, %v2479
    %v3758 = vpack.c.b16 %v2486, %v2480
    %v3759 = vpack.c.b16 %v2487, %v2481
    %v3760 = vpack.c.b16 %v2488, %v2482
    %v3761 = vpack.c.b16 %v2495, %v2489
    %v3762 = vpack.c.b16 %v2496, %v2490
    %v3763 = vpack.c.b16 %v2497, %v2491
    %v3764 = vpack.c.b16 %v2498, %v2492
    %v3765 = vpack.c.b16 %v2499, %v2493
    %v3766 = vpack.c.b16 %v2500, %v2494
    %v3767 = vpack.c.b16 %v2507, %v2501
    %v3768 = vpack.c.b16 %v2508, %v2502
    %v3769 = vpack.c.b16 %v2509, %v2503
    %v3770 = vpack.c.b16 %v2510, %v2504
    %v3771 = vpack.c.b16 %v2511, %v2505
    %v3772 = vpack.c.b16 %v2512, %v2506
    %v3773 = vpack.c.b16 %v2519, %v2513
    %v3774 = vpack.c.b16 %v2520, %v2514
    %v3775 = vpack.c.b16 %v2521, %v2515
    %v3776 = vpack.c.b16 %v2522, %v2516
    %v3777 = vpack.c.b16 %v2523, %v2517
    %v3778 = vpack.c.b16 %v2524, %v2518
    %v3779 = vpack.c.b16 %v2531, %v2525
    %v3780 = vpack.c.b16 %v2532, %v2526
    %v3781 = vpack.c.b16 %v2533, %v2527
    %v3782 = vpack.c.b16 %v2534, %v2528
    %v3783 = vpack.c.b16 %v2535, %v2529
    %v3784 = vpack.c.b16 %v2536, %v2530
    %v3785 = vpack.c.b16 %v2543, %v2537
    %v3786 = vpack.c.b16 %v2544, %v2538
    %v3787 = vpack.c.b16 %v2545, %v2539
    %v3788 = vpack.c.b16 %v2546, %v2540
    %v3789 = vpack.c.b16 %v2547, %v2541
    %v3790 = vpack.c.b16 %v2548, %v2542
    %v3791 = vpack.c.b16 %v2555, %v2549
    %v3792 = vpack.c.b16 %v2556, %v2550
    %v3793 = vpack.c.b16 %v2557, %v2551
    %v3794 = vpack.c.b16 %v2558, %v2552
    %v3795 = vpack.c.b16 %v2559, %v2553
    %v3796 = vpack.c.b16 %v2560, %v2554
    %v3797 = vpack.c.b16 %v2567, %v2561
    %v3798 = vpack.c.b16 %v2568, %v2562
    %v3799 = vpack.c.b16 %v2569, %v2563
    %v3800 = vpack.c.b16 %v2570, %v2564
    %v3801 = vpack.c.b16 %v2571, %v2565
    %v3802 = vpack.c.b16 %v2572, %v2566
    %v3803 = vpack.c.b16 %v2579, %v2573
    %v3804 = vpack.c.b16 %v2580, %v2574
    %v3805 = vpack.c.b16 %v2581, %v2575
    %v3806 = vpack.c.b16 %v2582, %v2576
    %v3807 = vpack.c.b16 %v2583, %v2577
    %v3808 = vpack.c.b16 %v2584, %v2578
    %v3809 = vpack.c.b16 %v2591, %v2585
    %v3810 = vpack.c.b16 %v2592, %v2586
    %v3811 = vpack.c.b16 %v2593, %v2587
    %v3812 = vpack.c.b16 %v2594, %v2588
    %v3813 = vpack.c.b16 %v2595, %v2589
    %v3814 = vpack.c.b16 %v2596, %v2590
    %v3815 = vpack.c.b16 %v2603, %v2597
    %v3816 = vpack.c.b16 %v2604, %v2598
    %v3817 = vpack.c.b16 %v2605, %v2599
    %v3818 = vpack.c.b16 %v2606, %v2600
    %v3819 = vpack.c.b16 %v2607, %v2601
    %v3820 = vpack.c.b16 %v2608, %v2602
    %v3821 = vpack.c.b16 %v2615, %v2609
    %v3822 = vpack.c.b16 %v2616, %v2610
    %v3823 = vpack.c.b16 %v2617, %v2611
    %v3824 = vpack.c.b16 %v2618, %v2612
    %v3825 = vpack.c.b16 %v2619, %v2613
    %v3826 = vpack.c.b16 %v2620, %v2614
    %v3827 = vpack.c.b16 %v2627, %v2621
    %v3828 = vpack.c.b16 %v2628, %v2622
    %v3829 = vpack.c.b16 %v2629, %v2623
    %v3830 = vpack.c.b16 %v2630, %v2624
    %v3831 = vpack.c.b16 %v2631, %v2625
    %v3832 = vpack.c.b16 %v2632, %v2626
    %v3833 = vpack.c.b16 %v2639, %v2633
    %v3834 = vpack.c.b16 %v2640, %v2634
    %v3835 = vpack.c.b16 %v2641, %v2635
    %v3836 = vpack.c.b16 %v2642, %v2636
    %v3837 = vpack.c.b16 %v2643, %v2637
    %v3838 = vpack.c.b16 %v2644, %v2638
    %v3839 = vpack.c.b16 %v2651, %v2645
    %v3840 = vpack.c.b16 %v2652, %v2646
    %v3841 = vpack.c.b16 %v2653, %v2647
    %v3842 = vpack.c.b16 %v2654, %v2648
    %v3843 = vpack.c.b16 %v2655, %v2649
    %v3844 = vpack.c.b16 %v2656, %v2650
    %v3845 = vpack.c.b16 %v2663, %v2657
    %v3846 = vpack.c.b16 %v2664, %v2658
    %v3847 = vpack.c.b16 %v2665, %v2659
    %v3848 = vpack.c.b16 %v2666, %v2660
    %v3849 = vpack.c.b16 %v2667, %v2661
    %v3850 = vpack.c.b16 %v2668, %v2662
    %v3851 = vpack.c.b16 %v2675, %v2669
    %v3852 = vpack.c.b16 %v2676, %v2670
    %v3853 = vpack.c.b16 %v2677, %v2671
    %v3854 = vpack.c.b16 %v2678, %v2672
    %v3855 = vpack.c.b16 %v2679, %v2673
    %v3856 = vpack.c.b16 %v2680, %v2674
    %v3857 = vpack.c.b16 %v2687, %v2681
    %v3858 = vpack.c.b16 %v2688, %v2682
    %v3859 = vpack.c.b16 %v2689, %v2683
    %v3860 = vpack.c.b16 %v2690, %v2684
    %v3861 = vpack.c.b16 %v2691, %v2685
    %v3862 = vpack.c.b16 %v2692, %v2686
    %v3863 = vpack.c.b16 %v2699, %v2693
    %v3864 = vpack.c.b16 %v2700, %v2694
    %v3865 = vpack.c.b16 %v2701, %v2695
    %v3866 = vpack.c.b16 %v2702, %v2696
    %v3867 = vpack.c.b16 %v2703, %v2697
    %v3868 = vpack.c.b16 %v2704, %v2698
    %v3869 = vpack.c.b16 %v2711, %v2705
    %v3870 = vpack.c.b16 %v2712, %v2706
    %v3871 = vpack.c.b16 %v2713, %v2707
    %v3872 = vpack.c.b16 %v2714, %v2708
    %v3873 = vpack.c.b16 %v2715, %v2709
    %v3874 = vpack.c.b16 %v2716, %v2710
    %v3875 = vpack.c.b16 %v2723, %v2717
    %v3876 = vpack.c.b16 %v2724, %v2718
    %v3877 = vpack.c.b16 %v2725, %v2719
    %v3878 = vpack.c.b16 %v2726, %v2720
    %v3879 = vpack.c.b16 %v2727, %v2721
    %v3880 = vpack.c.b16 %v2728, %v2722
    %v3881 = vpack.c.b16 %v2735, %v2729
    %v3882 = vpack.c.b16 %v2736, %v2730
    %v3883 = vpack.c.b16 %v2737, %v2731
    %v3884 = vpack.c.b16 %v2738, %v2732
    %v3885 = vpack.c.b16 %v2739, %v2733
    %v3886 = vpack.c.b16 %v2740, %v2734
    %v3887 = vpack.c.b16 %v2747, %v2741
    %v3888 = vpack.c.b16 %v2748, %v2742
    %v3889 = vpack.c.b16 %v2749, %v2743
    %v3890 = vpack.c.b16 %v2750, %v2744
    %v3891 = vpack.c.b16 %v2751, %v2745
    %v3892 = vpack.c.b16 %v2752, %v2746
    %v3893 = vpack.c.b16 %v2759, %v2753
    %v3894 = vpack.c.b16 %v2760, %v2754
    %v3895 = vpack.c.b16 %v2761, %v2755
    %v3896 = vpack.c.b16 %v2762, %v2756
    %v3897 = vpack.c.b16 %v2763, %v2757
    %v3898 = vpack.c.b16 %v2764, %v2758
    %v3899 = vpack.c.b16 %v2771, %v2765
    %v3900 = vpack.c.b16 %v2772, %v2766
    %v3901 = vpack.c.b16 %v2773, %v2767
    %v3902 = vpack.c.b16 %v2774, %v2768
    %v3903 = vpack.c.b16 %v2775, %v2769
    %v3904 = vpack.c.b16 %v2776, %v2770
    %v3905 = vpack.c.b16 %v2783, %v2777
    %v3906 = vpack.c.b16 %v2784, %v2778
    %v3907 = vpack.c.b16 %v2785, %v2779
    %v3908 = vpack.c.b16 %v2786, %v2780
    %v3909 = vpack.c.b16 %v2787, %v2781
    %v3910 = vpack.c.b16 %v2788, %v2782
    %v3911 = vpack.c.b16 %v2795, %v2789
    %v3912 = vpack.c.b16 %v2796, %v2790
    %v3913 = vpack.c.b16 %v2797, %v2791
    %v3914 = vpack.c.b16 %v2798, %v2792
    %v3915 = vpack.c.b16 %v2799, %v2793
    %v3916 = vpack.c.b16 %v2800, %v2794
    %v3917 = vpack.c.b16 %v2807, %v2801
    %v3918 = vpack.c.b16 %v2808, %v2802
    %v3919 = vpack.c.b16 %v2809, %v2803
    %v3920 = vpack.c.b16 %v2810, %v2804
    %v3921 = vpack.c.b16 %v2811, %v2805
    %v3922 = vpack.c.b16 %v2812, %v2806
    %v3923 = vpack.c.b16 %v2819, %v2813
    %v3924 = vpack.c.b16 %v2820, %v2814
    %v3925 = vpack.c.b16 %v2821, %v2815
    %v3926 = vpack.c.b16 %v2822, %v2816
    %v3927 = vpack.c.b16 %v2823, %v2817
    %v3928 = vpack.c.b16 %v2824, %v2818
    %v3929 = vpack.c.b16 %v2831, %v2825
    %v3930 = vpack.c.b16 %v2832, %v2826
    %v3931 = vpack.c.b16 %v2833, %v2827
    %v3932 = vpack.c.b16 %v2834, %v2828
    %v3933 = vpack.c.b16 %v2835, %v2829
    %v3934 = vpack.c.b16 %v2836, %v2830
    %v3935 = vpack.c.b16 %v2843, %v2837
    %v3936 = vpack.c.b16 %v2844, %v2838
    %v3937 = vpack.c.b16 %v2845, %v2839
    %v3938 = vpack.c.b16 %v2846, %v2840
    %v3939 = vpack.c.b16 %v2847, %v2841
    %v3940 = vpack.c.b16 %v2848, %v2842
    %v3941 = vpack.c.b16 %v2855, %v2849
    %v3942 = vpack.c.b16 %v2856, %v2850
    %v3943 = vpack.c.b16 %v2857, %v2851
    %v3944 = vpack.c.b16 %v2858, %v2852
    %v3945 = vpack.c.b16 %v2859, %v2853
    %v3946 = vpack.c.b16 %v2860, %v2854
    %v3947 = vpack.c.b16 %v2867, %v2861
    %v3948 = vpack.c.b16 %v2868, %v2862
    %v3949 = vpack.c.b16 %v2869, %v2863
    %v3950 = vpack.c.b16 %v2870, %v2864
    %v3951 = vpack.c.b16 %v2871, %v2865
    %v3952 = vpack.c.b16 %v2872, %v2866
    %v3953 = vpack.c.b16 %v2879, %v2873
    %v3954 = vpack.c.b16 %v2880, %v2874
    %v3955 = vpack.c.b16 %v2881, %v2875
    %v3956 = vpack.c.b16 %v2882, %v2876
    %v3957 = vpack.c.b16 %v2883, %v2877
    %v3958 = vpack.c.b16 %v2884, %v2878
    %v3959 = vpack.c.b16 %v2891, %v2885
    %v3960 = vpack.c.b16 %v2892, %v2886
    %v3961 = vpack.c.b16 %v2893, %v2887
    %v3962 = vpack.c.b16 %v2894, %v2888
    %v3963 = vpack.c.b16 %v2895, %v2889
    %v3964 = vpack.c.b16 %v2896, %v2890
    %v3965 = vpack.c.b16 %v2903, %v2897
    %v3966 = vpack.c.b16 %v2904, %v2898
    %v3967 = vpack.c.b16 %v2905, %v2899
    %v3968 = vpack.c.b16 %v2906, %v2900
    %v3969 = vpack.c.b16 %v2907, %v2901
    %v3970 = vpack.c.b16 %v2908, %v2902
    %v3971 = vpack.c.b16 %v2915, %v2909
    %v3972 = vpack.c.b16 %v2916, %v2910
    %v3973 = vpack.c.b16 %v2917, %v2911
    %v3974 = vpack.c.b16 %v2918, %v2912
    %v3975 = vpack.c.b16 %v2919, %v2913
    %v3976 = vpack.c.b16 %v2920, %v2914
    %v3977 = vpack.c.b16 %v2927, %v2921
    %v3978 = vpack.c.b16 %v2928, %v2922
    %v3979 = vpack.c.b16 %v2929, %v2923
    %v3980 = vpack.c.b16 %v2930, %v2924
    %v3981 = vpack.c.b16 %v2931, %v2925
    %v3982 = vpack.c.b16 %v2932, %v2926
    %v3983 = vpack.c.b16 %v2939, %v2933
    %v3984 = vpack.c.b16 %v2940, %v2934
    %v3985 = vpack.c.b16 %v2941, %v2935
    %v3986 = vpack.c.b16 %v2942, %v2936
    %v3987 = vpack.c.b16 %v2943, %v2937
    %v3988 = vpack.c.b16 %v2944, %v2938
    %v3989 = vpack.c.b16 %v2951, %v2945
    %v3990 = vpack.c.b16 %v2952, %v2946
    %v3991 = vpack.c.b16 %v2953, %v2947
    %v3992 = vpack.c.b16 %v2954, %v2948
    %v3993 = vpack.c.b16 %v2955, %v2949
    %v3994 = vpack.c.b16 %v2956, %v2950
    %v3995 = vpack.c.b16 %v2963, %v2957
    %v3996 = vpack.c.b16 %v2964, %v2958
    %v3997 = vpack.c.b16 %v2965, %v2959
    %v3998 = vpack.c.b16 %v2966, %v2960
    %v3999 = vpack.c.b16 %v2967, %v2961
    %v4000 = vpack.c.b16 %v2968, %v2962
    %v4001 = vpack.c.b16 %v2975, %v2969
    %v4002 = vpack.c.b16 %v2976, %v2970
    %v4003 = vpack.c.b16 %v2977, %v2971
    %v4004 = vpack.c.b16 %v2978, %v2972
    %v4005 = vpack.c.b16 %v2979, %v2973
    %v4006 = vpack.c.b16 %v2980, %v2974
    %v4007 = vpack.c.b16 %v2987, %v2981
    %v4008 = vpack.c.b16 %v2988, %v2982
    %v4009 = vpack.c.b16 %v2989, %v2983
    %v4010 = vpack.c.b16 %v2990, %v2984
    %v4011 = vpack.c.b16 %v2991, %v2985
    %v4012 = vpack.c.b16 %v2992, %v2986
    %v4013 = vpack.c.b16 %v2999, %v2993
    %v4014 = vpack.c.b16 %v3000, %v2994
    %v4015 = vpack.c.b16 %v3001, %v2995
    %v4016 = vpack.c.b16 %v3002, %v2996
    %v4017 = vpack.c.b16 %v3003, %v2997
    %v4018 = vpack.c.b16 %v3004, %v2998
    %v4019 = vpack.c.b16 %v3011, %v3005
    %v4020 = vpack.c.b16 %v3012, %v3006
    %v4021 = vpack.c.b16 %v3013, %v3007
    %v4022 = vpack.c.b16 %v3014, %v3008
    %v4023 = vpack.c.b16 %v3015, %v3009
    %v4024 = vpack.c.b16 %v3016, %v3010
    %v4025 = vpack.c.b16 %v3023, %v3017
    %v4026 = vpack.c.b16 %v3024, %v3018
    %v4027 = vpack.c.b16 %v3025, %v3019
    %v4028 = vpack.c.b16 %v3026, %v3020
    %v4029 = vpack.c.b16 %v3027, %v3021
    %v4030 = vpack.c.b16 %v3028, %v3022
    %v4031 = vpack.c.b16 %v3035, %v3029
    %v4032 = vpack.c.b16 %v3036, %v3030
    %v4033 = vpack.c.b16 %v3037, %v3031
    %v4034 = vpack.c.b16 %v3038, %v3032
    %v4035 = vpack.c.b16 %v3039, %v3033
    %v4036 = vpack.c.b16 %v3040, %v3034
    %v4037 = vpack.c.b16 %v3047, %v3041
    %v4038 = vpack.c.b16 %v3048, %v3042
    %v4039 = vpack.c.b16 %v3049, %v3043
    %v4040 = vpack.c.b16 %v3050, %v3044
    %v4041 = vpack.c.b16 %v3051, %v3045
    %v4042 = vpack.c.b16 %v3052, %v3046
    %v4043 = vpack.c.b16 %v3059, %v3053
    %v4044 = vpack.c.b16 %v3060, %v3054
    %v4045 = vpack.c.b16 %v3061, %v3055
    %v4046 = vpack.c.b16 %v3062, %v3056
    %v4047 = vpack.c.b16 %v3063, %v3057
    %v4048 = vpack.c.b16 %v3064, %v3058
    %v4049 = vpack.c.b16 %v3071, %v3065
    %v4050 = vpack.c.b16 %v3072, %v3066
    %v4051 = vpack.c.b16 %v3073, %v3067
    %v4052 = vpack.c.b16 %v3074, %v3068
    %v4053 = vpack.c.b16 %v3075, %v3069
    %v4054 = vpack.c.b16 %v3076, %v3070
    %v4055 = vpack.c.b16 %v3083, %v3077
    %v4056 = vpack.c.b16 %v3084, %v3078
    %v4057 = vpack.c.b16 %v3085, %v3079
    %v4058 = vpack.c.b16 %v3086, %v3080
    %v4059 = vpack.c.b16 %v3087, %v3081
    %v4060 = vpack.c.b16 %v3088, %v3082
    %v4061 = vpack.c.b16 %v3095, %v3089
    %v4062 = vpack.c.b16 %v3096, %v3090
    %v4063 = vpack.c.b16 %v3097, %v3091
    %v4064 = vpack.c.b16 %v3098, %v3092
    %v4065 = vpack.c.b16 %v3099, %v3093
    %v4066 = vpack.c.b16 %v3100, %v3094
    %v4067 = vpack.c.b16 %v3107, %v3101
    %v4068 = vpack.c.b16 %v3108, %v3102
    %v4069 = vpack.c.b16 %v3109, %v3103
    %v4070 = vpack.c.b16 %v3110, %v3104
    %v4071 = vpack.c.b16 %v3111, %v3105
    %v4072 = vpack.c.b16 %v3112, %v3106
    %v4073 = vpack.c.b16 %v3119, %v3113
    %v4074 = vpack.c.b16 %v3120, %v3114
    %v4075 = vpack.c.b16 %v3121, %v3115
    %v4076 = vpack.c.b16 %v3122, %v3116
    %v4077 = vpack.c.b16 %v3123, %v3117
    %v4078 = vpack.c.b16 %v3124, %v3118
    %v4079 = vpack.c.b16 %v3131, %v3125
    %v4080 = vpack.c.b16 %v3132, %v3126
    %v4081 = vpack.c.b16 %v3133, %v3127
    %v4082 = vpack.c.b16 %v3134, %v3128
    %v4083 = vpack.c.b16 %v3135, %v3129
    %v4084 = vpack.c.b16 %v3136, %v3130
    %v4085 = vpack.c.b16 %v3143, %v3137
    %v4086 = vpack.c.b16 %v3144, %v3138
    %v4087 = vpack.c.b16 %v3145, %v3139
    %v4088 = vpack.c.b16 %v3146, %v3140
    %v4089 = vpack.c.b16 %v3147, %v3141
    %v4090 = vpack.c.b16 %v3148, %v3142
    %v4091 = vpack.c.b16 %v3155, %v3149
    %v4092 = vpack.c.b16 %v3156, %v3150
    %v4093 = vpack.c.b16 %v3157, %v3151
    %v4094 = vpack.c.b16 %v3158, %v3152
    %v4095 = vpack.c.b16 %v3159, %v3153
    %v4096 = vpack.c.b16 %v3160, %v3154
    %v4097 = vpack.c.b16 %v3167, %v3161
    %v4098 = vpack.c.b16 %v3168, %v3162
    %v4099 = vpack.c.b16 %v3169, %v3163
    %v4100 = vpack.c.b16 %v3170, %v3164
    %v4101 = vpack.c.b16 %v3171, %v3165
    %v4102 = vpack.c.b16 %v3172, %v3166
    %v4103 = vpack.c.b16 %v3179, %v3173
    %v4104 = vpack.c.b16 %v3180, %v3174
    %v4105 = vpack.c.b16 %v3181, %v3175
    %v4106 = vpack.c.b16 %v3182, %v3176
    %v4107 = vpack.c.b16 %v3183, %v3177
    %v4108 = vpack.c.b16 %v3184, %v3178
    %v4109 = vpack.c.b16 %v3191, %v3185
    %v4110 = vpack.c.b16 %v3192, %v3186
    %v4111 = vpack.c.b16 %v3193, %v3187
    %v4112 = vpack.c.b16 %v3194, %v3188
    %v4113 = vpack.c.b16 %v3195, %v3189
    %v4114 = vpack.c.b16 %v3196, %v3190
    %v4115 = vpack.c.b16 %v3203, %v3197
    %v4116 = vpack.c.b16 %v3204, %v3198
    %v4117 = vpack.c.b16 %v3205, %v3199
    %v4118 = vpack.c.b16 %v3206, %v3200
    %v4119 = vpack.c.b16 %v3207, %v3201
    %v4120 = vpack.c.b16 %v3208, %v3202
    %v4121 = vpack.c.b16 %v3215, %v3209
    %v4122 = vpack.c.b16 %v3216, %v3210
    %v4123 = vpack.c.b16 %v3217, %v3211
    %v4124 = vpack.c.b16 %v3218, %v3212
    %v4125 = vpack.c.b16 %v3219, %v3213
    %v4126 = vpack.c.b16 %v3220, %v3214
    %v4127 = vpack.c.b16 %v3227, %v3221
    %v4128 = vpack.c.b16 %v3228, %v3222
    %v4129 = vpack.c.b16 %v3229, %v3223
    %v4130 = vpack.c.b16 %v3230, %v3224
    %v4131 = vpack.c.b16 %v3231, %v3225
    %v4132 = vpack.c.b16 %v3232, %v3226
    %v4133 = vpack.c.b16 %v3239, %v3233
    %v4134 = vpack.c.b16 %v3240, %v3234
    %v4135 = vpack.c.b16 %v3241, %v3235
    %v4136 = vpack.c.b16 %v3242, %v3236
    %v4137 = vpack.c.b16 %v3243, %v3237
    %v4138 = vpack.c.b16 %v3244, %v3238
    %v4139 = vpack.c.b16 %v3251, %v3245
    %v4140 = vpack.c.b16 %v3252, %v3246
    %v4141 = vpack.c.b16 %v3253, %v3247
    %v4142 = vpack.c.b16 %v3254, %v3248
    %v4143 = vpack.c.b16 %v3255, %v3249
    %v4144 = vpack.c.b16 %v3256, %v3250
    %v4145 = vpack.c.b16 %v3263, %v3257
    %v4146 = vpack.c.b16 %v3264, %v3258
    %v4147 = vpack.c.b16 %v3265, %v3259
    %v4148 = vpack.c.b16 %v3266, %v3260
    %v4149 = vpack.c.b16 %v3267, %v3261
    %v4150 = vpack.c.b16 %v3268, %v3262
    %v4151 = vpack.c.b16 %v3275, %v3269
    %v4152 = vpack.c.b16 %v3276, %v3270
    %v4153 = vpack.c.b16 %v3277, %v3271
    %v4154 = vpack.c.b16 %v3278, %v3272
    %v4155 = vpack.c.b16 %v3279, %v3273
    %v4156 = vpack.c.b16 %v3280, %v3274
    %v4157 = vpack.c.b16 %v3287, %v3281
    %v4158 = vpack.c.b16 %v3288, %v3282
    %v4159 = vpack.c.b16 %v3289, %v3283
    %v4160 = vpack.c.b16 %v3290, %v3284
    %v4161 = vpack.c.b16 %v3291, %v3285
    %v4162 = vpack.c.b16 %v3292, %v3286
    %v4163 = vpack.c.b16 %v3299, %v3293
    %v4164 = vpack.c.b16 %v3300, %v3294
    %v4165 = vpack.c.b16 %v3301, %v3295
    %v4166 = vpack.c.b16 %v3302, %v3296
    %v4167 = vpack.c.b16 %v3303, %v3297
    %v4168 = vpack.c.b16 %v3304, %v3298
    %v4169 = vpack.c.b16 %v3311, %v3305
    %v4170 = vpack.c.b16 %v3312, %v3306
    %v4171 = vpack.c.b16 %v3313, %v3307
    %v4172 = vpack.c.b16 %v3314, %v3308
    %v4173 = vpack.c.b16 %v3315, %v3309
    %v4174 = vpack.c.b16 %v3316, %v3310
    %v4175 = vpack.c.b16 %v3323, %v3317
    %v4176 = vpack.c.b16 %v3324, %v3318
    %v4177 = vpack.c.b16 %v3325, %v3319
    %v4178 = vpack.c.b16 %v3326, %v3320
    %v4179 = vpack.c.b16 %v3327, %v3321
    %v4180 = vpack.c.b16 %v3328, %v3322
    %v4181 = vpack.c.b16 %v3335, %v3329
    %v4182 = vpack.c.b16 %v3336, %v3330
    %v4183 = vpack.c.b16 %v3337, %v3331
    %v4184 = vpack.c.b16 %v3338, %v3332
    %v4185 = vpack.c.b16 %v3339, %v3333
    %v4186 = vpack.c.b16 %v3340, %v3334
    %v4187 = vpack.c.b16 %v3347, %v3341
    %v4188 = vpack.c.b16 %v3348, %v3342
    %v4189 = vpack.c.b16 %v3349, %v3343
    %v4190 = vpack.c.b16 %v3350, %v3344
    %v4191 = vpack.c.b16 %v3351, %v3345
    %v4192 = vpack.c.b16 %v3352, %v3346
    %v4193 = vpack.c.b16 %v3359, %v3353
    %v4194 = vpack.c.b16 %v3360, %v3354
    %v4195 = vpack.c.b16 %v3361, %v3355
    %v4196 = vpack.c.b16 %v3362, %v3356
    %v4197 = vpack.c.b16 %v3363, %v3357
    %v4198 = vpack.c.b16 %v3364, %v3358
    %v4199 = vpack.c.b16 %v3371, %v3365
    %v4200 = vpack.c.b16 %v3372, %v3366
    %v4201 = vpack.c.b16 %v3373, %v3367
    %v4202 = vpack.c.b16 %v3374, %v3368
    %v4203 = vpack.c.b16 %v3375, %v3369
    %v4204 = vpack.c.b16 %v3376, %v3370
    %v4205 = vpack.c.b16 %v3383, %v3377
    %v4206 = vpack.c.b16 %v3384, %v3378
    %v4207 = vpack.c.b16 %v3385, %v3379
    %v4208 = vpack.c.b16 %v3386, %v3380
    %v4209 = vpack.c.b16 %v3387, %v3381
    %v4210 = vpack.c.b16 %v3388, %v3382
    %v4211 = vpack.c.b16 %v3395, %v3389
    %v4212 = vpack.c.b16 %v3396, %v3390
    %v4213 = vpack.c.b16 %v3397, %v3391
    %v4214 = vpack.c.b16 %v3398, %v3392
    %v4215 = vpack.c.b16 %v3399, %v3393
    %v4216 = vpack.c.b16 %v3400, %v3394
    %v4217 = vpack.c.b16 %v3407, %v3401
    %v4218 = vpack.c.b16 %v3408, %v3402
    %v4219 = vpack.c.b16 %v3409, %v3403
    %v4220 = vpack.c.b16 %v3410, %v3404
    %v4221 = vpack.c.b16 %v3411, %v3405
    %v4222 = vpack.c.b16 %v3412, %v3406
    %v4223 = vpack.c.b16 %v3419, %v3413
    %v4224 = vpack.c.b16 %v3420, %v3414
    %v4225 = vpack.c.b16 %v3421, %v3415
    %v4226 = vpack.c.b16 %v3422, %v3416
    %v4227 = vpack.c.b16 %v3423, %v3417
    %v4228 = vpack.c.b16 %v3424, %v3418
    %v4229 = vpack.c.b16 %v3431, %v3425
    %v4230 = vpack.c.b16 %v3432, %v3426
    %v4231 = vpack.c.b16 %v3433, %v3427
    %v4232 = vpack.c.b16 %v3434, %v3428
    %v4233 = vpack.c.b16 %v3435, %v3429
    %v4234 = vpack.c.b16 %v3436, %v3430
    %v4235 = vpack.c.b16 %v3443, %v3437
    %v4236 = vpack.c.b16 %v3444, %v3438
    %v4237 = vpack.c.b16 %v3445, %v3439
    %v4238 = vpack.c.b16 %v3446, %v3440
    %v4239 = vpack.c.b16 %v3447, %v3441
    %v4240 = vpack.c.b16 %v3448, %v3442
    %v4241 = vpack.c.b16 %v3455, %v3449
    %v4242 = vpack.c.b16 %v3456, %v3450
    %v4243 = vpack.c.b16 %v3457, %v3451
    %v4244 = vpack.c.b16 %v3458, %v3452
    %v4245 = vpack.c.b16 %v3459, %v3453
    %v4246 = vpack.c.b16 %v3460, %v3454
    %v4247 = vpack.c.b16 %v3467, %v3461
    %v4248 = vpack.c.b16 %v3468, %v3462
    %v4249 = vpack.c.b16 %v3469, %v3463
    %v4250 = vpack.c.b16 %v3470, %v3464
    %v4251 = vpack.c.b16 %v3471, %v3465
    %v4252 = vpack.c.b16 %v3472, %v3466
    %v4253 = vpack.c.b16 %v3479, %v3473
    %v4254 = vpack.c.b16 %v3480, %v3474
    %v4255 = vpack.c.b16 %v3481, %v3475
    %v4256 = vpack.c.b16 %v3482, %v3476
    %v4257 = vpack.c.b16 %v3483, %v3477
    %v4258 = vpack.c.b16 %v3484, %v3478
    %v4259 = vpack.c.b16 %v3491, %v3485
    %v4260 = vpack.c.b16 %v3492, %v3486
    %v4261 = vpack.c.b16 %v3493, %v3487
    %v4262 = vpack.c.b16 %v3494, %v3488
    %v4263 = vpack.c.b16 %v3495, %v3489
    %v4264 = vpack.c.b16 %v3496, %v3490
    %5033 = vmatprep.subr.bf16.mxu0 %v3540
    %5034 = vmatpush1.bf16.msra.mxu0 %v3539
    %5035 = vmatprep.subr.bf16.mxu0 %v3534
    %5036 = vmatpush1.bf16.msra.mxu0 %v3533
    %5037 = vmatprep.subr.bf16.mxu0 %v3528
    %5038 = vmatpush1.bf16.msra.mxu0 %v3527
    %5039 = vmatprep.subr.bf16.mxu0 %v3522
    %5040 = vmatpush1.bf16.msra.mxu0 %v3521
    %5041 = vmatprep.subr.bf16.mxu0 %v3516
    %5042 = vmatpush1.bf16.msra.mxu0 %v3515
    %5043 = vmatprep.subr.bf16.mxu0 %v3510
    %5044 = vmatpush1.bf16.msra.mxu0 %v3509
    %5045 = vmatprep.subr.bf16.mxu0 %v3504
    %5046 = vmatpush1.bf16.msra.mxu0 %v3503
    %5047 = vmatprep.subr.bf16.mxu0 %v3498
    %5048 = vmatpush1.bf16.msra.mxu0 %v3497
    %5049 = vmatprep.subr.bf16.mxu0 %v3588
    %5050 = vmatpush2.bf16.msra.mxu0 %v3587
    %5051 = vmatprep.subr.bf16.mxu0 %v3582
    %5052 = vmatpush2.bf16.msra.mxu0 %v3581
    %5053 = vmatprep.subr.bf16.mxu0 %v3576
    %5054 = vmatpush2.bf16.msra.mxu0 %v3575
    %5055 = vmatprep.subr.bf16.mxu0 %v3570
    %5056 = vmatpush2.bf16.msra.mxu0 %v3569
    %5057 = vmatprep.subr.bf16.mxu0 %v3564
    %5058 = vmatpush2.bf16.msra.mxu0 %v3563
    %5059 = vmatprep.subr.bf16.mxu0 %v3558
    %5060 = vmatpush2.bf16.msra.mxu0 %v3557
    %5061 = vmatprep.subr.bf16.mxu0 %v3552
    %5062 = vmatpush2.bf16.msra.mxu0 %v3551
    %5063 = vmatprep.subr.bf16.mxu0 %v3546
    %5064 = vmatpush2.bf16.msra.mxu0 %v3545
    %5065 = vmatprep.mubr.bf16.mxu0 %v1162
    %5066 = vmatmul.mubr.bf16.gmra.mxu0 %v1161
    %v5067 = vpop.f32.mrf.mxu0
    %v5068 = vadd.f32 %v1086, %v5067
    %v5069 = vpop.f32.mrf.mxu0
    %v5070 = vadd.f32 %v1090, %v5069
    %v5071 = vpop.f32.mrf.mxu0
    %v5072 = vadd.f32 %v1086, %v5071
    %v5073 = vpop.f32.mrf.mxu0
    %v5074 = vadd.f32 %v1090, %v5073
    %5075 = vdwg.mxu0
    %5076 = vmatprep.subr.bf16.mxu0 %v3636
    %5077 = vmatpush1.bf16.msra.mxu0 %v3635
    %5078 = vmatprep.subr.bf16.mxu0 %v3630
    %5079 = vmatpush1.bf16.msra.mxu0 %v3629
    %5080 = vmatprep.subr.bf16.mxu0 %v3624
    %5081 = vmatpush1.bf16.msra.mxu0 %v3623
    %5082 = vmatprep.subr.bf16.mxu0 %v3618
    %5083 = vmatpush1.bf16.msra.mxu0 %v3617
    %5084 = vmatprep.subr.bf16.mxu0 %v3612
    %5085 = vmatpush1.bf16.msra.mxu0 %v3611
    %5086 = vmatprep.subr.bf16.mxu0 %v3606
    %5087 = vmatpush1.bf16.msra.mxu0 %v3605
    %5088 = vmatprep.subr.bf16.mxu0 %v3600
    %5089 = vmatpush1.bf16.msra.mxu0 %v3599
    %5090 = vmatprep.subr.bf16.mxu0 %v3594
    %5091 = vmatpush1.bf16.msra.mxu0 %v3593
    %5092 = vmatprep.subr.bf16.mxu0 %v3684
    %5093 = vmatpush2.bf16.msra.mxu0 %v3683
    %5094 = vmatprep.subr.bf16.mxu0 %v3678
    %5095 = vmatpush2.bf16.msra.mxu0 %v3677
    %5096 = vmatprep.subr.bf16.mxu0 %v3672
    %5097 = vmatpush2.bf16.msra.mxu0 %v3671
    %5098 = vmatprep.subr.bf16.mxu0 %v3666
    %5099 = vmatpush2.bf16.msra.mxu0 %v3665
    %5100 = vmatprep.subr.bf16.mxu0 %v3660
    %5101 = vmatpush2.bf16.msra.mxu0 %v3659
    %5102 = vmatprep.subr.bf16.mxu0 %v3654
    %5103 = vmatpush2.bf16.msra.mxu0 %v3653
    %5104 = vmatprep.subr.bf16.mxu0 %v3648
    %5105 = vmatpush2.bf16.msra.mxu0 %v3647
    %5106 = vmatprep.subr.bf16.mxu0 %v3642
    %5107 = vmatpush2.bf16.msra.mxu0 %v3641
    %5108 = vmatprep.mubr.bf16.mxu0 %v1164
    %5109 = vmatmul.mubr.bf16.gmra.mxu0 %v1163
    %v5110 = vpop.f32.mrf.mxu0
    %v5111 = vadd.f32 %v5068, %v5110
    %v5112 = vpop.f32.mrf.mxu0
    %v5113 = vadd.f32 %v5070, %v5112
    %v5114 = vpop.f32.mrf.mxu0
    %v5115 = vadd.f32 %v5072, %v5114
    %v5116 = vpop.f32.mrf.mxu0
    %v5117 = vadd.f32 %v5074, %v5116
    %5118 = vdwg.mxu0
    %5119 = vmatprep.subr.bf16.mxu0 %v3732
    %5120 = vmatpush1.bf16.msra.mxu0 %v3731
    %5121 = vmatprep.subr.bf16.mxu0 %v3726
    %5122 = vmatpush1.bf16.msra.mxu0 %v3725
    %5123 = vmatprep.subr.bf16.mxu0 %v3720
    %5124 = vmatpush1.bf16.msra.mxu0 %v3719
    %5125 = vmatprep.subr.bf16.mxu0 %v3714
    %5126 = vmatpush1.bf16.msra.mxu0 %v3713
    %5127 = vmatprep.subr.bf16.mxu0 %v3708
    %5128 = vmatpush1.bf16.msra.mxu0 %v3707
    %5129 = vmatprep.subr.bf16.mxu0 %v3702
    %5130 = vmatpush1.bf16.msra.mxu0 %v3701
    %5131 = vmatprep.subr.bf16.mxu0 %v3696
    %5132 = vmatpush1.bf16.msra.mxu0 %v3695
    %5133 = vmatprep.subr.bf16.mxu0 %v3690
    %5134 = vmatpush1.bf16.msra.mxu0 %v3689
    %5135 = vmatprep.subr.bf16.mxu0 %v3780
    %5136 = vmatpush2.bf16.msra.mxu0 %v3779
    %5137 = vmatprep.subr.bf16.mxu0 %v3774
    %5138 = vmatpush2.bf16.msra.mxu0 %v3773
    %5139 = vmatprep.subr.bf16.mxu0 %v3768
    %5140 = vmatpush2.bf16.msra.mxu0 %v3767
    %5141 = vmatprep.subr.bf16.mxu0 %v3762
    %5142 = vmatpush2.bf16.msra.mxu0 %v3761
    %5143 = vmatprep.subr.bf16.mxu0 %v3756
    %5144 = vmatpush2.bf16.msra.mxu0 %v3755
    %5145 = vmatprep.subr.bf16.mxu0 %v3750
    %5146 = vmatpush2.bf16.msra.mxu0 %v3749
    %5147 = vmatprep.subr.bf16.mxu0 %v3744
    %5148 = vmatpush2.bf16.msra.mxu0 %v3743
    %5149 = vmatprep.subr.bf16.mxu0 %v3738
    %5150 = vmatpush2.bf16.msra.mxu0 %v3737
    %5151 = vmatprep.mubr.bf16.mxu0 %v1166
    %5152 = vmatmul.mubr.bf16.gmra.mxu0 %v1165
    %v5153 = vpop.f32.mrf.mxu0
    %v5154 = vadd.f32 %v5111, %v5153
    %v5155 = vpop.f32.mrf.mxu0
    %v5156 = vadd.f32 %v5113, %v5155
    %v5157 = vpop.f32.mrf.mxu0
    %v5158 = vadd.f32 %v5115, %v5157
    %v5159 = vpop.f32.mrf.mxu0
    %v5160 = vadd.f32 %v5117, %v5159
    %5161 = vdwg.mxu0
    %5162 = vmatprep.subr.bf16.mxu0 %v3828
    %5163 = vmatpush1.bf16.msra.mxu0 %v3827
    %5164 = vmatprep.subr.bf16.mxu0 %v3822
    %5165 = vmatpush1.bf16.msra.mxu0 %v3821
    %5166 = vmatprep.subr.bf16.mxu0 %v3816
    %5167 = vmatpush1.bf16.msra.mxu0 %v3815
    %5168 = vmatprep.subr.bf16.mxu0 %v3810
    %5169 = vmatpush1.bf16.msra.mxu0 %v3809
    %5170 = vmatprep.subr.bf16.mxu0 %v3804
    %5171 = vmatpush1.bf16.msra.mxu0 %v3803
    %5172 = vmatprep.subr.bf16.mxu0 %v3798
    %5173 = vmatpush1.bf16.msra.mxu0 %v3797
    %5174 = vmatprep.subr.bf16.mxu0 %v3792
    %5175 = vmatpush1.bf16.msra.mxu0 %v3791
    %5176 = vmatprep.subr.bf16.mxu0 %v3786
    %5177 = vmatpush1.bf16.msra.mxu0 %v3785
    %5178 = vmatprep.subr.bf16.mxu0 %v3876
    %5179 = vmatpush2.bf16.msra.mxu0 %v3875
    %5180 = vmatprep.subr.bf16.mxu0 %v3870
    %5181 = vmatpush2.bf16.msra.mxu0 %v3869
    %5182 = vmatprep.subr.bf16.mxu0 %v3864
    %5183 = vmatpush2.bf16.msra.mxu0 %v3863
    %5184 = vmatprep.subr.bf16.mxu0 %v3858
    %5185 = vmatpush2.bf16.msra.mxu0 %v3857
    %5186 = vmatprep.subr.bf16.mxu0 %v3852
    %5187 = vmatpush2.bf16.msra.mxu0 %v3851
    %5188 = vmatprep.subr.bf16.mxu0 %v3846
    %5189 = vmatpush2.bf16.msra.mxu0 %v3845
    %5190 = vmatprep.subr.bf16.mxu0 %v3840
    %5191 = vmatpush2.bf16.msra.mxu0 %v3839
    %5192 = vmatprep.subr.bf16.mxu0 %v3834
    %5193 = vmatpush2.bf16.msra.mxu0 %v3833
    %5194 = vmatprep.mubr.bf16.mxu0 %v1168
    %5195 = vmatmul.mubr.bf16.gmra.mxu0 %v1167
    %v5196 = vpop.f32.mrf.mxu0
    %v5197 = vadd.f32 %v5154, %v5196
    %v5198 = vpop.f32.mrf.mxu0
    %v5199 = vadd.f32 %v5156, %v5198
    %v5200 = vpop.f32.mrf.mxu0
    %v5201 = vadd.f32 %v5158, %v5200
    %v5202 = vpop.f32.mrf.mxu0
    %v5203 = vadd.f32 %v5160, %v5202
    %5204 = vdwg.mxu0
    %5205 = vmatprep.subr.bf16.mxu0 %v3924
    %5206 = vmatpush1.bf16.msra.mxu0 %v3923
    %5207 = vmatprep.subr.bf16.mxu0 %v3918
    %5208 = vmatpush1.bf16.msra.mxu0 %v3917
    %5209 = vmatprep.subr.bf16.mxu0 %v3912
    %5210 = vmatpush1.bf16.msra.mxu0 %v3911
    %5211 = vmatprep.subr.bf16.mxu0 %v3906
    %5212 = vmatpush1.bf16.msra.mxu0 %v3905
    %5213 = vmatprep.subr.bf16.mxu0 %v3900
    %5214 = vmatpush1.bf16.msra.mxu0 %v3899
    %5215 = vmatprep.subr.bf16.mxu0 %v3894
    %5216 = vmatpush1.bf16.msra.mxu0 %v3893
    %5217 = vmatprep.subr.bf16.mxu0 %v3888
    %5218 = vmatpush1.bf16.msra.mxu0 %v3887
    %5219 = vmatprep.subr.bf16.mxu0 %v3882
    %5220 = vmatpush1.bf16.msra.mxu0 %v3881
    %5221 = vmatprep.subr.bf16.mxu0 %v3972
    %5222 = vmatpush2.bf16.msra.mxu0 %v3971
    %5223 = vmatprep.subr.bf16.mxu0 %v3966
    %5224 = vmatpush2.bf16.msra.mxu0 %v3965
    %5225 = vmatprep.subr.bf16.mxu0 %v3960
    %5226 = vmatpush2.bf16.msra.mxu0 %v3959
    %5227 = vmatprep.subr.bf16.mxu0 %v3954
    %5228 = vmatpush2.bf16.msra.mxu0 %v3953
    %5229 = vmatprep.subr.bf16.mxu0 %v3948
    %5230 = vmatpush2.bf16.msra.mxu0 %v3947
    %5231 = vmatprep.subr.bf16.mxu0 %v3942
    %5232 = vmatpush2.bf16.msra.mxu0 %v3941
    %5233 = vmatprep.subr.bf16.mxu0 %v3936
    %5234 = vmatpush2.bf16.msra.mxu0 %v3935
    %5235 = vmatprep.subr.bf16.mxu0 %v3930
    %5236 = vmatpush2.bf16.msra.mxu0 %v3929
    %5237 = vmatprep.mubr.bf16.mxu0 %v1170
    %5238 = vmatmul.mubr.bf16.gmra.mxu0 %v1169
    %v5239 = vpop.f32.mrf.mxu0
    %v5240 = vadd.f32 %v5197, %v5239
    %v5241 = vpop.f32.mrf.mxu0
    %v5242 = vadd.f32 %v5199, %v5241
    %v5243 = vpop.f32.mrf.mxu0
    %v5244 = vadd.f32 %v5201, %v5243
    %v5245 = vpop.f32.mrf.mxu0
    %v5246 = vadd.f32 %v5203, %v5245
    %5247 = vdwg.mxu0
    %5248 = vmatprep.subr.bf16.mxu0 %v4020
    %5249 = vmatpush1.bf16.msra.mxu0 %v4019
    %5250 = vmatprep.subr.bf16.mxu0 %v4014
    %5251 = vmatpush1.bf16.msra.mxu0 %v4013
    %5252 = vmatprep.subr.bf16.mxu0 %v4008
    %5253 = vmatpush1.bf16.msra.mxu0 %v4007
    %5254 = vmatprep.subr.bf16.mxu0 %v4002
    %5255 = vmatpush1.bf16.msra.mxu0 %v4001
    %5256 = vmatprep.subr.bf16.mxu0 %v3996
    %5257 = vmatpush1.bf16.msra.mxu0 %v3995
    %5258 = vmatprep.subr.bf16.mxu0 %v3990
    %5259 = vmatpush1.bf16.msra.mxu0 %v3989
    %5260 = vmatprep.subr.bf16.mxu0 %v3984
    %5261 = vmatpush1.bf16.msra.mxu0 %v3983
    %5262 = vmatprep.subr.bf16.mxu0 %v3978
    %5263 = vmatpush1.bf16.msra.mxu0 %v3977
    %5264 = vmatprep.subr.bf16.mxu0 %v4068
    %5265 = vmatpush2.bf16.msra.mxu0 %v4067
    %5266 = vmatprep.subr.bf16.mxu0 %v4062
    %5267 = vmatpush2.bf16.msra.mxu0 %v4061
    %5268 = vmatprep.subr.bf16.mxu0 %v4056
    %5269 = vmatpush2.bf16.msra.mxu0 %v4055
    %5270 = vmatprep.subr.bf16.mxu0 %v4050
    %5271 = vmatpush2.bf16.msra.mxu0 %v4049
    %5272 = vmatprep.subr.bf16.mxu0 %v4044
    %5273 = vmatpush2.bf16.msra.mxu0 %v4043
    %5274 = vmatprep.subr.bf16.mxu0 %v4038
    %5275 = vmatpush2.bf16.msra.mxu0 %v4037
    %5276 = vmatprep.subr.bf16.mxu0 %v4032
    %5277 = vmatpush2.bf16.msra.mxu0 %v4031
    %5278 = vmatprep.subr.bf16.mxu0 %v4026
    %5279 = vmatpush2.bf16.msra.mxu0 %v4025
    %5280 = vmatprep.mubr.bf16.mxu0 %v1172
    %5281 = vmatmul.mubr.bf16.gmra.mxu0 %v1171
    %v5282 = vpop.f32.mrf.mxu0
    %v5283 = vadd.f32 %v5240, %v5282
    %v5284 = vpop.f32.mrf.mxu0
    %v5285 = vadd.f32 %v5242, %v5284
    %v5286 = vpop.f32.mrf.mxu0
    %v5287 = vadd.f32 %v5244, %v5286
    %v5288 = vpop.f32.mrf.mxu0
    %v5289 = vadd.f32 %v5246, %v5288
    %5290 = vdwg.mxu0
    %5291 = vmatprep.subr.bf16.mxu0 %v4116
    %5292 = vmatpush1.bf16.msra.mxu0 %v4115
    %5293 = vmatprep.subr.bf16.mxu0 %v4110
    %5294 = vmatpush1.bf16.msra.mxu0 %v4109
    %5295 = vmatprep.subr.bf16.mxu0 %v4104
    %5296 = vmatpush1.bf16.msra.mxu0 %v4103
    %5297 = vmatprep.subr.bf16.mxu0 %v4098
    %5298 = vmatpush1.bf16.msra.mxu0 %v4097
    %5299 = vmatprep.subr.bf16.mxu0 %v4092
    %5300 = vmatpush1.bf16.msra.mxu0 %v4091
    %5301 = vmatprep.subr.bf16.mxu0 %v4086
    %5302 = vmatpush1.bf16.msra.mxu0 %v4085
    %5303 = vmatprep.subr.bf16.mxu0 %v4080
    %5304 = vmatpush1.bf16.msra.mxu0 %v4079
    %5305 = vmatprep.subr.bf16.mxu0 %v4074
    %5306 = vmatpush1.bf16.msra.mxu0 %v4073
    %5307 = vmatprep.subr.bf16.mxu0 %v4164
    %5308 = vmatpush2.bf16.msra.mxu0 %v4163
    %5309 = vmatprep.subr.bf16.mxu0 %v4158
    %5310 = vmatpush2.bf16.msra.mxu0 %v4157
    %5311 = vmatprep.subr.bf16.mxu0 %v4152
    %5312 = vmatpush2.bf16.msra.mxu0 %v4151
    %5313 = vmatprep.subr.bf16.mxu0 %v4146
    %5314 = vmatpush2.bf16.msra.mxu0 %v4145
    %5315 = vmatprep.subr.bf16.mxu0 %v4140
    %5316 = vmatpush2.bf16.msra.mxu0 %v4139
    %5317 = vmatprep.subr.bf16.mxu0 %v4134
    %5318 = vmatpush2.bf16.msra.mxu0 %v4133
    %5319 = vmatprep.subr.bf16.mxu0 %v4128
    %5320 = vmatpush2.bf16.msra.mxu0 %v4127
    %5321 = vmatprep.subr.bf16.mxu0 %v4122
    %5322 = vmatpush2.bf16.msra.mxu0 %v4121
    %5323 = vmatprep.mubr.bf16.mxu0 %v1174
    %5324 = vmatmul.mubr.bf16.gmra.mxu0 %v1173
    %v5325 = vpop.f32.mrf.mxu0
    %v5326 = vadd.f32 %v5283, %v5325
    %v5327 = vpop.f32.mrf.mxu0
    %v5328 = vadd.f32 %v5285, %v5327
    %v5329 = vpop.f32.mrf.mxu0
    %v5330 = vadd.f32 %v5287, %v5329
    %v5331 = vpop.f32.mrf.mxu0
    %v5332 = vadd.f32 %v5289, %v5331
    %5333 = vdwg.mxu0
    %5334 = vmatprep.subr.bf16.mxu0 %v4212
    %5335 = vmatpush1.bf16.msra.mxu0 %v4211
    %5336 = vmatprep.subr.bf16.mxu0 %v4206
    %5337 = vmatpush1.bf16.msra.mxu0 %v4205
    %5338 = vmatprep.subr.bf16.mxu0 %v4200
    %5339 = vmatpush1.bf16.msra.mxu0 %v4199
    %5340 = vmatprep.subr.bf16.mxu0 %v4194
    %5341 = vmatpush1.bf16.msra.mxu0 %v4193
    %5342 = vmatprep.subr.bf16.mxu0 %v4188
    %5343 = vmatpush1.bf16.msra.mxu0 %v4187
    %5344 = vmatprep.subr.bf16.mxu0 %v4182
    %5345 = vmatpush1.bf16.msra.mxu0 %v4181
    %5346 = vmatprep.subr.bf16.mxu0 %v4176
    %5347 = vmatpush1.bf16.msra.mxu0 %v4175
    %5348 = vmatprep.subr.bf16.mxu0 %v4170
    %5349 = vmatpush1.bf16.msra.mxu0 %v4169
    %5350 = vmatprep.subr.bf16.mxu0 %v4260
    %5351 = vmatpush2.bf16.msra.mxu0 %v4259
    %5352 = vmatprep.subr.bf16.mxu0 %v4254
    %5353 = vmatpush2.bf16.msra.mxu0 %v4253
    %5354 = vmatprep.subr.bf16.mxu0 %v4248
    %5355 = vmatpush2.bf16.msra.mxu0 %v4247
    %5356 = vmatprep.subr.bf16.mxu0 %v4242
    %5357 = vmatpush2.bf16.msra.mxu0 %v4241
    %5358 = vmatprep.subr.bf16.mxu0 %v4236
    %5359 = vmatpush2.bf16.msra.mxu0 %v4235
    %5360 = vmatprep.subr.bf16.mxu0 %v4230
    %5361 = vmatpush2.bf16.msra.mxu0 %v4229
    %5362 = vmatprep.subr.bf16.mxu0 %v4224
    %5363 = vmatpush2.bf16.msra.mxu0 %v4223
    %5364 = vmatprep.subr.bf16.mxu0 %v4218
    %5365 = vmatpush2.bf16.msra.mxu0 %v4217
    %5366 = vmatprep.mubr.bf16.mxu0 %v1176
    %5367 = vmatmul.mubr.bf16.gmra.mxu0 %v1175
    %v5368 = vpop.f32.mrf.mxu0
    %v5369 = vadd.f32 %v5326, %v5368
    %v5370 = vpop.f32.mrf.mxu0
    %v5371 = vadd.f32 %v5328, %v5370
    %v5372 = vpop.f32.mrf.mxu0
    %v5373 = vadd.f32 %v5330, %v5372
    %v5374 = vpop.f32.mrf.mxu0
    %v5375 = vadd.f32 %v5332, %v5374
    %5376 = vdwg.mxu0
    %5377 = vmatprep.subr.bf16.mxu0 %v3542
    %5378 = vmatpush1.bf16.msra.mxu0 %v3541
    %5379 = vmatprep.subr.bf16.mxu0 %v3536
    %5380 = vmatpush1.bf16.msra.mxu0 %v3535
    %5381 = vmatprep.subr.bf16.mxu0 %v3530
    %5382 = vmatpush1.bf16.msra.mxu0 %v3529
    %5383 = vmatprep.subr.bf16.mxu0 %v3524
    %5384 = vmatpush1.bf16.msra.mxu0 %v3523
    %5385 = vmatprep.subr.bf16.mxu0 %v3518
    %5386 = vmatpush1.bf16.msra.mxu0 %v3517
    %5387 = vmatprep.subr.bf16.mxu0 %v3512
    %5388 = vmatpush1.bf16.msra.mxu0 %v3511
    %5389 = vmatprep.subr.bf16.mxu0 %v3506
    %5390 = vmatpush1.bf16.msra.mxu0 %v3505
    %5391 = vmatprep.subr.bf16.mxu0 %v3500
    %5392 = vmatpush1.bf16.msra.mxu0 %v3499
    %5393 = vmatprep.subr.bf16.mxu0 %v3590
    %5394 = vmatpush2.bf16.msra.mxu0 %v3589
    %5395 = vmatprep.subr.bf16.mxu0 %v3584
    %5396 = vmatpush2.bf16.msra.mxu0 %v3583
    %5397 = vmatprep.subr.bf16.mxu0 %v3578
    %5398 = vmatpush2.bf16.msra.mxu0 %v3577
    %5399 = vmatprep.subr.bf16.mxu0 %v3572
    %5400 = vmatpush2.bf16.msra.mxu0 %v3571
    %5401 = vmatprep.subr.bf16.mxu0 %v3566
    %5402 = vmatpush2.bf16.msra.mxu0 %v3565
    %5403 = vmatprep.subr.bf16.mxu0 %v3560
    %5404 = vmatpush2.bf16.msra.mxu0 %v3559
    %5405 = vmatprep.subr.bf16.mxu0 %v3554
    %5406 = vmatpush2.bf16.msra.mxu0 %v3553
    %5407 = vmatprep.subr.bf16.mxu0 %v3548
    %5408 = vmatpush2.bf16.msra.mxu0 %v3547
    %5409 = vmatprep.mubr.bf16.mxu0 %v1162
    %5410 = vmatmul.mubr.bf16.gmra.mxu0 %v1161
    %v5411 = vpop.f32.mrf.mxu0
    %v5412 = vadd.f32 %v1094, %v5411
    %v5413 = vpop.f32.mrf.mxu0
    %v5414 = vadd.f32 %v1098, %v5413
    %v5415 = vpop.f32.mrf.mxu0
    %v5416 = vadd.f32 %v1094, %v5415
    %v5417 = vpop.f32.mrf.mxu0
    %v5418 = vadd.f32 %v1098, %v5417
    %5419 = vdwg.mxu0
    %5420 = vmatprep.subr.bf16.mxu0 %v3638
    %5421 = vmatpush1.bf16.msra.mxu0 %v3637
    %5422 = vmatprep.subr.bf16.mxu0 %v3632
    %5423 = vmatpush1.bf16.msra.mxu0 %v3631
    %5424 = vmatprep.subr.bf16.mxu0 %v3626
    %5425 = vmatpush1.bf16.msra.mxu0 %v3625
    %5426 = vmatprep.subr.bf16.mxu0 %v3620
    %5427 = vmatpush1.bf16.msra.mxu0 %v3619
    %5428 = vmatprep.subr.bf16.mxu0 %v3614
    %5429 = vmatpush1.bf16.msra.mxu0 %v3613
    %5430 = vmatprep.subr.bf16.mxu0 %v3608
    %5431 = vmatpush1.bf16.msra.mxu0 %v3607
    %5432 = vmatprep.subr.bf16.mxu0 %v3602
    %5433 = vmatpush1.bf16.msra.mxu0 %v3601
    %5434 = vmatprep.subr.bf16.mxu0 %v3596
    %5435 = vmatpush1.bf16.msra.mxu0 %v3595
    %5436 = vmatprep.subr.bf16.mxu0 %v3686
    %5437 = vmatpush2.bf16.msra.mxu0 %v3685
    %5438 = vmatprep.subr.bf16.mxu0 %v3680
    %5439 = vmatpush2.bf16.msra.mxu0 %v3679
    %5440 = vmatprep.subr.bf16.mxu0 %v3674
    %5441 = vmatpush2.bf16.msra.mxu0 %v3673
    %5442 = vmatprep.subr.bf16.mxu0 %v3668
    %5443 = vmatpush2.bf16.msra.mxu0 %v3667
    %5444 = vmatprep.subr.bf16.mxu0 %v3662
    %5445 = vmatpush2.bf16.msra.mxu0 %v3661
    %5446 = vmatprep.subr.bf16.mxu0 %v3656
    %5447 = vmatpush2.bf16.msra.mxu0 %v3655
    %5448 = vmatprep.subr.bf16.mxu0 %v3650
    %5449 = vmatpush2.bf16.msra.mxu0 %v3649
    %5450 = vmatprep.subr.bf16.mxu0 %v3644
    %5451 = vmatpush2.bf16.msra.mxu0 %v3643
    %5452 = vmatprep.mubr.bf16.mxu0 %v1164
    %5453 = vmatmul.mubr.bf16.gmra.mxu0 %v1163
    %v5454 = vpop.f32.mrf.mxu0
    %v5455 = vadd.f32 %v5412, %v5454
    %v5456 = vpop.f32.mrf.mxu0
    %v5457 = vadd.f32 %v5414, %v5456
    %v5458 = vpop.f32.mrf.mxu0
    %v5459 = vadd.f32 %v5416, %v5458
    %v5460 = vpop.f32.mrf.mxu0
    %v5461 = vadd.f32 %v5418, %v5460
    %5462 = vdwg.mxu0
    %5463 = vmatprep.subr.bf16.mxu0 %v3734
    %5464 = vmatpush1.bf16.msra.mxu0 %v3733
    %5465 = vmatprep.subr.bf16.mxu0 %v3728
    %5466 = vmatpush1.bf16.msra.mxu0 %v3727
    %5467 = vmatprep.subr.bf16.mxu0 %v3722
    %5468 = vmatpush1.bf16.msra.mxu0 %v3721
    %5469 = vmatprep.subr.bf16.mxu0 %v3716
    %5470 = vmatpush1.bf16.msra.mxu0 %v3715
    %5471 = vmatprep.subr.bf16.mxu0 %v3710
    %5472 = vmatpush1.bf16.msra.mxu0 %v3709
    %5473 = vmatprep.subr.bf16.mxu0 %v3704
    %5474 = vmatpush1.bf16.msra.mxu0 %v3703
    %5475 = vmatprep.subr.bf16.mxu0 %v3698
    %5476 = vmatpush1.bf16.msra.mxu0 %v3697
    %5477 = vmatprep.subr.bf16.mxu0 %v3692
    %5478 = vmatpush1.bf16.msra.mxu0 %v3691
    %5479 = vmatprep.subr.bf16.mxu0 %v3782
    %5480 = vmatpush2.bf16.msra.mxu0 %v3781
    %5481 = vmatprep.subr.bf16.mxu0 %v3776
    %5482 = vmatpush2.bf16.msra.mxu0 %v3775
    %5483 = vmatprep.subr.bf16.mxu0 %v3770
    %5484 = vmatpush2.bf16.msra.mxu0 %v3769
    %5485 = vmatprep.subr.bf16.mxu0 %v3764
    %5486 = vmatpush2.bf16.msra.mxu0 %v3763
    %5487 = vmatprep.subr.bf16.mxu0 %v3758
    %5488 = vmatpush2.bf16.msra.mxu0 %v3757
    %5489 = vmatprep.subr.bf16.mxu0 %v3752
    %5490 = vmatpush2.bf16.msra.mxu0 %v3751
    %5491 = vmatprep.subr.bf16.mxu0 %v3746
    %5492 = vmatpush2.bf16.msra.mxu0 %v3745
    %5493 = vmatprep.subr.bf16.mxu0 %v3740
    %5494 = vmatpush2.bf16.msra.mxu0 %v3739
    %5495 = vmatprep.mubr.bf16.mxu0 %v1166
    %5496 = vmatmul.mubr.bf16.gmra.mxu0 %v1165
    %v5497 = vpop.f32.mrf.mxu0
    %v5498 = vadd.f32 %v5455, %v5497
    %v5499 = vpop.f32.mrf.mxu0
    %v5500 = vadd.f32 %v5457, %v5499
    %v5501 = vpop.f32.mrf.mxu0
    %v5502 = vadd.f32 %v5459, %v5501
    %v5503 = vpop.f32.mrf.mxu0
    %v5504 = vadd.f32 %v5461, %v5503
    %5505 = vdwg.mxu0
    %5506 = vmatprep.subr.bf16.mxu0 %v3830
    %5507 = vmatpush1.bf16.msra.mxu0 %v3829
    %5508 = vmatprep.subr.bf16.mxu0 %v3824
    %5509 = vmatpush1.bf16.msra.mxu0 %v3823
    %5510 = vmatprep.subr.bf16.mxu0 %v3818
    %5511 = vmatpush1.bf16.msra.mxu0 %v3817
    %5512 = vmatprep.subr.bf16.mxu0 %v3812
    %5513 = vmatpush1.bf16.msra.mxu0 %v3811
    %5514 = vmatprep.subr.bf16.mxu0 %v3806
    %5515 = vmatpush1.bf16.msra.mxu0 %v3805
    %5516 = vmatprep.subr.bf16.mxu0 %v3800
    %5517 = vmatpush1.bf16.msra.mxu0 %v3799
    %5518 = vmatprep.subr.bf16.mxu0 %v3794
    %5519 = vmatpush1.bf16.msra.mxu0 %v3793
    %5520 = vmatprep.subr.bf16.mxu0 %v3788
    %5521 = vmatpush1.bf16.msra.mxu0 %v3787
    %5522 = vmatprep.subr.bf16.mxu0 %v3878
    %5523 = vmatpush2.bf16.msra.mxu0 %v3877
    %5524 = vmatprep.subr.bf16.mxu0 %v3872
    %5525 = vmatpush2.bf16.msra.mxu0 %v3871
    %5526 = vmatprep.subr.bf16.mxu0 %v3866
    %5527 = vmatpush2.bf16.msra.mxu0 %v3865
    %5528 = vmatprep.subr.bf16.mxu0 %v3860
    %5529 = vmatpush2.bf16.msra.mxu0 %v3859
    %5530 = vmatprep.subr.bf16.mxu0 %v3854
    %5531 = vmatpush2.bf16.msra.mxu0 %v3853
    %5532 = vmatprep.subr.bf16.mxu0 %v3848
    %5533 = vmatpush2.bf16.msra.mxu0 %v3847
    %5534 = vmatprep.subr.bf16.mxu0 %v3842
    %5535 = vmatpush2.bf16.msra.mxu0 %v3841
    %5536 = vmatprep.subr.bf16.mxu0 %v3836
    %5537 = vmatpush2.bf16.msra.mxu0 %v3835
    %5538 = vmatprep.mubr.bf16.mxu0 %v1168
    %5539 = vmatmul.mubr.bf16.gmra.mxu0 %v1167
    %v5540 = vpop.f32.mrf.mxu0
    %v5541 = vadd.f32 %v5498, %v5540
    %v5542 = vpop.f32.mrf.mxu0
    %v5543 = vadd.f32 %v5500, %v5542
    %v5544 = vpop.f32.mrf.mxu0
    %v5545 = vadd.f32 %v5502, %v5544
    %v5546 = vpop.f32.mrf.mxu0
    %v5547 = vadd.f32 %v5504, %v5546
    %5548 = vdwg.mxu0
    %5549 = vmatprep.subr.bf16.mxu0 %v3926
    %5550 = vmatpush1.bf16.msra.mxu0 %v3925
    %5551 = vmatprep.subr.bf16.mxu0 %v3920
    %5552 = vmatpush1.bf16.msra.mxu0 %v3919
    %5553 = vmatprep.subr.bf16.mxu0 %v3914
    %5554 = vmatpush1.bf16.msra.mxu0 %v3913
    %5555 = vmatprep.subr.bf16.mxu0 %v3908
    %5556 = vmatpush1.bf16.msra.mxu0 %v3907
    %5557 = vmatprep.subr.bf16.mxu0 %v3902
    %5558 = vmatpush1.bf16.msra.mxu0 %v3901
    %5559 = vmatprep.subr.bf16.mxu0 %v3896
    %5560 = vmatpush1.bf16.msra.mxu0 %v3895
    %5561 = vmatprep.subr.bf16.mxu0 %v3890
    %5562 = vmatpush1.bf16.msra.mxu0 %v3889
    %5563 = vmatprep.subr.bf16.mxu0 %v3884
    %5564 = vmatpush1.bf16.msra.mxu0 %v3883
    %5565 = vmatprep.subr.bf16.mxu0 %v3974
    %5566 = vmatpush2.bf16.msra.mxu0 %v3973
    %5567 = vmatprep.subr.bf16.mxu0 %v3968
    %5568 = vmatpush2.bf16.msra.mxu0 %v3967
    %5569 = vmatprep.subr.bf16.mxu0 %v3962
    %5570 = vmatpush2.bf16.msra.mxu0 %v3961
    %5571 = vmatprep.subr.bf16.mxu0 %v3956
    %5572 = vmatpush2.bf16.msra.mxu0 %v3955
    %5573 = vmatprep.subr.bf16.mxu0 %v3950
    %5574 = vmatpush2.bf16.msra.mxu0 %v3949
    %5575 = vmatprep.subr.bf16.mxu0 %v3944
    %5576 = vmatpush2.bf16.msra.mxu0 %v3943
    %5577 = vmatprep.subr.bf16.mxu0 %v3938
    %5578 = vmatpush2.bf16.msra.mxu0 %v3937
    %5579 = vmatprep.subr.bf16.mxu0 %v3932
    %5580 = vmatpush2.bf16.msra.mxu0 %v3931
    %5581 = vmatprep.mubr.bf16.mxu0 %v1170
    %5582 = vmatmul.mubr.bf16.gmra.mxu0 %v1169
    %v5583 = vpop.f32.mrf.mxu0
    %v5584 = vadd.f32 %v5541, %v5583
    %v5585 = vpop.f32.mrf.mxu0
    %v5586 = vadd.f32 %v5543, %v5585
    %v5587 = vpop.f32.mrf.mxu0
    %v5588 = vadd.f32 %v5545, %v5587
    %v5589 = vpop.f32.mrf.mxu0
    %v5590 = vadd.f32 %v5547, %v5589
    %5591 = vdwg.mxu0
    %5592 = vmatprep.subr.bf16.mxu0 %v4022
    %5593 = vmatpush1.bf16.msra.mxu0 %v4021
    %5594 = vmatprep.subr.bf16.mxu0 %v4016
    %5595 = vmatpush1.bf16.msra.mxu0 %v4015
    %5596 = vmatprep.subr.bf16.mxu0 %v4010
    %5597 = vmatpush1.bf16.msra.mxu0 %v4009
    %5598 = vmatprep.subr.bf16.mxu0 %v4004
    %5599 = vmatpush1.bf16.msra.mxu0 %v4003
    %5600 = vmatprep.subr.bf16.mxu0 %v3998
    %5601 = vmatpush1.bf16.msra.mxu0 %v3997
    %5602 = vmatprep.subr.bf16.mxu0 %v3992
    %5603 = vmatpush1.bf16.msra.mxu0 %v3991
    %5604 = vmatprep.subr.bf16.mxu0 %v3986
    %5605 = vmatpush1.bf16.msra.mxu0 %v3985
    %5606 = vmatprep.subr.bf16.mxu0 %v3980
    %5607 = vmatpush1.bf16.msra.mxu0 %v3979
    %5608 = vmatprep.subr.bf16.mxu0 %v4070
    %5609 = vmatpush2.bf16.msra.mxu0 %v4069
    %5610 = vmatprep.subr.bf16.mxu0 %v4064
    %5611 = vmatpush2.bf16.msra.mxu0 %v4063
    %5612 = vmatprep.subr.bf16.mxu0 %v4058
    %5613 = vmatpush2.bf16.msra.mxu0 %v4057
    %5614 = vmatprep.subr.bf16.mxu0 %v4052
    %5615 = vmatpush2.bf16.msra.mxu0 %v4051
    %5616 = vmatprep.subr.bf16.mxu0 %v4046
    %5617 = vmatpush2.bf16.msra.mxu0 %v4045
    %5618 = vmatprep.subr.bf16.mxu0 %v4040
    %5619 = vmatpush2.bf16.msra.mxu0 %v4039
    %5620 = vmatprep.subr.bf16.mxu0 %v4034
    %5621 = vmatpush2.bf16.msra.mxu0 %v4033
    %5622 = vmatprep.subr.bf16.mxu0 %v4028
    %5623 = vmatpush2.bf16.msra.mxu0 %v4027
    %5624 = vmatprep.mubr.bf16.mxu0 %v1172
    %5625 = vmatmul.mubr.bf16.gmra.mxu0 %v1171
    %v5626 = vpop.f32.mrf.mxu0
    %v5627 = vadd.f32 %v5584, %v5626
    %v5628 = vpop.f32.mrf.mxu0
    %v5629 = vadd.f32 %v5586, %v5628
    %v5630 = vpop.f32.mrf.mxu0
    %v5631 = vadd.f32 %v5588, %v5630
    %v5632 = vpop.f32.mrf.mxu0
    %v5633 = vadd.f32 %v5590, %v5632
    %5634 = vdwg.mxu0
    %5635 = vmatprep.subr.bf16.mxu0 %v4118
    %5636 = vmatpush1.bf16.msra.mxu0 %v4117
    %5637 = vmatprep.subr.bf16.mxu0 %v4112
    %5638 = vmatpush1.bf16.msra.mxu0 %v4111
    %5639 = vmatprep.subr.bf16.mxu0 %v4106
    %5640 = vmatpush1.bf16.msra.mxu0 %v4105
    %5641 = vmatprep.subr.bf16.mxu0 %v4100
    %5642 = vmatpush1.bf16.msra.mxu0 %v4099
    %5643 = vmatprep.subr.bf16.mxu0 %v4094
    %5644 = vmatpush1.bf16.msra.mxu0 %v4093
    %5645 = vmatprep.subr.bf16.mxu0 %v4088
    %5646 = vmatpush1.bf16.msra.mxu0 %v4087
    %5647 = vmatprep.subr.bf16.mxu0 %v4082
    %5648 = vmatpush1.bf16.msra.mxu0 %v4081
    %5649 = vmatprep.subr.bf16.mxu0 %v4076
    %5650 = vmatpush1.bf16.msra.mxu0 %v4075
    %5651 = vmatprep.subr.bf16.mxu0 %v4166
    %5652 = vmatpush2.bf16.msra.mxu0 %v4165
    %5653 = vmatprep.subr.bf16.mxu0 %v4160
    %5654 = vmatpush2.bf16.msra.mxu0 %v4159
    %5655 = vmatprep.subr.bf16.mxu0 %v4154
    %5656 = vmatpush2.bf16.msra.mxu0 %v4153
    %5657 = vmatprep.subr.bf16.mxu0 %v4148
    %5658 = vmatpush2.bf16.msra.mxu0 %v4147
    %5659 = vmatprep.subr.bf16.mxu0 %v4142
    %5660 = vmatpush2.bf16.msra.mxu0 %v4141
    %5661 = vmatprep.subr.bf16.mxu0 %v4136
    %5662 = vmatpush2.bf16.msra.mxu0 %v4135
    %5663 = vmatprep.subr.bf16.mxu0 %v4130
    %5664 = vmatpush2.bf16.msra.mxu0 %v4129
    %5665 = vmatprep.subr.bf16.mxu0 %v4124
    %5666 = vmatpush2.bf16.msra.mxu0 %v4123
    %5667 = vmatprep.mubr.bf16.mxu0 %v1174
    %5668 = vmatmul.mubr.bf16.gmra.mxu0 %v1173
    %v5669 = vpop.f32.mrf.mxu0
    %v5670 = vadd.f32 %v5627, %v5669
    %v5671 = vpop.f32.mrf.mxu0
    %v5672 = vadd.f32 %v5629, %v5671
    %v5673 = vpop.f32.mrf.mxu0
    %v5674 = vadd.f32 %v5631, %v5673
    %v5675 = vpop.f32.mrf.mxu0
    %v5676 = vadd.f32 %v5633, %v5675
    %5677 = vdwg.mxu0
    %5678 = vmatprep.subr.bf16.mxu0 %v4214
    %5679 = vmatpush1.bf16.msra.mxu0 %v4213
    %5680 = vmatprep.subr.bf16.mxu0 %v4208
    %5681 = vmatpush1.bf16.msra.mxu0 %v4207
    %5682 = vmatprep.subr.bf16.mxu0 %v4202
    %5683 = vmatpush1.bf16.msra.mxu0 %v4201
    %5684 = vmatprep.subr.bf16.mxu0 %v4196
    %5685 = vmatpush1.bf16.msra.mxu0 %v4195
    %5686 = vmatprep.subr.bf16.mxu0 %v4190
    %5687 = vmatpush1.bf16.msra.mxu0 %v4189
    %5688 = vmatprep.subr.bf16.mxu0 %v4184
    %5689 = vmatpush1.bf16.msra.mxu0 %v4183
    %5690 = vmatprep.subr.bf16.mxu0 %v4178
    %5691 = vmatpush1.bf16.msra.mxu0 %v4177
    %5692 = vmatprep.subr.bf16.mxu0 %v4172
    %5693 = vmatpush1.bf16.msra.mxu0 %v4171
    %5694 = vmatprep.subr.bf16.mxu0 %v4262
    %5695 = vmatpush2.bf16.msra.mxu0 %v4261
    %5696 = vmatprep.subr.bf16.mxu0 %v4256
    %5697 = vmatpush2.bf16.msra.mxu0 %v4255
    %5698 = vmatprep.subr.bf16.mxu0 %v4250
    %5699 = vmatpush2.bf16.msra.mxu0 %v4249
    %5700 = vmatprep.subr.bf16.mxu0 %v4244
    %5701 = vmatpush2.bf16.msra.mxu0 %v4243
    %5702 = vmatprep.subr.bf16.mxu0 %v4238
    %5703 = vmatpush2.bf16.msra.mxu0 %v4237
    %5704 = vmatprep.subr.bf16.mxu0 %v4232
    %5705 = vmatpush2.bf16.msra.mxu0 %v4231
    %5706 = vmatprep.subr.bf16.mxu0 %v4226
    %5707 = vmatpush2.bf16.msra.mxu0 %v4225
    %5708 = vmatprep.subr.bf16.mxu0 %v4220
    %5709 = vmatpush2.bf16.msra.mxu0 %v4219
    %5710 = vmatprep.mubr.bf16.mxu0 %v1176
    %5711 = vmatmul.mubr.bf16.gmra.mxu0 %v1175
    %v5712 = vpop.f32.mrf.mxu0
    %v5713 = vadd.f32 %v5670, %v5712
    %v5714 = vpop.f32.mrf.mxu0
    %v5715 = vadd.f32 %v5672, %v5714
    %v5716 = vpop.f32.mrf.mxu0
    %v5717 = vadd.f32 %v5674, %v5716
    %v5718 = vpop.f32.mrf.mxu0
    %v5719 = vadd.f32 %v5676, %v5718
    %5720 = vdwg.mxu0
    %5721 = vmatprep.subr.bf16.mxu0 %v3544
    %5722 = vmatpush1.bf16.msra.mxu0 %v3543
    %5723 = vmatprep.subr.bf16.mxu0 %v3538
    %5724 = vmatpush1.bf16.msra.mxu0 %v3537
    %5725 = vmatprep.subr.bf16.mxu0 %v3532
    %5726 = vmatpush1.bf16.msra.mxu0 %v3531
    %5727 = vmatprep.subr.bf16.mxu0 %v3526
    %5728 = vmatpush1.bf16.msra.mxu0 %v3525
    %5729 = vmatprep.subr.bf16.mxu0 %v3520
    %5730 = vmatpush1.bf16.msra.mxu0 %v3519
    %5731 = vmatprep.subr.bf16.mxu0 %v3514
    %5732 = vmatpush1.bf16.msra.mxu0 %v3513
    %5733 = vmatprep.subr.bf16.mxu0 %v3508
    %5734 = vmatpush1.bf16.msra.mxu0 %v3507
    %5735 = vmatprep.subr.bf16.mxu0 %v3502
    %5736 = vmatpush1.bf16.msra.mxu0 %v3501
    %5737 = vmatprep.subr.bf16.mxu0 %v3592
    %5738 = vmatpush2.bf16.msra.mxu0 %v3591
    %5739 = vmatprep.subr.bf16.mxu0 %v3586
    %5740 = vmatpush2.bf16.msra.mxu0 %v3585
    %5741 = vmatprep.subr.bf16.mxu0 %v3580
    %5742 = vmatpush2.bf16.msra.mxu0 %v3579
    %5743 = vmatprep.subr.bf16.mxu0 %v3574
    %5744 = vmatpush2.bf16.msra.mxu0 %v3573
    %5745 = vmatprep.subr.bf16.mxu0 %v3568
    %5746 = vmatpush2.bf16.msra.mxu0 %v3567
    %5747 = vmatprep.subr.bf16.mxu0 %v3562
    %5748 = vmatpush2.bf16.msra.mxu0 %v3561
    %5749 = vmatprep.subr.bf16.mxu0 %v3556
    %5750 = vmatpush2.bf16.msra.mxu0 %v3555
    %5751 = vmatprep.subr.bf16.mxu0 %v3550
    %5752 = vmatpush2.bf16.msra.mxu0 %v3549
    %5753 = vmatprep.mubr.bf16.mxu0 %v1162
    %5754 = vmatmul.mubr.bf16.gmra.mxu0 %v1161
    %v5755 = vpop.f32.mrf.mxu0
    %v5756 = vadd.f32 %v1102, %v5755
    %v5757 = vpop.f32.mrf.mxu0
    %v5758 = vadd.f32 %v1106, %v5757
    %v5759 = vpop.f32.mrf.mxu0
    %v5760 = vadd.f32 %v1102, %v5759
    %v5761 = vpop.f32.mrf.mxu0
    %v5762 = vadd.f32 %v1106, %v5761
    %5763 = vdwg.mxu0
    %5764 = vmatprep.subr.bf16.mxu0 %v3640
    %5765 = vmatpush1.bf16.msra.mxu0 %v3639
    %5766 = vmatprep.subr.bf16.mxu0 %v3634
    %5767 = vmatpush1.bf16.msra.mxu0 %v3633
    %5768 = vmatprep.subr.bf16.mxu0 %v3628
    %5769 = vmatpush1.bf16.msra.mxu0 %v3627
    %5770 = vmatprep.subr.bf16.mxu0 %v3622
    %5771 = vmatpush1.bf16.msra.mxu0 %v3621
    %5772 = vmatprep.subr.bf16.mxu0 %v3616
    %5773 = vmatpush1.bf16.msra.mxu0 %v3615
    %5774 = vmatprep.subr.bf16.mxu0 %v3610
    %5775 = vmatpush1.bf16.msra.mxu0 %v3609
    %5776 = vmatprep.subr.bf16.mxu0 %v3604
    %5777 = vmatpush1.bf16.msra.mxu0 %v3603
    %5778 = vmatprep.subr.bf16.mxu0 %v3598
    %5779 = vmatpush1.bf16.msra.mxu0 %v3597
    %5780 = vmatprep.subr.bf16.mxu0 %v3688
    %5781 = vmatpush2.bf16.msra.mxu0 %v3687
    %5782 = vmatprep.subr.bf16.mxu0 %v3682
    %5783 = vmatpush2.bf16.msra.mxu0 %v3681
    %5784 = vmatprep.subr.bf16.mxu0 %v3676
    %5785 = vmatpush2.bf16.msra.mxu0 %v3675
    %5786 = vmatprep.subr.bf16.mxu0 %v3670
    %5787 = vmatpush2.bf16.msra.mxu0 %v3669
    %5788 = vmatprep.subr.bf16.mxu0 %v3664
    %5789 = vmatpush2.bf16.msra.mxu0 %v3663
    %5790 = vmatprep.subr.bf16.mxu0 %v3658
    %5791 = vmatpush2.bf16.msra.mxu0 %v3657
    %5792 = vmatprep.subr.bf16.mxu0 %v3652
    %5793 = vmatpush2.bf16.msra.mxu0 %v3651
    %5794 = vmatprep.subr.bf16.mxu0 %v3646
    %5795 = vmatpush2.bf16.msra.mxu0 %v3645
    %5796 = vmatprep.mubr.bf16.mxu0 %v1164
    %5797 = vmatmul.mubr.bf16.gmra.mxu0 %v1163
    %v5798 = vpop.f32.mrf.mxu0
    %v5799 = vadd.f32 %v5756, %v5798
    %v5800 = vpop.f32.mrf.mxu0
    %v5801 = vadd.f32 %v5758, %v5800
    %v5802 = vpop.f32.mrf.mxu0
    %v5803 = vadd.f32 %v5760, %v5802
    %v5804 = vpop.f32.mrf.mxu0
    %v5805 = vadd.f32 %v5762, %v5804
    %5806 = vdwg.mxu0
    %5807 = vmatprep.subr.bf16.mxu0 %v3736
    %5808 = vmatpush1.bf16.msra.mxu0 %v3735
    %5809 = vmatprep.subr.bf16.mxu0 %v3730
    %5810 = vmatpush1.bf16.msra.mxu0 %v3729
    %5811 = vmatprep.subr.bf16.mxu0 %v3724
    %5812 = vmatpush1.bf16.msra.mxu0 %v3723
    %5813 = vmatprep.subr.bf16.mxu0 %v3718
    %5814 = vmatpush1.bf16.msra.mxu0 %v3717
    %5815 = vmatprep.subr.bf16.mxu0 %v3712
    %5816 = vmatpush1.bf16.msra.mxu0 %v3711
    %5817 = vmatprep.subr.bf16.mxu0 %v3706
    %5818 = vmatpush1.bf16.msra.mxu0 %v3705
    %5819 = vmatprep.subr.bf16.mxu0 %v3700
    %5820 = vmatpush1.bf16.msra.mxu0 %v3699
    %5821 = vmatprep.subr.bf16.mxu0 %v3694
    %5822 = vmatpush1.bf16.msra.mxu0 %v3693
    %5823 = vmatprep.subr.bf16.mxu0 %v3784
    %5824 = vmatpush2.bf16.msra.mxu0 %v3783
    %5825 = vmatprep.subr.bf16.mxu0 %v3778
    %5826 = vmatpush2.bf16.msra.mxu0 %v3777
    %5827 = vmatprep.subr.bf16.mxu0 %v3772
    %5828 = vmatpush2.bf16.msra.mxu0 %v3771
    %5829 = vmatprep.subr.bf16.mxu0 %v3766
    %5830 = vmatpush2.bf16.msra.mxu0 %v3765
    %5831 = vmatprep.subr.bf16.mxu0 %v3760
    %5832 = vmatpush2.bf16.msra.mxu0 %v3759
    %5833 = vmatprep.subr.bf16.mxu0 %v3754
    %5834 = vmatpush2.bf16.msra.mxu0 %v3753
    %5835 = vmatprep.subr.bf16.mxu0 %v3748
    %5836 = vmatpush2.bf16.msra.mxu0 %v3747
    %5837 = vmatprep.subr.bf16.mxu0 %v3742
    %5838 = vmatpush2.bf16.msra.mxu0 %v3741
    %5839 = vmatprep.mubr.bf16.mxu0 %v1166
    %5840 = vmatmul.mubr.bf16.gmra.mxu0 %v1165
    %v5841 = vpop.f32.mrf.mxu0
    %v5842 = vadd.f32 %v5799, %v5841
    %v5843 = vpop.f32.mrf.mxu0
    %v5844 = vadd.f32 %v5801, %v5843
    %v5845 = vpop.f32.mrf.mxu0
    %v5846 = vadd.f32 %v5803, %v5845
    %v5847 = vpop.f32.mrf.mxu0
    %v5848 = vadd.f32 %v5805, %v5847
    %5849 = vdwg.mxu0
    %5850 = vmatprep.subr.bf16.mxu0 %v3832
    %5851 = vmatpush1.bf16.msra.mxu0 %v3831
    %5852 = vmatprep.subr.bf16.mxu0 %v3826
    %5853 = vmatpush1.bf16.msra.mxu0 %v3825
    %5854 = vmatprep.subr.bf16.mxu0 %v3820
    %5855 = vmatpush1.bf16.msra.mxu0 %v3819
    %5856 = vmatprep.subr.bf16.mxu0 %v3814
    %5857 = vmatpush1.bf16.msra.mxu0 %v3813
    %5858 = vmatprep.subr.bf16.mxu0 %v3808
    %5859 = vmatpush1.bf16.msra.mxu0 %v3807
    %5860 = vmatprep.subr.bf16.mxu0 %v3802
    %5861 = vmatpush1.bf16.msra.mxu0 %v3801
    %5862 = vmatprep.subr.bf16.mxu0 %v3796
    %5863 = vmatpush1.bf16.msra.mxu0 %v3795
    %5864 = vmatprep.subr.bf16.mxu0 %v3790
    %5865 = vmatpush1.bf16.msra.mxu0 %v3789
    %5866 = vmatprep.subr.bf16.mxu0 %v3880
    %5867 = vmatpush2.bf16.msra.mxu0 %v3879
    %5868 = vmatprep.subr.bf16.mxu0 %v3874
    %5869 = vmatpush2.bf16.msra.mxu0 %v3873
    %5870 = vmatprep.subr.bf16.mxu0 %v3868
    %5871 = vmatpush2.bf16.msra.mxu0 %v3867
    %5872 = vmatprep.subr.bf16.mxu0 %v3862
    %5873 = vmatpush2.bf16.msra.mxu0 %v3861
    %5874 = vmatprep.subr.bf16.mxu0 %v3856
    %5875 = vmatpush2.bf16.msra.mxu0 %v3855
    %5876 = vmatprep.subr.bf16.mxu0 %v3850
    %5877 = vmatpush2.bf16.msra.mxu0 %v3849
    %5878 = vmatprep.subr.bf16.mxu0 %v3844
    %5879 = vmatpush2.bf16.msra.mxu0 %v3843
    %5880 = vmatprep.subr.bf16.mxu0 %v3838
    %5881 = vmatpush2.bf16.msra.mxu0 %v3837
    %5882 = vmatprep.mubr.bf16.mxu0 %v1168
    %5883 = vmatmul.mubr.bf16.gmra.mxu0 %v1167
    %v5884 = vpop.f32.mrf.mxu0
    %v5885 = vadd.f32 %v5842, %v5884
    %v5886 = vpop.f32.mrf.mxu0
    %v5887 = vadd.f32 %v5844, %v5886
    %v5888 = vpop.f32.mrf.mxu0
    %v5889 = vadd.f32 %v5846, %v5888
    %v5890 = vpop.f32.mrf.mxu0
    %v5891 = vadd.f32 %v5848, %v5890
    %5892 = vdwg.mxu0
    %5893 = vmatprep.subr.bf16.mxu0 %v3928
    %5894 = vmatpush1.bf16.msra.mxu0 %v3927
    %5895 = vmatprep.subr.bf16.mxu0 %v3922
    %5896 = vmatpush1.bf16.msra.mxu0 %v3921
    %5897 = vmatprep.subr.bf16.mxu0 %v3916
    %5898 = vmatpush1.bf16.msra.mxu0 %v3915
    %5899 = vmatprep.subr.bf16.mxu0 %v3910
    %5900 = vmatpush1.bf16.msra.mxu0 %v3909
    %5901 = vmatprep.subr.bf16.mxu0 %v3904
    %5902 = vmatpush1.bf16.msra.mxu0 %v3903
    %5903 = vmatprep.subr.bf16.mxu0 %v3898
    %5904 = vmatpush1.bf16.msra.mxu0 %v3897
    %5905 = vmatprep.subr.bf16.mxu0 %v3892
    %5906 = vmatpush1.bf16.msra.mxu0 %v3891
    %5907 = vmatprep.subr.bf16.mxu0 %v3886
    %5908 = vmatpush1.bf16.msra.mxu0 %v3885
    %5909 = vmatprep.subr.bf16.mxu0 %v3976
    %5910 = vmatpush2.bf16.msra.mxu0 %v3975
    %5911 = vmatprep.subr.bf16.mxu0 %v3970
    %5912 = vmatpush2.bf16.msra.mxu0 %v3969
    %5913 = vmatprep.subr.bf16.mxu0 %v3964
    %5914 = vmatpush2.bf16.msra.mxu0 %v3963
    %5915 = vmatprep.subr.bf16.mxu0 %v3958
    %5916 = vmatpush2.bf16.msra.mxu0 %v3957
    %5917 = vmatprep.subr.bf16.mxu0 %v3952
    %5918 = vmatpush2.bf16.msra.mxu0 %v3951
    %5919 = vmatprep.subr.bf16.mxu0 %v3946
    %5920 = vmatpush2.bf16.msra.mxu0 %v3945
    %5921 = vmatprep.subr.bf16.mxu0 %v3940
    %5922 = vmatpush2.bf16.msra.mxu0 %v3939
    %5923 = vmatprep.subr.bf16.mxu0 %v3934
    %5924 = vmatpush2.bf16.msra.mxu0 %v3933
    %5925 = vmatprep.mubr.bf16.mxu0 %v1170
    %5926 = vmatmul.mubr.bf16.gmra.mxu0 %v1169
    %v5927 = vpop.f32.mrf.mxu0
    %v5928 = vadd.f32 %v5885, %v5927
    %v5929 = vpop.f32.mrf.mxu0
    %v5930 = vadd.f32 %v5887, %v5929
    %v5931 = vpop.f32.mrf.mxu0
    %v5932 = vadd.f32 %v5889, %v5931
    %v5933 = vpop.f32.mrf.mxu0
    %v5934 = vadd.f32 %v5891, %v5933
    %5935 = vdwg.mxu0
    %5936 = vmatprep.subr.bf16.mxu0 %v4024
    %5937 = vmatpush1.bf16.msra.mxu0 %v4023
    %5938 = vmatprep.subr.bf16.mxu0 %v4018
    %5939 = vmatpush1.bf16.msra.mxu0 %v4017
    %5940 = vmatprep.subr.bf16.mxu0 %v4012
    %5941 = vmatpush1.bf16.msra.mxu0 %v4011
    %5942 = vmatprep.subr.bf16.mxu0 %v4006
    %5943 = vmatpush1.bf16.msra.mxu0 %v4005
    %5944 = vmatprep.subr.bf16.mxu0 %v4000
    %5945 = vmatpush1.bf16.msra.mxu0 %v3999
    %5946 = vmatprep.subr.bf16.mxu0 %v3994
    %5947 = vmatpush1.bf16.msra.mxu0 %v3993
    %5948 = vmatprep.subr.bf16.mxu0 %v3988
    %5949 = vmatpush1.bf16.msra.mxu0 %v3987
    %5950 = vmatprep.subr.bf16.mxu0 %v3982
    %5951 = vmatpush1.bf16.msra.mxu0 %v3981
    %5952 = vmatprep.subr.bf16.mxu0 %v4072
    %5953 = vmatpush2.bf16.msra.mxu0 %v4071
    %5954 = vmatprep.subr.bf16.mxu0 %v4066
    %5955 = vmatpush2.bf16.msra.mxu0 %v4065
    %5956 = vmatprep.subr.bf16.mxu0 %v4060
    %5957 = vmatpush2.bf16.msra.mxu0 %v4059
    %5958 = vmatprep.subr.bf16.mxu0 %v4054
    %5959 = vmatpush2.bf16.msra.mxu0 %v4053
    %5960 = vmatprep.subr.bf16.mxu0 %v4048
    %5961 = vmatpush2.bf16.msra.mxu0 %v4047
    %5962 = vmatprep.subr.bf16.mxu0 %v4042
    %5963 = vmatpush2.bf16.msra.mxu0 %v4041
    %5964 = vmatprep.subr.bf16.mxu0 %v4036
    %5965 = vmatpush2.bf16.msra.mxu0 %v4035
    %5966 = vmatprep.subr.bf16.mxu0 %v4030
    %5967 = vmatpush2.bf16.msra.mxu0 %v4029
    %5968 = vmatprep.mubr.bf16.mxu0 %v1172
    %5969 = vmatmul.mubr.bf16.gmra.mxu0 %v1171
    %v5970 = vpop.f32.mrf.mxu0
    %v5971 = vadd.f32 %v5928, %v5970
    %v5972 = vpop.f32.mrf.mxu0
    %v5973 = vadd.f32 %v5930, %v5972
    %v5974 = vpop.f32.mrf.mxu0
    %v5975 = vadd.f32 %v5932, %v5974
    %v5976 = vpop.f32.mrf.mxu0
    %v5977 = vadd.f32 %v5934, %v5976
    %5978 = vdwg.mxu0
    %5979 = vmatprep.subr.bf16.mxu0 %v4120
    %5980 = vmatpush1.bf16.msra.mxu0 %v4119
    %5981 = vmatprep.subr.bf16.mxu0 %v4114
    %5982 = vmatpush1.bf16.msra.mxu0 %v4113
    %5983 = vmatprep.subr.bf16.mxu0 %v4108
    %5984 = vmatpush1.bf16.msra.mxu0 %v4107
    %5985 = vmatprep.subr.bf16.mxu0 %v4102
    %5986 = vmatpush1.bf16.msra.mxu0 %v4101
    %5987 = vmatprep.subr.bf16.mxu0 %v4096
    %5988 = vmatpush1.bf16.msra.mxu0 %v4095
    %5989 = vmatprep.subr.bf16.mxu0 %v4090
    %5990 = vmatpush1.bf16.msra.mxu0 %v4089
    %5991 = vmatprep.subr.bf16.mxu0 %v4084
    %5992 = vmatpush1.bf16.msra.mxu0 %v4083
    %5993 = vmatprep.subr.bf16.mxu0 %v4078
    %5994 = vmatpush1.bf16.msra.mxu0 %v4077
    %5995 = vmatprep.subr.bf16.mxu0 %v4168
    %5996 = vmatpush2.bf16.msra.mxu0 %v4167
    %5997 = vmatprep.subr.bf16.mxu0 %v4162
    %5998 = vmatpush2.bf16.msra.mxu0 %v4161
    %5999 = vmatprep.subr.bf16.mxu0 %v4156
    %6000 = vmatpush2.bf16.msra.mxu0 %v4155
    %6001 = vmatprep.subr.bf16.mxu0 %v4150
    %6002 = vmatpush2.bf16.msra.mxu0 %v4149
    %6003 = vmatprep.subr.bf16.mxu0 %v4144
    %6004 = vmatpush2.bf16.msra.mxu0 %v4143
    %6005 = vmatprep.subr.bf16.mxu0 %v4138
    %6006 = vmatpush2.bf16.msra.mxu0 %v4137
    %6007 = vmatprep.subr.bf16.mxu0 %v4132
    %6008 = vmatpush2.bf16.msra.mxu0 %v4131
    %6009 = vmatprep.subr.bf16.mxu0 %v4126
    %6010 = vmatpush2.bf16.msra.mxu0 %v4125
    %6011 = vmatprep.mubr.bf16.mxu0 %v1174
    %6012 = vmatmul.mubr.bf16.gmra.mxu0 %v1173
    %v6013 = vpop.f32.mrf.mxu0
    %v6014 = vadd.f32 %v5971, %v6013
    %v6015 = vpop.f32.mrf.mxu0
    %v6016 = vadd.f32 %v5973, %v6015
    %v6017 = vpop.f32.mrf.mxu0
    %v6018 = vadd.f32 %v5975, %v6017
    %v6019 = vpop.f32.mrf.mxu0
    %v6020 = vadd.f32 %v5977, %v6019
    %6021 = vdwg.mxu0
    %6022 = vmatprep.subr.bf16.mxu0 %v4216
    %6023 = vmatpush1.bf16.msra.mxu0 %v4215
    %6024 = vmatprep.subr.bf16.mxu0 %v4210
    %6025 = vmatpush1.bf16.msra.mxu0 %v4209
    %6026 = vmatprep.subr.bf16.mxu0 %v4204
    %6027 = vmatpush1.bf16.msra.mxu0 %v4203
    %6028 = vmatprep.subr.bf16.mxu0 %v4198
    %6029 = vmatpush1.bf16.msra.mxu0 %v4197
    %6030 = vmatprep.subr.bf16.mxu0 %v4192
    %6031 = vmatpush1.bf16.msra.mxu0 %v4191
    %6032 = vmatprep.subr.bf16.mxu0 %v4186
    %6033 = vmatpush1.bf16.msra.mxu0 %v4185
    %6034 = vmatprep.subr.bf16.mxu0 %v4180
    %6035 = vmatpush1.bf16.msra.mxu0 %v4179
    %6036 = vmatprep.subr.bf16.mxu0 %v4174
    %6037 = vmatpush1.bf16.msra.mxu0 %v4173
    %6038 = vmatprep.subr.bf16.mxu0 %v4264
    %6039 = vmatpush2.bf16.msra.mxu0 %v4263
    %6040 = vmatprep.subr.bf16.mxu0 %v4258
    %6041 = vmatpush2.bf16.msra.mxu0 %v4257
    %6042 = vmatprep.subr.bf16.mxu0 %v4252
    %6043 = vmatpush2.bf16.msra.mxu0 %v4251
    %6044 = vmatprep.subr.bf16.mxu0 %v4246
    %6045 = vmatpush2.bf16.msra.mxu0 %v4245
    %6046 = vmatprep.subr.bf16.mxu0 %v4240
    %6047 = vmatpush2.bf16.msra.mxu0 %v4239
    %6048 = vmatprep.subr.bf16.mxu0 %v4234
    %6049 = vmatpush2.bf16.msra.mxu0 %v4233
    %6050 = vmatprep.subr.bf16.mxu0 %v4228
    %6051 = vmatpush2.bf16.msra.mxu0 %v4227
    %6052 = vmatprep.subr.bf16.mxu0 %v4222
    %6053 = vmatpush2.bf16.msra.mxu0 %v4221
    %6054 = vmatprep.mubr.bf16.mxu0 %v1176
    %6055 = vmatmul.mubr.bf16.gmra.mxu0 %v1175
    %v6056 = vpop.f32.mrf.mxu0
    %v6057 = vadd.f32 %v6014, %v6056
    %v6058 = vpop.f32.mrf.mxu0
    %v6059 = vadd.f32 %v6016, %v6058
    %v6060 = vpop.f32.mrf.mxu0
    %v6061 = vadd.f32 %v6018, %v6060
    %v6062 = vpop.f32.mrf.mxu0
    %v6063 = vadd.f32 %v6020, %v6062
    %6064 = vdwg.mxu0
    %v6065 = vmax.f32 %v5713, 0.0
    %v6066 = vmax.f32 %v5715, 0.0
    %v6067 = vmax.f32 %v6057, 0.0
    %v6068 = vmax.f32 %v6059, 0.0
    %v6069 = vmax.f32 %v5717, 0.0
    %v6070 = vmax.f32 %v5719, 0.0
    %v6071 = vmax.f32 %v6061, 0.0
    %v6072 = vmax.f32 %v6063, 0.0
    %v6073 = vpack.c.bf16 %v6069, %v6065
    %v6074 = vpack.c.bf16 %v6070, %v6066
    %v6075 = vpack.c.bf16 %v6071, %v6067
    %v6076 = vpack.c.bf16 %v6072, %v6068
    %v6077 = vld [vmem:[#allocation7] sm:$0xff]
    %v6078 = vld [vmem:[#allocation7 + $0x8] sm:$0xff]
    %v6079 = vld [vmem:[#allocation7 + $0x10] sm:$0xff]
    %v6080 = vld [vmem:[#allocation7 + $0x18] sm:$0xff]
    %v6081 = vld [vmem:[#allocation7 + $0x20] sm:$0xff]
    %v6082 = vld [vmem:[#allocation7 + $0x28] sm:$0xff]
    %v6083 = vld [vmem:[#allocation7 + $0x30] sm:$0xff]
    %v6084 = vld [vmem:[#allocation7 + $0x38] sm:$0xff]
    %v6085 = vld [vmem:[#allocation7 + $0x40] sm:$0xff]
    %v6086 = vld [vmem:[#allocation7 + $0x48] sm:$0xff]
    %v6087 = vld [vmem:[#allocation7 + $0x50] sm:$0xff]
    %v6088 = vld [vmem:[#allocation7 + $0x58] sm:$0xff]
    %v6089 = vld [vmem:[#allocation7 + $0x60] sm:$0xff]
    %v6090 = vld [vmem:[#allocation7 + $0x68] sm:$0xff]
    %v6091 = vld [vmem:[#allocation7 + $0x70] sm:$0xff]
    %v6092 = vld [vmem:[#allocation7 + $0x78] sm:$0xff]
    %v6093 = vld [vmem:[#allocation7 + $0x80] sm:$0xff]
    %v6094 = vld [vmem:[#allocation7 + $0x88] sm:$0xff]
    %v6095 = vld [vmem:[#allocation7 + $0x90] sm:$0xff]
    %v6096 = vld [vmem:[#allocation7 + $0x98] sm:$0xff]
    %v6097 = vld [vmem:[#allocation7 + $0xa0] sm:$0xff]
    %v6098 = vld [vmem:[#allocation7 + $0xa8] sm:$0xff]
    %v6099 = vld [vmem:[#allocation7 + $0xb0] sm:$0xff]
    %v6100 = vld [vmem:[#allocation7 + $0xb8] sm:$0xff]
    %v6101 = vld [vmem:[#allocation7 + $0xc0] sm:$0xff]
    %v6102 = vld [vmem:[#allocation7 + $0xc8] sm:$0xff]
    %v6103 = vld [vmem:[#allocation7 + $0xd0] sm:$0xff]
    %v6104 = vld [vmem:[#allocation7 + $0xd8] sm:$0xff]
    %v6105 = vld [vmem:[#allocation7 + $0xe0] sm:$0xff]
    %v6106 = vld [vmem:[#allocation7 + $0xe8] sm:$0xff]
    %v6107 = vld [vmem:[#allocation7 + $0xf0] sm:$0xff]
    %v6108 = vld [vmem:[#allocation7 + $0xf8] sm:$0xff]
    %v6109 = vld [vmem:[#allocation7 + $0x100] sm:$0xff]
    %v6110 = vld [vmem:[#allocation7 + $0x108] sm:$0xff]
    %v6111 = vld [vmem:[#allocation7 + $0x110] sm:$0xff]
    %v6112 = vld [vmem:[#allocation7 + $0x118] sm:$0xff]
    %v6113 = vld [vmem:[#allocation7 + $0x120] sm:$0xff]
    %v6114 = vld [vmem:[#allocation7 + $0x128] sm:$0xff]
    %v6115 = vld [vmem:[#allocation7 + $0x130] sm:$0xff]
    %v6116 = vld [vmem:[#allocation7 + $0x138] sm:$0xff]
    %v6117 = vld [vmem:[#allocation7 + $0x140] sm:$0xff]
    %v6118 = vld [vmem:[#allocation7 + $0x148] sm:$0xff]
    %v6119 = vld [vmem:[#allocation7 + $0x150] sm:$0xff]
    %v6120 = vld [vmem:[#allocation7 + $0x158] sm:$0xff]
    %v6121 = vld [vmem:[#allocation7 + $0x160] sm:$0xff]
    %v6122 = vld [vmem:[#allocation7 + $0x168] sm:$0xff]
    %v6123 = vld [vmem:[#allocation7 + $0x170] sm:$0xff]
    %v6124 = vld [vmem:[#allocation7 + $0x178] sm:$0xff]
    %v6125 = vld [vmem:[#allocation7 + $0x180] sm:$0xff]
    %v6126 = vld [vmem:[#allocation7 + $0x188] sm:$0xff]
    %v6127 = vld [vmem:[#allocation7 + $0x190] sm:$0xff]
    %v6128 = vld [vmem:[#allocation7 + $0x198] sm:$0xff]
    %v6129 = vld [vmem:[#allocation7 + $0x1a0] sm:$0xff]
    %v6130 = vld [vmem:[#allocation7 + $0x1a8] sm:$0xff]
    %v6131 = vld [vmem:[#allocation7 + $0x1b0] sm:$0xff]
    %v6132 = vld [vmem:[#allocation7 + $0x1b8] sm:$0xff]
    %v6133 = vld [vmem:[#allocation7 + $0x1c0] sm:$0xff]
    %v6134 = vld [vmem:[#allocation7 + $0x1c8] sm:$0xff]
    %v6135 = vld [vmem:[#allocation7 + $0x1d0] sm:$0xff]
    %v6136 = vld [vmem:[#allocation7 + $0x1d8] sm:$0xff]
    %v6137 = vld [vmem:[#allocation7 + $0x1e0] sm:$0xff]
    %v6138 = vld [vmem:[#allocation7 + $0x1e8] sm:$0xff]
    %v6139 = vld [vmem:[#allocation7 + $0x1f0] sm:$0xff]
    %v6140 = vld [vmem:[#allocation7 + $0x1f8] sm:$0xff]
    %v6141 = vld [vmem:[#allocation8] sm:$0x3]
    %v6143 = vlaneseq
    %v6144 = vshrl.u32 %v6143, 7
    %v6145 = vsub.s32 0, %v6144
    %v6146 = vrot.slane %v6141, %v6145
    %v6147 = vlaneseq
    %v6148 = vshrl.u32 %v6147, 7
    %v6149 = vsub.s32 1, %v6148
    %v6150 = vrot.slane %v6141, %v6149
    %v6217 = vunpack.c.l.b16 %v6077
    %v6218 = vunpack.c.h.b16 %v6077
    %v6219 = vunpack.c.l.b16 %v6078
    %v6220 = vunpack.c.h.b16 %v6078
    %v6221 = vunpack.c.l.b16 %v6079
    %v6222 = vunpack.c.h.b16 %v6079
    %v6223 = vunpack.c.l.b16 %v6080
    %v6224 = vunpack.c.h.b16 %v6080
    %v6225 = vunpack.c.l.b16 %v6081
    %v6226 = vunpack.c.h.b16 %v6081
    %v6227 = vunpack.c.l.b16 %v6082
    %v6228 = vunpack.c.h.b16 %v6082
    %v6229 = vunpack.c.l.b16 %v6083
    %v6230 = vunpack.c.h.b16 %v6083
    %v6231 = vunpack.c.l.b16 %v6084
    %v6232 = vunpack.c.h.b16 %v6084
    %v6233 = vunpack.c.l.b16 %v6085
    %v6234 = vunpack.c.h.b16 %v6085
    %v6235 = vunpack.c.l.b16 %v6086
    %v6236 = vunpack.c.h.b16 %v6086
    %v6237 = vunpack.c.l.b16 %v6087
    %v6238 = vunpack.c.h.b16 %v6087
    %v6239 = vunpack.c.l.b16 %v6088
    %v6240 = vunpack.c.h.b16 %v6088
    %v6241 = vunpack.c.l.b16 %v6089
    %v6242 = vunpack.c.h.b16 %v6089
    %v6243 = vunpack.c.l.b16 %v6090
    %v6244 = vunpack.c.h.b16 %v6090
    %v6245 = vunpack.c.l.b16 %v6091
    %v6246 = vunpack.c.h.b16 %v6091
    %v6247 = vunpack.c.l.b16 %v6092
    %v6248 = vunpack.c.h.b16 %v6092
    %v6249 = vunpack.c.l.b16 %v6093
    %v6250 = vunpack.c.h.b16 %v6093
    %v6251 = vunpack.c.l.b16 %v6094
    %v6252 = vunpack.c.h.b16 %v6094
    %v6253 = vunpack.c.l.b16 %v6095
    %v6254 = vunpack.c.h.b16 %v6095
    %v6255 = vunpack.c.l.b16 %v6096
    %v6256 = vunpack.c.h.b16 %v6096
    %v6257 = vunpack.c.l.b16 %v6097
    %v6258 = vunpack.c.h.b16 %v6097
    %v6259 = vunpack.c.l.b16 %v6098
    %v6260 = vunpack.c.h.b16 %v6098
    %v6261 = vunpack.c.l.b16 %v6099
    %v6262 = vunpack.c.h.b16 %v6099
    %v6263 = vunpack.c.l.b16 %v6100
    %v6264 = vunpack.c.h.b16 %v6100
    %v6265 = vunpack.c.l.b16 %v6101
    %v6266 = vunpack.c.h.b16 %v6101
    %v6267 = vunpack.c.l.b16 %v6102
    %v6268 = vunpack.c.h.b16 %v6102
    %v6269 = vunpack.c.l.b16 %v6103
    %v6270 = vunpack.c.h.b16 %v6103
    %v6271 = vunpack.c.l.b16 %v6104
    %v6272 = vunpack.c.h.b16 %v6104
    %v6273 = vunpack.c.l.b16 %v6105
    %v6274 = vunpack.c.h.b16 %v6105
    %v6275 = vunpack.c.l.b16 %v6106
    %v6276 = vunpack.c.h.b16 %v6106
    %v6277 = vunpack.c.l.b16 %v6107
    %v6278 = vunpack.c.h.b16 %v6107
    %v6279 = vunpack.c.l.b16 %v6108
    %v6280 = vunpack.c.h.b16 %v6108
    %v6281 = vunpack.c.l.b16 %v6109
    %v6282 = vunpack.c.h.b16 %v6109
    %v6283 = vunpack.c.l.b16 %v6110
    %v6284 = vunpack.c.h.b16 %v6110
    %v6285 = vunpack.c.l.b16 %v6111
    %v6286 = vunpack.c.h.b16 %v6111
    %v6287 = vunpack.c.l.b16 %v6112
    %v6288 = vunpack.c.h.b16 %v6112
    %v6289 = vunpack.c.l.b16 %v6113
    %v6290 = vunpack.c.h.b16 %v6113
    %v6291 = vunpack.c.l.b16 %v6114
    %v6292 = vunpack.c.h.b16 %v6114
    %v6293 = vunpack.c.l.b16 %v6115
    %v6294 = vunpack.c.h.b16 %v6115
    %v6295 = vunpack.c.l.b16 %v6116
    %v6296 = vunpack.c.h.b16 %v6116
    %v6297 = vunpack.c.l.b16 %v6117
    %v6298 = vunpack.c.h.b16 %v6117
    %v6299 = vunpack.c.l.b16 %v6118
    %v6300 = vunpack.c.h.b16 %v6118
    %v6301 = vunpack.c.l.b16 %v6119
    %v6302 = vunpack.c.h.b16 %v6119
    %v6303 = vunpack.c.l.b16 %v6120
    %v6304 = vunpack.c.h.b16 %v6120
    %v6305 = vunpack.c.l.b16 %v6121
    %v6306 = vunpack.c.h.b16 %v6121
    %v6307 = vunpack.c.l.b16 %v6122
    %v6308 = vunpack.c.h.b16 %v6122
    %v6309 = vunpack.c.l.b16 %v6123
    %v6310 = vunpack.c.h.b16 %v6123
    %v6311 = vunpack.c.l.b16 %v6124
    %v6312 = vunpack.c.h.b16 %v6124
    %v6313 = vunpack.c.l.b16 %v6125
    %v6314 = vunpack.c.h.b16 %v6125
    %v6315 = vunpack.c.l.b16 %v6126
    %v6316 = vunpack.c.h.b16 %v6126
    %v6317 = vunpack.c.l.b16 %v6127
    %v6318 = vunpack.c.h.b16 %v6127
    %v6319 = vunpack.c.l.b16 %v6128
    %v6320 = vunpack.c.h.b16 %v6128
    %v6321 = vunpack.c.l.b16 %v6129
    %v6322 = vunpack.c.h.b16 %v6129
    %v6323 = vunpack.c.l.b16 %v6130
    %v6324 = vunpack.c.h.b16 %v6130
    %v6325 = vunpack.c.l.b16 %v6131
    %v6326 = vunpack.c.h.b16 %v6131
    %v6327 = vunpack.c.l.b16 %v6132
    %v6328 = vunpack.c.h.b16 %v6132
    %v6329 = vunpack.c.l.b16 %v6133
    %v6330 = vunpack.c.h.b16 %v6133
    %v6331 = vunpack.c.l.b16 %v6134
    %v6332 = vunpack.c.h.b16 %v6134
    %v6333 = vunpack.c.l.b16 %v6135
    %v6334 = vunpack.c.h.b16 %v6135
    %v6335 = vunpack.c.l.b16 %v6136
    %v6336 = vunpack.c.h.b16 %v6136
    %v6337 = vunpack.c.l.b16 %v6137
    %v6338 = vunpack.c.h.b16 %v6137
    %v6339 = vunpack.c.l.b16 %v6138
    %v6340 = vunpack.c.h.b16 %v6138
    %v6341 = vunpack.c.l.b16 %v6139
    %v6342 = vunpack.c.h.b16 %v6139
    %v6343 = vunpack.c.l.b16 %v6140
    %v6344 = vunpack.c.h.b16 %v6140
    %v6345 = vpack.c.b16 %v6219, %v6217
    %v6346 = vpack.c.b16 %v6220, %v6218
    %v6347 = vpack.c.b16 %v6223, %v6221
    %v6348 = vpack.c.b16 %v6224, %v6222
    %v6349 = vpack.c.b16 %v6227, %v6225
    %v6350 = vpack.c.b16 %v6228, %v6226
    %v6351 = vpack.c.b16 %v6231, %v6229
    %v6352 = vpack.c.b16 %v6232, %v6230
    %v6353 = vpack.c.b16 %v6235, %v6233
    %v6354 = vpack.c.b16 %v6236, %v6234
    %v6355 = vpack.c.b16 %v6239, %v6237
    %v6356 = vpack.c.b16 %v6240, %v6238
    %v6357 = vpack.c.b16 %v6243, %v6241
    %v6358 = vpack.c.b16 %v6244, %v6242
    %v6359 = vpack.c.b16 %v6247, %v6245
    %v6360 = vpack.c.b16 %v6248, %v6246
    %v6361 = vpack.c.b16 %v6251, %v6249
    %v6362 = vpack.c.b16 %v6252, %v6250
    %v6363 = vpack.c.b16 %v6255, %v6253
    %v6364 = vpack.c.b16 %v6256, %v6254
    %v6365 = vpack.c.b16 %v6259, %v6257
    %v6366 = vpack.c.b16 %v6260, %v6258
    %v6367 = vpack.c.b16 %v6263, %v6261
    %v6368 = vpack.c.b16 %v6264, %v6262
    %v6369 = vpack.c.b16 %v6267, %v6265
    %v6370 = vpack.c.b16 %v6268, %v6266
    %v6371 = vpack.c.b16 %v6271, %v6269
    %v6372 = vpack.c.b16 %v6272, %v6270
    %v6373 = vpack.c.b16 %v6275, %v6273
    %v6374 = vpack.c.b16 %v6276, %v6274
    %v6375 = vpack.c.b16 %v6279, %v6277
    %v6376 = vpack.c.b16 %v6280, %v6278
    %v6377 = vpack.c.b16 %v6283, %v6281
    %v6378 = vpack.c.b16 %v6284, %v6282
    %v6379 = vpack.c.b16 %v6287, %v6285
    %v6380 = vpack.c.b16 %v6288, %v6286
    %v6381 = vpack.c.b16 %v6291, %v6289
    %v6382 = vpack.c.b16 %v6292, %v6290
    %v6383 = vpack.c.b16 %v6295, %v6293
    %v6384 = vpack.c.b16 %v6296, %v6294
    %v6385 = vpack.c.b16 %v6299, %v6297
    %v6386 = vpack.c.b16 %v6300, %v6298
    %v6387 = vpack.c.b16 %v6303, %v6301
    %v6388 = vpack.c.b16 %v6304, %v6302
    %v6389 = vpack.c.b16 %v6307, %v6305
    %v6390 = vpack.c.b16 %v6308, %v6306
    %v6391 = vpack.c.b16 %v6311, %v6309
    %v6392 = vpack.c.b16 %v6312, %v6310
    %v6393 = vpack.c.b16 %v6315, %v6313
    %v6394 = vpack.c.b16 %v6316, %v6314
    %v6395 = vpack.c.b16 %v6319, %v6317
    %v6396 = vpack.c.b16 %v6320, %v6318
    %v6397 = vpack.c.b16 %v6323, %v6321
    %v6398 = vpack.c.b16 %v6324, %v6322
    %v6399 = vpack.c.b16 %v6327, %v6325
    %v6400 = vpack.c.b16 %v6328, %v6326
    %v6401 = vpack.c.b16 %v6331, %v6329
    %v6402 = vpack.c.b16 %v6332, %v6330
    %v6403 = vpack.c.b16 %v6335, %v6333
    %v6404 = vpack.c.b16 %v6336, %v6334
    %v6405 = vpack.c.b16 %v6339, %v6337
    %v6406 = vpack.c.b16 %v6340, %v6338
    %v6407 = vpack.c.b16 %v6343, %v6341
    %v6408 = vpack.c.b16 %v6344, %v6342
    %6473 = vmatprep.subr.bf16.mxu0 %v6360
    %6474 = vmatpush1.bf16.msra.mxu0 %v6359
    %6475 = vmatprep.subr.bf16.mxu0 %v6358
    %6476 = vmatpush1.bf16.msra.mxu0 %v6357
    %6477 = vmatprep.subr.bf16.mxu0 %v6356
    %6478 = vmatpush1.bf16.msra.mxu0 %v6355
    %6479 = vmatprep.subr.bf16.mxu0 %v6354
    %6480 = vmatpush1.bf16.msra.mxu0 %v6353
    %6481 = vmatprep.subr.bf16.mxu0 %v6352
    %6482 = vmatpush1.bf16.msra.mxu0 %v6351
    %6483 = vmatprep.subr.bf16.mxu0 %v6350
    %6484 = vmatpush1.bf16.msra.mxu0 %v6349
    %6485 = vmatprep.subr.bf16.mxu0 %v6348
    %6486 = vmatpush1.bf16.msra.mxu0 %v6347
    %6487 = vmatprep.subr.bf16.mxu0 %v6346
    %6488 = vmatpush1.bf16.msra.mxu0 %v6345
    %6489 = vmatprep.subr.bf16.mxu0 %v6376
    %6490 = vmatpush2.bf16.msra.mxu0 %v6375
    %6491 = vmatprep.subr.bf16.mxu0 %v6374
    %6492 = vmatpush2.bf16.msra.mxu0 %v6373
    %6493 = vmatprep.subr.bf16.mxu0 %v6372
    %6494 = vmatpush2.bf16.msra.mxu0 %v6371
    %6495 = vmatprep.subr.bf16.mxu0 %v6370
    %6496 = vmatpush2.bf16.msra.mxu0 %v6369
    %6497 = vmatprep.subr.bf16.mxu0 %v6368
    %6498 = vmatpush2.bf16.msra.mxu0 %v6367
    %6499 = vmatprep.subr.bf16.mxu0 %v6366
    %6500 = vmatpush2.bf16.msra.mxu0 %v6365
    %6501 = vmatprep.subr.bf16.mxu0 %v6364
    %6502 = vmatpush2.bf16.msra.mxu0 %v6363
    %6503 = vmatprep.subr.bf16.mxu0 %v6362
    %6504 = vmatpush2.bf16.msra.mxu0 %v6361
    %6505 = vmatprep.mubr.bf16.mxu0 %v6074
    %6506 = vmatmul.mubr.bf16.gmra.mxu0 %v6073
    %v6507 = vpop.f32.mrf.mxu0
    %v6508 = vadd.f32 %v6146, %v6507
    %v6509 = vpop.f32.mrf.mxu0
    %v6510 = vadd.f32 %v6150, %v6509
    %v6511 = vpop.f32.mrf.mxu0
    %v6512 = vadd.f32 %v6146, %v6511
    %v6513 = vpop.f32.mrf.mxu0
    %v6514 = vadd.f32 %v6150, %v6513
    %6515 = vdwg.mxu0
    %6516 = vmatprep.subr.bf16.mxu0 %v6392
    %6517 = vmatpush1.bf16.msra.mxu0 %v6391
    %6518 = vmatprep.subr.bf16.mxu0 %v6390
    %6519 = vmatpush1.bf16.msra.mxu0 %v6389
    %6520 = vmatprep.subr.bf16.mxu0 %v6388
    %6521 = vmatpush1.bf16.msra.mxu0 %v6387
    %6522 = vmatprep.subr.bf16.mxu0 %v6386
    %6523 = vmatpush1.bf16.msra.mxu0 %v6385
    %6524 = vmatprep.subr.bf16.mxu0 %v6384
    %6525 = vmatpush1.bf16.msra.mxu0 %v6383
    %6526 = vmatprep.subr.bf16.mxu0 %v6382
    %6527 = vmatpush1.bf16.msra.mxu0 %v6381
    %6528 = vmatprep.subr.bf16.mxu0 %v6380
    %6529 = vmatpush1.bf16.msra.mxu0 %v6379
    %6530 = vmatprep.subr.bf16.mxu0 %v6378
    %6531 = vmatpush1.bf16.msra.mxu0 %v6377
    %6532 = vmatprep.subr.bf16.mxu0 %v6408
    %6533 = vmatpush2.bf16.msra.mxu0 %v6407
    %6534 = vmatprep.subr.bf16.mxu0 %v6406
    %6535 = vmatpush2.bf16.msra.mxu0 %v6405
    %6536 = vmatprep.subr.bf16.mxu0 %v6404
    %6537 = vmatpush2.bf16.msra.mxu0 %v6403
    %6538 = vmatprep.subr.bf16.mxu0 %v6402
    %6539 = vmatpush2.bf16.msra.mxu0 %v6401
    %6540 = vmatprep.subr.bf16.mxu0 %v6400
    %6541 = vmatpush2.bf16.msra.mxu0 %v6399
    %6542 = vmatprep.subr.bf16.mxu0 %v6398
    %6543 = vmatpush2.bf16.msra.mxu0 %v6397
    %6544 = vmatprep.subr.bf16.mxu0 %v6396
    %6545 = vmatpush2.bf16.msra.mxu0 %v6395
    %6546 = vmatprep.subr.bf16.mxu0 %v6394
    %6547 = vmatpush2.bf16.msra.mxu0 %v6393
    %6548 = vmatprep.mubr.bf16.mxu0 %v6076
    %6549 = vmatmul.mubr.bf16.gmra.mxu0 %v6075
    %v6550 = vpop.f32.mrf.mxu0
    %v6551 = vadd.f32 %v6508, %v6550
    %v6552 = vpop.f32.mrf.mxu0
    %v6553 = vadd.f32 %v6510, %v6552
    %v6554 = vpop.f32.mrf.mxu0
    %v6555 = vadd.f32 %v6512, %v6554
    %v6556 = vpop.f32.mrf.mxu0
    %v6557 = vadd.f32 %v6514, %v6556
    %6558 = vdwg.mxu0
    %v6559 = vadd.f32 %v5369, %v6551
    %v6560 = vadd.f32 %v5371, %v6553
    %v6561 = vadd.f32 %v5373, %v6555
    %v6562 = vadd.f32 %v5375, %v6557
    %v6563 = vld [vmem:[%s1] sm:$0xf]
    %v6564 = vld [vmem:[%s1 + $0x4] sm:$0xf]
    %v6565 = vld [vmem:[#allocation10] sm:$0xff]
    %v6566 = vld [vmem:[#allocation10 + $0x8] sm:$0xff]
    %v6567 = vld [vmem:[#allocation11] sm:$0x3]
    %v6569 = vlaneseq
    %v6570 = vshrl.u32 %v6569, 7
    %v6571 = vsub.s32 0, %v6570
    %v6572 = vrot.slane %v6567, %v6571
    %v6573 = vlaneseq
    %v6574 = vshrl.u32 %v6573, 7
    %v6575 = vsub.s32 1, %v6574
    %v6576 = vrot.slane %v6567, %v6575
    %v6581 = vunpack.c.l.b16 %v6563
    %v6582 = vunpack.c.l.b16 %v6564
    %v6583 = vpack.c.b16 %v6582, %v6581
    %v6586 = vunpack.c.l.b16 %v6565
    %v6587 = vunpack.c.h.b16 %v6565
    %v6588 = vunpack.c.l.b16 %v6566
    %v6589 = vunpack.c.h.b16 %v6566
    %v6590 = vpack.c.b16 %v6588, %v6586
    %v6591 = vpack.c.b16 %v6589, %v6587
    %vm6594 = vcmask 130048
    %v6596 = vsel %vm6594, %v6583, 0
    %6598 = vmatprep.subr.bf16.mxu0 0
    %6599 = vmatpush1.bf16.msra.mxu0 0
    %6600 = vmatprep.subr.bf16.mxu0 0
    %6601 = vmatpush1.bf16.msra.mxu0 0
    %6602 = vmatprep.subr.bf16.mxu0 0
    %6603 = vmatpush1.bf16.msra.mxu0 0
    %6604 = vmatprep.subr.bf16.mxu0 0
    %6605 = vmatpush1.bf16.msra.mxu0 0
    %6606 = vmatprep.subr.bf16.mxu0 0
    %6607 = vmatpush1.bf16.msra.mxu0 0
    %6608 = vmatprep.subr.bf16.mxu0 0
    %6609 = vmatpush1.bf16.msra.mxu0 0
    %6610 = vmatprep.subr.bf16.mxu0 0
    %6611 = vmatpush1.bf16.msra.mxu0 0
    %6612 = vmatprep.subr.bf16.mxu0 %v6591
    %6613 = vmatpush1.bf16.msra.mxu0 %v6590
    %6614 = vmatprep.subr.bf16.mxu0 0
    %6615 = vmatpush2.bf16.msra.mxu0 0
    %6616 = vmatprep.subr.bf16.mxu0 0
    %6617 = vmatpush2.bf16.msra.mxu0 0
    %6618 = vmatprep.subr.bf16.mxu0 0
    %6619 = vmatpush2.bf16.msra.mxu0 0
    %6620 = vmatprep.subr.bf16.mxu0 0
    %6621 = vmatpush2.bf16.msra.mxu0 0
    %6622 = vmatprep.subr.bf16.mxu0 0
    %6623 = vmatpush2.bf16.msra.mxu0 0
    %6624 = vmatprep.subr.bf16.mxu0 0
    %6625 = vmatpush2.bf16.msra.mxu0 0
    %6626 = vmatprep.subr.bf16.mxu0 0
    %6627 = vmatpush2.bf16.msra.mxu0 0
    %6628 = vmatprep.subr.bf16.mxu0 0
    %6629 = vmatpush2.bf16.msra.mxu0 0
    %6630 = vmatprep.mubr.bf16.mxu0 0
    %6631 = vmatmul.mubr.bf16.gmra.mxu0 %v6596
    %v6632 = vpop.f32.mrf.mxu0
    %v6633 = vadd.f32 %v6572, %v6632
    %v6634 = vpop.f32.mrf.mxu0
    %v6635 = vadd.f32 %v6576, %v6634
    %v6636 = vpop.f32.mrf.mxu0
    %v6637 = vadd.f32 %v6572, %v6636
    %v6638 = vpop.f32.mrf.mxu0
    %v6639 = vadd.f32 %v6576, %v6638
    %6640 = vdwg.mxu0
    %v6641 = vadd.f32 %v6559, %v6633
    %v6642 = vadd.f32 %v6560, %v6635
    %v6643 = vadd.f32 %v6561, %v6637
    %v6644 = vadd.f32 %v6562, %v6639
    %v6645 = vld [vmem:[#allocation13] sm:$0x3]
    %v6646 = vld [vmem:[#allocation14] sm:$0x3]
    %v6647 = vadd.f32 %v6641, %v6642
    %6648 = vadd.xlane.f32.xlu0 %v6647
    %v6649 = vpop.xlane.xlu0 %6648
    %v6650 = vadd.f32 %v6643, %v6644
    %6651 = vadd.xlane.f32.xlu0 %v6650
    %v6652 = vpop.xlane.xlu0 %6651
    %v6653 = vrcp.pop 256.0
    %v6654 = vmul.f32 %v6649, %v6653
    %v6655 = vmul.f32 %v6652, %v6653
    %v6656 = vsub.f32 %v6641, %v6654
    %v6657 = vsub.f32 %v6642, %v6654
    %v6658 = vsub.f32 %v6643, %v6655
    %v6659 = vsub.f32 %v6644, %v6655
    %v6660 = vmul.f32 %v6656, %v6656
    %v6661 = vmul.f32 %v6657, %v6657
    %v6662 = vmul.f32 %v6658, %v6658
    %v6663 = vmul.f32 %v6659, %v6659
    %v6664 = vadd.f32 %v6660, %v6661
    %6665 = vadd.xlane.f32.xlu0 %v6664
    %v6666 = vpop.xlane.xlu0 %6665
    %v6667 = vadd.f32 %v6662, %v6663
    %6668 = vadd.xlane.f32.xlu0 %v6667
    %v6669 = vpop.xlane.xlu0 %6668
    %v6670 = vmul.f32 %v6666, %v6653
    %v6671 = vmul.f32 %v6669, %v6653
    %v6672 = vadd.f32 %v6670, 1e-05
    %v6673 = vadd.f32 %v6671, 1e-05
    %v6674 = vrsqrt.pop %v6672
    %v6675 = vrsqrt.pop %v6673
    %v6676 = vmul.f32 %v6656, %v6674
    %v6677 = vmul.f32 %v6657, %v6674
    %v6678 = vmul.f32 %v6658, %v6675
    %v6679 = vmul.f32 %v6659, %v6675
    %v6681 = vlaneseq
    %v6682 = vshrl.u32 %v6681, 7
    %v6683 = vsub.s32 0, %v6682
    %v6684 = vrot.slane %v6645, %v6683
    %v6685 = vlaneseq
    %v6686 = vshrl.u32 %v6685, 7
    %v6687 = vsub.s32 1, %v6686
    %v6688 = vrot.slane %v6645, %v6687
    %v6691 = vmul.f32 %v6676, %v6684
    %v6692 = vmul.f32 %v6677, %v6688
    %v6693 = vmul.f32 %v6678, %v6684
    %v6694 = vmul.f32 %v6679, %v6688
    %v6696 = vlaneseq
    %v6697 = vshrl.u32 %v6696, 7
    %v6698 = vsub.s32 0, %v6697
    %v6699 = vrot.slane %v6646, %v6698
    %v6700 = vlaneseq
    %v6701 = vshrl.u32 %v6700, 7
    %v6702 = vsub.s32 1, %v6701
    %v6703 = vrot.slane %v6646, %v6702
    %v6706 = vadd.f32 %v6691, %v6699
    %v6707 = vadd.f32 %v6692, %v6703
    %v6708 = vadd.f32 %v6693, %v6699
    %v6709 = vadd.f32 %v6694, %v6703
    %v6710 = vpack.c.bf16 %v6708, %v6706
    %v6711 = vpack.c.bf16 %v6709, %v6707
    %v6712 = vld [vmem:[#allocation16] sm:$0xff]
    %v6713 = vld [vmem:[#allocation16 + $0x8] sm:$0xff]
    %v6714 = vld [vmem:[#allocation16 + $0x10] sm:$0xff]
    %v6715 = vld [vmem:[#allocation16 + $0x18] sm:$0xff]
    %v6716 = vld [vmem:[#allocation16 + $0x20] sm:$0xff]
    %v6717 = vld [vmem:[#allocation16 + $0x28] sm:$0xff]
    %v6718 = vld [vmem:[#allocation16 + $0x30] sm:$0xff]
    %v6719 = vld [vmem:[#allocation16 + $0x38] sm:$0xff]
    %v6720 = vld [vmem:[#allocation16 + $0x40] sm:$0xff]
    %v6721 = vld [vmem:[#allocation16 + $0x48] sm:$0xff]
    %v6722 = vld [vmem:[#allocation16 + $0x50] sm:$0xff]
    %v6723 = vld [vmem:[#allocation16 + $0x58] sm:$0xff]
    %v6724 = vld [vmem:[#allocation16 + $0x60] sm:$0xff]
    %v6725 = vld [vmem:[#allocation16 + $0x68] sm:$0xff]
    %v6726 = vld [vmem:[#allocation16 + $0x70] sm:$0xff]
    %v6727 = vld [vmem:[#allocation16 + $0x78] sm:$0xff]
    %v6728 = vld [vmem:[#allocation16 + $0x80] sm:$0xff]
    %v6729 = vld [vmem:[#allocation16 + $0x88] sm:$0xff]
    %v6730 = vld [vmem:[#allocation16 + $0x90] sm:$0xff]
    %v6731 = vld [vmem:[#allocation16 + $0x98] sm:$0xff]
    %v6732 = vld [vmem:[#allocation16 + $0xa0] sm:$0xff]
    %v6733 = vld [vmem:[#allocation16 + $0xa8] sm:$0xff]
    %v6734 = vld [vmem:[#allocation16 + $0xb0] sm:$0xff]
    %v6735 = vld [vmem:[#allocation16 + $0xb8] sm:$0xff]
    %v6736 = vld [vmem:[#allocation16 + $0xc0] sm:$0xff]
    %v6737 = vld [vmem:[#allocation16 + $0xc8] sm:$0xff]
    %v6738 = vld [vmem:[#allocation16 + $0xd0] sm:$0xff]
    %v6739 = vld [vmem:[#allocation16 + $0xd8] sm:$0xff]
    %v6740 = vld [vmem:[#allocation16 + $0xe0] sm:$0xff]
    %v6741 = vld [vmem:[#allocation16 + $0xe8] sm:$0xff]
    %v6742 = vld [vmem:[#allocation16 + $0xf0] sm:$0xff]
    %v6743 = vld [vmem:[#allocation16 + $0xf8] sm:$0xff]
    %v6744 = vld [vmem:[#allocation16 + $0x100] sm:$0xff]
    %v6745 = vld [vmem:[#allocation16 + $0x108] sm:$0xff]
    %v6746 = vld [vmem:[#allocation16 + $0x110] sm:$0xff]
    %v6747 = vld [vmem:[#allocation16 + $0x118] sm:$0xff]
    %v6748 = vld [vmem:[#allocation16 + $0x120] sm:$0xff]
    %v6749 = vld [vmem:[#allocation16 + $0x128] sm:$0xff]
    %v6750 = vld [vmem:[#allocation16 + $0x130] sm:$0xff]
    %v6751 = vld [vmem:[#allocation16 + $0x138] sm:$0xff]
    %v6752 = vld [vmem:[#allocation16 + $0x140] sm:$0xff]
    %v6753 = vld [vmem:[#allocation16 + $0x148] sm:$0xff]
    %v6754 = vld [vmem:[#allocation16 + $0x150] sm:$0xff]
    %v6755 = vld [vmem:[#allocation16 + $0x158] sm:$0xff]
    %v6756 = vld [vmem:[#allocation16 + $0x160] sm:$0xff]
    %v6757 = vld [vmem:[#allocation16 + $0x168] sm:$0xff]
    %v6758 = vld [vmem:[#allocation16 + $0x170] sm:$0xff]
    %v6759 = vld [vmem:[#allocation16 + $0x178] sm:$0xff]
    %v6760 = vld [vmem:[#allocation16 + $0x180] sm:$0xff]
    %v6761 = vld [vmem:[#allocation16 + $0x188] sm:$0xff]
    %v6762 = vld [vmem:[#allocation16 + $0x190] sm:$0xff]
    %v6763 = vld [vmem:[#allocation16 + $0x198] sm:$0xff]
    %v6764 = vld [vmem:[#allocation16 + $0x1a0] sm:$0xff]
    %v6765 = vld [vmem:[#allocation16 + $0x1a8] sm:$0xff]
    %v6766 = vld [vmem:[#allocation16 + $0x1b0] sm:$0xff]
    %v6767 = vld [vmem:[#allocation16 + $0x1b8] sm:$0xff]
    %v6768 = vld [vmem:[#allocation16 + $0x1c0] sm:$0xff]
    %v6769 = vld [vmem:[#allocation16 + $0x1c8] sm:$0xff]
    %v6770 = vld [vmem:[#allocation16 + $0x1d0] sm:$0xff]
    %v6771 = vld [vmem:[#allocation16 + $0x1d8] sm:$0xff]
    %v6772 = vld [vmem:[#allocation16 + $0x1e0] sm:$0xff]
    %v6773 = vld [vmem:[#allocation16 + $0x1e8] sm:$0xff]
    %v6774 = vld [vmem:[#allocation16 + $0x1f0] sm:$0xff]
    %v6775 = vld [vmem:[#allocation16 + $0x1f8] sm:$0xff]
    %v6776 = vld [vmem:[#allocation16 + $0x200] sm:$0xff]
    %v6777 = vld [vmem:[#allocation16 + $0x208] sm:$0xff]
    %v6778 = vld [vmem:[#allocation16 + $0x210] sm:$0xff]
    %v6779 = vld [vmem:[#allocation16 + $0x218] sm:$0xff]
    %v6780 = vld [vmem:[#allocation16 + $0x220] sm:$0xff]
    %v6781 = vld [vmem:[#allocation16 + $0x228] sm:$0xff]
    %v6782 = vld [vmem:[#allocation16 + $0x230] sm:$0xff]
    %v6783 = vld [vmem:[#allocation16 + $0x238] sm:$0xff]
    %v6784 = vld [vmem:[#allocation16 + $0x240] sm:$0xff]
    %v6785 = vld [vmem:[#allocation16 + $0x248] sm:$0xff]
    %v6786 = vld [vmem:[#allocation16 + $0x250] sm:$0xff]
    %v6787 = vld [vmem:[#allocation16 + $0x258] sm:$0xff]
    %v6788 = vld [vmem:[#allocation16 + $0x260] sm:$0xff]
    %v6789 = vld [vmem:[#allocation16 + $0x268] sm:$0xff]
    %v6790 = vld [vmem:[#allocation16 + $0x270] sm:$0xff]
    %v6791 = vld [vmem:[#allocation16 + $0x278] sm:$0xff]
    %v6792 = vld [vmem:[#allocation16 + $0x280] sm:$0xff]
    %v6793 = vld [vmem:[#allocation16 + $0x288] sm:$0xff]
    %v6794 = vld [vmem:[#allocation16 + $0x290] sm:$0xff]
    %v6795 = vld [vmem:[#allocation16 + $0x298] sm:$0xff]
    %v6796 = vld [vmem:[#allocation16 + $0x2a0] sm:$0xff]
    %v6797 = vld [vmem:[#allocation16 + $0x2a8] sm:$0xff]
    %v6798 = vld [vmem:[#allocation16 + $0x2b0] sm:$0xff]
    %v6799 = vld [vmem:[#allocation16 + $0x2b8] sm:$0xff]
    %v6800 = vld [vmem:[#allocation16 + $0x2c0] sm:$0xff]
    %v6801 = vld [vmem:[#allocation16 + $0x2c8] sm:$0xff]
    %v6802 = vld [vmem:[#allocation16 + $0x2d0] sm:$0xff]
    %v6803 = vld [vmem:[#allocation16 + $0x2d8] sm:$0xff]
    %v6804 = vld [vmem:[#allocation16 + $0x2e0] sm:$0xff]
    %v6805 = vld [vmem:[#allocation16 + $0x2e8] sm:$0xff]
    %v6806 = vld [vmem:[#allocation16 + $0x2f0] sm:$0xff]
    %v6807 = vld [vmem:[#allocation16 + $0x2f8] sm:$0xff]
    %v6808 = vld [vmem:[#allocation17] sm:$0x3f]
    %v6810 = vlaneseq
    %v6811 = vshrl.u32 %v6810, 7
    %v6812 = vsub.s32 0, %v6811
    %v6813 = vrot.slane %v6808, %v6812
    %v6814 = vlaneseq
    %v6815 = vshrl.u32 %v6814, 7
    %v6816 = vsub.s32 1, %v6815
    %v6817 = vrot.slane %v6808, %v6816
    %v6818 = vlaneseq
    %v6819 = vshrl.u32 %v6818, 7
    %v6820 = vsub.s32 2, %v6819
    %v6821 = vrot.slane %v6808, %v6820
    %v6822 = vlaneseq
    %v6823 = vshrl.u32 %v6822, 7
    %v6824 = vsub.s32 3, %v6823
    %v6825 = vrot.slane %v6808, %v6824
    %v6826 = vlaneseq
    %v6827 = vshrl.u32 %v6826, 7
    %v6828 = vsub.s32 4, %v6827
    %v6829 = vrot.slane %v6808, %v6828
    %v6830 = vlaneseq
    %v6831 = vshrl.u32 %v6830, 7
    %v6832 = vsub.s32 5, %v6831
    %v6833 = vrot.slane %v6808, %v6832
    %v6936 = vunpack.c.l.b16 %v6712
    %v6937 = vunpack.c.h.b16 %v6712
    %v6938 = vunpack.c.l.b16 %v6713
    %v6939 = vunpack.c.h.b16 %v6713
    %v6940 = vunpack.c.l.b16 %v6714
    %v6941 = vunpack.c.h.b16 %v6714
    %v6942 = vunpack.c.l.b16 %v6715
    %v6943 = vunpack.c.h.b16 %v6715
    %v6944 = vunpack.c.l.b16 %v6716
    %v6945 = vunpack.c.h.b16 %v6716
    %v6946 = vunpack.c.l.b16 %v6717
    %v6947 = vunpack.c.h.b16 %v6717
    %v6948 = vunpack.c.l.b16 %v6718
    %v6949 = vunpack.c.h.b16 %v6718
    %v6950 = vunpack.c.l.b16 %v6719
    %v6951 = vunpack.c.h.b16 %v6719
    %v6952 = vunpack.c.l.b16 %v6720
    %v6953 = vunpack.c.h.b16 %v6720
    %v6954 = vunpack.c.l.b16 %v6721
    %v6955 = vunpack.c.h.b16 %v6721
    %v6956 = vunpack.c.l.b16 %v6722
    %v6957 = vunpack.c.h.b16 %v6722
    %v6958 = vunpack.c.l.b16 %v6723
    %v6959 = vunpack.c.h.b16 %v6723
    %v6960 = vunpack.c.l.b16 %v6724
    %v6961 = vunpack.c.h.b16 %v6724
    %v6962 = vunpack.c.l.b16 %v6725
    %v6963 = vunpack.c.h.b16 %v6725
    %v6964 = vunpack.c.l.b16 %v6726
    %v6965 = vunpack.c.h.b16 %v6726
    %v6966 = vunpack.c.l.b16 %v6727
    %v6967 = vunpack.c.h.b16 %v6727
    %v6968 = vunpack.c.l.b16 %v6728
    %v6969 = vunpack.c.h.b16 %v6728
    %v6970 = vunpack.c.l.b16 %v6729
    %v6971 = vunpack.c.h.b16 %v6729
    %v6972 = vunpack.c.l.b16 %v6730
    %v6973 = vunpack.c.h.b16 %v6730
    %v6974 = vunpack.c.l.b16 %v6731
    %v6975 = vunpack.c.h.b16 %v6731
    %v6976 = vunpack.c.l.b16 %v6732
    %v6977 = vunpack.c.h.b16 %v6732
    %v6978 = vunpack.c.l.b16 %v6733
    %v6979 = vunpack.c.h.b16 %v6733
    %v6980 = vunpack.c.l.b16 %v6734
    %v6981 = vunpack.c.h.b16 %v6734
    %v6982 = vunpack.c.l.b16 %v6735
    %v6983 = vunpack.c.h.b16 %v6735
    %v6984 = vunpack.c.l.b16 %v6736
    %v6985 = vunpack.c.h.b16 %v6736
    %v6986 = vunpack.c.l.b16 %v6737
    %v6987 = vunpack.c.h.b16 %v6737
    %v6988 = vunpack.c.l.b16 %v6738
    %v6989 = vunpack.c.h.b16 %v6738
    %v6990 = vunpack.c.l.b16 %v6739
    %v6991 = vunpack.c.h.b16 %v6739
    %v6992 = vunpack.c.l.b16 %v6740
    %v6993 = vunpack.c.h.b16 %v6740
    %v6994 = vunpack.c.l.b16 %v6741
    %v6995 = vunpack.c.h.b16 %v6741
    %v6996 = vunpack.c.l.b16 %v6742
    %v6997 = vunpack.c.h.b16 %v6742
    %v6998 = vunpack.c.l.b16 %v6743
    %v6999 = vunpack.c.h.b16 %v6743
    %v7000 = vunpack.c.l.b16 %v6744
    %v7001 = vunpack.c.h.b16 %v6744
    %v7002 = vunpack.c.l.b16 %v6745
    %v7003 = vunpack.c.h.b16 %v6745
    %v7004 = vunpack.c.l.b16 %v6746
    %v7005 = vunpack.c.h.b16 %v6746
    %v7006 = vunpack.c.l.b16 %v6747
    %v7007 = vunpack.c.h.b16 %v6747
    %v7008 = vunpack.c.l.b16 %v6748
    %v7009 = vunpack.c.h.b16 %v6748
    %v7010 = vunpack.c.l.b16 %v6749
    %v7011 = vunpack.c.h.b16 %v6749
    %v7012 = vunpack.c.l.b16 %v6750
    %v7013 = vunpack.c.h.b16 %v6750
    %v7014 = vunpack.c.l.b16 %v6751
    %v7015 = vunpack.c.h.b16 %v6751
    %v7016 = vunpack.c.l.b16 %v6752
    %v7017 = vunpack.c.h.b16 %v6752
    %v7018 = vunpack.c.l.b16 %v6753
    %v7019 = vunpack.c.h.b16 %v6753
    %v7020 = vunpack.c.l.b16 %v6754
    %v7021 = vunpack.c.h.b16 %v6754
    %v7022 = vunpack.c.l.b16 %v6755
    %v7023 = vunpack.c.h.b16 %v6755
    %v7024 = vunpack.c.l.b16 %v6756
    %v7025 = vunpack.c.h.b16 %v6756
    %v7026 = vunpack.c.l.b16 %v6757
    %v7027 = vunpack.c.h.b16 %v6757
    %v7028 = vunpack.c.l.b16 %v6758
    %v7029 = vunpack.c.h.b16 %v6758
    %v7030 = vunpack.c.l.b16 %v6759
    %v7031 = vunpack.c.h.b16 %v6759
    %v7032 = vunpack.c.l.b16 %v6760
    %v7033 = vunpack.c.h.b16 %v6760
    %v7034 = vunpack.c.l.b16 %v6761
    %v7035 = vunpack.c.h.b16 %v6761
    %v7036 = vunpack.c.l.b16 %v6762
    %v7037 = vunpack.c.h.b16 %v6762
    %v7038 = vunpack.c.l.b16 %v6763
    %v7039 = vunpack.c.h.b16 %v6763
    %v7040 = vunpack.c.l.b16 %v6764
    %v7041 = vunpack.c.h.b16 %v6764
    %v7042 = vunpack.c.l.b16 %v6765
    %v7043 = vunpack.c.h.b16 %v6765
    %v7044 = vunpack.c.l.b16 %v6766
    %v7045 = vunpack.c.h.b16 %v6766
    %v7046 = vunpack.c.l.b16 %v6767
    %v7047 = vunpack.c.h.b16 %v6767
    %v7048 = vunpack.c.l.b16 %v6768
    %v7049 = vunpack.c.h.b16 %v6768
    %v7050 = vunpack.c.l.b16 %v6769
    %v7051 = vunpack.c.h.b16 %v6769
    %v7052 = vunpack.c.l.b16 %v6770
    %v7053 = vunpack.c.h.b16 %v6770
    %v7054 = vunpack.c.l.b16 %v6771
    %v7055 = vunpack.c.h.b16 %v6771
    %v7056 = vunpack.c.l.b16 %v6772
    %v7057 = vunpack.c.h.b16 %v6772
    %v7058 = vunpack.c.l.b16 %v6773
    %v7059 = vunpack.c.h.b16 %v6773
    %v7060 = vunpack.c.l.b16 %v6774
    %v7061 = vunpack.c.h.b16 %v6774
    %v7062 = vunpack.c.l.b16 %v6775
    %v7063 = vunpack.c.h.b16 %v6775
    %v7064 = vunpack.c.l.b16 %v6776
    %v7065 = vunpack.c.h.b16 %v6776
    %v7066 = vunpack.c.l.b16 %v6777
    %v7067 = vunpack.c.h.b16 %v6777
    %v7068 = vunpack.c.l.b16 %v6778
    %v7069 = vunpack.c.h.b16 %v6778
    %v7070 = vunpack.c.l.b16 %v6779
    %v7071 = vunpack.c.h.b16 %v6779
    %v7072 = vunpack.c.l.b16 %v6780
    %v7073 = vunpack.c.h.b16 %v6780
    %v7074 = vunpack.c.l.b16 %v6781
    %v7075 = vunpack.c.h.b16 %v6781
    %v7076 = vunpack.c.l.b16 %v6782
    %v7077 = vunpack.c.h.b16 %v6782
    %v7078 = vunpack.c.l.b16 %v6783
    %v7079 = vunpack.c.h.b16 %v6783
    %v7080 = vunpack.c.l.b16 %v6784
    %v7081 = vunpack.c.h.b16 %v6784
    %v7082 = vunpack.c.l.b16 %v6785
    %v7083 = vunpack.c.h.b16 %v6785
    %v7084 = vunpack.c.l.b16 %v6786
    %v7085 = vunpack.c.h.b16 %v6786
    %v7086 = vunpack.c.l.b16 %v6787
    %v7087 = vunpack.c.h.b16 %v6787
    %v7088 = vunpack.c.l.b16 %v6788
    %v7089 = vunpack.c.h.b16 %v6788
    %v7090 = vunpack.c.l.b16 %v6789
    %v7091 = vunpack.c.h.b16 %v6789
    %v7092 = vunpack.c.l.b16 %v6790
    %v7093 = vunpack.c.h.b16 %v6790
    %v7094 = vunpack.c.l.b16 %v6791
    %v7095 = vunpack.c.h.b16 %v6791
    %v7096 = vunpack.c.l.b16 %v6792
    %v7097 = vunpack.c.h.b16 %v6792
    %v7098 = vunpack.c.l.b16 %v6793
    %v7099 = vunpack.c.h.b16 %v6793
    %v7100 = vunpack.c.l.b16 %v6794
    %v7101 = vunpack.c.h.b16 %v6794
    %v7102 = vunpack.c.l.b16 %v6795
    %v7103 = vunpack.c.h.b16 %v6795
    %v7104 = vunpack.c.l.b16 %v6796
    %v7105 = vunpack.c.h.b16 %v6796
    %v7106 = vunpack.c.l.b16 %v6797
    %v7107 = vunpack.c.h.b16 %v6797
    %v7108 = vunpack.c.l.b16 %v6798
    %v7109 = vunpack.c.h.b16 %v6798
    %v7110 = vunpack.c.l.b16 %v6799
    %v7111 = vunpack.c.h.b16 %v6799
    %v7112 = vunpack.c.l.b16 %v6800
    %v7113 = vunpack.c.h.b16 %v6800
    %v7114 = vunpack.c.l.b16 %v6801
    %v7115 = vunpack.c.h.b16 %v6801
    %v7116 = vunpack.c.l.b16 %v6802
    %v7117 = vunpack.c.h.b16 %v6802
    %v7118 = vunpack.c.l.b16 %v6803
    %v7119 = vunpack.c.h.b16 %v6803
    %v7120 = vunpack.c.l.b16 %v6804
    %v7121 = vunpack.c.h.b16 %v6804
    %v7122 = vunpack.c.l.b16 %v6805
    %v7123 = vunpack.c.h.b16 %v6805
    %v7124 = vunpack.c.l.b16 %v6806
    %v7125 = vunpack.c.h.b16 %v6806
    %v7126 = vunpack.c.l.b16 %v6807
    %v7127 = vunpack.c.h.b16 %v6807
    %v7128 = vpack.c.b16 %v6942, %v6936
    %v7129 = vpack.c.b16 %v6943, %v6937
    %v7130 = vpack.c.b16 %v6944, %v6938
    %v7131 = vpack.c.b16 %v6945, %v6939
    %v7132 = vpack.c.b16 %v6946, %v6940
    %v7133 = vpack.c.b16 %v6947, %v6941
    %v7134 = vpack.c.b16 %v6954, %v6948
    %v7135 = vpack.c.b16 %v6955, %v6949
    %v7136 = vpack.c.b16 %v6956, %v6950
    %v7137 = vpack.c.b16 %v6957, %v6951
    %v7138 = vpack.c.b16 %v6958, %v6952
    %v7139 = vpack.c.b16 %v6959, %v6953
    %v7140 = vpack.c.b16 %v6966, %v6960
    %v7141 = vpack.c.b16 %v6967, %v6961
    %v7142 = vpack.c.b16 %v6968, %v6962
    %v7143 = vpack.c.b16 %v6969, %v6963
    %v7144 = vpack.c.b16 %v6970, %v6964
    %v7145 = vpack.c.b16 %v6971, %v6965
    %v7146 = vpack.c.b16 %v6978, %v6972
    %v7147 = vpack.c.b16 %v6979, %v6973
    %v7148 = vpack.c.b16 %v6980, %v6974
    %v7149 = vpack.c.b16 %v6981, %v6975
    %v7150 = vpack.c.b16 %v6982, %v6976
    %v7151 = vpack.c.b16 %v6983, %v6977
    %v7152 = vpack.c.b16 %v6990, %v6984
    %v7153 = vpack.c.b16 %v6991, %v6985
    %v7154 = vpack.c.b16 %v6992, %v6986
    %v7155 = vpack.c.b16 %v6993, %v6987
    %v7156 = vpack.c.b16 %v6994, %v6988
    %v7157 = vpack.c.b16 %v6995, %v6989
    %v7158 = vpack.c.b16 %v7002, %v6996
    %v7159 = vpack.c.b16 %v7003, %v6997
    %v7160 = vpack.c.b16 %v7004, %v6998
    %v7161 = vpack.c.b16 %v7005, %v6999
    %v7162 = vpack.c.b16 %v7006, %v7000
    %v7163 = vpack.c.b16 %v7007, %v7001
    %v7164 = vpack.c.b16 %v7014, %v7008
    %v7165 = vpack.c.b16 %v7015, %v7009
    %v7166 = vpack.c.b16 %v7016, %v7010
    %v7167 = vpack.c.b16 %v7017, %v7011
    %v7168 = vpack.c.b16 %v7018, %v7012
    %v7169 = vpack.c.b16 %v7019, %v7013
    %v7170 = vpack.c.b16 %v7026, %v7020
    %v7171 = vpack.c.b16 %v7027, %v7021
    %v7172 = vpack.c.b16 %v7028, %v7022
    %v7173 = vpack.c.b16 %v7029, %v7023
    %v7174 = vpack.c.b16 %v7030, %v7024
    %v7175 = vpack.c.b16 %v7031, %v7025
    %v7176 = vpack.c.b16 %v7038, %v7032
    %v7177 = vpack.c.b16 %v7039, %v7033
    %v7178 = vpack.c.b16 %v7040, %v7034
    %v7179 = vpack.c.b16 %v7041, %v7035
    %v7180 = vpack.c.b16 %v7042, %v7036
    %v7181 = vpack.c.b16 %v7043, %v7037
    %v7182 = vpack.c.b16 %v7050, %v7044
    %v7183 = vpack.c.b16 %v7051, %v7045
    %v7184 = vpack.c.b16 %v7052, %v7046
    %v7185 = vpack.c.b16 %v7053, %v7047
    %v7186 = vpack.c.b16 %v7054, %v7048
    %v7187 = vpack.c.b16 %v7055, %v7049
    %v7188 = vpack.c.b16 %v7062, %v7056
    %v7189 = vpack.c.b16 %v7063, %v7057
    %v7190 = vpack.c.b16 %v7064, %v7058
    %v7191 = vpack.c.b16 %v7065, %v7059
    %v7192 = vpack.c.b16 %v7066, %v7060
    %v7193 = vpack.c.b16 %v7067, %v7061
    %v7194 = vpack.c.b16 %v7074, %v7068
    %v7195 = vpack.c.b16 %v7075, %v7069
    %v7196 = vpack.c.b16 %v7076, %v7070
    %v7197 = vpack.c.b16 %v7077, %v7071
    %v7198 = vpack.c.b16 %v7078, %v7072
    %v7199 = vpack.c.b16 %v7079, %v7073
    %v7200 = vpack.c.b16 %v7086, %v7080
    %v7201 = vpack.c.b16 %v7087, %v7081
    %v7202 = vpack.c.b16 %v7088, %v7082
    %v7203 = vpack.c.b16 %v7089, %v7083
    %v7204 = vpack.c.b16 %v7090, %v7084
    %v7205 = vpack.c.b16 %v7091, %v7085
    %v7206 = vpack.c.b16 %v7098, %v7092
    %v7207 = vpack.c.b16 %v7099, %v7093
    %v7208 = vpack.c.b16 %v7100, %v7094
    %v7209 = vpack.c.b16 %v7101, %v7095
    %v7210 = vpack.c.b16 %v7102, %v7096
    %v7211 = vpack.c.b16 %v7103, %v7097
    %v7212 = vpack.c.b16 %v7110, %v7104
    %v7213 = vpack.c.b16 %v7111, %v7105
    %v7214 = vpack.c.b16 %v7112, %v7106
    %v7215 = vpack.c.b16 %v7113, %v7107
    %v7216 = vpack.c.b16 %v7114, %v7108
    %v7217 = vpack.c.b16 %v7115, %v7109
    %v7218 = vpack.c.b16 %v7122, %v7116
    %v7219 = vpack.c.b16 %v7123, %v7117
    %v7220 = vpack.c.b16 %v7124, %v7118
    %v7221 = vpack.c.b16 %v7125, %v7119
    %v7222 = vpack.c.b16 %v7126, %v7120
    %v7223 = vpack.c.b16 %v7127, %v7121
    %7320 = vmatprep.subr.bf16.mxu0 %v7171
    %7321 = vmatpush1.bf16.msra.mxu0 %v7170
    %7322 = vmatprep.subr.bf16.mxu0 %v7165
    %7323 = vmatpush1.bf16.msra.mxu0 %v7164
    %7324 = vmatprep.subr.bf16.mxu0 %v7159
    %7325 = vmatpush1.bf16.msra.mxu0 %v7158
    %7326 = vmatprep.subr.bf16.mxu0 %v7153
    %7327 = vmatpush1.bf16.msra.mxu0 %v7152
    %7328 = vmatprep.subr.bf16.mxu0 %v7147
    %7329 = vmatpush1.bf16.msra.mxu0 %v7146
    %7330 = vmatprep.subr.bf16.mxu0 %v7141
    %7331 = vmatpush1.bf16.msra.mxu0 %v7140
    %7332 = vmatprep.subr.bf16.mxu0 %v7135
    %7333 = vmatpush1.bf16.msra.mxu0 %v7134
    %7334 = vmatprep.subr.bf16.mxu0 %v7129
    %7335 = vmatpush1.bf16.msra.mxu0 %v7128
    %7336 = vmatprep.subr.bf16.mxu0 %v7219
    %7337 = vmatpush2.bf16.msra.mxu0 %v7218
    %7338 = vmatprep.subr.bf16.mxu0 %v7213
    %7339 = vmatpush2.bf16.msra.mxu0 %v7212
    %7340 = vmatprep.subr.bf16.mxu0 %v7207
    %7341 = vmatpush2.bf16.msra.mxu0 %v7206
    %7342 = vmatprep.subr.bf16.mxu0 %v7201
    %7343 = vmatpush2.bf16.msra.mxu0 %v7200
    %7344 = vmatprep.subr.bf16.mxu0 %v7195
    %7345 = vmatpush2.bf16.msra.mxu0 %v7194
    %7346 = vmatprep.subr.bf16.mxu0 %v7189
    %7347 = vmatpush2.bf16.msra.mxu0 %v7188
    %7348 = vmatprep.subr.bf16.mxu0 %v7183
    %7349 = vmatpush2.bf16.msra.mxu0 %v7182
    %7350 = vmatprep.subr.bf16.mxu0 %v7177
    %7351 = vmatpush2.bf16.msra.mxu0 %v7176
    %7352 = vmatprep.mubr.bf16.mxu0 %v6711
    %7353 = vmatmul.mubr.bf16.gmra.mxu0 %v6710
    %v7354 = vpop.f32.mrf.mxu0
    %v7355 = vadd.f32 %v6813, %v7354
    %v7356 = vpop.f32.mrf.mxu0
    %v7357 = vadd.f32 %v6817, %v7356
    %v7358 = vpop.f32.mrf.mxu0
    %v7359 = vadd.f32 %v6813, %v7358
    %v7360 = vpop.f32.mrf.mxu0
    %v7361 = vadd.f32 %v6817, %v7360
    %7362 = vdwg.mxu0
    %7363 = vmatprep.subr.bf16.mxu0 %v7173
    %7364 = vmatpush1.bf16.msra.mxu0 %v7172
    %7365 = vmatprep.subr.bf16.mxu0 %v7167
    %7366 = vmatpush1.bf16.msra.mxu0 %v7166
    %7367 = vmatprep.subr.bf16.mxu0 %v7161
    %7368 = vmatpush1.bf16.msra.mxu0 %v7160
    %7369 = vmatprep.subr.bf16.mxu0 %v7155
    %7370 = vmatpush1.bf16.msra.mxu0 %v7154
    %7371 = vmatprep.subr.bf16.mxu0 %v7149
    %7372 = vmatpush1.bf16.msra.mxu0 %v7148
    %7373 = vmatprep.subr.bf16.mxu0 %v7143
    %7374 = vmatpush1.bf16.msra.mxu0 %v7142
    %7375 = vmatprep.subr.bf16.mxu0 %v7137
    %7376 = vmatpush1.bf16.msra.mxu0 %v7136
    %7377 = vmatprep.subr.bf16.mxu0 %v7131
    %7378 = vmatpush1.bf16.msra.mxu0 %v7130
    %7379 = vmatprep.subr.bf16.mxu0 %v7221
    %7380 = vmatpush2.bf16.msra.mxu0 %v7220
    %7381 = vmatprep.subr.bf16.mxu0 %v7215
    %7382 = vmatpush2.bf16.msra.mxu0 %v7214
    %7383 = vmatprep.subr.bf16.mxu0 %v7209
    %7384 = vmatpush2.bf16.msra.mxu0 %v7208
    %7385 = vmatprep.subr.bf16.mxu0 %v7203
    %7386 = vmatpush2.bf16.msra.mxu0 %v7202
    %7387 = vmatprep.subr.bf16.mxu0 %v7197
    %7388 = vmatpush2.bf16.msra.mxu0 %v7196
    %7389 = vmatprep.subr.bf16.mxu0 %v7191
    %7390 = vmatpush2.bf16.msra.mxu0 %v7190
    %7391 = vmatprep.subr.bf16.mxu0 %v7185
    %7392 = vmatpush2.bf16.msra.mxu0 %v7184
    %7393 = vmatprep.subr.bf16.mxu0 %v7179
    %7394 = vmatpush2.bf16.msra.mxu0 %v7178
    %7395 = vmatprep.mubr.bf16.mxu0 %v6711
    %7396 = vmatmul.mubr.bf16.gmra.mxu0 %v6710
    %v7397 = vpop.f32.mrf.mxu0
    %v7398 = vadd.f32 %v6821, %v7397
    %v7399 = vpop.f32.mrf.mxu0
    %v7400 = vadd.f32 %v6825, %v7399
    %v7401 = vpop.f32.mrf.mxu0
    %v7402 = vadd.f32 %v6821, %v7401
    %v7403 = vpop.f32.mrf.mxu0
    %v7404 = vadd.f32 %v6825, %v7403
    %7405 = vdwg.mxu0
    %7406 = vmatprep.subr.bf16.mxu0 %v7175
    %7407 = vmatpush1.bf16.msra.mxu0 %v7174
    %7408 = vmatprep.subr.bf16.mxu0 %v7169
    %7409 = vmatpush1.bf16.msra.mxu0 %v7168
    %7410 = vmatprep.subr.bf16.mxu0 %v7163
    %7411 = vmatpush1.bf16.msra.mxu0 %v7162
    %7412 = vmatprep.subr.bf16.mxu0 %v7157
    %7413 = vmatpush1.bf16.msra.mxu0 %v7156
    %7414 = vmatprep.subr.bf16.mxu0 %v7151
    %7415 = vmatpush1.bf16.msra.mxu0 %v7150
    %7416 = vmatprep.subr.bf16.mxu0 %v7145
    %7417 = vmatpush1.bf16.msra.mxu0 %v7144
    %7418 = vmatprep.subr.bf16.mxu0 %v7139
    %7419 = vmatpush1.bf16.msra.mxu0 %v7138
    %7420 = vmatprep.subr.bf16.mxu0 %v7133
    %7421 = vmatpush1.bf16.msra.mxu0 %v7132
    %7422 = vmatprep.subr.bf16.mxu0 %v7223
    %7423 = vmatpush2.bf16.msra.mxu0 %v7222
    %7424 = vmatprep.subr.bf16.mxu0 %v7217
    %7425 = vmatpush2.bf16.msra.mxu0 %v7216
    %7426 = vmatprep.subr.bf16.mxu0 %v7211
    %7427 = vmatpush2.bf16.msra.mxu0 %v7210
    %7428 = vmatprep.subr.bf16.mxu0 %v7205
    %7429 = vmatpush2.bf16.msra.mxu0 %v7204
    %7430 = vmatprep.subr.bf16.mxu0 %v7199
    %7431 = vmatpush2.bf16.msra.mxu0 %v7198
    %7432 = vmatprep.subr.bf16.mxu0 %v7193
    %7433 = vmatpush2.bf16.msra.mxu0 %v7192
    %7434 = vmatprep.subr.bf16.mxu0 %v7187
    %7435 = vmatpush2.bf16.msra.mxu0 %v7186
    %7436 = vmatprep.subr.bf16.mxu0 %v7181
    %7437 = vmatpush2.bf16.msra.mxu0 %v7180
    %7438 = vmatprep.mubr.bf16.mxu0 %v6711
    %7439 = vmatmul.mubr.bf16.gmra.mxu0 %v6710
    %v7440 = vpop.f32.mrf.mxu0
    %v7441 = vadd.f32 %v6829, %v7440
    %v7442 = vpop.f32.mrf.mxu0
    %v7443 = vadd.f32 %v6833, %v7442
    %v7444 = vpop.f32.mrf.mxu0
    %v7445 = vadd.f32 %v6829, %v7444
    %v7446 = vpop.f32.mrf.mxu0
    %v7447 = vadd.f32 %v6833, %v7446
    %7448 = vdwg.mxu0
    %v7449 = vmul.f32 %v7355, 0.25
    %v7450 = vmul.f32 %v7357, 0.25
    %v7451 = vmul.f32 %v7359, 0.25
    %v7452 = vmul.f32 %v7361, 0.25
    %v7453 = vpack.c.bf16 %v7451, %v7449
    %v7454 = vpack.c.bf16 %v7452, %v7450
    %v7455 = vpack.c.bf16 %v7402, %v7398
    %v7456 = vpack.c.bf16 %v7404, %v7400
    %v7457 = vpack.c.bf16 %v7445, %v7441
    %v7458 = vpack.c.bf16 %v7447, %v7443
    %v7459 = vld [vmem:[%s2] sm:$0xff]
    %v7460 = vld [vmem:[%s2 + $0x8] sm:$0xff]
    %v7461 = vld [vmem:[%s3] sm:$0x1]
    %7462 = vset.pattern.permute.xlu0 0
    %7463 = vperm.xlu0 %7462, %v7459
    %v7464 = vpop.permute.xlu0 %7463
    %7465 = vset.pattern.permute.xlu0 0
    %7466 = vperm.xlu0 %7465, %v7460
    %v7467 = vpop.permute.xlu0 %7466
    %v7468 = vlaneseq
    %v7469 = vshrl.u32 %v7468, 7
    %v7470 = vsub.s32 0, %v7469
    %v7471 = vrot.slane %v7461, %v7470
    %vm7472 = vcmp.eq.s32.totalorder %v7464, %v7471
    %vm7473 = vcmp.eq.s32.totalorder %v7467, %v7471
    %v7474 = vsel %vm7472, 0.0, -1e+09
    %v7475 = vsel %vm7473, 0.0, -1e+09
    %v7477 = vsel %vm6594, %v7453, 0
    %v7480 = vsel %vm6594, %v7455, 0
    %7482 = vmatprep.subr.bf16.mxu0 0
    %7483 = vmatpush1.bf16.xpose.msra.mxu0 0
    %7484 = vmatprep.subr.bf16.mxu0 0
    %7485 = vmatpush1.bf16.xpose.msra.mxu0 0
    %7486 = vmatprep.subr.bf16.mxu0 0
    %7487 = vmatpush1.bf16.xpose.msra.mxu0 0
    %7488 = vmatprep.subr.bf16.mxu0 0
    %7489 = vmatpush1.bf16.xpose.msra.mxu0 0
    %7490 = vmatprep.subr.bf16.mxu0 0
    %7491 = vmatpush1.bf16.xpose.msra.mxu0 0
    %7492 = vmatprep.subr.bf16.mxu0 0
    %7493 = vmatpush1.bf16.xpose.msra.mxu0 0
    %7494 = vmatprep.subr.bf16.mxu0 0
    %7495 = vmatpush1.bf16.xpose.msra.mxu0 0
    %7496 = vmatprep.subr.bf16.mxu0 0
    %7497 = vmatpush1.bf16.xpose.msra.mxu0 %v7480
    %7498 = vmatprep.subr.bf16.mxu0 0
    %7499 = vmatpush2.bf16.xpose.msra.mxu0 0
    %7500 = vmatprep.subr.bf16.mxu0 0
    %7501 = vmatpush2.bf16.xpose.msra.mxu0 0
    %7502 = vmatprep.subr.bf16.mxu0 0
    %7503 = vmatpush2.bf16.xpose.msra.mxu0 0
    %7504 = vmatprep.subr.bf16.mxu0 0
    %7505 = vmatpush2.bf16.xpose.msra.mxu0 0
    %7506 = vmatprep.subr.bf16.mxu0 0
    %7507 = vmatpush2.bf16.xpose.msra.mxu0 0
    %7508 = vmatprep.subr.bf16.mxu0 0
    %7509 = vmatpush2.bf16.xpose.msra.mxu0 0
    %7510 = vmatprep.subr.bf16.mxu0 0
    %7511 = vmatpush2.bf16.xpose.msra.mxu0 0
    %7512 = vmatprep.subr.bf16.mxu0 0
    %7513 = vmatpush2.bf16.xpose.msra.mxu0 0
    %7514 = vmatprep.mubr.bf16.mxu0 0
    %7515 = vmatmul.mubr.bf16.gmra.mxu0 %v7477
    %v7516 = vpop.f32.mrf.mxu0
    %v7517 = vadd.f32 %v7474, %v7516
    %v7518 = vpop.f32.mrf.mxu0
    %v7519 = vpop.f32.mrf.mxu0
    %v7520 = vadd.f32 %v7475, %v7519
    %v7521 = vpop.f32.mrf.mxu0
    %7522 = vdwg.mxu0
    %v7523 = vsel %vm6594, %v7517, -inf
    %7524 = vmax.xlane.f32.xlu0 %v7523
    %v7525 = vpop.xlane.xlu0 %7524
    %v7526 = vsel %vm6594, %v7520, -inf
    %7527 = vmax.xlane.f32.xlu0 %v7526
    %v7528 = vpop.xlane.xlu0 %7527
    %v7529 = vsub.f32 %v7517, %v7525
    %v7530 = vsub.f32 %v7520, %v7528
    %v7531 = vmul.f32 %v7529, 1.442695
    %v7532 = vpow.pop %v7531
    %v7533 = vmul.f32 %v7530, 1.442695
    %v7534 = vpow.pop %v7533
    %v7535 = vsel %vm6594, %v7532, 0.0
    %7536 = vadd.xlane.f32.xlu0 %v7535
    %v7537 = vpop.xlane.xlu0 %7536
    %v7538 = vsel %vm6594, %v7534, 0.0
    %7539 = vadd.xlane.f32.xlu0 %v7538
    %v7540 = vpop.xlane.xlu0 %7539
    %v7541 = vrcp.pop %v7537
    %v7542 = vmul.f32 %v7532, %v7541
    %v7543 = vrcp.pop %v7540
    %v7544 = vmul.f32 %v7534, %v7543
    %v7545 = vpack.c.bf16 %v7544, %v7542
    %v7547 = vsel %vm6594, %v7545, 0
    %7549 = vmatprep.subr.bf16.mxu0 0
    %7550 = vmatpush1.bf16.msra.mxu0 0
    %7551 = vmatprep.subr.bf16.mxu0 0
    %7552 = vmatpush1.bf16.msra.mxu0 0
    %7553 = vmatprep.subr.bf16.mxu0 0
    %7554 = vmatpush1.bf16.msra.mxu0 0
    %7555 = vmatprep.subr.bf16.mxu0 0
    %7556 = vmatpush1.bf16.msra.mxu0 0
    %7557 = vmatprep.subr.bf16.mxu0 0
    %7558 = vmatpush1.bf16.msra.mxu0 0
    %7559 = vmatprep.subr.bf16.mxu0 0
    %7560 = vmatpush1.bf16.msra.mxu0 0
    %7561 = vmatprep.subr.bf16.mxu0 0
    %7562 = vmatpush1.bf16.msra.mxu0 0
    %7563 = vmatprep.subr.bf16.mxu0 0
    %7564 = vmatpush1.bf16.msra.mxu0 %v7457
    %7565 = vmatprep.subr.bf16.mxu0 0
    %7566 = vmatpush2.bf16.msra.mxu0 0
    %7567 = vmatprep.subr.bf16.mxu0 0
    %7568 = vmatpush2.bf16.msra.mxu0 0
    %7569 = vmatprep.subr.bf16.mxu0 0
    %7570 = vmatpush2.bf16.msra.mxu0 0
    %7571 = vmatprep.subr.bf16.mxu0 0
    %7572 = vmatpush2.bf16.msra.mxu0 0
    %7573 = vmatprep.subr.bf16.mxu0 0
    %7574 = vmatpush2.bf16.msra.mxu0 0
    %7575 = vmatprep.subr.bf16.mxu0 0
    %7576 = vmatpush2.bf16.msra.mxu0 0
    %7577 = vmatprep.subr.bf16.mxu0 0
    %7578 = vmatpush2.bf16.msra.mxu0 0
    %7579 = vmatprep.subr.bf16.mxu0 0
    %7580 = vmatpush2.bf16.msra.mxu0 0
    %7581 = vmatprep.mubr.bf16.mxu0 0
    %7582 = vmatmul.mubr.bf16.gmra.mxu0 %v7547
    %v7583 = vpop.f32.mrf.mxu0
    %v7584 = vadd.f32 0.0, %v7583
    %v7585 = vpop.f32.mrf.mxu0
    %v7586 = vpop.f32.mrf.mxu0
    %v7587 = vadd.f32 0.0, %v7586
    %v7588 = vpop.f32.mrf.mxu0
    %7589 = vdwg.mxu0
    %7590 = vst.msk [vmem:[#allocation2] sm:$0xff] %vm6594, %v7584
    %7591 = vst.msk [vmem:[#allocation2 + $0x10] sm:$0xff] %vm6594, %v7587
    %7593 = vrot.lane.b32.xlu0 %v7453, 112
    %v7594 = vpop.permute.xlu0 %7593
    %7596 = vrot.lane.b32.xlu0 %v7455, 112
    %v7597 = vpop.permute.xlu0 %7596
    %v7599 = vsel %vm6594, %v7594, 0
    %v7602 = vsel %vm6594, %v7597, 0
    %7604 = vmatprep.subr.bf16.mxu0 0
    %7605 = vmatpush1.bf16.xpose.msra.mxu0 0
    %7606 = vmatprep.subr.bf16.mxu0 0
    %7607 = vmatpush1.bf16.xpose.msra.mxu0 0
    %7608 = vmatprep.subr.bf16.mxu0 0
    %7609 = vmatpush1.bf16.xpose.msra.mxu0 0
    %7610 = vmatprep.subr.bf16.mxu0 0
    %7611 = vmatpush1.bf16.xpose.msra.mxu0 0
    %7612 = vmatprep.subr.bf16.mxu0 0
    %7613 = vmatpush1.bf16.xpose.msra.mxu0 0
    %7614 = vmatprep.subr.bf16.mxu0 0
    %7615 = vmatpush1.bf16.xpose.msra.mxu0 0
    %7616 = vmatprep.subr.bf16.mxu0 0
    %7617 = vmatpush1.bf16.xpose.msra.mxu0 0
    %7618 = vmatprep.subr.bf16.mxu0 0
    %7619 = vmatpush1.bf16.xpose.msra.mxu0 %v7602
    %7620 = vmatprep.subr.bf16.mxu0 0
    %7621 = vmatpush2.bf16.xpose.msra.mxu0 0
    %7622 = vmatprep.subr.bf16.mxu0 0
    %7623 = vmatpush2.bf16.xpose.msra.mxu0 0
    %7624 = vmatprep.subr.bf16.mxu0 0
    %7625 = vmatpush2.bf16.xpose.msra.mxu0 0
    %7626 = vmatprep.subr.bf16.mxu0 0
    %7627 = vmatpush2.bf16.xpose.msra.mxu0 0
    %7628 = vmatprep.subr.bf16.mxu0 0
    %7629 = vmatpush2.bf16.xpose.msra.mxu0 0
    %7630 = vmatprep.subr.bf16.mxu0 0
    %7631 = vmatpush2.bf16.xpose.msra.mxu0 0
    %7632 = vmatprep.subr.bf16.mxu0 0
    %7633 = vmatpush2.bf16.xpose.msra.mxu0 0
    %7634 = vmatprep.subr.bf16.mxu0 0
    %7635 = vmatpush2.bf16.xpose.msra.mxu0 0
    %7636 = vmatprep.mubr.bf16.mxu0 0
    %7637 = vmatmul.mubr.bf16.gmra.mxu0 %v7599
    %v7638 = vpop.f32.mrf.mxu0
    %v7639 = vadd.f32 %v7474, %v7638
    %v7640 = vpop.f32.mrf.mxu0
    %v7641 = vpop.f32.mrf.mxu0
    %v7642 = vadd.f32 %v7475, %v7641
    %v7643 = vpop.f32.mrf.mxu0
    %7644 = vdwg.mxu0
    %v7645 = vsel %vm6594, %v7639, -inf
    %7646 = vmax.xlane.f32.xlu0 %v7645
    %v7647 = vpop.xlane.xlu0 %7646
    %v7648 = vsel %vm6594, %v7642, -inf
    %7649 = vmax.xlane.f32.xlu0 %v7648
    %v7650 = vpop.xlane.xlu0 %7649
    %v7651 = vsub.f32 %v7639, %v7647
    %v7652 = vsub.f32 %v7642, %v7650
    %v7653 = vmul.f32 %v7651, 1.442695
    %v7654 = vpow.pop %v7653
    %v7655 = vmul.f32 %v7652, 1.442695
    %v7656 = vpow.pop %v7655
    %v7657 = vsel %vm6594, %v7654, 0.0
    %7658 = vadd.xlane.f32.xlu0 %v7657
    %v7659 = vpop.xlane.xlu0 %7658
    %v7660 = vsel %vm6594, %v7656, 0.0
    %7661 = vadd.xlane.f32.xlu0 %v7660
    %v7662 = vpop.xlane.xlu0 %7661
    %v7663 = vrcp.pop %v7659
    %v7664 = vmul.f32 %v7654, %v7663
    %v7665 = vrcp.pop %v7662
    %v7666 = vmul.f32 %v7656, %v7665
    %v7667 = vpack.c.bf16 %v7666, %v7664
    %7669 = vrot.lane.b32.xlu0 %v7457, 112
    %v7670 = vpop.permute.xlu0 %7669
    %v7673 = vsel %vm6594, %v7667, 0
    %7675 = vmatprep.subr.bf16.mxu0 0
    %7676 = vmatpush1.bf16.msra.mxu0 0
    %7677 = vmatprep.subr.bf16.mxu0 0
    %7678 = vmatpush1.bf16.msra.mxu0 0
    %7679 = vmatprep.subr.bf16.mxu0 0
    %7680 = vmatpush1.bf16.msra.mxu0 0
    %7681 = vmatprep.subr.bf16.mxu0 0
    %7682 = vmatpush1.bf16.msra.mxu0 0
    %7683 = vmatprep.subr.bf16.mxu0 0
    %7684 = vmatpush1.bf16.msra.mxu0 0
    %7685 = vmatprep.subr.bf16.mxu0 0
    %7686 = vmatpush1.bf16.msra.mxu0 0
    %7687 = vmatprep.subr.bf16.mxu0 0
    %7688 = vmatpush1.bf16.msra.mxu0 0
    %7689 = vmatprep.subr.bf16.mxu0 0
    %7690 = vmatpush1.bf16.msra.mxu0 %v7670
    %7691 = vmatprep.subr.bf16.mxu0 0
    %7692 = vmatpush2.bf16.msra.mxu0 0
    %7693 = vmatprep.subr.bf16.mxu0 0
    %7694 = vmatpush2.bf16.msra.mxu0 0
    %7695 = vmatprep.subr.bf16.mxu0 0
    %7696 = vmatpush2.bf16.msra.mxu0 0
    %7697 = vmatprep.subr.bf16.mxu0 0
    %7698 = vmatpush2.bf16.msra.mxu0 0
    %7699 = vmatprep.subr.bf16.mxu0 0
    %7700 = vmatpush2.bf16.msra.mxu0 0
    %7701 = vmatprep.subr.bf16.mxu0 0
    %7702 = vmatpush2.bf16.msra.mxu0 0
    %7703 = vmatprep.subr.bf16.mxu0 0
    %7704 = vmatpush2.bf16.msra.mxu0 0
    %7705 = vmatprep.subr.bf16.mxu0 0
    %7706 = vmatpush2.bf16.msra.mxu0 0
    %7707 = vmatprep.mubr.bf16.mxu0 0
    %7708 = vmatmul.mubr.bf16.gmra.mxu0 %v7673
    %v7709 = vpop.f32.mrf.mxu0
    %v7710 = vadd.f32 0.0, %v7709
    %v7711 = vpop.f32.mrf.mxu0
    %v7712 = vpop.f32.mrf.mxu0
    %v7713 = vadd.f32 0.0, %v7712
    %v7714 = vpop.f32.mrf.mxu0
    %7715 = vdwg.mxu0
    %7718 = vrot.lane.b32.xlu0 %v7710, 16
    %v7719 = vpop.permute.xlu0 %7718
    %7720 = vrot.lane.b32.xlu0 %v7713, 16
    %v7721 = vpop.permute.xlu0 %7720
    %vm7724 = vcmask 261248
    %7725 = vst.msk [vmem:[#allocation2] sm:$0xff] %vm7724, %v7719
    %7726 = vst.msk [vmem:[#allocation2 + $0x10] sm:$0xff] %vm7724, %v7721
    %7727 = vrot.lane.b32.xlu0 %v7453, 96
    %v7728 = vpop.permute.xlu0 %7727
    %7729 = vrot.lane.b32.xlu0 %v7455, 96
    %v7730 = vpop.permute.xlu0 %7729
    %v7732 = vsel %vm6594, %v7728, 0
    %v7735 = vsel %vm6594, %v7730, 0
    %7737 = vmatprep.subr.bf16.mxu0 0
    %7738 = vmatpush1.bf16.xpose.msra.mxu0 0
    %7739 = vmatprep.subr.bf16.mxu0 0
    %7740 = vmatpush1.bf16.xpose.msra.mxu0 0
    %7741 = vmatprep.subr.bf16.mxu0 0
    %7742 = vmatpush1.bf16.xpose.msra.mxu0 0
    %7743 = vmatprep.subr.bf16.mxu0 0
    %7744 = vmatpush1.bf16.xpose.msra.mxu0 0
    %7745 = vmatprep.subr.bf16.mxu0 0
    %7746 = vmatpush1.bf16.xpose.msra.mxu0 0
    %7747 = vmatprep.subr.bf16.mxu0 0
    %7748 = vmatpush1.bf16.xpose.msra.mxu0 0
    %7749 = vmatprep.subr.bf16.mxu0 0
    %7750 = vmatpush1.bf16.xpose.msra.mxu0 0
    %7751 = vmatprep.subr.bf16.mxu0 0
    %7752 = vmatpush1.bf16.xpose.msra.mxu0 %v7735
    %7753 = vmatprep.subr.bf16.mxu0 0
    %7754 = vmatpush2.bf16.xpose.msra.mxu0 0
    %7755 = vmatprep.subr.bf16.mxu0 0
    %7756 = vmatpush2.bf16.xpose.msra.mxu0 0
    %7757 = vmatprep.subr.bf16.mxu0 0
    %7758 = vmatpush2.bf16.xpose.msra.mxu0 0
    %7759 = vmatprep.subr.bf16.mxu0 0
    %7760 = vmatpush2.bf16.xpose.msra.mxu0 0
    %7761 = vmatprep.subr.bf16.mxu0 0
    %7762 = vmatpush2.bf16.xpose.msra.mxu0 0
    %7763 = vmatprep.subr.bf16.mxu0 0
    %7764 = vmatpush2.bf16.xpose.msra.mxu0 0
    %7765 = vmatprep.subr.bf16.mxu0 0
    %7766 = vmatpush2.bf16.xpose.msra.mxu0 0
    %7767 = vmatprep.subr.bf16.mxu0 0
    %7768 = vmatpush2.bf16.xpose.msra.mxu0 0
    %7769 = vmatprep.mubr.bf16.mxu0 0
    %7770 = vmatmul.mubr.bf16.gmra.mxu0 %v7732
    %v7771 = vpop.f32.mrf.mxu0
    %v7772 = vadd.f32 %v7474, %v7771
    %v7773 = vpop.f32.mrf.mxu0
    %v7774 = vpop.f32.mrf.mxu0
    %v7775 = vadd.f32 %v7475, %v7774
    %v7776 = vpop.f32.mrf.mxu0
    %7777 = vdwg.mxu0
    %v7778 = vsel %vm6594, %v7772, -inf
    %7779 = vmax.xlane.f32.xlu0 %v7778
    %v7780 = vpop.xlane.xlu0 %7779
    %v7781 = vsel %vm6594, %v7775, -inf
    %7782 = vmax.xlane.f32.xlu0 %v7781
    %v7783 = vpop.xlane.xlu0 %7782
    %v7784 = vsub.f32 %v7772, %v7780
    %v7785 = vsub.f32 %v7775, %v7783
    %v7786 = vmul.f32 %v7784, 1.442695
    %v7787 = vpow.pop %v7786
    %v7788 = vmul.f32 %v7785, 1.442695
    %v7789 = vpow.pop %v7788
    %v7790 = vsel %vm6594, %v7787, 0.0
    %7791 = vadd.xlane.f32.xlu0 %v7790
    %v7792 = vpop.xlane.xlu0 %7791
    %v7793 = vsel %vm6594, %v7789, 0.0
    %7794 = vadd.xlane.f32.xlu0 %v7793
    %v7795 = vpop.xlane.xlu0 %7794
    %v7796 = vrcp.pop %v7792
    %v7797 = vmul.f32 %v7787, %v7796
    %v7798 = vrcp.pop %v7795
    %v7799 = vmul.f32 %v7789, %v7798
    %v7800 = vpack.c.bf16 %v7799, %v7797
    %7801 = vrot.lane.b32.xlu0 %v7457, 96
    %v7802 = vpop.permute.xlu0 %7801
    %v7805 = vsel %vm6594, %v7800, 0
    %7807 = vmatprep.subr.bf16.mxu0 0
    %7808 = vmatpush1.bf16.msra.mxu0 0
    %7809 = vmatprep.subr.bf16.mxu0 0
    %7810 = vmatpush1.bf16.msra.mxu0 0
    %7811 = vmatprep.subr.bf16.mxu0 0
    %7812 = vmatpush1.bf16.msra.mxu0 0
    %7813 = vmatprep.subr.bf16.mxu0 0
    %7814 = vmatpush1.bf16.msra.mxu0 0
    %7815 = vmatprep.subr.bf16.mxu0 0
    %7816 = vmatpush1.bf16.msra.mxu0 0
    %7817 = vmatprep.subr.bf16.mxu0 0
    %7818 = vmatpush1.bf16.msra.mxu0 0
    %7819 = vmatprep.subr.bf16.mxu0 0
    %7820 = vmatpush1.bf16.msra.mxu0 0
    %7821 = vmatprep.subr.bf16.mxu0 0
    %7822 = vmatpush1.bf16.msra.mxu0 %v7802
    %7823 = vmatprep.subr.bf16.mxu0 0
    %7824 = vmatpush2.bf16.msra.mxu0 0
    %7825 = vmatprep.subr.bf16.mxu0 0
    %7826 = vmatpush2.bf16.msra.mxu0 0
    %7827 = vmatprep.subr.bf16.mxu0 0
    %7828 = vmatpush2.bf16.msra.mxu0 0
    %7829 = vmatprep.subr.bf16.mxu0 0
    %7830 = vmatpush2.bf16.msra.mxu0 0
    %7831 = vmatprep.subr.bf16.mxu0 0
    %7832 = vmatpush2.bf16.msra.mxu0 0
    %7833 = vmatprep.subr.bf16.mxu0 0
    %7834 = vmatpush2.bf16.msra.mxu0 0
    %7835 = vmatprep.subr.bf16.mxu0 0
    %7836 = vmatpush2.bf16.msra.mxu0 0
    %7837 = vmatprep.subr.bf16.mxu0 0
    %7838 = vmatpush2.bf16.msra.mxu0 0
    %7839 = vmatprep.mubr.bf16.mxu0 0
    %7840 = vmatmul.mubr.bf16.gmra.mxu0 %v7805
    %v7841 = vpop.f32.mrf.mxu0
    %v7842 = vadd.f32 0.0, %v7841
    %v7843 = vpop.f32.mrf.mxu0
    %v7844 = vpop.f32.mrf.mxu0
    %v7845 = vadd.f32 0.0, %v7844
    %v7846 = vpop.f32.mrf.mxu0
    %7847 = vdwg.mxu0
    %7850 = vrot.lane.b32.xlu0 %v7842, 32
    %v7851 = vpop.permute.xlu0 %7850
    %7852 = vrot.lane.b32.xlu0 %v7845, 32
    %v7853 = vpop.permute.xlu0 %7852
    %vm7856 = vcmask 392448
    %7857 = vst.msk [vmem:[#allocation2] sm:$0xff] %vm7856, %v7851
    %7858 = vst.msk [vmem:[#allocation2 + $0x10] sm:$0xff] %vm7856, %v7853
    %7859 = vrot.lane.b32.xlu0 %v7453, 80
    %v7860 = vpop.permute.xlu0 %7859
    %7861 = vrot.lane.b32.xlu0 %v7455, 80
    %v7862 = vpop.permute.xlu0 %7861
    %v7864 = vsel %vm6594, %v7860, 0
    %v7867 = vsel %vm6594, %v7862, 0
    %7869 = vmatprep.subr.bf16.mxu0 0
    %7870 = vmatpush1.bf16.xpose.msra.mxu0 0
    %7871 = vmatprep.subr.bf16.mxu0 0
    %7872 = vmatpush1.bf16.xpose.msra.mxu0 0
    %7873 = vmatprep.subr.bf16.mxu0 0
    %7874 = vmatpush1.bf16.xpose.msra.mxu0 0
    %7875 = vmatprep.subr.bf16.mxu0 0
    %7876 = vmatpush1.bf16.xpose.msra.mxu0 0
    %7877 = vmatprep.subr.bf16.mxu0 0
    %7878 = vmatpush1.bf16.xpose.msra.mxu0 0
    %7879 = vmatprep.subr.bf16.mxu0 0
    %7880 = vmatpush1.bf16.xpose.msra.mxu0 0
    %7881 = vmatprep.subr.bf16.mxu0 0
    %7882 = vmatpush1.bf16.xpose.msra.mxu0 0
    %7883 = vmatprep.subr.bf16.mxu0 0
    %7884 = vmatpush1.bf16.xpose.msra.mxu0 %v7867
    %7885 = vmatprep.subr.bf16.mxu0 0
    %7886 = vmatpush2.bf16.xpose.msra.mxu0 0
    %7887 = vmatprep.subr.bf16.mxu0 0
    %7888 = vmatpush2.bf16.xpose.msra.mxu0 0
    %7889 = vmatprep.subr.bf16.mxu0 0
    %7890 = vmatpush2.bf16.xpose.msra.mxu0 0
    %7891 = vmatprep.subr.bf16.mxu0 0
    %7892 = vmatpush2.bf16.xpose.msra.mxu0 0
    %7893 = vmatprep.subr.bf16.mxu0 0
    %7894 = vmatpush2.bf16.xpose.msra.mxu0 0
    %7895 = vmatprep.subr.bf16.mxu0 0
    %7896 = vmatpush2.bf16.xpose.msra.mxu0 0
    %7897 = vmatprep.subr.bf16.mxu0 0
    %7898 = vmatpush2.bf16.xpose.msra.mxu0 0
    %7899 = vmatprep.subr.bf16.mxu0 0
    %7900 = vmatpush2.bf16.xpose.msra.mxu0 0
    %7901 = vmatprep.mubr.bf16.mxu0 0
    %7902 = vmatmul.mubr.bf16.gmra.mxu0 %v7864
    %v7903 = vpop.f32.mrf.mxu0
    %v7904 = vadd.f32 %v7474, %v7903
    %v7905 = vpop.f32.mrf.mxu0
    %v7906 = vpop.f32.mrf.mxu0
    %v7907 = vadd.f32 %v7475, %v7906
    %v7908 = vpop.f32.mrf.mxu0
    %7909 = vdwg.mxu0
    %v7910 = vsel %vm6594, %v7904, -inf
    %7911 = vmax.xlane.f32.xlu0 %v7910
    %v7912 = vpop.xlane.xlu0 %7911
    %v7913 = vsel %vm6594, %v7907, -inf
    %7914 = vmax.xlane.f32.xlu0 %v7913
    %v7915 = vpop.xlane.xlu0 %7914
    %v7916 = vsub.f32 %v7904, %v7912
    %v7917 = vsub.f32 %v7907, %v7915
    %v7918 = vmul.f32 %v7916, 1.442695
    %v7919 = vpow.pop %v7918
    %v7920 = vmul.f32 %v7917, 1.442695
    %v7921 = vpow.pop %v7920
    %v7922 = vsel %vm6594, %v7919, 0.0
    %7923 = vadd.xlane.f32.xlu0 %v7922
    %v7924 = vpop.xlane.xlu0 %7923
    %v7925 = vsel %vm6594, %v7921, 0.0
    %7926 = vadd.xlane.f32.xlu0 %v7925
    %v7927 = vpop.xlane.xlu0 %7926
    %v7928 = vrcp.pop %v7924
    %v7929 = vmul.f32 %v7919, %v7928
    %v7930 = vrcp.pop %v7927
    %v7931 = vmul.f32 %v7921, %v7930
    %v7932 = vpack.c.bf16 %v7931, %v7929
    %7933 = vrot.lane.b32.xlu0 %v7457, 80
    %v7934 = vpop.permute.xlu0 %7933
    %v7937 = vsel %vm6594, %v7932, 0
    %7939 = vmatprep.subr.bf16.mxu0 0
    %7940 = vmatpush1.bf16.msra.mxu0 0
    %7941 = vmatprep.subr.bf16.mxu0 0
    %7942 = vmatpush1.bf16.msra.mxu0 0
    %7943 = vmatprep.subr.bf16.mxu0 0
    %7944 = vmatpush1.bf16.msra.mxu0 0
    %7945 = vmatprep.subr.bf16.mxu0 0
    %7946 = vmatpush1.bf16.msra.mxu0 0
    %7947 = vmatprep.subr.bf16.mxu0 0
    %7948 = vmatpush1.bf16.msra.mxu0 0
    %7949 = vmatprep.subr.bf16.mxu0 0
    %7950 = vmatpush1.bf16.msra.mxu0 0
    %7951 = vmatprep.subr.bf16.mxu0 0
    %7952 = vmatpush1.bf16.msra.mxu0 0
    %7953 = vmatprep.subr.bf16.mxu0 0
    %7954 = vmatpush1.bf16.msra.mxu0 %v7934
    %7955 = vmatprep.subr.bf16.mxu0 0
    %7956 = vmatpush2.bf16.msra.mxu0 0
    %7957 = vmatprep.subr.bf16.mxu0 0
    %7958 = vmatpush2.bf16.msra.mxu0 0
    %7959 = vmatprep.subr.bf16.mxu0 0
    %7960 = vmatpush2.bf16.msra.mxu0 0
    %7961 = vmatprep.subr.bf16.mxu0 0
    %7962 = vmatpush2.bf16.msra.mxu0 0
    %7963 = vmatprep.subr.bf16.mxu0 0
    %7964 = vmatpush2.bf16.msra.mxu0 0
    %7965 = vmatprep.subr.bf16.mxu0 0
    %7966 = vmatpush2.bf16.msra.mxu0 0
    %7967 = vmatprep.subr.bf16.mxu0 0
    %7968 = vmatpush2.bf16.msra.mxu0 0
    %7969 = vmatprep.subr.bf16.mxu0 0
    %7970 = vmatpush2.bf16.msra.mxu0 0
    %7971 = vmatprep.mubr.bf16.mxu0 0
    %7972 = vmatmul.mubr.bf16.gmra.mxu0 %v7937
    %v7973 = vpop.f32.mrf.mxu0
    %v7974 = vadd.f32 0.0, %v7973
    %v7975 = vpop.f32.mrf.mxu0
    %v7976 = vpop.f32.mrf.mxu0
    %v7977 = vadd.f32 0.0, %v7976
    %v7978 = vpop.f32.mrf.mxu0
    %7979 = vdwg.mxu0
    %7982 = vrot.lane.b32.xlu0 %v7974, 48
    %v7983 = vpop.permute.xlu0 %7982
    %7984 = vrot.lane.b32.xlu0 %v7977, 48
    %v7985 = vpop.permute.xlu0 %7984
    %vm7988 = vcmask 523648
    %7989 = vst.msk [vmem:[#allocation2] sm:$0xff] %vm7988, %v7983
    %7990 = vst.msk [vmem:[#allocation2 + $0x10] sm:$0xff] %vm7988, %v7985
    %7991 = vrot.lane.b32.xlu0 %v7453, 64
    %v7992 = vpop.permute.xlu0 %7991
    %7993 = vrot.lane.b32.xlu0 %v7455, 64
    %v7994 = vpop.permute.xlu0 %7993
    %v7996 = vsel %vm6594, %v7992, 0
    %v7999 = vsel %vm6594, %v7994, 0
    %8001 = vmatprep.subr.bf16.mxu0 0
    %8002 = vmatpush1.bf16.xpose.msra.mxu0 0
    %8003 = vmatprep.subr.bf16.mxu0 0
    %8004 = vmatpush1.bf16.xpose.msra.mxu0 0
    %8005 = vmatprep.subr.bf16.mxu0 0
    %8006 = vmatpush1.bf16.xpose.msra.mxu0 0
    %8007 = vmatprep.subr.bf16.mxu0 0
    %8008 = vmatpush1.bf16.xpose.msra.mxu0 0
    %8009 = vmatprep.subr.bf16.mxu0 0
    %8010 = vmatpush1.bf16.xpose.msra.mxu0 0
    %8011 = vmatprep.subr.bf16.mxu0 0
    %8012 = vmatpush1.bf16.xpose.msra.mxu0 0
    %8013 = vmatprep.subr.bf16.mxu0 0
    %8014 = vmatpush1.bf16.xpose.msra.mxu0 0
    %8015 = vmatprep.subr.bf16.mxu0 0
    %8016 = vmatpush1.bf16.xpose.msra.mxu0 %v7999
    %8017 = vmatprep.subr.bf16.mxu0 0
    %8018 = vmatpush2.bf16.xpose.msra.mxu0 0
    %8019 = vmatprep.subr.bf16.mxu0 0
    %8020 = vmatpush2.bf16.xpose.msra.mxu0 0
    %8021 = vmatprep.subr.bf16.mxu0 0
    %8022 = vmatpush2.bf16.xpose.msra.mxu0 0
    %8023 = vmatprep.subr.bf16.mxu0 0
    %8024 = vmatpush2.bf16.xpose.msra.mxu0 0
    %8025 = vmatprep.subr.bf16.mxu0 0
    %8026 = vmatpush2.bf16.xpose.msra.mxu0 0
    %8027 = vmatprep.subr.bf16.mxu0 0
    %8028 = vmatpush2.bf16.xpose.msra.mxu0 0
    %8029 = vmatprep.subr.bf16.mxu0 0
    %8030 = vmatpush2.bf16.xpose.msra.mxu0 0
    %8031 = vmatprep.subr.bf16.mxu0 0
    %8032 = vmatpush2.bf16.xpose.msra.mxu0 0
    %8033 = vmatprep.mubr.bf16.mxu0 0
    %8034 = vmatmul.mubr.bf16.gmra.mxu0 %v7996
    %v8035 = vpop.f32.mrf.mxu0
    %v8036 = vadd.f32 %v7474, %v8035
    %v8037 = vpop.f32.mrf.mxu0
    %v8038 = vpop.f32.mrf.mxu0
    %v8039 = vadd.f32 %v7475, %v8038
    %v8040 = vpop.f32.mrf.mxu0
    %8041 = vdwg.mxu0
    %v8042 = vsel %vm6594, %v8036, -inf
    %8043 = vmax.xlane.f32.xlu0 %v8042
    %v8044 = vpop.xlane.xlu0 %8043
    %v8045 = vsel %vm6594, %v8039, -inf
    %8046 = vmax.xlane.f32.xlu0 %v8045
    %v8047 = vpop.xlane.xlu0 %8046
    %v8048 = vsub.f32 %v8036, %v8044
    %v8049 = vsub.f32 %v8039, %v8047
    %v8050 = vmul.f32 %v8048, 1.442695
    %v8051 = vpow.pop %v8050
    %v8052 = vmul.f32 %v8049, 1.442695
    %v8053 = vpow.pop %v8052
    %v8054 = vsel %vm6594, %v8051, 0.0
    %8055 = vadd.xlane.f32.xlu0 %v8054
    %v8056 = vpop.xlane.xlu0 %8055
    %v8057 = vsel %vm6594, %v8053, 0.0
    %8058 = vadd.xlane.f32.xlu0 %v8057
    %v8059 = vpop.xlane.xlu0 %8058
    %v8060 = vrcp.pop %v8056
    %v8061 = vmul.f32 %v8051, %v8060
    %v8062 = vrcp.pop %v8059
    %v8063 = vmul.f32 %v8053, %v8062
    %v8064 = vpack.c.bf16 %v8063, %v8061
    %8065 = vrot.lane.b32.xlu0 %v7457, 64
    %v8066 = vpop.permute.xlu0 %8065
    %v8069 = vsel %vm6594, %v8064, 0
    %8071 = vmatprep.subr.bf16.mxu0 0
    %8072 = vmatpush1.bf16.msra.mxu0 0
    %8073 = vmatprep.subr.bf16.mxu0 0
    %8074 = vmatpush1.bf16.msra.mxu0 0
    %8075 = vmatprep.subr.bf16.mxu0 0
    %8076 = vmatpush1.bf16.msra.mxu0 0
    %8077 = vmatprep.subr.bf16.mxu0 0
    %8078 = vmatpush1.bf16.msra.mxu0 0
    %8079 = vmatprep.subr.bf16.mxu0 0
    %8080 = vmatpush1.bf16.msra.mxu0 0
    %8081 = vmatprep.subr.bf16.mxu0 0
    %8082 = vmatpush1.bf16.msra.mxu0 0
    %8083 = vmatprep.subr.bf16.mxu0 0
    %8084 = vmatpush1.bf16.msra.mxu0 0
    %8085 = vmatprep.subr.bf16.mxu0 0
    %8086 = vmatpush1.bf16.msra.mxu0 %v8066
    %8087 = vmatprep.subr.bf16.mxu0 0
    %8088 = vmatpush2.bf16.msra.mxu0 0
    %8089 = vmatprep.subr.bf16.mxu0 0
    %8090 = vmatpush2.bf16.msra.mxu0 0
    %8091 = vmatprep.subr.bf16.mxu0 0
    %8092 = vmatpush2.bf16.msra.mxu0 0
    %8093 = vmatprep.subr.bf16.mxu0 0
    %8094 = vmatpush2.bf16.msra.mxu0 0
    %8095 = vmatprep.subr.bf16.mxu0 0
    %8096 = vmatpush2.bf16.msra.mxu0 0
    %8097 = vmatprep.subr.bf16.mxu0 0
    %8098 = vmatpush2.bf16.msra.mxu0 0
    %8099 = vmatprep.subr.bf16.mxu0 0
    %8100 = vmatpush2.bf16.msra.mxu0 0
    %8101 = vmatprep.subr.bf16.mxu0 0
    %8102 = vmatpush2.bf16.msra.mxu0 0
    %8103 = vmatprep.mubr.bf16.mxu0 0
    %8104 = vmatmul.mubr.bf16.gmra.mxu0 %v8069
    %v8105 = vpop.f32.mrf.mxu0
    %v8106 = vadd.f32 0.0, %v8105
    %v8107 = vpop.f32.mrf.mxu0
    %v8108 = vpop.f32.mrf.mxu0
    %v8109 = vadd.f32 0.0, %v8108
    %v8110 = vpop.f32.mrf.mxu0
    %8111 = vdwg.mxu0
    %8114 = vrot.lane.b32.xlu0 %v8106, 64
    %v8115 = vpop.permute.xlu0 %8114
    %8116 = vrot.lane.b32.xlu0 %v8109, 64
    %v8117 = vpop.permute.xlu0 %8116
    %vm8120 = vcmask 654848
    %8121 = vst.msk [vmem:[#allocation2] sm:$0xff] %vm8120, %v8115
    %8122 = vst.msk [vmem:[#allocation2 + $0x10] sm:$0xff] %vm8120, %v8117
    %8123 = vrot.lane.b32.xlu0 %v7453, 48
    %v8124 = vpop.permute.xlu0 %8123
    %8125 = vrot.lane.b32.xlu0 %v7455, 48
    %v8126 = vpop.permute.xlu0 %8125
    %v8128 = vsel %vm6594, %v8124, 0
    %v8131 = vsel %vm6594, %v8126, 0
    %8133 = vmatprep.subr.bf16.mxu0 0
    %8134 = vmatpush1.bf16.xpose.msra.mxu0 0
    %8135 = vmatprep.subr.bf16.mxu0 0
    %8136 = vmatpush1.bf16.xpose.msra.mxu0 0
    %8137 = vmatprep.subr.bf16.mxu0 0
    %8138 = vmatpush1.bf16.xpose.msra.mxu0 0
    %8139 = vmatprep.subr.bf16.mxu0 0
    %8140 = vmatpush1.bf16.xpose.msra.mxu0 0
    %8141 = vmatprep.subr.bf16.mxu0 0
    %8142 = vmatpush1.bf16.xpose.msra.mxu0 0
    %8143 = vmatprep.subr.bf16.mxu0 0
    %8144 = vmatpush1.bf16.xpose.msra.mxu0 0
    %8145 = vmatprep.subr.bf16.mxu0 0
    %8146 = vmatpush1.bf16.xpose.msra.mxu0 0
    %8147 = vmatprep.subr.bf16.mxu0 0
    %8148 = vmatpush1.bf16.xpose.msra.mxu0 %v8131
    %8149 = vmatprep.subr.bf16.mxu0 0
    %8150 = vmatpush2.bf16.xpose.msra.mxu0 0
    %8151 = vmatprep.subr.bf16.mxu0 0
    %8152 = vmatpush2.bf16.xpose.msra.mxu0 0
    %8153 = vmatprep.subr.bf16.mxu0 0
    %8154 = vmatpush2.bf16.xpose.msra.mxu0 0
    %8155 = vmatprep.subr.bf16.mxu0 0
    %8156 = vmatpush2.bf16.xpose.msra.mxu0 0
    %8157 = vmatprep.subr.bf16.mxu0 0
    %8158 = vmatpush2.bf16.xpose.msra.mxu0 0
    %8159 = vmatprep.subr.bf16.mxu0 0
    %8160 = vmatpush2.bf16.xpose.msra.mxu0 0
    %8161 = vmatprep.subr.bf16.mxu0 0
    %8162 = vmatpush2.bf16.xpose.msra.mxu0 0
    %8163 = vmatprep.subr.bf16.mxu0 0
    %8164 = vmatpush2.bf16.xpose.msra.mxu0 0
    %8165 = vmatprep.mubr.bf16.mxu0 0
    %8166 = vmatmul.mubr.bf16.gmra.mxu0 %v8128
    %v8167 = vpop.f32.mrf.mxu0
    %v8168 = vadd.f32 %v7474, %v8167
    %v8169 = vpop.f32.mrf.mxu0
    %v8170 = vpop.f32.mrf.mxu0
    %v8171 = vadd.f32 %v7475, %v8170
    %v8172 = vpop.f32.mrf.mxu0
    %8173 = vdwg.mxu0
    %v8174 = vsel %vm6594, %v8168, -inf
    %8175 = vmax.xlane.f32.xlu0 %v8174
    %v8176 = vpop.xlane.xlu0 %8175
    %v8177 = vsel %vm6594, %v8171, -inf
    %8178 = vmax.xlane.f32.xlu0 %v8177
    %v8179 = vpop.xlane.xlu0 %8178
    %v8180 = vsub.f32 %v8168, %v8176
    %v8181 = vsub.f32 %v8171, %v8179
    %v8182 = vmul.f32 %v8180, 1.442695
    %v8183 = vpow.pop %v8182
    %v8184 = vmul.f32 %v8181, 1.442695
    %v8185 = vpow.pop %v8184
    %v8186 = vsel %vm6594, %v8183, 0.0
    %8187 = vadd.xlane.f32.xlu0 %v8186
    %v8188 = vpop.xlane.xlu0 %8187
    %v8189 = vsel %vm6594, %v8185, 0.0
    %8190 = vadd.xlane.f32.xlu0 %v8189
    %v8191 = vpop.xlane.xlu0 %8190
    %v8192 = vrcp.pop %v8188
    %v8193 = vmul.f32 %v8183, %v8192
    %v8194 = vrcp.pop %v8191
    %v8195 = vmul.f32 %v8185, %v8194
    %v8196 = vpack.c.bf16 %v8195, %v8193
    %8197 = vrot.lane.b32.xlu0 %v7457, 48
    %v8198 = vpop.permute.xlu0 %8197
    %v8201 = vsel %vm6594, %v8196, 0
    %8203 = vmatprep.subr.bf16.mxu0 0
    %8204 = vmatpush1.bf16.msra.mxu0 0
    %8205 = vmatprep.subr.bf16.mxu0 0
    %8206 = vmatpush1.bf16.msra.mxu0 0
    %8207 = vmatprep.subr.bf16.mxu0 0
    %8208 = vmatpush1.bf16.msra.mxu0 0
    %8209 = vmatprep.subr.bf16.mxu0 0
    %8210 = vmatpush1.bf16.msra.mxu0 0
    %8211 = vmatprep.subr.bf16.mxu0 0
    %8212 = vmatpush1.bf16.msra.mxu0 0
    %8213 = vmatprep.subr.bf16.mxu0 0
    %8214 = vmatpush1.bf16.msra.mxu0 0
    %8215 = vmatprep.subr.bf16.mxu0 0
    %8216 = vmatpush1.bf16.msra.mxu0 0
    %8217 = vmatprep.subr.bf16.mxu0 0
    %8218 = vmatpush1.bf16.msra.mxu0 %v8198
    %8219 = vmatprep.subr.bf16.mxu0 0
    %8220 = vmatpush2.bf16.msra.mxu0 0
    %8221 = vmatprep.subr.bf16.mxu0 0
    %8222 = vmatpush2.bf16.msra.mxu0 0
    %8223 = vmatprep.subr.bf16.mxu0 0
    %8224 = vmatpush2.bf16.msra.mxu0 0
    %8225 = vmatprep.subr.bf16.mxu0 0
    %8226 = vmatpush2.bf16.msra.mxu0 0
    %8227 = vmatprep.subr.bf16.mxu0 0
    %8228 = vmatpush2.bf16.msra.mxu0 0
    %8229 = vmatprep.subr.bf16.mxu0 0
    %8230 = vmatpush2.bf16.msra.mxu0 0
    %8231 = vmatprep.subr.bf16.mxu0 0
    %8232 = vmatpush2.bf16.msra.mxu0 0
    %8233 = vmatprep.subr.bf16.mxu0 0
    %8234 = vmatpush2.bf16.msra.mxu0 0
    %8235 = vmatprep.mubr.bf16.mxu0 0
    %8236 = vmatmul.mubr.bf16.gmra.mxu0 %v8201
    %v8237 = vpop.f32.mrf.mxu0
    %v8238 = vadd.f32 0.0, %v8237
    %v8239 = vpop.f32.mrf.mxu0
    %v8240 = vpop.f32.mrf.mxu0
    %v8241 = vadd.f32 0.0, %v8240
    %v8242 = vpop.f32.mrf.mxu0
    %8243 = vdwg.mxu0
    %8246 = vrot.lane.b32.xlu0 %v8238, 80
    %v8247 = vpop.permute.xlu0 %8246
    %8248 = vrot.lane.b32.xlu0 %v8241, 80
    %v8249 = vpop.permute.xlu0 %8248
    %vm8252 = vcmask 786048
    %8253 = vst.msk [vmem:[#allocation2] sm:$0xff] %vm8252, %v8247
    %8254 = vst.msk [vmem:[#allocation2 + $0x10] sm:$0xff] %vm8252, %v8249
    %8255 = vrot.lane.b32.xlu0 %v7453, 32
    %v8256 = vpop.permute.xlu0 %8255
    %8257 = vrot.lane.b32.xlu0 %v7455, 32
    %v8258 = vpop.permute.xlu0 %8257
    %v8260 = vsel %vm6594, %v8256, 0
    %v8263 = vsel %vm6594, %v8258, 0
    %8265 = vmatprep.subr.bf16.mxu0 0
    %8266 = vmatpush1.bf16.xpose.msra.mxu0 0
    %8267 = vmatprep.subr.bf16.mxu0 0
    %8268 = vmatpush1.bf16.xpose.msra.mxu0 0
    %8269 = vmatprep.subr.bf16.mxu0 0
    %8270 = vmatpush1.bf16.xpose.msra.mxu0 0
    %8271 = vmatprep.subr.bf16.mxu0 0
    %8272 = vmatpush1.bf16.xpose.msra.mxu0 0
    %8273 = vmatprep.subr.bf16.mxu0 0
    %8274 = vmatpush1.bf16.xpose.msra.mxu0 0
    %8275 = vmatprep.subr.bf16.mxu0 0
    %8276 = vmatpush1.bf16.xpose.msra.mxu0 0
    %8277 = vmatprep.subr.bf16.mxu0 0
    %8278 = vmatpush1.bf16.xpose.msra.mxu0 0
    %8279 = vmatprep.subr.bf16.mxu0 0
    %8280 = vmatpush1.bf16.xpose.msra.mxu0 %v8263
    %8281 = vmatprep.subr.bf16.mxu0 0
    %8282 = vmatpush2.bf16.xpose.msra.mxu0 0
    %8283 = vmatprep.subr.bf16.mxu0 0
    %8284 = vmatpush2.bf16.xpose.msra.mxu0 0
    %8285 = vmatprep.subr.bf16.mxu0 0
    %8286 = vmatpush2.bf16.xpose.msra.mxu0 0
    %8287 = vmatprep.subr.bf16.mxu0 0
    %8288 = vmatpush2.bf16.xpose.msra.mxu0 0
    %8289 = vmatprep.subr.bf16.mxu0 0
    %8290 = vmatpush2.bf16.xpose.msra.mxu0 0
    %8291 = vmatprep.subr.bf16.mxu0 0
    %8292 = vmatpush2.bf16.xpose.msra.mxu0 0
    %8293 = vmatprep.subr.bf16.mxu0 0
    %8294 = vmatpush2.bf16.xpose.msra.mxu0 0
    %8295 = vmatprep.subr.bf16.mxu0 0
    %8296 = vmatpush2.bf16.xpose.msra.mxu0 0
    %8297 = vmatprep.mubr.bf16.mxu0 0
    %8298 = vmatmul.mubr.bf16.gmra.mxu0 %v8260
    %v8299 = vpop.f32.mrf.mxu0
    %v8300 = vadd.f32 %v7474, %v8299
    %v8301 = vpop.f32.mrf.mxu0
    %v8302 = vpop.f32.mrf.mxu0
    %v8303 = vadd.f32 %v7475, %v8302
    %v8304 = vpop.f32.mrf.mxu0
    %8305 = vdwg.mxu0
    %v8306 = vsel %vm6594, %v8300, -inf
    %8307 = vmax.xlane.f32.xlu0 %v8306
    %v8308 = vpop.xlane.xlu0 %8307
    %v8309 = vsel %vm6594, %v8303, -inf
    %8310 = vmax.xlane.f32.xlu0 %v8309
    %v8311 = vpop.xlane.xlu0 %8310
    %v8312 = vsub.f32 %v8300, %v8308
    %v8313 = vsub.f32 %v8303, %v8311
    %v8314 = vmul.f32 %v8312, 1.442695
    %v8315 = vpow.pop %v8314
    %v8316 = vmul.f32 %v8313, 1.442695
    %v8317 = vpow.pop %v8316
    %v8318 = vsel %vm6594, %v8315, 0.0
    %8319 = vadd.xlane.f32.xlu0 %v8318
    %v8320 = vpop.xlane.xlu0 %8319
    %v8321 = vsel %vm6594, %v8317, 0.0
    %8322 = vadd.xlane.f32.xlu0 %v8321
    %v8323 = vpop.xlane.xlu0 %8322
    %v8324 = vrcp.pop %v8320
    %v8325 = vmul.f32 %v8315, %v8324
    %v8326 = vrcp.pop %v8323
    %v8327 = vmul.f32 %v8317, %v8326
    %v8328 = vpack.c.bf16 %v8327, %v8325
    %8329 = vrot.lane.b32.xlu0 %v7457, 32
    %v8330 = vpop.permute.xlu0 %8329
    %v8333 = vsel %vm6594, %v8328, 0
    %8335 = vmatprep.subr.bf16.mxu0 0
    %8336 = vmatpush1.bf16.msra.mxu0 0
    %8337 = vmatprep.subr.bf16.mxu0 0
    %8338 = vmatpush1.bf16.msra.mxu0 0
    %8339 = vmatprep.subr.bf16.mxu0 0
    %8340 = vmatpush1.bf16.msra.mxu0 0
    %8341 = vmatprep.subr.bf16.mxu0 0
    %8342 = vmatpush1.bf16.msra.mxu0 0
    %8343 = vmatprep.subr.bf16.mxu0 0
    %8344 = vmatpush1.bf16.msra.mxu0 0
    %8345 = vmatprep.subr.bf16.mxu0 0
    %8346 = vmatpush1.bf16.msra.mxu0 0
    %8347 = vmatprep.subr.bf16.mxu0 0
    %8348 = vmatpush1.bf16.msra.mxu0 0
    %8349 = vmatprep.subr.bf16.mxu0 0
    %8350 = vmatpush1.bf16.msra.mxu0 %v8330
    %8351 = vmatprep.subr.bf16.mxu0 0
    %8352 = vmatpush2.bf16.msra.mxu0 0
    %8353 = vmatprep.subr.bf16.mxu0 0
    %8354 = vmatpush2.bf16.msra.mxu0 0
    %8355 = vmatprep.subr.bf16.mxu0 0
    %8356 = vmatpush2.bf16.msra.mxu0 0
    %8357 = vmatprep.subr.bf16.mxu0 0
    %8358 = vmatpush2.bf16.msra.mxu0 0
    %8359 = vmatprep.subr.bf16.mxu0 0
    %8360 = vmatpush2.bf16.msra.mxu0 0
    %8361 = vmatprep.subr.bf16.mxu0 0
    %8362 = vmatpush2.bf16.msra.mxu0 0
    %8363 = vmatprep.subr.bf16.mxu0 0
    %8364 = vmatpush2.bf16.msra.mxu0 0
    %8365 = vmatprep.subr.bf16.mxu0 0
    %8366 = vmatpush2.bf16.msra.mxu0 0
    %8367 = vmatprep.mubr.bf16.mxu0 0
    %8368 = vmatmul.mubr.bf16.gmra.mxu0 %v8333
    %v8369 = vpop.f32.mrf.mxu0
    %v8370 = vadd.f32 0.0, %v8369
    %v8371 = vpop.f32.mrf.mxu0
    %v8372 = vpop.f32.mrf.mxu0
    %v8373 = vadd.f32 0.0, %v8372
    %v8374 = vpop.f32.mrf.mxu0
    %8375 = vdwg.mxu0
    %8378 = vrot.lane.b32.xlu0 %v8370, 96
    %v8379 = vpop.permute.xlu0 %8378
    %8380 = vrot.lane.b32.xlu0 %v8373, 96
    %v8381 = vpop.permute.xlu0 %8380
    %vm8384 = vcmask 917248
    %8385 = vst.msk [vmem:[#allocation2] sm:$0xff] %vm8384, %v8379
    %8386 = vst.msk [vmem:[#allocation2 + $0x10] sm:$0xff] %vm8384, %v8381
    %8387 = vrot.lane.b32.xlu0 %v7453, 16
    %v8388 = vpop.permute.xlu0 %8387
    %8389 = vrot.lane.b32.xlu0 %v7455, 16
    %v8390 = vpop.permute.xlu0 %8389
    %v8392 = vsel %vm6594, %v8388, 0
    %v8395 = vsel %vm6594, %v8390, 0
    %8397 = vmatprep.subr.bf16.mxu0 0
    %8398 = vmatpush1.bf16.xpose.msra.mxu0 0
    %8399 = vmatprep.subr.bf16.mxu0 0
    %8400 = vmatpush1.bf16.xpose.msra.mxu0 0
    %8401 = vmatprep.subr.bf16.mxu0 0
    %8402 = vmatpush1.bf16.xpose.msra.mxu0 0
    %8403 = vmatprep.subr.bf16.mxu0 0
    %8404 = vmatpush1.bf16.xpose.msra.mxu0 0
    %8405 = vmatprep.subr.bf16.mxu0 0
    %8406 = vmatpush1.bf16.xpose.msra.mxu0 0
    %8407 = vmatprep.subr.bf16.mxu0 0
    %8408 = vmatpush1.bf16.xpose.msra.mxu0 0
    %8409 = vmatprep.subr.bf16.mxu0 0
    %8410 = vmatpush1.bf16.xpose.msra.mxu0 0
    %8411 = vmatprep.subr.bf16.mxu0 0
    %8412 = vmatpush1.bf16.xpose.msra.mxu0 %v8395
    %8413 = vmatprep.subr.bf16.mxu0 0
    %8414 = vmatpush2.bf16.xpose.msra.mxu0 0
    %8415 = vmatprep.subr.bf16.mxu0 0
    %8416 = vmatpush2.bf16.xpose.msra.mxu0 0
    %8417 = vmatprep.subr.bf16.mxu0 0
    %8418 = vmatpush2.bf16.xpose.msra.mxu0 0
    %8419 = vmatprep.subr.bf16.mxu0 0
    %8420 = vmatpush2.bf16.xpose.msra.mxu0 0
    %8421 = vmatprep.subr.bf16.mxu0 0
    %8422 = vmatpush2.bf16.xpose.msra.mxu0 0
    %8423 = vmatprep.subr.bf16.mxu0 0
    %8424 = vmatpush2.bf16.xpose.msra.mxu0 0
    %8425 = vmatprep.subr.bf16.mxu0 0
    %8426 = vmatpush2.bf16.xpose.msra.mxu0 0
    %8427 = vmatprep.subr.bf16.mxu0 0
    %8428 = vmatpush2.bf16.xpose.msra.mxu0 0
    %8429 = vmatprep.mubr.bf16.mxu0 0
    %8430 = vmatmul.mubr.bf16.gmra.mxu0 %v8392
    %v8431 = vpop.f32.mrf.mxu0
    %v8432 = vadd.f32 %v7474, %v8431
    %v8433 = vpop.f32.mrf.mxu0
    %v8434 = vpop.f32.mrf.mxu0
    %v8435 = vadd.f32 %v7475, %v8434
    %v8436 = vpop.f32.mrf.mxu0
    %8437 = vdwg.mxu0
    %v8438 = vsel %vm6594, %v8432, -inf
    %8439 = vmax.xlane.f32.xlu0 %v8438
    %v8440 = vpop.xlane.xlu0 %8439
    %v8441 = vsel %vm6594, %v8435, -inf
    %8442 = vmax.xlane.f32.xlu0 %v8441
    %v8443 = vpop.xlane.xlu0 %8442
    %v8444 = vsub.f32 %v8432, %v8440
    %v8445 = vsub.f32 %v8435, %v8443
    %v8446 = vmul.f32 %v8444, 1.442695
    %v8447 = vpow.pop %v8446
    %v8448 = vmul.f32 %v8445, 1.442695
    %v8449 = vpow.pop %v8448
    %v8450 = vsel %vm6594, %v8447, 0.0
    %8451 = vadd.xlane.f32.xlu0 %v8450
    %v8452 = vpop.xlane.xlu0 %8451
    %v8453 = vsel %vm6594, %v8449, 0.0
    %8454 = vadd.xlane.f32.xlu0 %v8453
    %v8455 = vpop.xlane.xlu0 %8454
    %v8456 = vrcp.pop %v8452
    %v8457 = vmul.f32 %v8447, %v8456
    %v8458 = vrcp.pop %v8455
    %v8459 = vmul.f32 %v8449, %v8458
    %v8460 = vpack.c.bf16 %v8459, %v8457
    %8461 = vrot.lane.b32.xlu0 %v7457, 16
    %v8462 = vpop.permute.xlu0 %8461
    %v8465 = vsel %vm6594, %v8460, 0
    %8467 = vmatprep.subr.bf16.mxu0 0
    %8468 = vmatpush1.bf16.msra.mxu0 0
    %8469 = vmatprep.subr.bf16.mxu0 0
    %8470 = vmatpush1.bf16.msra.mxu0 0
    %8471 = vmatprep.subr.bf16.mxu0 0
    %8472 = vmatpush1.bf16.msra.mxu0 0
    %8473 = vmatprep.subr.bf16.mxu0 0
    %8474 = vmatpush1.bf16.msra.mxu0 0
    %8475 = vmatprep.subr.bf16.mxu0 0
    %8476 = vmatpush1.bf16.msra.mxu0 0
    %8477 = vmatprep.subr.bf16.mxu0 0
    %8478 = vmatpush1.bf16.msra.mxu0 0
    %8479 = vmatprep.subr.bf16.mxu0 0
    %8480 = vmatpush1.bf16.msra.mxu0 0
    %8481 = vmatprep.subr.bf16.mxu0 0
    %8482 = vmatpush1.bf16.msra.mxu0 %v8462
    %8483 = vmatprep.subr.bf16.mxu0 0
    %8484 = vmatpush2.bf16.msra.mxu0 0
    %8485 = vmatprep.subr.bf16.mxu0 0
    %8486 = vmatpush2.bf16.msra.mxu0 0
    %8487 = vmatprep.subr.bf16.mxu0 0
    %8488 = vmatpush2.bf16.msra.mxu0 0
    %8489 = vmatprep.subr.bf16.mxu0 0
    %8490 = vmatpush2.bf16.msra.mxu0 0
    %8491 = vmatprep.subr.bf16.mxu0 0
    %8492 = vmatpush2.bf16.msra.mxu0 0
    %8493 = vmatprep.subr.bf16.mxu0 0
    %8494 = vmatpush2.bf16.msra.mxu0 0
    %8495 = vmatprep.subr.bf16.mxu0 0
    %8496 = vmatpush2.bf16.msra.mxu0 0
    %8497 = vmatprep.subr.bf16.mxu0 0
    %8498 = vmatpush2.bf16.msra.mxu0 0
    %8499 = vmatprep.mubr.bf16.mxu0 0
    %8500 = vmatmul.mubr.bf16.gmra.mxu0 %v8465
    %v8501 = vpop.f32.mrf.mxu0
    %v8502 = vadd.f32 0.0, %v8501
    %v8503 = vpop.f32.mrf.mxu0
    %v8504 = vpop.f32.mrf.mxu0
    %v8505 = vadd.f32 0.0, %v8504
    %v8506 = vpop.f32.mrf.mxu0
    %8507 = vdwg.mxu0
    %8510 = vrot.lane.b32.xlu0 %v8502, 112
    %v8511 = vpop.permute.xlu0 %8510
    %8512 = vrot.lane.b32.xlu0 %v8505, 112
    %v8513 = vpop.permute.xlu0 %8512
    %vm8516 = vcmask 1048448
    %8517 = vst.msk [vmem:[#allocation2] sm:$0xff] %vm8516, %v8511
    %8518 = vst.msk [vmem:[#allocation2 + $0x10] sm:$0xff] %vm8516, %v8513
    %v8520 = vsel %vm6594, %v7454, 0
    %v8523 = vsel %vm6594, %v7456, 0
    %8525 = vmatprep.subr.bf16.mxu0 0
    %8526 = vmatpush1.bf16.xpose.msra.mxu0 0
    %8527 = vmatprep.subr.bf16.mxu0 0
    %8528 = vmatpush1.bf16.xpose.msra.mxu0 0
    %8529 = vmatprep.subr.bf16.mxu0 0
    %8530 = vmatpush1.bf16.xpose.msra.mxu0 0
    %8531 = vmatprep.subr.bf16.mxu0 0
    %8532 = vmatpush1.bf16.xpose.msra.mxu0 0
    %8533 = vmatprep.subr.bf16.mxu0 0
    %8534 = vmatpush1.bf16.xpose.msra.mxu0 0
    %8535 = vmatprep.subr.bf16.mxu0 0
    %8536 = vmatpush1.bf16.xpose.msra.mxu0 0
    %8537 = vmatprep.subr.bf16.mxu0 0
    %8538 = vmatpush1.bf16.xpose.msra.mxu0 0
    %8539 = vmatprep.subr.bf16.mxu0 0
    %8540 = vmatpush1.bf16.xpose.msra.mxu0 %v8523
    %8541 = vmatprep.subr.bf16.mxu0 0
    %8542 = vmatpush2.bf16.xpose.msra.mxu0 0
    %8543 = vmatprep.subr.bf16.mxu0 0
    %8544 = vmatpush2.bf16.xpose.msra.mxu0 0
    %8545 = vmatprep.subr.bf16.mxu0 0
    %8546 = vmatpush2.bf16.xpose.msra.mxu0 0
    %8547 = vmatprep.subr.bf16.mxu0 0
    %8548 = vmatpush2.bf16.xpose.msra.mxu0 0
    %8549 = vmatprep.subr.bf16.mxu0 0
    %8550 = vmatpush2.bf16.xpose.msra.mxu0 0
    %8551 = vmatprep.subr.bf16.mxu0 0
    %8552 = vmatpush2.bf16.xpose.msra.mxu0 0
    %8553 = vmatprep.subr.bf16.mxu0 0
    %8554 = vmatpush2.bf16.xpose.msra.mxu0 0
    %8555 = vmatprep.subr.bf16.mxu0 0
    %8556 = vmatpush2.bf16.xpose.msra.mxu0 0
    %8557 = vmatprep.mubr.bf16.mxu0 0
    %8558 = vmatmul.mubr.bf16.gmra.mxu0 %v8520
    %v8559 = vpop.f32.mrf.mxu0
    %v8560 = vadd.f32 %v7474, %v8559
    %v8561 = vpop.f32.mrf.mxu0
    %v8562 = vpop.f32.mrf.mxu0
    %v8563 = vadd.f32 %v7475, %v8562
    %v8564 = vpop.f32.mrf.mxu0
    %8565 = vdwg.mxu0
    %v8566 = vsel %vm6594, %v8560, -inf
    %8567 = vmax.xlane.f32.xlu0 %v8566
    %v8568 = vpop.xlane.xlu0 %8567
    %v8569 = vsel %vm6594, %v8563, -inf
    %8570 = vmax.xlane.f32.xlu0 %v8569
    %v8571 = vpop.xlane.xlu0 %8570
    %v8572 = vsub.f32 %v8560, %v8568
    %v8573 = vsub.f32 %v8563, %v8571
    %v8574 = vmul.f32 %v8572, 1.442695
    %v8575 = vpow.pop %v8574
    %v8576 = vmul.f32 %v8573, 1.442695
    %v8577 = vpow.pop %v8576
    %v8578 = vsel %vm6594, %v8575, 0.0
    %8579 = vadd.xlane.f32.xlu0 %v8578
    %v8580 = vpop.xlane.xlu0 %8579
    %v8581 = vsel %vm6594, %v8577, 0.0
    %8582 = vadd.xlane.f32.xlu0 %v8581
    %v8583 = vpop.xlane.xlu0 %8582
    %v8584 = vrcp.pop %v8580
    %v8585 = vmul.f32 %v8575, %v8584
    %v8586 = vrcp.pop %v8583
    %v8587 = vmul.f32 %v8577, %v8586
    %v8588 = vpack.c.bf16 %v8587, %v8585
    %v8590 = vsel %vm6594, %v8588, 0
    %8592 = vmatprep.subr.bf16.mxu0 0
    %8593 = vmatpush1.bf16.msra.mxu0 0
    %8594 = vmatprep.subr.bf16.mxu0 0
    %8595 = vmatpush1.bf16.msra.mxu0 0
    %8596 = vmatprep.subr.bf16.mxu0 0
    %8597 = vmatpush1.bf16.msra.mxu0 0
    %8598 = vmatprep.subr.bf16.mxu0 0
    %8599 = vmatpush1.bf16.msra.mxu0 0
    %8600 = vmatprep.subr.bf16.mxu0 0
    %8601 = vmatpush1.bf16.msra.mxu0 0
    %8602 = vmatprep.subr.bf16.mxu0 0
    %8603 = vmatpush1.bf16.msra.mxu0 0
    %8604 = vmatprep.subr.bf16.mxu0 0
    %8605 = vmatpush1.bf16.msra.mxu0 0
    %8606 = vmatprep.subr.bf16.mxu0 0
    %8607 = vmatpush1.bf16.msra.mxu0 %v7458
    %8608 = vmatprep.subr.bf16.mxu0 0
    %8609 = vmatpush2.bf16.msra.mxu0 0
    %8610 = vmatprep.subr.bf16.mxu0 0
    %8611 = vmatpush2.bf16.msra.mxu0 0
    %8612 = vmatprep.subr.bf16.mxu0 0
    %8613 = vmatpush2.bf16.msra.mxu0 0
    %8614 = vmatprep.subr.bf16.mxu0 0
    %8615 = vmatpush2.bf16.msra.mxu0 0
    %8616 = vmatprep.subr.bf16.mxu0 0
    %8617 = vmatpush2.bf16.msra.mxu0 0
    %8618 = vmatprep.subr.bf16.mxu0 0
    %8619 = vmatpush2.bf16.msra.mxu0 0
    %8620 = vmatprep.subr.bf16.mxu0 0
    %8621 = vmatpush2.bf16.msra.mxu0 0
    %8622 = vmatprep.subr.bf16.mxu0 0
    %8623 = vmatpush2.bf16.msra.mxu0 0
    %8624 = vmatprep.mubr.bf16.mxu0 0
    %8625 = vmatmul.mubr.bf16.gmra.mxu0 %v8590
    %v8626 = vpop.f32.mrf.mxu0
    %v8627 = vadd.f32 0.0, %v8626
    %v8628 = vpop.f32.mrf.mxu0
    %v8629 = vpop.f32.mrf.mxu0
    %v8630 = vadd.f32 0.0, %v8629
    %v8631 = vpop.f32.mrf.mxu0
    %8632 = vdwg.mxu0
    %8633 = vst.msk [vmem:[#allocation2 + $0x8] sm:$0xff] %vm6594, %v8627
    %8634 = vst.msk [vmem:[#allocation2 + $0x18] sm:$0xff] %vm6594, %v8630
    %8636 = vrot.lane.b32.xlu0 %v7454, 112
    %v8637 = vpop.permute.xlu0 %8636
    %8639 = vrot.lane.b32.xlu0 %v7456, 112
    %v8640 = vpop.permute.xlu0 %8639
    %v8642 = vsel %vm6594, %v8637, 0
    %v8645 = vsel %vm6594, %v8640, 0
    %8647 = vmatprep.subr.bf16.mxu0 0
    %8648 = vmatpush1.bf16.xpose.msra.mxu0 0
    %8649 = vmatprep.subr.bf16.mxu0 0
    %8650 = vmatpush1.bf16.xpose.msra.mxu0 0
    %8651 = vmatprep.subr.bf16.mxu0 0
    %8652 = vmatpush1.bf16.xpose.msra.mxu0 0
    %8653 = vmatprep.subr.bf16.mxu0 0
    %8654 = vmatpush1.bf16.xpose.msra.mxu0 0
    %8655 = vmatprep.subr.bf16.mxu0 0
    %8656 = vmatpush1.bf16.xpose.msra.mxu0 0
    %8657 = vmatprep.subr.bf16.mxu0 0
    %8658 = vmatpush1.bf16.xpose.msra.mxu0 0
    %8659 = vmatprep.subr.bf16.mxu0 0
    %8660 = vmatpush1.bf16.xpose.msra.mxu0 0
    %8661 = vmatprep.subr.bf16.mxu0 0
    %8662 = vmatpush1.bf16.xpose.msra.mxu0 %v8645
    %8663 = vmatprep.subr.bf16.mxu0 0
    %8664 = vmatpush2.bf16.xpose.msra.mxu0 0
    %8665 = vmatprep.subr.bf16.mxu0 0
    %8666 = vmatpush2.bf16.xpose.msra.mxu0 0
    %8667 = vmatprep.subr.bf16.mxu0 0
    %8668 = vmatpush2.bf16.xpose.msra.mxu0 0
    %8669 = vmatprep.subr.bf16.mxu0 0
    %8670 = vmatpush2.bf16.xpose.msra.mxu0 0
    %8671 = vmatprep.subr.bf16.mxu0 0
    %8672 = vmatpush2.bf16.xpose.msra.mxu0 0
    %8673 = vmatprep.subr.bf16.mxu0 0
    %8674 = vmatpush2.bf16.xpose.msra.mxu0 0
    %8675 = vmatprep.subr.bf16.mxu0 0
    %8676 = vmatpush2.bf16.xpose.msra.mxu0 0
    %8677 = vmatprep.subr.bf16.mxu0 0
    %8678 = vmatpush2.bf16.xpose.msra.mxu0 0
    %8679 = vmatprep.mubr.bf16.mxu0 0
    %8680 = vmatmul.mubr.bf16.gmra.mxu0 %v8642
    %v8681 = vpop.f32.mrf.mxu0
    %v8682 = vadd.f32 %v7474, %v8681
    %v8683 = vpop.f32.mrf.mxu0
    %v8684 = vpop.f32.mrf.mxu0
    %v8685 = vadd.f32 %v7475, %v8684
    %v8686 = vpop.f32.mrf.mxu0
    %8687 = vdwg.mxu0
    %v8688 = vsel %vm6594, %v8682, -inf
    %8689 = vmax.xlane.f32.xlu0 %v8688
    %v8690 = vpop.xlane.xlu0 %8689
    %v8691 = vsel %vm6594, %v8685, -inf
    %8692 = vmax.xlane.f32.xlu0 %v8691
    %v8693 = vpop.xlane.xlu0 %8692
    %v8694 = vsub.f32 %v8682, %v8690
    %v8695 = vsub.f32 %v8685, %v8693
    %v8696 = vmul.f32 %v8694, 1.442695
    %v8697 = vpow.pop %v8696
    %v8698 = vmul.f32 %v8695, 1.442695
    %v8699 = vpow.pop %v8698
    %v8700 = vsel %vm6594, %v8697, 0.0
    %8701 = vadd.xlane.f32.xlu0 %v8700
    %v8702 = vpop.xlane.xlu0 %8701
    %v8703 = vsel %vm6594, %v8699, 0.0
    %8704 = vadd.xlane.f32.xlu0 %v8703
    %v8705 = vpop.xlane.xlu0 %8704
    %v8706 = vrcp.pop %v8702
    %v8707 = vmul.f32 %v8697, %v8706
    %v8708 = vrcp.pop %v8705
    %v8709 = vmul.f32 %v8699, %v8708
    %v8710 = vpack.c.bf16 %v8709, %v8707
    %8712 = vrot.lane.b32.xlu0 %v7458, 112
    %v8713 = vpop.permute.xlu0 %8712
    %v8716 = vsel %vm6594, %v8710, 0
    %8718 = vmatprep.subr.bf16.mxu0 0
    %8719 = vmatpush1.bf16.msra.mxu0 0
    %8720 = vmatprep.subr.bf16.mxu0 0
    %8721 = vmatpush1.bf16.msra.mxu0 0
    %8722 = vmatprep.subr.bf16.mxu0 0
    %8723 = vmatpush1.bf16.msra.mxu0 0
    %8724 = vmatprep.subr.bf16.mxu0 0
    %8725 = vmatpush1.bf16.msra.mxu0 0
    %8726 = vmatprep.subr.bf16.mxu0 0
    %8727 = vmatpush1.bf16.msra.mxu0 0
    %8728 = vmatprep.subr.bf16.mxu0 0
    %8729 = vmatpush1.bf16.msra.mxu0 0
    %8730 = vmatprep.subr.bf16.mxu0 0
    %8731 = vmatpush1.bf16.msra.mxu0 0
    %8732 = vmatprep.subr.bf16.mxu0 0
    %8733 = vmatpush1.bf16.msra.mxu0 %v8713
    %8734 = vmatprep.subr.bf16.mxu0 0
    %8735 = vmatpush2.bf16.msra.mxu0 0
    %8736 = vmatprep.subr.bf16.mxu0 0
    %8737 = vmatpush2.bf16.msra.mxu0 0
    %8738 = vmatprep.subr.bf16.mxu0 0
    %8739 = vmatpush2.bf16.msra.mxu0 0
    %8740 = vmatprep.subr.bf16.mxu0 0
    %8741 = vmatpush2.bf16.msra.mxu0 0
    %8742 = vmatprep.subr.bf16.mxu0 0
    %8743 = vmatpush2.bf16.msra.mxu0 0
    %8744 = vmatprep.subr.bf16.mxu0 0
    %8745 = vmatpush2.bf16.msra.mxu0 0
    %8746 = vmatprep.subr.bf16.mxu0 0
    %8747 = vmatpush2.bf16.msra.mxu0 0
    %8748 = vmatprep.subr.bf16.mxu0 0
    %8749 = vmatpush2.bf16.msra.mxu0 0
    %8750 = vmatprep.mubr.bf16.mxu0 0
    %8751 = vmatmul.mubr.bf16.gmra.mxu0 %v8716
    %v8752 = vpop.f32.mrf.mxu0
    %v8753 = vadd.f32 0.0, %v8752
    %v8754 = vpop.f32.mrf.mxu0
    %v8755 = vpop.f32.mrf.mxu0
    %v8756 = vadd.f32 0.0, %v8755
    %v8757 = vpop.f32.mrf.mxu0
    %8758 = vdwg.mxu0
    %8761 = vrot.lane.b32.xlu0 %v8753, 16
    %v8762 = vpop.permute.xlu0 %8761
    %8763 = vrot.lane.b32.xlu0 %v8756, 16
    %v8764 = vpop.permute.xlu0 %8763
    %8767 = vst.msk [vmem:[#allocation2 + $0x8] sm:$0xff] %vm7724, %v8762
    %8768 = vst.msk [vmem:[#allocation2 + $0x18] sm:$0xff] %vm7724, %v8764
    %8769 = vrot.lane.b32.xlu0 %v7454, 96
    %v8770 = vpop.permute.xlu0 %8769
    %8771 = vrot.lane.b32.xlu0 %v7456, 96
    %v8772 = vpop.permute.xlu0 %8771
    %v8774 = vsel %vm6594, %v8770, 0
    %v8777 = vsel %vm6594, %v8772, 0
    %8779 = vmatprep.subr.bf16.mxu0 0
    %8780 = vmatpush1.bf16.xpose.msra.mxu0 0
    %8781 = vmatprep.subr.bf16.mxu0 0
    %8782 = vmatpush1.bf16.xpose.msra.mxu0 0
    %8783 = vmatprep.subr.bf16.mxu0 0
    %8784 = vmatpush1.bf16.xpose.msra.mxu0 0
    %8785 = vmatprep.subr.bf16.mxu0 0
    %8786 = vmatpush1.bf16.xpose.msra.mxu0 0
    %8787 = vmatprep.subr.bf16.mxu0 0
    %8788 = vmatpush1.bf16.xpose.msra.mxu0 0
    %8789 = vmatprep.subr.bf16.mxu0 0
    %8790 = vmatpush1.bf16.xpose.msra.mxu0 0
    %8791 = vmatprep.subr.bf16.mxu0 0
    %8792 = vmatpush1.bf16.xpose.msra.mxu0 0
    %8793 = vmatprep.subr.bf16.mxu0 0
    %8794 = vmatpush1.bf16.xpose.msra.mxu0 %v8777
    %8795 = vmatprep.subr.bf16.mxu0 0
    %8796 = vmatpush2.bf16.xpose.msra.mxu0 0
    %8797 = vmatprep.subr.bf16.mxu0 0
    %8798 = vmatpush2.bf16.xpose.msra.mxu0 0
    %8799 = vmatprep.subr.bf16.mxu0 0
    %8800 = vmatpush2.bf16.xpose.msra.mxu0 0
    %8801 = vmatprep.subr.bf16.mxu0 0
    %8802 = vmatpush2.bf16.xpose.msra.mxu0 0
    %8803 = vmatprep.subr.bf16.mxu0 0
    %8804 = vmatpush2.bf16.xpose.msra.mxu0 0
    %8805 = vmatprep.subr.bf16.mxu0 0
    %8806 = vmatpush2.bf16.xpose.msra.mxu0 0
    %8807 = vmatprep.subr.bf16.mxu0 0
    %8808 = vmatpush2.bf16.xpose.msra.mxu0 0
    %8809 = vmatprep.subr.bf16.mxu0 0
    %8810 = vmatpush2.bf16.xpose.msra.mxu0 0
    %8811 = vmatprep.mubr.bf16.mxu0 0
    %8812 = vmatmul.mubr.bf16.gmra.mxu0 %v8774
    %v8813 = vpop.f32.mrf.mxu0
    %v8814 = vadd.f32 %v7474, %v8813
    %v8815 = vpop.f32.mrf.mxu0
    %v8816 = vpop.f32.mrf.mxu0
    %v8817 = vadd.f32 %v7475, %v8816
    %v8818 = vpop.f32.mrf.mxu0
    %8819 = vdwg.mxu0
    %v8820 = vsel %vm6594, %v8814, -inf
    %8821 = vmax.xlane.f32.xlu0 %v8820
    %v8822 = vpop.xlane.xlu0 %8821
    %v8823 = vsel %vm6594, %v8817, -inf
    %8824 = vmax.xlane.f32.xlu0 %v8823
    %v8825 = vpop.xlane.xlu0 %8824
    %v8826 = vsub.f32 %v8814, %v8822
    %v8827 = vsub.f32 %v8817, %v8825
    %v8828 = vmul.f32 %v8826, 1.442695
    %v8829 = vpow.pop %v8828
    %v8830 = vmul.f32 %v8827, 1.442695
    %v8831 = vpow.pop %v8830
    %v8832 = vsel %vm6594, %v8829, 0.0
    %8833 = vadd.xlane.f32.xlu0 %v8832
    %v8834 = vpop.xlane.xlu0 %8833
    %v8835 = vsel %vm6594, %v8831, 0.0
    %8836 = vadd.xlane.f32.xlu0 %v8835
    %v8837 = vpop.xlane.xlu0 %8836
    %v8838 = vrcp.pop %v8834
    %v8839 = vmul.f32 %v8829, %v8838
    %v8840 = vrcp.pop %v8837
    %v8841 = vmul.f32 %v8831, %v8840
    %v8842 = vpack.c.bf16 %v8841, %v8839
    %8843 = vrot.lane.b32.xlu0 %v7458, 96
    %v8844 = vpop.permute.xlu0 %8843
    %v8847 = vsel %vm6594, %v8842, 0
    %8849 = vmatprep.subr.bf16.mxu0 0
    %8850 = vmatpush1.bf16.msra.mxu0 0
    %8851 = vmatprep.subr.bf16.mxu0 0
    %8852 = vmatpush1.bf16.msra.mxu0 0
    %8853 = vmatprep.subr.bf16.mxu0 0
    %8854 = vmatpush1.bf16.msra.mxu0 0
    %8855 = vmatprep.subr.bf16.mxu0 0
    %8856 = vmatpush1.bf16.msra.mxu0 0
    %8857 = vmatprep.subr.bf16.mxu0 0
    %8858 = vmatpush1.bf16.msra.mxu0 0
    %8859 = vmatprep.subr.bf16.mxu0 0
    %8860 = vmatpush1.bf16.msra.mxu0 0
    %8861 = vmatprep.subr.bf16.mxu0 0
    %8862 = vmatpush1.bf16.msra.mxu0 0
    %8863 = vmatprep.subr.bf16.mxu0 0
    %8864 = vmatpush1.bf16.msra.mxu0 %v8844
    %8865 = vmatprep.subr.bf16.mxu0 0
    %8866 = vmatpush2.bf16.msra.mxu0 0
    %8867 = vmatprep.subr.bf16.mxu0 0
    %8868 = vmatpush2.bf16.msra.mxu0 0
    %8869 = vmatprep.subr.bf16.mxu0 0
    %8870 = vmatpush2.bf16.msra.mxu0 0
    %8871 = vmatprep.subr.bf16.mxu0 0
    %8872 = vmatpush2.bf16.msra.mxu0 0
    %8873 = vmatprep.subr.bf16.mxu0 0
    %8874 = vmatpush2.bf16.msra.mxu0 0
    %8875 = vmatprep.subr.bf16.mxu0 0
    %8876 = vmatpush2.bf16.msra.mxu0 0
    %8877 = vmatprep.subr.bf16.mxu0 0
    %8878 = vmatpush2.bf16.msra.mxu0 0
    %8879 = vmatprep.subr.bf16.mxu0 0
    %8880 = vmatpush2.bf16.msra.mxu0 0
    %8881 = vmatprep.mubr.bf16.mxu0 0
    %8882 = vmatmul.mubr.bf16.gmra.mxu0 %v8847
    %v8883 = vpop.f32.mrf.mxu0
    %v8884 = vadd.f32 0.0, %v8883
    %v8885 = vpop.f32.mrf.mxu0
    %v8886 = vpop.f32.mrf.mxu0
    %v8887 = vadd.f32 0.0, %v8886
    %v8888 = vpop.f32.mrf.mxu0
    %8889 = vdwg.mxu0
    %8892 = vrot.lane.b32.xlu0 %v8884, 32
    %v8893 = vpop.permute.xlu0 %8892
    %8894 = vrot.lane.b32.xlu0 %v8887, 32
    %v8895 = vpop.permute.xlu0 %8894
    %8898 = vst.msk [vmem:[#allocation2 + $0x8] sm:$0xff] %vm7856, %v8893
    %8899 = vst.msk [vmem:[#allocation2 + $0x18] sm:$0xff] %vm7856, %v8895
    %8900 = vrot.lane.b32.xlu0 %v7454, 80
    %v8901 = vpop.permute.xlu0 %8900
    %8902 = vrot.lane.b32.xlu0 %v7456, 80
    %v8903 = vpop.permute.xlu0 %8902
    %v8905 = vsel %vm6594, %v8901, 0
    %v8908 = vsel %vm6594, %v8903, 0
    %8910 = vmatprep.subr.bf16.mxu0 0
    %8911 = vmatpush1.bf16.xpose.msra.mxu0 0
    %8912 = vmatprep.subr.bf16.mxu0 0
    %8913 = vmatpush1.bf16.xpose.msra.mxu0 0
    %8914 = vmatprep.subr.bf16.mxu0 0
    %8915 = vmatpush1.bf16.xpose.msra.mxu0 0
    %8916 = vmatprep.subr.bf16.mxu0 0
    %8917 = vmatpush1.bf16.xpose.msra.mxu0 0
    %8918 = vmatprep.subr.bf16.mxu0 0
    %8919 = vmatpush1.bf16.xpose.msra.mxu0 0
    %8920 = vmatprep.subr.bf16.mxu0 0
    %8921 = vmatpush1.bf16.xpose.msra.mxu0 0
    %8922 = vmatprep.subr.bf16.mxu0 0
    %8923 = vmatpush1.bf16.xpose.msra.mxu0 0
    %8924 = vmatprep.subr.bf16.mxu0 0
    %8925 = vmatpush1.bf16.xpose.msra.mxu0 %v8908
    %8926 = vmatprep.subr.bf16.mxu0 0
    %8927 = vmatpush2.bf16.xpose.msra.mxu0 0
    %8928 = vmatprep.subr.bf16.mxu0 0
    %8929 = vmatpush2.bf16.xpose.msra.mxu0 0
    %8930 = vmatprep.subr.bf16.mxu0 0
    %8931 = vmatpush2.bf16.xpose.msra.mxu0 0
    %8932 = vmatprep.subr.bf16.mxu0 0
    %8933 = vmatpush2.bf16.xpose.msra.mxu0 0
    %8934 = vmatprep.subr.bf16.mxu0 0
    %8935 = vmatpush2.bf16.xpose.msra.mxu0 0
    %8936 = vmatprep.subr.bf16.mxu0 0
    %8937 = vmatpush2.bf16.xpose.msra.mxu0 0
    %8938 = vmatprep.subr.bf16.mxu0 0
    %8939 = vmatpush2.bf16.xpose.msra.mxu0 0
    %8940 = vmatprep.subr.bf16.mxu0 0
    %8941 = vmatpush2.bf16.xpose.msra.mxu0 0
    %8942 = vmatprep.mubr.bf16.mxu0 0
    %8943 = vmatmul.mubr.bf16.gmra.mxu0 %v8905
    %v8944 = vpop.f32.mrf.mxu0
    %v8945 = vadd.f32 %v7474, %v8944
    %v8946 = vpop.f32.mrf.mxu0
    %v8947 = vpop.f32.mrf.mxu0
    %v8948 = vadd.f32 %v7475, %v8947
    %v8949 = vpop.f32.mrf.mxu0
    %8950 = vdwg.mxu0
    %v8951 = vsel %vm6594, %v8945, -inf
    %8952 = vmax.xlane.f32.xlu0 %v8951
    %v8953 = vpop.xlane.xlu0 %8952
    %v8954 = vsel %vm6594, %v8948, -inf
    %8955 = vmax.xlane.f32.xlu0 %v8954
    %v8956 = vpop.xlane.xlu0 %8955
    %v8957 = vsub.f32 %v8945, %v8953
    %v8958 = vsub.f32 %v8948, %v8956
    %v8959 = vmul.f32 %v8957, 1.442695
    %v8960 = vpow.pop %v8959
    %v8961 = vmul.f32 %v8958, 1.442695
    %v8962 = vpow.pop %v8961
    %v8963 = vsel %vm6594, %v8960, 0.0
    %8964 = vadd.xlane.f32.xlu0 %v8963
    %v8965 = vpop.xlane.xlu0 %8964
    %v8966 = vsel %vm6594, %v8962, 0.0
    %8967 = vadd.xlane.f32.xlu0 %v8966
    %v8968 = vpop.xlane.xlu0 %8967
    %v8969 = vrcp.pop %v8965
    %v8970 = vmul.f32 %v8960, %v8969
    %v8971 = vrcp.pop %v8968
    %v8972 = vmul.f32 %v8962, %v8971
    %v8973 = vpack.c.bf16 %v8972, %v8970
    %8974 = vrot.lane.b32.xlu0 %v7458, 80
    %v8975 = vpop.permute.xlu0 %8974
    %v8978 = vsel %vm6594, %v8973, 0
    %8980 = vmatprep.subr.bf16.mxu0 0
    %8981 = vmatpush1.bf16.msra.mxu0 0
    %8982 = vmatprep.subr.bf16.mxu0 0
    %8983 = vmatpush1.bf16.msra.mxu0 0
    %8984 = vmatprep.subr.bf16.mxu0 0
    %8985 = vmatpush1.bf16.msra.mxu0 0
    %8986 = vmatprep.subr.bf16.mxu0 0
    %8987 = vmatpush1.bf16.msra.mxu0 0
    %8988 = vmatprep.subr.bf16.mxu0 0
    %8989 = vmatpush1.bf16.msra.mxu0 0
    %8990 = vmatprep.subr.bf16.mxu0 0
    %8991 = vmatpush1.bf16.msra.mxu0 0
    %8992 = vmatprep.subr.bf16.mxu0 0
    %8993 = vmatpush1.bf16.msra.mxu0 0
    %8994 = vmatprep.subr.bf16.mxu0 0
    %8995 = vmatpush1.bf16.msra.mxu0 %v8975
    %8996 = vmatprep.subr.bf16.mxu0 0
    %8997 = vmatpush2.bf16.msra.mxu0 0
    %8998 = vmatprep.subr.bf16.mxu0 0
    %8999 = vmatpush2.bf16.msra.mxu0 0
    %9000 = vmatprep.subr.bf16.mxu0 0
    %9001 = vmatpush2.bf16.msra.mxu0 0
    %9002 = vmatprep.subr.bf16.mxu0 0
    %9003 = vmatpush2.bf16.msra.mxu0 0
    %9004 = vmatprep.subr.bf16.mxu0 0
    %9005 = vmatpush2.bf16.msra.mxu0 0
    %9006 = vmatprep.subr.bf16.mxu0 0
    %9007 = vmatpush2.bf16.msra.mxu0 0
    %9008 = vmatprep.subr.bf16.mxu0 0
    %9009 = vmatpush2.bf16.msra.mxu0 0
    %9010 = vmatprep.subr.bf16.mxu0 0
    %9011 = vmatpush2.bf16.msra.mxu0 0
    %9012 = vmatprep.mubr.bf16.mxu0 0
    %9013 = vmatmul.mubr.bf16.gmra.mxu0 %v8978
    %v9014 = vpop.f32.mrf.mxu0
    %v9015 = vadd.f32 0.0, %v9014
    %v9016 = vpop.f32.mrf.mxu0
    %v9017 = vpop.f32.mrf.mxu0
    %v9018 = vadd.f32 0.0, %v9017
    %v9019 = vpop.f32.mrf.mxu0
    %9020 = vdwg.mxu0
    %9023 = vrot.lane.b32.xlu0 %v9015, 48
    %v9024 = vpop.permute.xlu0 %9023
    %9025 = vrot.lane.b32.xlu0 %v9018, 48
    %v9026 = vpop.permute.xlu0 %9025
    %9029 = vst.msk [vmem:[#allocation2 + $0x8] sm:$0xff] %vm7988, %v9024
    %9030 = vst.msk [vmem:[#allocation2 + $0x18] sm:$0xff] %vm7988, %v9026
    %9031 = vrot.lane.b32.xlu0 %v7454, 64
    %v9032 = vpop.permute.xlu0 %9031
    %9033 = vrot.lane.b32.xlu0 %v7456, 64
    %v9034 = vpop.permute.xlu0 %9033
    %v9036 = vsel %vm6594, %v9032, 0
    %v9039 = vsel %vm6594, %v9034, 0
    %9041 = vmatprep.subr.bf16.mxu0 0
    %9042 = vmatpush1.bf16.xpose.msra.mxu0 0
    %9043 = vmatprep.subr.bf16.mxu0 0
    %9044 = vmatpush1.bf16.xpose.msra.mxu0 0
    %9045 = vmatprep.subr.bf16.mxu0 0
    %9046 = vmatpush1.bf16.xpose.msra.mxu0 0
    %9047 = vmatprep.subr.bf16.mxu0 0
    %9048 = vmatpush1.bf16.xpose.msra.mxu0 0
    %9049 = vmatprep.subr.bf16.mxu0 0
    %9050 = vmatpush1.bf16.xpose.msra.mxu0 0
    %9051 = vmatprep.subr.bf16.mxu0 0
    %9052 = vmatpush1.bf16.xpose.msra.mxu0 0
    %9053 = vmatprep.subr.bf16.mxu0 0
    %9054 = vmatpush1.bf16.xpose.msra.mxu0 0
    %9055 = vmatprep.subr.bf16.mxu0 0
    %9056 = vmatpush1.bf16.xpose.msra.mxu0 %v9039
    %9057 = vmatprep.subr.bf16.mxu0 0
    %9058 = vmatpush2.bf16.xpose.msra.mxu0 0
    %9059 = vmatprep.subr.bf16.mxu0 0
    %9060 = vmatpush2.bf16.xpose.msra.mxu0 0
    %9061 = vmatprep.subr.bf16.mxu0 0
    %9062 = vmatpush2.bf16.xpose.msra.mxu0 0
    %9063 = vmatprep.subr.bf16.mxu0 0
    %9064 = vmatpush2.bf16.xpose.msra.mxu0 0
    %9065 = vmatprep.subr.bf16.mxu0 0
    %9066 = vmatpush2.bf16.xpose.msra.mxu0 0
    %9067 = vmatprep.subr.bf16.mxu0 0
    %9068 = vmatpush2.bf16.xpose.msra.mxu0 0
    %9069 = vmatprep.subr.bf16.mxu0 0
    %9070 = vmatpush2.bf16.xpose.msra.mxu0 0
    %9071 = vmatprep.subr.bf16.mxu0 0
    %9072 = vmatpush2.bf16.xpose.msra.mxu0 0
    %9073 = vmatprep.mubr.bf16.mxu0 0
    %9074 = vmatmul.mubr.bf16.gmra.mxu0 %v9036
    %v9075 = vpop.f32.mrf.mxu0
    %v9076 = vadd.f32 %v7474, %v9075
    %v9077 = vpop.f32.mrf.mxu0
    %v9078 = vpop.f32.mrf.mxu0
    %v9079 = vadd.f32 %v7475, %v9078
    %v9080 = vpop.f32.mrf.mxu0
    %9081 = vdwg.mxu0
    %v9082 = vsel %vm6594, %v9076, -inf
    %9083 = vmax.xlane.f32.xlu0 %v9082
    %v9084 = vpop.xlane.xlu0 %9083
    %v9085 = vsel %vm6594, %v9079, -inf
    %9086 = vmax.xlane.f32.xlu0 %v9085
    %v9087 = vpop.xlane.xlu0 %9086
    %v9088 = vsub.f32 %v9076, %v9084
    %v9089 = vsub.f32 %v9079, %v9087
    %v9090 = vmul.f32 %v9088, 1.442695
    %v9091 = vpow.pop %v9090
    %v9092 = vmul.f32 %v9089, 1.442695
    %v9093 = vpow.pop %v9092
    %v9094 = vsel %vm6594, %v9091, 0.0
    %9095 = vadd.xlane.f32.xlu0 %v9094
    %v9096 = vpop.xlane.xlu0 %9095
    %v9097 = vsel %vm6594, %v9093, 0.0
    %9098 = vadd.xlane.f32.xlu0 %v9097
    %v9099 = vpop.xlane.xlu0 %9098
    %v9100 = vrcp.pop %v9096
    %v9101 = vmul.f32 %v9091, %v9100
    %v9102 = vrcp.pop %v9099
    %v9103 = vmul.f32 %v9093, %v9102
    %v9104 = vpack.c.bf16 %v9103, %v9101
    %9105 = vrot.lane.b32.xlu0 %v7458, 64
    %v9106 = vpop.permute.xlu0 %9105
    %v9109 = vsel %vm6594, %v9104, 0
    %9111 = vmatprep.subr.bf16.mxu0 0
    %9112 = vmatpush1.bf16.msra.mxu0 0
    %9113 = vmatprep.subr.bf16.mxu0 0
    %9114 = vmatpush1.bf16.msra.mxu0 0
    %9115 = vmatprep.subr.bf16.mxu0 0
    %9116 = vmatpush1.bf16.msra.mxu0 0
    %9117 = vmatprep.subr.bf16.mxu0 0
    %9118 = vmatpush1.bf16.msra.mxu0 0
    %9119 = vmatprep.subr.bf16.mxu0 0
    %9120 = vmatpush1.bf16.msra.mxu0 0
    %9121 = vmatprep.subr.bf16.mxu0 0
    %9122 = vmatpush1.bf16.msra.mxu0 0
    %9123 = vmatprep.subr.bf16.mxu0 0
    %9124 = vmatpush1.bf16.msra.mxu0 0
    %9125 = vmatprep.subr.bf16.mxu0 0
    %9126 = vmatpush1.bf16.msra.mxu0 %v9106
    %9127 = vmatprep.subr.bf16.mxu0 0
    %9128 = vmatpush2.bf16.msra.mxu0 0
    %9129 = vmatprep.subr.bf16.mxu0 0
    %9130 = vmatpush2.bf16.msra.mxu0 0
    %9131 = vmatprep.subr.bf16.mxu0 0
    %9132 = vmatpush2.bf16.msra.mxu0 0
    %9133 = vmatprep.subr.bf16.mxu0 0
    %9134 = vmatpush2.bf16.msra.mxu0 0
    %9135 = vmatprep.subr.bf16.mxu0 0
    %9136 = vmatpush2.bf16.msra.mxu0 0
    %9137 = vmatprep.subr.bf16.mxu0 0
    %9138 = vmatpush2.bf16.msra.mxu0 0
    %9139 = vmatprep.subr.bf16.mxu0 0
    %9140 = vmatpush2.bf16.msra.mxu0 0
    %9141 = vmatprep.subr.bf16.mxu0 0
    %9142 = vmatpush2.bf16.msra.mxu0 0
    %9143 = vmatprep.mubr.bf16.mxu0 0
    %9144 = vmatmul.mubr.bf16.gmra.mxu0 %v9109
    %v9145 = vpop.f32.mrf.mxu0
    %v9146 = vadd.f32 0.0, %v9145
    %v9147 = vpop.f32.mrf.mxu0
    %v9148 = vpop.f32.mrf.mxu0
    %v9149 = vadd.f32 0.0, %v9148
    %v9150 = vpop.f32.mrf.mxu0
    %9151 = vdwg.mxu0
    %9154 = vrot.lane.b32.xlu0 %v9146, 64
    %v9155 = vpop.permute.xlu0 %9154
    %9156 = vrot.lane.b32.xlu0 %v9149, 64
    %v9157 = vpop.permute.xlu0 %9156
    %9160 = vst.msk [vmem:[#allocation2 + $0x8] sm:$0xff] %vm8120, %v9155
    %9161 = vst.msk [vmem:[#allocation2 + $0x18] sm:$0xff] %vm8120, %v9157
    %9162 = vrot.lane.b32.xlu0 %v7454, 48
    %v9163 = vpop.permute.xlu0 %9162
    %9164 = vrot.lane.b32.xlu0 %v7456, 48
    %v9165 = vpop.permute.xlu0 %9164
    %v9167 = vsel %vm6594, %v9163, 0
    %v9170 = vsel %vm6594, %v9165, 0
    %9172 = vmatprep.subr.bf16.mxu0 0
    %9173 = vmatpush1.bf16.xpose.msra.mxu0 0
    %9174 = vmatprep.subr.bf16.mxu0 0
    %9175 = vmatpush1.bf16.xpose.msra.mxu0 0
    %9176 = vmatprep.subr.bf16.mxu0 0
    %9177 = vmatpush1.bf16.xpose.msra.mxu0 0
    %9178 = vmatprep.subr.bf16.mxu0 0
    %9179 = vmatpush1.bf16.xpose.msra.mxu0 0
    %9180 = vmatprep.subr.bf16.mxu0 0
    %9181 = vmatpush1.bf16.xpose.msra.mxu0 0
    %9182 = vmatprep.subr.bf16.mxu0 0
    %9183 = vmatpush1.bf16.xpose.msra.mxu0 0
    %9184 = vmatprep.subr.bf16.mxu0 0
    %9185 = vmatpush1.bf16.xpose.msra.mxu0 0
    %9186 = vmatprep.subr.bf16.mxu0 0
    %9187 = vmatpush1.bf16.xpose.msra.mxu0 %v9170
    %9188 = vmatprep.subr.bf16.mxu0 0
    %9189 = vmatpush2.bf16.xpose.msra.mxu0 0
    %9190 = vmatprep.subr.bf16.mxu0 0
    %9191 = vmatpush2.bf16.xpose.msra.mxu0 0
    %9192 = vmatprep.subr.bf16.mxu0 0
    %9193 = vmatpush2.bf16.xpose.msra.mxu0 0
    %9194 = vmatprep.subr.bf16.mxu0 0
    %9195 = vmatpush2.bf16.xpose.msra.mxu0 0
    %9196 = vmatprep.subr.bf16.mxu0 0
    %9197 = vmatpush2.bf16.xpose.msra.mxu0 0
    %9198 = vmatprep.subr.bf16.mxu0 0
    %9199 = vmatpush2.bf16.xpose.msra.mxu0 0
    %9200 = vmatprep.subr.bf16.mxu0 0
    %9201 = vmatpush2.bf16.xpose.msra.mxu0 0
    %9202 = vmatprep.subr.bf16.mxu0 0
    %9203 = vmatpush2.bf16.xpose.msra.mxu0 0
    %9204 = vmatprep.mubr.bf16.mxu0 0
    %9205 = vmatmul.mubr.bf16.gmra.mxu0 %v9167
    %v9206 = vpop.f32.mrf.mxu0
    %v9207 = vadd.f32 %v7474, %v9206
    %v9208 = vpop.f32.mrf.mxu0
    %v9209 = vpop.f32.mrf.mxu0
    %v9210 = vadd.f32 %v7475, %v9209
    %v9211 = vpop.f32.mrf.mxu0
    %9212 = vdwg.mxu0
    %v9213 = vsel %vm6594, %v9207, -inf
    %9214 = vmax.xlane.f32.xlu0 %v9213
    %v9215 = vpop.xlane.xlu0 %9214
    %v9216 = vsel %vm6594, %v9210, -inf
    %9217 = vmax.xlane.f32.xlu0 %v9216
    %v9218 = vpop.xlane.xlu0 %9217
    %v9219 = vsub.f32 %v9207, %v9215
    %v9220 = vsub.f32 %v9210, %v9218
    %v9221 = vmul.f32 %v9219, 1.442695
    %v9222 = vpow.pop %v9221
    %v9223 = vmul.f32 %v9220, 1.442695
    %v9224 = vpow.pop %v9223
    %v9225 = vsel %vm6594, %v9222, 0.0
    %9226 = vadd.xlane.f32.xlu0 %v9225
    %v9227 = vpop.xlane.xlu0 %9226
    %v9228 = vsel %vm6594, %v9224, 0.0
    %9229 = vadd.xlane.f32.xlu0 %v9228
    %v9230 = vpop.xlane.xlu0 %9229
    %v9231 = vrcp.pop %v9227
    %v9232 = vmul.f32 %v9222, %v9231
    %v9233 = vrcp.pop %v9230
    %v9234 = vmul.f32 %v9224, %v9233
    %v9235 = vpack.c.bf16 %v9234, %v9232
    %9236 = vrot.lane.b32.xlu0 %v7458, 48
    %v9237 = vpop.permute.xlu0 %9236
    %v9240 = vsel %vm6594, %v9235, 0
    %9242 = vmatprep.subr.bf16.mxu0 0
    %9243 = vmatpush1.bf16.msra.mxu0 0
    %9244 = vmatprep.subr.bf16.mxu0 0
    %9245 = vmatpush1.bf16.msra.mxu0 0
    %9246 = vmatprep.subr.bf16.mxu0 0
    %9247 = vmatpush1.bf16.msra.mxu0 0
    %9248 = vmatprep.subr.bf16.mxu0 0
    %9249 = vmatpush1.bf16.msra.mxu0 0
    %9250 = vmatprep.subr.bf16.mxu0 0
    %9251 = vmatpush1.bf16.msra.mxu0 0
    %9252 = vmatprep.subr.bf16.mxu0 0
    %9253 = vmatpush1.bf16.msra.mxu0 0
    %9254 = vmatprep.subr.bf16.mxu0 0
    %9255 = vmatpush1.bf16.msra.mxu0 0
    %9256 = vmatprep.subr.bf16.mxu0 0
    %9257 = vmatpush1.bf16.msra.mxu0 %v9237
    %9258 = vmatprep.subr.bf16.mxu0 0
    %9259 = vmatpush2.bf16.msra.mxu0 0
    %9260 = vmatprep.subr.bf16.mxu0 0
    %9261 = vmatpush2.bf16.msra.mxu0 0
    %9262 = vmatprep.subr.bf16.mxu0 0
    %9263 = vmatpush2.bf16.msra.mxu0 0
    %9264 = vmatprep.subr.bf16.mxu0 0
    %9265 = vmatpush2.bf16.msra.mxu0 0
    %9266 = vmatprep.subr.bf16.mxu0 0
    %9267 = vmatpush2.bf16.msra.mxu0 0
    %9268 = vmatprep.subr.bf16.mxu0 0
    %9269 = vmatpush2.bf16.msra.mxu0 0
    %9270 = vmatprep.subr.bf16.mxu0 0
    %9271 = vmatpush2.bf16.msra.mxu0 0
    %9272 = vmatprep.subr.bf16.mxu0 0
    %9273 = vmatpush2.bf16.msra.mxu0 0
    %9274 = vmatprep.mubr.bf16.mxu0 0
    %9275 = vmatmul.mubr.bf16.gmra.mxu0 %v9240
    %v9276 = vpop.f32.mrf.mxu0
    %v9277 = vadd.f32 0.0, %v9276
    %v9278 = vpop.f32.mrf.mxu0
    %v9279 = vpop.f32.mrf.mxu0
    %v9280 = vadd.f32 0.0, %v9279
    %v9281 = vpop.f32.mrf.mxu0
    %9282 = vdwg.mxu0
    %9285 = vrot.lane.b32.xlu0 %v9277, 80
    %v9286 = vpop.permute.xlu0 %9285
    %9287 = vrot.lane.b32.xlu0 %v9280, 80
    %v9288 = vpop.permute.xlu0 %9287
    %9291 = vst.msk [vmem:[#allocation2 + $0x8] sm:$0xff] %vm8252, %v9286
    %9292 = vst.msk [vmem:[#allocation2 + $0x18] sm:$0xff] %vm8252, %v9288
    %9293 = vrot.lane.b32.xlu0 %v7454, 32
    %v9294 = vpop.permute.xlu0 %9293
    %9295 = vrot.lane.b32.xlu0 %v7456, 32
    %v9296 = vpop.permute.xlu0 %9295
    %v9298 = vsel %vm6594, %v9294, 0
    %v9301 = vsel %vm6594, %v9296, 0
    %9303 = vmatprep.subr.bf16.mxu0 0
    %9304 = vmatpush1.bf16.xpose.msra.mxu0 0
    %9305 = vmatprep.subr.bf16.mxu0 0
    %9306 = vmatpush1.bf16.xpose.msra.mxu0 0
    %9307 = vmatprep.subr.bf16.mxu0 0
    %9308 = vmatpush1.bf16.xpose.msra.mxu0 0
    %9309 = vmatprep.subr.bf16.mxu0 0
    %9310 = vmatpush1.bf16.xpose.msra.mxu0 0
    %9311 = vmatprep.subr.bf16.mxu0 0
    %9312 = vmatpush1.bf16.xpose.msra.mxu0 0
    %9313 = vmatprep.subr.bf16.mxu0 0
    %9314 = vmatpush1.bf16.xpose.msra.mxu0 0
    %9315 = vmatprep.subr.bf16.mxu0 0
    %9316 = vmatpush1.bf16.xpose.msra.mxu0 0
    %9317 = vmatprep.subr.bf16.mxu0 0
    %9318 = vmatpush1.bf16.xpose.msra.mxu0 %v9301
    %9319 = vmatprep.subr.bf16.mxu0 0
    %9320 = vmatpush2.bf16.xpose.msra.mxu0 0
    %9321 = vmatprep.subr.bf16.mxu0 0
    %9322 = vmatpush2.bf16.xpose.msra.mxu0 0
    %9323 = vmatprep.subr.bf16.mxu0 0
    %9324 = vmatpush2.bf16.xpose.msra.mxu0 0
    %9325 = vmatprep.subr.bf16.mxu0 0
    %9326 = vmatpush2.bf16.xpose.msra.mxu0 0
    %9327 = vmatprep.subr.bf16.mxu0 0
    %9328 = vmatpush2.bf16.xpose.msra.mxu0 0
    %9329 = vmatprep.subr.bf16.mxu0 0
    %9330 = vmatpush2.bf16.xpose.msra.mxu0 0
    %9331 = vmatprep.subr.bf16.mxu0 0
    %9332 = vmatpush2.bf16.xpose.msra.mxu0 0
    %9333 = vmatprep.subr.bf16.mxu0 0
    %9334 = vmatpush2.bf16.xpose.msra.mxu0 0
    %9335 = vmatprep.mubr.bf16.mxu0 0
    %9336 = vmatmul.mubr.bf16.gmra.mxu0 %v9298
    %v9337 = vpop.f32.mrf.mxu0
    %v9338 = vadd.f32 %v7474, %v9337
    %v9339 = vpop.f32.mrf.mxu0
    %v9340 = vpop.f32.mrf.mxu0
    %v9341 = vadd.f32 %v7475, %v9340
    %v9342 = vpop.f32.mrf.mxu0
    %9343 = vdwg.mxu0
    %v9344 = vsel %vm6594, %v9338, -inf
    %9345 = vmax.xlane.f32.xlu0 %v9344
    %v9346 = vpop.xlane.xlu0 %9345
    %v9347 = vsel %vm6594, %v9341, -inf
    %9348 = vmax.xlane.f32.xlu0 %v9347
    %v9349 = vpop.xlane.xlu0 %9348
    %v9350 = vsub.f32 %v9338, %v9346
    %v9351 = vsub.f32 %v9341, %v9349
    %v9352 = vmul.f32 %v9350, 1.442695
    %v9353 = vpow.pop %v9352
    %v9354 = vmul.f32 %v9351, 1.442695
    %v9355 = vpow.pop %v9354
    %v9356 = vsel %vm6594, %v9353, 0.0
    %9357 = vadd.xlane.f32.xlu0 %v9356
    %v9358 = vpop.xlane.xlu0 %9357
    %v9359 = vsel %vm6594, %v9355, 0.0
    %9360 = vadd.xlane.f32.xlu0 %v9359
    %v9361 = vpop.xlane.xlu0 %9360
    %v9362 = vrcp.pop %v9358
    %v9363 = vmul.f32 %v9353, %v9362
    %v9364 = vrcp.pop %v9361
    %v9365 = vmul.f32 %v9355, %v9364
    %v9366 = vpack.c.bf16 %v9365, %v9363
    %9367 = vrot.lane.b32.xlu0 %v7458, 32
    %v9368 = vpop.permute.xlu0 %9367
    %v9371 = vsel %vm6594, %v9366, 0
    %9373 = vmatprep.subr.bf16.mxu0 0
    %9374 = vmatpush1.bf16.msra.mxu0 0
    %9375 = vmatprep.subr.bf16.mxu0 0
    %9376 = vmatpush1.bf16.msra.mxu0 0
    %9377 = vmatprep.subr.bf16.mxu0 0
    %9378 = vmatpush1.bf16.msra.mxu0 0
    %9379 = vmatprep.subr.bf16.mxu0 0
    %9380 = vmatpush1.bf16.msra.mxu0 0
    %9381 = vmatprep.subr.bf16.mxu0 0
    %9382 = vmatpush1.bf16.msra.mxu0 0
    %9383 = vmatprep.subr.bf16.mxu0 0
    %9384 = vmatpush1.bf16.msra.mxu0 0
    %9385 = vmatprep.subr.bf16.mxu0 0
    %9386 = vmatpush1.bf16.msra.mxu0 0
    %9387 = vmatprep.subr.bf16.mxu0 0
    %9388 = vmatpush1.bf16.msra.mxu0 %v9368
    %9389 = vmatprep.subr.bf16.mxu0 0
    %9390 = vmatpush2.bf16.msra.mxu0 0
    %9391 = vmatprep.subr.bf16.mxu0 0
    %9392 = vmatpush2.bf16.msra.mxu0 0
    %9393 = vmatprep.subr.bf16.mxu0 0
    %9394 = vmatpush2.bf16.msra.mxu0 0
    %9395 = vmatprep.subr.bf16.mxu0 0
    %9396 = vmatpush2.bf16.msra.mxu0 0
    %9397 = vmatprep.subr.bf16.mxu0 0
    %9398 = vmatpush2.bf16.msra.mxu0 0
    %9399 = vmatprep.subr.bf16.mxu0 0
    %9400 = vmatpush2.bf16.msra.mxu0 0
    %9401 = vmatprep.subr.bf16.mxu0 0
    %9402 = vmatpush2.bf16.msra.mxu0 0
    %9403 = vmatprep.subr.bf16.mxu0 0
    %9404 = vmatpush2.bf16.msra.mxu0 0
    %9405 = vmatprep.mubr.bf16.mxu0 0
    %9406 = vmatmul.mubr.bf16.gmra.mxu0 %v9371
    %v9407 = vpop.f32.mrf.mxu0
    %v9408 = vadd.f32 0.0, %v9407
    %v9409 = vpop.f32.mrf.mxu0
    %v9410 = vpop.f32.mrf.mxu0
    %v9411 = vadd.f32 0.0, %v9410
    %v9412 = vpop.f32.mrf.mxu0
    %9413 = vdwg.mxu0
    %9416 = vrot.lane.b32.xlu0 %v9408, 96
    %v9417 = vpop.permute.xlu0 %9416
    %9418 = vrot.lane.b32.xlu0 %v9411, 96
    %v9419 = vpop.permute.xlu0 %9418
    %9422 = vst.msk [vmem:[#allocation2 + $0x8] sm:$0xff] %vm8384, %v9417
    %9423 = vst.msk [vmem:[#allocation2 + $0x18] sm:$0xff] %vm8384, %v9419
    %9424 = vrot.lane.b32.xlu0 %v7454, 16
    %v9425 = vpop.permute.xlu0 %9424
    %9426 = vrot.lane.b32.xlu0 %v7456, 16
    %v9427 = vpop.permute.xlu0 %9426
    %v9429 = vsel %vm6594, %v9425, 0
    %v9432 = vsel %vm6594, %v9427, 0
    %9434 = vmatprep.subr.bf16.mxu0 0
    %9435 = vmatpush1.bf16.xpose.msra.mxu0 0
    %9436 = vmatprep.subr.bf16.mxu0 0
    %9437 = vmatpush1.bf16.xpose.msra.mxu0 0
    %9438 = vmatprep.subr.bf16.mxu0 0
    %9439 = vmatpush1.bf16.xpose.msra.mxu0 0
    %9440 = vmatprep.subr.bf16.mxu0 0
    %9441 = vmatpush1.bf16.xpose.msra.mxu0 0
    %9442 = vmatprep.subr.bf16.mxu0 0
    %9443 = vmatpush1.bf16.xpose.msra.mxu0 0
    %9444 = vmatprep.subr.bf16.mxu0 0
    %9445 = vmatpush1.bf16.xpose.msra.mxu0 0
    %9446 = vmatprep.subr.bf16.mxu0 0
    %9447 = vmatpush1.bf16.xpose.msra.mxu0 0
    %9448 = vmatprep.subr.bf16.mxu0 0
    %9449 = vmatpush1.bf16.xpose.msra.mxu0 %v9432
    %9450 = vmatprep.subr.bf16.mxu0 0
    %9451 = vmatpush2.bf16.xpose.msra.mxu0 0
    %9452 = vmatprep.subr.bf16.mxu0 0
    %9453 = vmatpush2.bf16.xpose.msra.mxu0 0
    %9454 = vmatprep.subr.bf16.mxu0 0
    %9455 = vmatpush2.bf16.xpose.msra.mxu0 0
    %9456 = vmatprep.subr.bf16.mxu0 0
    %9457 = vmatpush2.bf16.xpose.msra.mxu0 0
    %9458 = vmatprep.subr.bf16.mxu0 0
    %9459 = vmatpush2.bf16.xpose.msra.mxu0 0
    %9460 = vmatprep.subr.bf16.mxu0 0
    %9461 = vmatpush2.bf16.xpose.msra.mxu0 0
    %9462 = vmatprep.subr.bf16.mxu0 0
    %9463 = vmatpush2.bf16.xpose.msra.mxu0 0
    %9464 = vmatprep.subr.bf16.mxu0 0
    %9465 = vmatpush2.bf16.xpose.msra.mxu0 0
    %9466 = vmatprep.mubr.bf16.mxu0 0
    %9467 = vmatmul.mubr.bf16.gmra.mxu0 %v9429
    %v9468 = vpop.f32.mrf.mxu0
    %v9469 = vadd.f32 %v7474, %v9468
    %v9470 = vpop.f32.mrf.mxu0
    %v9471 = vpop.f32.mrf.mxu0
    %v9472 = vadd.f32 %v7475, %v9471
    %v9473 = vpop.f32.mrf.mxu0
    %9474 = vdwg.mxu0
    %v9475 = vsel %vm6594, %v9469, -inf
    %9476 = vmax.xlane.f32.xlu0 %v9475
    %v9477 = vpop.xlane.xlu0 %9476
    %v9478 = vsel %vm6594, %v9472, -inf
    %9479 = vmax.xlane.f32.xlu0 %v9478
    %v9480 = vpop.xlane.xlu0 %9479
    %v9481 = vsub.f32 %v9469, %v9477
    %v9482 = vsub.f32 %v9472, %v9480
    %v9483 = vmul.f32 %v9481, 1.442695
    %v9484 = vpow.pop %v9483
    %v9485 = vmul.f32 %v9482, 1.442695
    %v9486 = vpow.pop %v9485
    %v9487 = vsel %vm6594, %v9484, 0.0
    %9488 = vadd.xlane.f32.xlu0 %v9487
    %v9489 = vpop.xlane.xlu0 %9488
    %v9490 = vsel %vm6594, %v9486, 0.0
    %9491 = vadd.xlane.f32.xlu0 %v9490
    %v9492 = vpop.xlane.xlu0 %9491
    %v9493 = vrcp.pop %v9489
    %v9494 = vmul.f32 %v9484, %v9493
    %v9495 = vrcp.pop %v9492
    %v9496 = vmul.f32 %v9486, %v9495
    %v9497 = vpack.c.bf16 %v9496, %v9494
    %9498 = vrot.lane.b32.xlu0 %v7458, 16
    %v9499 = vpop.permute.xlu0 %9498
    %v9502 = vsel %vm6594, %v9497, 0
    %9504 = vmatprep.subr.bf16.mxu0 0
    %9505 = vmatpush1.bf16.msra.mxu0 0
    %9506 = vmatprep.subr.bf16.mxu0 0
    %9507 = vmatpush1.bf16.msra.mxu0 0
    %9508 = vmatprep.subr.bf16.mxu0 0
    %9509 = vmatpush1.bf16.msra.mxu0 0
    %9510 = vmatprep.subr.bf16.mxu0 0
    %9511 = vmatpush1.bf16.msra.mxu0 0
    %9512 = vmatprep.subr.bf16.mxu0 0
    %9513 = vmatpush1.bf16.msra.mxu0 0
    %9514 = vmatprep.subr.bf16.mxu0 0
    %9515 = vmatpush1.bf16.msra.mxu0 0
    %9516 = vmatprep.subr.bf16.mxu0 0
    %9517 = vmatpush1.bf16.msra.mxu0 0
    %9518 = vmatprep.subr.bf16.mxu0 0
    %9519 = vmatpush1.bf16.msra.mxu0 %v9499
    %9520 = vmatprep.subr.bf16.mxu0 0
    %9521 = vmatpush2.bf16.msra.mxu0 0
    %9522 = vmatprep.subr.bf16.mxu0 0
    %9523 = vmatpush2.bf16.msra.mxu0 0
    %9524 = vmatprep.subr.bf16.mxu0 0
    %9525 = vmatpush2.bf16.msra.mxu0 0
    %9526 = vmatprep.subr.bf16.mxu0 0
    %9527 = vmatpush2.bf16.msra.mxu0 0
    %9528 = vmatprep.subr.bf16.mxu0 0
    %9529 = vmatpush2.bf16.msra.mxu0 0
    %9530 = vmatprep.subr.bf16.mxu0 0
    %9531 = vmatpush2.bf16.msra.mxu0 0
    %9532 = vmatprep.subr.bf16.mxu0 0
    %9533 = vmatpush2.bf16.msra.mxu0 0
    %9534 = vmatprep.subr.bf16.mxu0 0
    %9535 = vmatpush2.bf16.msra.mxu0 0
    %9536 = vmatprep.mubr.bf16.mxu0 0
    %9537 = vmatmul.mubr.bf16.gmra.mxu0 %v9502
    %v9538 = vpop.f32.mrf.mxu0
    %v9539 = vadd.f32 0.0, %v9538
    %v9540 = vpop.f32.mrf.mxu0
    %v9541 = vpop.f32.mrf.mxu0
    %v9542 = vadd.f32 0.0, %v9541
    %v9543 = vpop.f32.mrf.mxu0
    %9544 = vdwg.mxu0
    %9547 = vrot.lane.b32.xlu0 %v9539, 112
    %v9548 = vpop.permute.xlu0 %9547
    %9549 = vrot.lane.b32.xlu0 %v9542, 112
    %v9550 = vpop.permute.xlu0 %9549
    %9553 = vst.msk [vmem:[#allocation2 + $0x8] sm:$0xff] %vm8516, %v9548
    %9554 = vst.msk [vmem:[#allocation2 + $0x18] sm:$0xff] %vm8516, %v9550
    %v9555 = vld [vmem:[#allocation2] sm:$0xff]
    %v9556 = vld [vmem:[#allocation2 + $0x8] sm:$0xff]
    %v9557 = vld [vmem:[#allocation2 + $0x10] sm:$0xff]
    %v9558 = vld [vmem:[#allocation2 + $0x18] sm:$0xff]
    %v9559 = vpack.c.bf16 %v9557, %v9555
    %v9560 = vpack.c.bf16 %v9558, %v9556
    %v9561 = vld [vmem:[#allocation19] sm:$0xff]
    %v9562 = vld [vmem:[#allocation19 + $0x8] sm:$0xff]
    %v9563 = vld [vmem:[#allocation19 + $0x10] sm:$0xff]
    %v9564 = vld [vmem:[#allocation19 + $0x18] sm:$0xff]
    %v9565 = vld [vmem:[#allocation19 + $0x20] sm:$0xff]
    %v9566 = vld [vmem:[#allocation19 + $0x28] sm:$0xff]
    %v9567 = vld [vmem:[#allocation19 + $0x30] sm:$0xff]
    %v9568 = vld [vmem:[#allocation19 + $0x38] sm:$0xff]
    %v9569 = vld [vmem:[#allocation19 + $0x40] sm:$0xff]
    %v9570 = vld [vmem:[#allocation19 + $0x48] sm:$0xff]
    %v9571 = vld [vmem:[#allocation19 + $0x50] sm:$0xff]
    %v9572 = vld [vmem:[#allocation19 + $0x58] sm:$0xff]
    %v9573 = vld [vmem:[#allocation19 + $0x60] sm:$0xff]
    %v9574 = vld [vmem:[#allocation19 + $0x68] sm:$0xff]
    %v9575 = vld [vmem:[#allocation19 + $0x70] sm:$0xff]
    %v9576 = vld [vmem:[#allocation19 + $0x78] sm:$0xff]
    %v9577 = vld [vmem:[#allocation19 + $0x80] sm:$0xff]
    %v9578 = vld [vmem:[#allocation19 + $0x88] sm:$0xff]
    %v9579 = vld [vmem:[#allocation19 + $0x90] sm:$0xff]
    %v9580 = vld [vmem:[#allocation19 + $0x98] sm:$0xff]
    %v9581 = vld [vmem:[#allocation19 + $0xa0] sm:$0xff]
    %v9582 = vld [vmem:[#allocation19 + $0xa8] sm:$0xff]
    %v9583 = vld [vmem:[#allocation19 + $0xb0] sm:$0xff]
    %v9584 = vld [vmem:[#allocation19 + $0xb8] sm:$0xff]
    %v9585 = vld [vmem:[#allocation19 + $0xc0] sm:$0xff]
    %v9586 = vld [vmem:[#allocation19 + $0xc8] sm:$0xff]
    %v9587 = vld [vmem:[#allocation19 + $0xd0] sm:$0xff]
    %v9588 = vld [vmem:[#allocation19 + $0xd8] sm:$0xff]
    %v9589 = vld [vmem:[#allocation19 + $0xe0] sm:$0xff]
    %v9590 = vld [vmem:[#allocation19 + $0xe8] sm:$0xff]
    %v9591 = vld [vmem:[#allocation19 + $0xf0] sm:$0xff]
    %v9592 = vld [vmem:[#allocation19 + $0xf8] sm:$0xff]
    %v9593 = vld [vmem:[#allocation20] sm:$0x3]
    %v9595 = vlaneseq
    %v9596 = vshrl.u32 %v9595, 7
    %v9597 = vsub.s32 0, %v9596
    %v9598 = vrot.slane %v9593, %v9597
    %v9599 = vlaneseq
    %v9600 = vshrl.u32 %v9599, 7
    %v9601 = vsub.s32 1, %v9600
    %v9602 = vrot.slane %v9593, %v9601
    %v9637 = vunpack.c.l.b16 %v9561
    %v9638 = vunpack.c.h.b16 %v9561
    %v9639 = vunpack.c.l.b16 %v9562
    %v9640 = vunpack.c.h.b16 %v9562
    %v9641 = vunpack.c.l.b16 %v9563
    %v9642 = vunpack.c.h.b16 %v9563
    %v9643 = vunpack.c.l.b16 %v9564
    %v9644 = vunpack.c.h.b16 %v9564
    %v9645 = vunpack.c.l.b16 %v9565
    %v9646 = vunpack.c.h.b16 %v9565
    %v9647 = vunpack.c.l.b16 %v9566
    %v9648 = vunpack.c.h.b16 %v9566
    %v9649 = vunpack.c.l.b16 %v9567
    %v9650 = vunpack.c.h.b16 %v9567
    %v9651 = vunpack.c.l.b16 %v9568
    %v9652 = vunpack.c.h.b16 %v9568
    %v9653 = vunpack.c.l.b16 %v9569
    %v9654 = vunpack.c.h.b16 %v9569
    %v9655 = vunpack.c.l.b16 %v9570
    %v9656 = vunpack.c.h.b16 %v9570
    %v9657 = vunpack.c.l.b16 %v9571
    %v9658 = vunpack.c.h.b16 %v9571
    %v9659 = vunpack.c.l.b16 %v9572
    %v9660 = vunpack.c.h.b16 %v9572
    %v9661 = vunpack.c.l.b16 %v9573
    %v9662 = vunpack.c.h.b16 %v9573
    %v9663 = vunpack.c.l.b16 %v9574
    %v9664 = vunpack.c.h.b16 %v9574
    %v9665 = vunpack.c.l.b16 %v9575
    %v9666 = vunpack.c.h.b16 %v9575
    %v9667 = vunpack.c.l.b16 %v9576
    %v9668 = vunpack.c.h.b16 %v9576
    %v9669 = vunpack.c.l.b16 %v9577
    %v9670 = vunpack.c.h.b16 %v9577
    %v9671 = vunpack.c.l.b16 %v9578
    %v9672 = vunpack.c.h.b16 %v9578
    %v9673 = vunpack.c.l.b16 %v9579
    %v9674 = vunpack.c.h.b16 %v9579
    %v9675 = vunpack.c.l.b16 %v9580
    %v9676 = vunpack.c.h.b16 %v9580
    %v9677 = vunpack.c.l.b16 %v9581
    %v9678 = vunpack.c.h.b16 %v9581
    %v9679 = vunpack.c.l.b16 %v9582
    %v9680 = vunpack.c.h.b16 %v9582
    %v9681 = vunpack.c.l.b16 %v9583
    %v9682 = vunpack.c.h.b16 %v9583
    %v9683 = vunpack.c.l.b16 %v9584
    %v9684 = vunpack.c.h.b16 %v9584
    %v9685 = vunpack.c.l.b16 %v9585
    %v9686 = vunpack.c.h.b16 %v9585
    %v9687 = vunpack.c.l.b16 %v9586
    %v9688 = vunpack.c.h.b16 %v9586
    %v9689 = vunpack.c.l.b16 %v9587
    %v9690 = vunpack.c.h.b16 %v9587
    %v9691 = vunpack.c.l.b16 %v9588
    %v9692 = vunpack.c.h.b16 %v9588
    %v9693 = vunpack.c.l.b16 %v9589
    %v9694 = vunpack.c.h.b16 %v9589
    %v9695 = vunpack.c.l.b16 %v9590
    %v9696 = vunpack.c.h.b16 %v9590
    %v9697 = vunpack.c.l.b16 %v9591
    %v9698 = vunpack.c.h.b16 %v9591
    %v9699 = vunpack.c.l.b16 %v9592
    %v9700 = vunpack.c.h.b16 %v9592
    %v9701 = vpack.c.b16 %v9639, %v9637
    %v9702 = vpack.c.b16 %v9640, %v9638
    %v9703 = vpack.c.b16 %v9643, %v9641
    %v9704 = vpack.c.b16 %v9644, %v9642
    %v9705 = vpack.c.b16 %v9647, %v9645
    %v9706 = vpack.c.b16 %v9648, %v9646
    %v9707 = vpack.c.b16 %v9651, %v9649
    %v9708 = vpack.c.b16 %v9652, %v9650
    %v9709 = vpack.c.b16 %v9655, %v9653
    %v9710 = vpack.c.b16 %v9656, %v9654
    %v9711 = vpack.c.b16 %v9659, %v9657
    %v9712 = vpack.c.b16 %v9660, %v9658
    %v9713 = vpack.c.b16 %v9663, %v9661
    %v9714 = vpack.c.b16 %v9664, %v9662
    %v9715 = vpack.c.b16 %v9667, %v9665
    %v9716 = vpack.c.b16 %v9668, %v9666
    %v9717 = vpack.c.b16 %v9671, %v9669
    %v9718 = vpack.c.b16 %v9672, %v9670
    %v9719 = vpack.c.b16 %v9675, %v9673
    %v9720 = vpack.c.b16 %v9676, %v9674
    %v9721 = vpack.c.b16 %v9679, %v9677
    %v9722 = vpack.c.b16 %v9680, %v9678
    %v9723 = vpack.c.b16 %v9683, %v9681
    %v9724 = vpack.c.b16 %v9684, %v9682
    %v9725 = vpack.c.b16 %v9687, %v9685
    %v9726 = vpack.c.b16 %v9688, %v9686
    %v9727 = vpack.c.b16 %v9691, %v9689
    %v9728 = vpack.c.b16 %v9692, %v9690
    %v9729 = vpack.c.b16 %v9695, %v9693
    %v9730 = vpack.c.b16 %v9696, %v9694
    %v9731 = vpack.c.b16 %v9699, %v9697
    %v9732 = vpack.c.b16 %v9700, %v9698
    %9765 = vmatprep.subr.bf16.mxu0 %v9716
    %9766 = vmatpush1.bf16.msra.mxu0 %v9715
    %9767 = vmatprep.subr.bf16.mxu0 %v9714
    %9768 = vmatpush1.bf16.msra.mxu0 %v9713
    %9769 = vmatprep.subr.bf16.mxu0 %v9712
    %9770 = vmatpush1.bf16.msra.mxu0 %v9711
    %9771 = vmatprep.subr.bf16.mxu0 %v9710
    %9772 = vmatpush1.bf16.msra.mxu0 %v9709
    %9773 = vmatprep.subr.bf16.mxu0 %v9708
    %9774 = vmatpush1.bf16.msra.mxu0 %v9707
    %9775 = vmatprep.subr.bf16.mxu0 %v9706
    %9776 = vmatpush1.bf16.msra.mxu0 %v9705
    %9777 = vmatprep.subr.bf16.mxu0 %v9704
    %9778 = vmatpush1.bf16.msra.mxu0 %v9703
    %9779 = vmatprep.subr.bf16.mxu0 %v9702
    %9780 = vmatpush1.bf16.msra.mxu0 %v9701
    %9781 = vmatprep.subr.bf16.mxu0 %v9732
    %9782 = vmatpush2.bf16.msra.mxu0 %v9731
    %9783 = vmatprep.subr.bf16.mxu0 %v9730
    %9784 = vmatpush2.bf16.msra.mxu0 %v9729
    %9785 = vmatprep.subr.bf16.mxu0 %v9728
    %9786 = vmatpush2.bf16.msra.mxu0 %v9727
    %9787 = vmatprep.subr.bf16.mxu0 %v9726
    %9788 = vmatpush2.bf16.msra.mxu0 %v9725
    %9789 = vmatprep.subr.bf16.mxu0 %v9724
    %9790 = vmatpush2.bf16.msra.mxu0 %v9723
    %9791 = vmatprep.subr.bf16.mxu0 %v9722
    %9792 = vmatpush2.bf16.msra.mxu0 %v9721
    %9793 = vmatprep.subr.bf16.mxu0 %v9720
    %9794 = vmatpush2.bf16.msra.mxu0 %v9719
    %9795 = vmatprep.subr.bf16.mxu0 %v9718
    %9796 = vmatpush2.bf16.msra.mxu0 %v9717
    %9797 = vmatprep.mubr.bf16.mxu0 %v9560
    %9798 = vmatmul.mubr.bf16.gmra.mxu0 %v9559
    %v9799 = vpop.f32.mrf.mxu0
    %v9800 = vadd.f32 %v9598, %v9799
    %v9801 = vpop.f32.mrf.mxu0
    %v9802 = vadd.f32 %v9602, %v9801
    %v9803 = vpop.f32.mrf.mxu0
    %v9804 = vadd.f32 %v9598, %v9803
    %v9805 = vpop.f32.mrf.mxu0
    %v9806 = vadd.f32 %v9602, %v9805
    %9807 = vdwg.mxu0
    %v9808 = vadd.f32 %v6559, %v9800
    %v9809 = vadd.f32 %v6560, %v9802
    %v9810 = vadd.f32 %v6561, %v9804
    %v9811 = vadd.f32 %v6562, %v9806
    %v9812 = vld [vmem:[#allocation22] sm:$0x3]
    %v9813 = vld [vmem:[#allocation23] sm:$0x3]
    %v9814 = vadd.f32 %v9808, %v9809
    %9815 = vadd.xlane.f32.xlu0 %v9814
    %v9816 = vpop.xlane.xlu0 %9815
    %v9817 = vadd.f32 %v9810, %v9811
    %9818 = vadd.xlane.f32.xlu0 %v9817
    %v9819 = vpop.xlane.xlu0 %9818
    %v9820 = vmul.f32 %v9816, %v6653
    %v9821 = vmul.f32 %v9819, %v6653
    %v9822 = vsub.f32 %v9808, %v9820
    %v9823 = vsub.f32 %v9809, %v9820
    %v9824 = vsub.f32 %v9810, %v9821
    %v9825 = vsub.f32 %v9811, %v9821
    %v9826 = vmul.f32 %v9822, %v9822
    %v9827 = vmul.f32 %v9823, %v9823
    %v9828 = vmul.f32 %v9824, %v9824
    %v9829 = vmul.f32 %v9825, %v9825
    %v9830 = vadd.f32 %v9826, %v9827
    %9831 = vadd.xlane.f32.xlu0 %v9830
    %v9832 = vpop.xlane.xlu0 %9831
    %v9833 = vadd.f32 %v9828, %v9829
    %9834 = vadd.xlane.f32.xlu0 %v9833
    %v9835 = vpop.xlane.xlu0 %9834
    %v9836 = vmul.f32 %v9832, %v6653
    %v9837 = vmul.f32 %v9835, %v6653
    %v9838 = vadd.f32 %v9836, 1e-05
    %v9839 = vadd.f32 %v9837, 1e-05
    %v9840 = vrsqrt.pop %v9838
    %v9841 = vrsqrt.pop %v9839
    %v9842 = vmul.f32 %v9822, %v9840
    %v9843 = vmul.f32 %v9823, %v9840
    %v9844 = vmul.f32 %v9824, %v9841
    %v9845 = vmul.f32 %v9825, %v9841
    %v9847 = vlaneseq
    %v9848 = vshrl.u32 %v9847, 7
    %v9849 = vsub.s32 0, %v9848
    %v9850 = vrot.slane %v9812, %v9849
    %v9851 = vlaneseq
    %v9852 = vshrl.u32 %v9851, 7
    %v9853 = vsub.s32 1, %v9852
    %v9854 = vrot.slane %v9812, %v9853
    %v9857 = vmul.f32 %v9842, %v9850
    %v9858 = vmul.f32 %v9843, %v9854
    %v9859 = vmul.f32 %v9844, %v9850
    %v9860 = vmul.f32 %v9845, %v9854
    %v9862 = vlaneseq
    %v9863 = vshrl.u32 %v9862, 7
    %v9864 = vsub.s32 0, %v9863
    %v9865 = vrot.slane %v9813, %v9864
    %v9866 = vlaneseq
    %v9867 = vshrl.u32 %v9866, 7
    %v9868 = vsub.s32 1, %v9867
    %v9869 = vrot.slane %v9813, %v9868
    %v9872 = vadd.f32 %v9857, %v9865
    %v9873 = vadd.f32 %v9858, %v9869
    %v9874 = vadd.f32 %v9859, %v9865
    %v9875 = vadd.f32 %v9860, %v9869
    %v9876 = vpack.c.bf16 %v9874, %v9872
    %v9877 = vpack.c.bf16 %v9875, %v9873
    %v9878 = vld [vmem:[#allocation25] sm:$0xff]
    %v9879 = vld [vmem:[#allocation25 + $0x8] sm:$0xff]
    %v9880 = vld [vmem:[#allocation25 + $0x10] sm:$0xff]
    %v9881 = vld [vmem:[#allocation25 + $0x18] sm:$0xff]
    %v9882 = vld [vmem:[#allocation25 + $0x20] sm:$0xff]
    %v9883 = vld [vmem:[#allocation25 + $0x28] sm:$0xff]
    %v9884 = vld [vmem:[#allocation25 + $0x30] sm:$0xff]
    %v9885 = vld [vmem:[#allocation25 + $0x38] sm:$0xff]
    %v9886 = vld [vmem:[#allocation25 + $0x40] sm:$0xff]
    %v9887 = vld [vmem:[#allocation25 + $0x48] sm:$0xff]
    %v9888 = vld [vmem:[#allocation25 + $0x50] sm:$0xff]
    %v9889 = vld [vmem:[#allocation25 + $0x58] sm:$0xff]
    %v9890 = vld [vmem:[#allocation25 + $0x60] sm:$0xff]
    %v9891 = vld [vmem:[#allocation25 + $0x68] sm:$0xff]
    %v9892 = vld [vmem:[#allocation25 + $0x70] sm:$0xff]
    %v9893 = vld [vmem:[#allocation25 + $0x78] sm:$0xff]
    %v9894 = vld [vmem:[#allocation25 + $0x80] sm:$0xff]
    %v9895 = vld [vmem:[#allocation25 + $0x88] sm:$0xff]
    %v9896 = vld [vmem:[#allocation25 + $0x90] sm:$0xff]
    %v9897 = vld [vmem:[#allocation25 + $0x98] sm:$0xff]
    %v9898 = vld [vmem:[#allocation25 + $0xa0] sm:$0xff]
    %v9899 = vld [vmem:[#allocation25 + $0xa8] sm:$0xff]
    %v9900 = vld [vmem:[#allocation25 + $0xb0] sm:$0xff]
    %v9901 = vld [vmem:[#allocation25 + $0xb8] sm:$0xff]
    %v9902 = vld [vmem:[#allocation25 + $0xc0] sm:$0xff]
    %v9903 = vld [vmem:[#allocation25 + $0xc8] sm:$0xff]
    %v9904 = vld [vmem:[#allocation25 + $0xd0] sm:$0xff]
    %v9905 = vld [vmem:[#allocation25 + $0xd8] sm:$0xff]
    %v9906 = vld [vmem:[#allocation25 + $0xe0] sm:$0xff]
    %v9907 = vld [vmem:[#allocation25 + $0xe8] sm:$0xff]
    %v9908 = vld [vmem:[#allocation25 + $0xf0] sm:$0xff]
    %v9909 = vld [vmem:[#allocation25 + $0xf8] sm:$0xff]
    %v9910 = vld [vmem:[#allocation26] sm:$0x3]
    %v9912 = vlaneseq
    %v9913 = vshrl.u32 %v9912, 7
    %v9914 = vsub.s32 0, %v9913
    %v9915 = vrot.slane %v9910, %v9914
    %v9916 = vlaneseq
    %v9917 = vshrl.u32 %v9916, 7
    %v9918 = vsub.s32 1, %v9917
    %v9919 = vrot.slane %v9910, %v9918
    %v9954 = vunpack.c.l.b16 %v9878
    %v9955 = vunpack.c.h.b16 %v9878
    %v9956 = vunpack.c.l.b16 %v9879
    %v9957 = vunpack.c.h.b16 %v9879
    %v9958 = vunpack.c.l.b16 %v9880
    %v9959 = vunpack.c.h.b16 %v9880
    %v9960 = vunpack.c.l.b16 %v9881
    %v9961 = vunpack.c.h.b16 %v9881
    %v9962 = vunpack.c.l.b16 %v9882
    %v9963 = vunpack.c.h.b16 %v9882
    %v9964 = vunpack.c.l.b16 %v9883
    %v9965 = vunpack.c.h.b16 %v9883
    %v9966 = vunpack.c.l.b16 %v9884
    %v9967 = vunpack.c.h.b16 %v9884
    %v9968 = vunpack.c.l.b16 %v9885
    %v9969 = vunpack.c.h.b16 %v9885
    %v9970 = vunpack.c.l.b16 %v9886
    %v9971 = vunpack.c.h.b16 %v9886
    %v9972 = vunpack.c.l.b16 %v9887
    %v9973 = vunpack.c.h.b16 %v9887
    %v9974 = vunpack.c.l.b16 %v9888
    %v9975 = vunpack.c.h.b16 %v9888
    %v9976 = vunpack.c.l.b16 %v9889
    %v9977 = vunpack.c.h.b16 %v9889
    %v9978 = vunpack.c.l.b16 %v9890
    %v9979 = vunpack.c.h.b16 %v9890
    %v9980 = vunpack.c.l.b16 %v9891
    %v9981 = vunpack.c.h.b16 %v9891
    %v9982 = vunpack.c.l.b16 %v9892
    %v9983 = vunpack.c.h.b16 %v9892
    %v9984 = vunpack.c.l.b16 %v9893
    %v9985 = vunpack.c.h.b16 %v9893
    %v9986 = vunpack.c.l.b16 %v9894
    %v9987 = vunpack.c.h.b16 %v9894
    %v9988 = vunpack.c.l.b16 %v9895
    %v9989 = vunpack.c.h.b16 %v9895
    %v9990 = vunpack.c.l.b16 %v9896
    %v9991 = vunpack.c.h.b16 %v9896
    %v9992 = vunpack.c.l.b16 %v9897
    %v9993 = vunpack.c.h.b16 %v9897
    %v9994 = vunpack.c.l.b16 %v9898
    %v9995 = vunpack.c.h.b16 %v9898
    %v9996 = vunpack.c.l.b16 %v9899
    %v9997 = vunpack.c.h.b16 %v9899
    %v9998 = vunpack.c.l.b16 %v9900
    %v9999 = vunpack.c.h.b16 %v9900
    %v10000 = vunpack.c.l.b16 %v9901
    %v10001 = vunpack.c.h.b16 %v9901
    %v10002 = vunpack.c.l.b16 %v9902
    %v10003 = vunpack.c.h.b16 %v9902
    %v10004 = vunpack.c.l.b16 %v9903
    %v10005 = vunpack.c.h.b16 %v9903
    %v10006 = vunpack.c.l.b16 %v9904
    %v10007 = vunpack.c.h.b16 %v9904
    %v10008 = vunpack.c.l.b16 %v9905
    %v10009 = vunpack.c.h.b16 %v9905
    %v10010 = vunpack.c.l.b16 %v9906
    %v10011 = vunpack.c.h.b16 %v9906
    %v10012 = vunpack.c.l.b16 %v9907
    %v10013 = vunpack.c.h.b16 %v9907
    %v10014 = vunpack.c.l.b16 %v9908
    %v10015 = vunpack.c.h.b16 %v9908
    %v10016 = vunpack.c.l.b16 %v9909
    %v10017 = vunpack.c.h.b16 %v9909
    %v10018 = vpack.c.b16 %v9956, %v9954
    %v10019 = vpack.c.b16 %v9957, %v9955
    %v10020 = vpack.c.b16 %v9960, %v9958
    %v10021 = vpack.c.b16 %v9961, %v9959
    %v10022 = vpack.c.b16 %v9964, %v9962
    %v10023 = vpack.c.b16 %v9965, %v9963
    %v10024 = vpack.c.b16 %v9968, %v9966
    %v10025 = vpack.c.b16 %v9969, %v9967
    %v10026 = vpack.c.b16 %v9972, %v9970
    %v10027 = vpack.c.b16 %v9973, %v9971
    %v10028 = vpack.c.b16 %v9976, %v9974
    %v10029 = vpack.c.b16 %v9977, %v9975
    %v10030 = vpack.c.b16 %v9980, %v9978
    %v10031 = vpack.c.b16 %v9981, %v9979
    %v10032 = vpack.c.b16 %v9984, %v9982
    %v10033 = vpack.c.b16 %v9985, %v9983
    %v10034 = vpack.c.b16 %v9988, %v9986
    %v10035 = vpack.c.b16 %v9989, %v9987
    %v10036 = vpack.c.b16 %v9992, %v9990
    %v10037 = vpack.c.b16 %v9993, %v9991
    %v10038 = vpack.c.b16 %v9996, %v9994
    %v10039 = vpack.c.b16 %v9997, %v9995
    %v10040 = vpack.c.b16 %v10000, %v9998
    %v10041 = vpack.c.b16 %v10001, %v9999
    %v10042 = vpack.c.b16 %v10004, %v10002
    %v10043 = vpack.c.b16 %v10005, %v10003
    %v10044 = vpack.c.b16 %v10008, %v10006
    %v10045 = vpack.c.b16 %v10009, %v10007
    %v10046 = vpack.c.b16 %v10012, %v10010
    %v10047 = vpack.c.b16 %v10013, %v10011
    %v10048 = vpack.c.b16 %v10016, %v10014
    %v10049 = vpack.c.b16 %v10017, %v10015
    %10082 = vmatprep.subr.bf16.mxu0 %v10033
    %10083 = vmatpush1.bf16.msra.mxu0 %v10032
    %10084 = vmatprep.subr.bf16.mxu0 %v10031
    %10085 = vmatpush1.bf16.msra.mxu0 %v10030
    %10086 = vmatprep.subr.bf16.mxu0 %v10029
    %10087 = vmatpush1.bf16.msra.mxu0 %v10028
    %10088 = vmatprep.subr.bf16.mxu0 %v10027
    %10089 = vmatpush1.bf16.msra.mxu0 %v10026
    %10090 = vmatprep.subr.bf16.mxu0 %v10025
    %10091 = vmatpush1.bf16.msra.mxu0 %v10024
    %10092 = vmatprep.subr.bf16.mxu0 %v10023
    %10093 = vmatpush1.bf16.msra.mxu0 %v10022
    %10094 = vmatprep.subr.bf16.mxu0 %v10021
    %10095 = vmatpush1.bf16.msra.mxu0 %v10020
    %10096 = vmatprep.subr.bf16.mxu0 %v10019
    %10097 = vmatpush1.bf16.msra.mxu0 %v10018
    %10098 = vmatprep.subr.bf16.mxu0 %v10049
    %10099 = vmatpush2.bf16.msra.mxu0 %v10048
    %10100 = vmatprep.subr.bf16.mxu0 %v10047
    %10101 = vmatpush2.bf16.msra.mxu0 %v10046
    %10102 = vmatprep.subr.bf16.mxu0 %v10045
    %10103 = vmatpush2.bf16.msra.mxu0 %v10044
    %10104 = vmatprep.subr.bf16.mxu0 %v10043
    %10105 = vmatpush2.bf16.msra.mxu0 %v10042
    %10106 = vmatprep.subr.bf16.mxu0 %v10041
    %10107 = vmatpush2.bf16.msra.mxu0 %v10040
    %10108 = vmatprep.subr.bf16.mxu0 %v10039
    %10109 = vmatpush2.bf16.msra.mxu0 %v10038
    %10110 = vmatprep.subr.bf16.mxu0 %v10037
    %10111 = vmatpush2.bf16.msra.mxu0 %v10036
    %10112 = vmatprep.subr.bf16.mxu0 %v10035
    %10113 = vmatpush2.bf16.msra.mxu0 %v10034
    %10114 = vmatprep.mubr.bf16.mxu0 %v9877
    %10115 = vmatmul.mubr.bf16.gmra.mxu0 %v9876
    %v10116 = vpop.f32.mrf.mxu0
    %v10117 = vadd.f32 %v9915, %v10116
    %v10118 = vpop.f32.mrf.mxu0
    %v10119 = vadd.f32 %v9919, %v10118
    %v10120 = vpop.f32.mrf.mxu0
    %v10121 = vadd.f32 %v9915, %v10120
    %v10122 = vpop.f32.mrf.mxu0
    %v10123 = vadd.f32 %v9919, %v10122
    %10124 = vdwg.mxu0
    %v10125 = vmax.f32 %v10117, 0.0
    %v10126 = vmax.f32 %v10119, 0.0
    %v10127 = vmax.f32 %v10121, 0.0
    %v10128 = vmax.f32 %v10123, 0.0
    %v10129 = vpack.c.bf16 %v10127, %v10125
    %v10130 = vpack.c.bf16 %v10128, %v10126
    %v10131 = vld [vmem:[#allocation28] sm:$0xff]
    %v10132 = vld [vmem:[#allocation28 + $0x8] sm:$0xff]
    %v10133 = vld [vmem:[#allocation28 + $0x10] sm:$0xff]
    %v10134 = vld [vmem:[#allocation28 + $0x18] sm:$0xff]
    %v10135 = vld [vmem:[#allocation28 + $0x20] sm:$0xff]
    %v10136 = vld [vmem:[#allocation28 + $0x28] sm:$0xff]
    %v10137 = vld [vmem:[#allocation28 + $0x30] sm:$0xff]
    %v10138 = vld [vmem:[#allocation28 + $0x38] sm:$0xff]
    %v10139 = vld [vmem:[#allocation28 + $0x40] sm:$0xff]
    %v10140 = vld [vmem:[#allocation28 + $0x48] sm:$0xff]
    %v10141 = vld [vmem:[#allocation28 + $0x50] sm:$0xff]
    %v10142 = vld [vmem:[#allocation28 + $0x58] sm:$0xff]
    %v10143 = vld [vmem:[#allocation28 + $0x60] sm:$0xff]
    %v10144 = vld [vmem:[#allocation28 + $0x68] sm:$0xff]
    %v10145 = vld [vmem:[#allocation28 + $0x70] sm:$0xff]
    %v10146 = vld [vmem:[#allocation28 + $0x78] sm:$0xff]
    %v10147 = vld [vmem:[#allocation28 + $0x80] sm:$0xff]
    %v10148 = vld [vmem:[#allocation28 + $0x88] sm:$0xff]
    %v10149 = vld [vmem:[#allocation28 + $0x90] sm:$0xff]
    %v10150 = vld [vmem:[#allocation28 + $0x98] sm:$0xff]
    %v10151 = vld [vmem:[#allocation28 + $0xa0] sm:$0xff]
    %v10152 = vld [vmem:[#allocation28 + $0xa8] sm:$0xff]
    %v10153 = vld [vmem:[#allocation28 + $0xb0] sm:$0xff]
    %v10154 = vld [vmem:[#allocation28 + $0xb8] sm:$0xff]
    %v10155 = vld [vmem:[#allocation28 + $0xc0] sm:$0xff]
    %v10156 = vld [vmem:[#allocation28 + $0xc8] sm:$0xff]
    %v10157 = vld [vmem:[#allocation28 + $0xd0] sm:$0xff]
    %v10158 = vld [vmem:[#allocation28 + $0xd8] sm:$0xff]
    %v10159 = vld [vmem:[#allocation28 + $0xe0] sm:$0xff]
    %v10160 = vld [vmem:[#allocation28 + $0xe8] sm:$0xff]
    %v10161 = vld [vmem:[#allocation28 + $0xf0] sm:$0xff]
    %v10162 = vld [vmem:[#allocation28 + $0xf8] sm:$0xff]
    %v10163 = vld [vmem:[#allocation29] sm:$0x3]
    %v10165 = vlaneseq
    %v10166 = vshrl.u32 %v10165, 7
    %v10167 = vsub.s32 0, %v10166
    %v10168 = vrot.slane %v10163, %v10167
    %v10169 = vlaneseq
    %v10170 = vshrl.u32 %v10169, 7
    %v10171 = vsub.s32 1, %v10170
    %v10172 = vrot.slane %v10163, %v10171
    %v10207 = vunpack.c.l.b16 %v10131
    %v10208 = vunpack.c.h.b16 %v10131
    %v10209 = vunpack.c.l.b16 %v10132
    %v10210 = vunpack.c.h.b16 %v10132
    %v10211 = vunpack.c.l.b16 %v10133
    %v10212 = vunpack.c.h.b16 %v10133
    %v10213 = vunpack.c.l.b16 %v10134
    %v10214 = vunpack.c.h.b16 %v10134
    %v10215 = vunpack.c.l.b16 %v10135
    %v10216 = vunpack.c.h.b16 %v10135
    %v10217 = vunpack.c.l.b16 %v10136
    %v10218 = vunpack.c.h.b16 %v10136
    %v10219 = vunpack.c.l.b16 %v10137
    %v10220 = vunpack.c.h.b16 %v10137
    %v10221 = vunpack.c.l.b16 %v10138
    %v10222 = vunpack.c.h.b16 %v10138
    %v10223 = vunpack.c.l.b16 %v10139
    %v10224 = vunpack.c.h.b16 %v10139
    %v10225 = vunpack.c.l.b16 %v10140
    %v10226 = vunpack.c.h.b16 %v10140
    %v10227 = vunpack.c.l.b16 %v10141
    %v10228 = vunpack.c.h.b16 %v10141
    %v10229 = vunpack.c.l.b16 %v10142
    %v10230 = vunpack.c.h.b16 %v10142
    %v10231 = vunpack.c.l.b16 %v10143
    %v10232 = vunpack.c.h.b16 %v10143
    %v10233 = vunpack.c.l.b16 %v10144
    %v10234 = vunpack.c.h.b16 %v10144
    %v10235 = vunpack.c.l.b16 %v10145
    %v10236 = vunpack.c.h.b16 %v10145
    %v10237 = vunpack.c.l.b16 %v10146
    %v10238 = vunpack.c.h.b16 %v10146
    %v10239 = vunpack.c.l.b16 %v10147
    %v10240 = vunpack.c.h.b16 %v10147
    %v10241 = vunpack.c.l.b16 %v10148
    %v10242 = vunpack.c.h.b16 %v10148
    %v10243 = vunpack.c.l.b16 %v10149
    %v10244 = vunpack.c.h.b16 %v10149
    %v10245 = vunpack.c.l.b16 %v10150
    %v10246 = vunpack.c.h.b16 %v10150
    %v10247 = vunpack.c.l.b16 %v10151
    %v10248 = vunpack.c.h.b16 %v10151
    %v10249 = vunpack.c.l.b16 %v10152
    %v10250 = vunpack.c.h.b16 %v10152
    %v10251 = vunpack.c.l.b16 %v10153
    %v10252 = vunpack.c.h.b16 %v10153
    %v10253 = vunpack.c.l.b16 %v10154
    %v10254 = vunpack.c.h.b16 %v10154
    %v10255 = vunpack.c.l.b16 %v10155
    %v10256 = vunpack.c.h.b16 %v10155
    %v10257 = vunpack.c.l.b16 %v10156
    %v10258 = vunpack.c.h.b16 %v10156
    %v10259 = vunpack.c.l.b16 %v10157
    %v10260 = vunpack.c.h.b16 %v10157
    %v10261 = vunpack.c.l.b16 %v10158
    %v10262 = vunpack.c.h.b16 %v10158
    %v10263 = vunpack.c.l.b16 %v10159
    %v10264 = vunpack.c.h.b16 %v10159
    %v10265 = vunpack.c.l.b16 %v10160
    %v10266 = vunpack.c.h.b16 %v10160
    %v10267 = vunpack.c.l.b16 %v10161
    %v10268 = vunpack.c.h.b16 %v10161
    %v10269 = vunpack.c.l.b16 %v10162
    %v10270 = vunpack.c.h.b16 %v10162
    %v10271 = vpack.c.b16 %v10209, %v10207
    %v10272 = vpack.c.b16 %v10210, %v10208
    %v10273 = vpack.c.b16 %v10213, %v10211
    %v10274 = vpack.c.b16 %v10214, %v10212
    %v10275 = vpack.c.b16 %v10217, %v10215
    %v10276 = vpack.c.b16 %v10218, %v10216
    %v10277 = vpack.c.b16 %v10221, %v10219
    %v10278 = vpack.c.b16 %v10222, %v10220
    %v10279 = vpack.c.b16 %v10225, %v10223
    %v10280 = vpack.c.b16 %v10226, %v10224
    %v10281 = vpack.c.b16 %v10229, %v10227
    %v10282 = vpack.c.b16 %v10230, %v10228
    %v10283 = vpack.c.b16 %v10233, %v10231
    %v10284 = vpack.c.b16 %v10234, %v10232
    %v10285 = vpack.c.b16 %v10237, %v10235
    %v10286 = vpack.c.b16 %v10238, %v10236
    %v10287 = vpack.c.b16 %v10241, %v10239
    %v10288 = vpack.c.b16 %v10242, %v10240
    %v10289 = vpack.c.b16 %v10245, %v10243
    %v10290 = vpack.c.b16 %v10246, %v10244
    %v10291 = vpack.c.b16 %v10249, %v10247
    %v10292 = vpack.c.b16 %v10250, %v10248
    %v10293 = vpack.c.b16 %v10253, %v10251
    %v10294 = vpack.c.b16 %v10254, %v10252
    %v10295 = vpack.c.b16 %v10257, %v10255
    %v10296 = vpack.c.b16 %v10258, %v10256
    %v10297 = vpack.c.b16 %v10261, %v10259
    %v10298 = vpack.c.b16 %v10262, %v10260
    %v10299 = vpack.c.b16 %v10265, %v10263
    %v10300 = vpack.c.b16 %v10266, %v10264
    %v10301 = vpack.c.b16 %v10269, %v10267
    %v10302 = vpack.c.b16 %v10270, %v10268
    %10335 = vmatprep.subr.bf16.mxu0 %v10286
    %10336 = vmatpush1.bf16.msra.mxu0 %v10285
    %10337 = vmatprep.subr.bf16.mxu0 %v10284
    %10338 = vmatpush1.bf16.msra.mxu0 %v10283
    %10339 = vmatprep.subr.bf16.mxu0 %v10282
    %10340 = vmatpush1.bf16.msra.mxu0 %v10281
    %10341 = vmatprep.subr.bf16.mxu0 %v10280
    %10342 = vmatpush1.bf16.msra.mxu0 %v10279
    %10343 = vmatprep.subr.bf16.mxu0 %v10278
    %10344 = vmatpush1.bf16.msra.mxu0 %v10277
    %10345 = vmatprep.subr.bf16.mxu0 %v10276
    %10346 = vmatpush1.bf16.msra.mxu0 %v10275
    %10347 = vmatprep.subr.bf16.mxu0 %v10274
    %10348 = vmatpush1.bf16.msra.mxu0 %v10273
    %10349 = vmatprep.subr.bf16.mxu0 %v10272
    %10350 = vmatpush1.bf16.msra.mxu0 %v10271
    %10351 = vmatprep.subr.bf16.mxu0 %v10302
    %10352 = vmatpush2.bf16.msra.mxu0 %v10301
    %10353 = vmatprep.subr.bf16.mxu0 %v10300
    %10354 = vmatpush2.bf16.msra.mxu0 %v10299
    %10355 = vmatprep.subr.bf16.mxu0 %v10298
    %10356 = vmatpush2.bf16.msra.mxu0 %v10297
    %10357 = vmatprep.subr.bf16.mxu0 %v10296
    %10358 = vmatpush2.bf16.msra.mxu0 %v10295
    %10359 = vmatprep.subr.bf16.mxu0 %v10294
    %10360 = vmatpush2.bf16.msra.mxu0 %v10293
    %10361 = vmatprep.subr.bf16.mxu0 %v10292
    %10362 = vmatpush2.bf16.msra.mxu0 %v10291
    %10363 = vmatprep.subr.bf16.mxu0 %v10290
    %10364 = vmatpush2.bf16.msra.mxu0 %v10289
    %10365 = vmatprep.subr.bf16.mxu0 %v10288
    %10366 = vmatpush2.bf16.msra.mxu0 %v10287
    %10367 = vmatprep.mubr.bf16.mxu0 %v10130
    %10368 = vmatmul.mubr.bf16.gmra.mxu0 %v10129
    %v10369 = vpop.f32.mrf.mxu0
    %v10370 = vadd.f32 %v10168, %v10369
    %v10371 = vpop.f32.mrf.mxu0
    %v10372 = vadd.f32 %v10172, %v10371
    %v10373 = vpop.f32.mrf.mxu0
    %v10374 = vadd.f32 %v10168, %v10373
    %v10375 = vpop.f32.mrf.mxu0
    %v10376 = vadd.f32 %v10172, %v10375
    %10377 = vdwg.mxu0
    %v10378 = vadd.f32 %v9808, %v10370
    %v10379 = vadd.f32 %v9809, %v10372
    %v10380 = vadd.f32 %v9810, %v10374
    %v10381 = vadd.f32 %v9811, %v10376
    %v10382 = vld [vmem:[%s4] sm:$0xff]
    %v10383 = vld [vmem:[%s4 + $0x8] sm:$0xff]
    %10385 = vset.pattern.permute.xlu0 0
    %10386 = vperm.xlu0 %10385, %v10382
    %v10387 = vpop.permute.xlu0 %10386
    %10390 = vset.pattern.permute.xlu0 0
    %10391 = vperm.xlu0 %10390, %v10383
    %v10392 = vpop.permute.xlu0 %10391
    %v10394 = vmul.f32 %v10378, %v10387
    %v10395 = vmul.f32 %v10379, %v10387
    %v10396 = vmul.f32 %v10380, %v10392
    %v10397 = vmul.f32 %v10381, %v10392
    %v10398 = vrot.slane %v10394, 4
    %v10399 = vadd.f32 %v10394, %v10398
    %v10400 = vrot.slane %v10399, 2
    %v10401 = vadd.f32 %v10399, %v10400
    %v10402 = vrot.slane %v10401, 1
    %v10403 = vadd.f32 %v10401, %v10402
    %v10404 = vrot.slane %v10395, 4
    %v10405 = vadd.f32 %v10395, %v10404
    %v10406 = vrot.slane %v10405, 2
    %v10407 = vadd.f32 %v10405, %v10406
    %v10408 = vrot.slane %v10407, 1
    %v10409 = vadd.f32 %v10407, %v10408
    %v10412 = vcombine.low %v10403, %v10409
    %v10414 = vunpack.c.l.s4 1966171168
    %v10415 = vunpack.c.0.s8 %v10414
    %v10416 = vlaneseq
    %v10417 = vshrl.u32 %v10416, 7
    %v10418 = vsub.s32 %v10415, %v10417
    %v10419 = vrot.slane %v10412, %v10418
    %v10421 = vunpack.c.l.s4 1966171168
    %v10422 = vunpack.c.0.s8 %v10421
    %v10423 = vlaneseq
    %v10424 = vshrl.u32 %v10423, 7
    %v10425 = vsub.s32 %v10422, %v10424
    %v10426 = vrot.slane %v10419, %v10425
    %v10428 = vlaneseq
    %vm10429 = vcmp.ge.s32.totalorder %v10428, 0
    %vm10430 = vcmp.lt.s32.totalorder %v10428, 256
    %vm10431 = vmand %vm10429, %vm10430
    %10432 = vst.msk [vmem:[%s23] sm:$0x3] %vm10431, %v10426
    %v10433 = vrot.slane %v10396, 4
    %v10434 = vadd.f32 %v10396, %v10433
    %v10435 = vrot.slane %v10434, 2
    %v10436 = vadd.f32 %v10434, %v10435
    %v10437 = vrot.slane %v10436, 1
    %v10438 = vadd.f32 %v10436, %v10437
    %v10439 = vrot.slane %v10397, 4
    %v10440 = vadd.f32 %v10397, %v10439
    %v10441 = vrot.slane %v10440, 2
    %v10442 = vadd.f32 %v10440, %v10441
    %v10443 = vrot.slane %v10442, 1
    %v10444 = vadd.f32 %v10442, %v10443
    %v10447 = vcombine.low %v10438, %v10444
    %v10449 = vunpack.c.l.s4 1966171168
    %v10450 = vunpack.c.0.s8 %v10449
    %v10451 = vlaneseq
    %v10452 = vshrl.u32 %v10451, 7
    %v10453 = vsub.s32 %v10450, %v10452
    %v10454 = vrot.slane %v10447, %v10453
    %v10456 = vunpack.c.l.s4 1966171168
    %v10457 = vunpack.c.0.s8 %v10456
    %v10458 = vlaneseq
    %v10459 = vshrl.u32 %v10458, 7
    %v10460 = vsub.s32 %v10457, %v10459
    %v10461 = vrot.slane %v10454, %v10460
    %s10463 = scalar_lea.vmem %s23, 2
    %10464 = vst.msk [vmem:[%s10463] sm:$0x3] %vm10431, %v10461
    // Predicated region
    $region166: #{image_encoder_forward.1} parent=1 // pred_check
      _
    $region167: #{image_encoder_forward.1} parent=1 // pred_check_branch
      %10466 = sbr.rel (0) target = $region169
    $region168: #{image_encoder_forward.1} parent=1 // pred_region
      _
    $region169: #{image_encoder_forward.1} parent=1 // pred_fallthru
      _
    // Predicated region
    $region170: #{image_encoder_forward.1} parent=1 // pred_check
      _
    $region171: #{image_encoder_forward.1} parent=1 // pred_check_branch
      %10468 = sbr.rel (0) target = $region173
    $region172: #{image_encoder_forward.1} parent=1 // pred_region
      _
    $region173: #{image_encoder_forward.1} parent=1 // pred_fallthru
      _
    %10469 = vsyncpa [#allocation4], 1
    %10470 = vsyncpa [#allocation6], 1
    %10471 = vsyncpa [#allocation9], 1
    %10472 = vsyncpa [#allocation12], 1
    %10473 = vsyncpa [#allocation15], 1
    %10474 = vsyncpa [#allocation18], 1
    %10475 = vsyncpa [#allocation21], 1
    %10476 = vsyncpa [#allocation24], 1
    %10477 = vsyncpa [#allocation27], 1
    %10478 = vsyncpa [#allocation30], 1

</llo_original>
